<compile_context>
chip_gen: v6e
topology: v6e:2x2x1
jax: 0.10.0
libtpu: 0.0.40
codegen_flags: <defaults>
</compile_context>

<pallas_src>
import jax
import jax.numpy as jnp
from jax import lax
from jax.experimental import pallas as pl
from jax.experimental.pallas import tpu as pltpu

BN_EPS = 1e-5
VMEM_LIMIT = 32 * 1024 * 1024


def conv3x3_stats_kernel(xp_ref, w1_ref, conv_ref, stats_ref):
    # xp_ref   : (1, H+2, W+2, Cin)  bf16, spatially pre-padded (pad=1)
    # w1_ref   : (9, Cin, Cmid)      bf16, 3x3 taps flattened tap-major (kh*3+kw)
    # conv_ref : (1, H, W, Cmid)     f32, pre-BN conv output
    # stats_ref: (1, 2, Cmid)        f32, [sum, sum-of-squares] over this image
    _, Hp, Wp, Cin = xp_ref.shape
    H, W = Hp - 2, Wp - 2
    Cmid = w1_ref.shape[-1]

    acc = jnp.zeros((H * W, Cmid), jnp.float32)
    # Only 3 sublane(W)-shifted loads (one per kw) instead of 9 slice+reshape
    # materializations; the kh slices of the loaded slab are whole-tile selections.
    for kw in range(3):
        xs = xp_ref[:, :, kw:kw + W, :]                     # (1, H+2, W, Cin) bf16
        for kh in range(3):
            patch = xs[0, kh:kh + H].reshape(H * W, Cin)    # W=8 -> layout-cheap
            acc = acc + jnp.dot(patch, w1_ref[kh * 3 + kw],
                                preferred_element_type=jnp.float32)
    # NOTE: conv1 bias intentionally omitted -- exactly cancelled by the
    # training-mode BatchNorm mean subtraction.

    conv_ref[...] = acc.reshape(1, H, W, Cmid)
    stats = jnp.concatenate(
        [jnp.sum(acc, axis=0, keepdims=True),
         jnp.sum(acc * acc, axis=0, keepdims=True)], axis=0)        # (2, Cmid)
    stats_ref[...] = stats.reshape(1, 2, Cmid)


def bn_relu_conv1x1_kernel(conv_ref, scale_ref, shift_ref, w2_ref, b2_ref, o_ref):
    # conv_ref : (1, H, W, Cmid) f32
    # scale_ref, shift_ref : (1, Cmid) f32  -- folded BatchNorm scale / shift
    # w2_ref   : (Cmid, Cout) bf16
    # b2_ref   : (1, Cout) f32
    # o_ref    : (1, H, W, Cout) f32
    _, H, W, Cmid = conv_ref.shape
    Cout = w2_ref.shape[-1]

    y = conv_ref[...].reshape(H * W, Cmid)
    # BatchNorm + ReLU fused into a single per-channel FMA + max.
    y = jnp.maximum(y * scale_ref[...] + shift_ref[...], 0.0)
    z = jnp.dot(y.astype(jnp.bfloat16), w2_ref[...],
                preferred_element_type=jnp.float32) + b2_ref[...]
    o_ref[...] = z.reshape(1, H, W, Cout).astype(o_ref.dtype)


@jax.jit
def dimension_adapter(x_nchw, params):
    """x_nchw: (N, Cin, H, W) float32. Returns (N, Cout, H, W) float32."""
    w1, b1, gamma, beta, w2, b2 = params   # b1 unused: cancelled by training-mode BN
    N, Cin, H, W = x_nchw.shape
    Cmid = w1.shape[-1]
    Cout = w2.shape[-1]

    # Layout plumbing: NCHW -> NHWC, spatial pad=1, bf16 matmul operands.
    x_nhwc = jnp.transpose(x_nchw, (0, 2, 3, 1))
    x_pad = jnp.pad(x_nhwc, ((0, 0), (1, 1), (1, 1), (0, 0))).astype(jnp.bfloat16)
    w1_b = w1.astype(jnp.bfloat16)
    w2_b = w2.astype(jnp.bfloat16)

    cparams = pltpu.CompilerParams(dimension_semantics=("parallel",),
                                   vmem_limit_bytes=VMEM_LIMIT)

    # ---- Pass 1: 3x3 conv + per-image BN statistics ----
    conv_out, stats = pl.pallas_call(
        conv3x3_stats_kernel,
        out_shape=(jax.ShapeDtypeStruct((N, H, W, Cmid), jnp.float32),
                   jax.ShapeDtypeStruct((N, 2, Cmid), jnp.float32)),
        grid=(N,),
        in_specs=[pl.BlockSpec((1, H + 2, W + 2, Cin), lambda n: (n, 0, 0, 0)),
                  pl.BlockSpec((9, Cin, Cmid), lambda n: (0, 0, 0))],
        out_specs=(pl.BlockSpec((1, H, W, Cmid), lambda n: (n, 0, 0, 0)),
                   pl.BlockSpec((1, 2, Cmid), lambda n: (n, 0, 0))),
        compiler_params=cparams,
    )(x_pad, w1_b)

    # ---- Fold training-mode BatchNorm into one per-channel scale/shift (tiny) ----
    # (one-pass variance: E[x^2] - mean^2; safe here, conv outputs are ~zero-mean)
    cnt = jnp.float32(N * H * W)
    mean = jnp.sum(stats[:, 0, :], axis=0) / cnt                     # (Cmid,)
    var = jnp.maximum(jnp.sum(stats[:, 1, :], axis=0) / cnt - mean * mean, 0.0)
    inv = lax.rsqrt(var + BN_EPS)
    scale = (gamma * inv).reshape(1, Cmid).astype(jnp.float32)
    shift = (beta - mean * gamma * inv).reshape(1, Cmid).astype(jnp.float32)

    # ---- Pass 2: fused BN scale/shift + ReLU + 1x1 conv ----
    out_nhwc = pl.pallas_call(
        bn_relu_conv1x1_kernel,
        out_shape=jax.ShapeDtypeStruct((N, H, W, Cout), jnp.float32),
        grid=(N,),
        in_specs=[pl.BlockSpec((1, H, W, Cmid), lambda n: (n, 0, 0, 0)),
                  pl.BlockSpec((1, Cmid), lambda n: (0, 0)),
                  pl.BlockSpec((1, Cmid), lambda n: (0, 0)),
                  pl.BlockSpec((Cmid, Cout), lambda n: (0, 0)),
                  pl.BlockSpec((1, Cout), lambda n: (0, 0))],
        out_specs=pl.BlockSpec((1, H, W, Cout), lambda n: (n, 0, 0, 0)),
        compiler_params=cparams,
    )(conv_out, scale, shift, w2_b, b2.reshape(1, Cout))

    # NHWC -> NCHW to match the PyTorch output convention.
    return jnp.transpose(out_nhwc, (0, 3, 1, 2))


def init_params(key, input_dim=512, mid_dim=384, output_dim=256):
    k1, k2, k3, k4 = jax.random.split(key, 4)
    w1 = jax.random.normal(k1, (9, input_dim, mid_dim), jnp.float32) * 0.02
    b1 = jax.random.normal(k2, (mid_dim,), jnp.float32) * 0.01  # cancelled by BN
    gamma = jnp.ones((mid_dim,), jnp.float32)    # BatchNorm2d default weight
    beta = jnp.zeros((mid_dim,), jnp.float32)    # BatchNorm2d default bias
    w2 = jax.random.normal(k3, (mid_dim, output_dim), jnp.float32) * 0.02
    b2 = jax.random.normal(k4, (output_dim,), jnp.float32) * 0.01
    return (w1, b1, gamma, beta, w2, b2)


def reference(x_nchw, params):
    """Pure-JAX (XLA convolution) reference, f32 everywhere, includes b1."""
    w1, b1, gamma, beta, w2, b2 = params
    Cin, Cmid = w1.shape[1], w1.shape[2]
    Cout = w2.shape[1]
    w1_oihw = jnp.transpose(w1.reshape(3, 3, Cin, Cmid), (3, 2, 0, 1))
    y = lax.conv_general_dilated(x_nchw, w1_oihw, (1, 1), ((1, 1), (1, 1)),
                                 dimension_numbers=("NCHW", "OIHW", "NCHW"))
    y = y + b1.reshape(1, Cmid, 1, 1)
    mean = jnp.mean(y, axis=(0, 2, 3), keepdims=True)
    var = jnp.mean((y - mean) ** 2, axis=(0, 2, 3), keepdims=True)
    y = (y - mean) * lax.rsqrt(var + BN_EPS) * gamma.reshape(1, Cmid, 1, 1) \
        + beta.reshape(1, Cmid, 1, 1)
    y = jnp.maximum(y, 0.0)
    w2_oihw = jnp.transpose(w2, (1, 0)).reshape(Cout, Cmid, 1, 1)
    z = lax.conv_general_dilated(y, w2_oihw, (1, 1), ((0, 0), (0, 0)),
                                 dimension_numbers=("NCHW", "OIHW", "NCHW"))
    return z + b2.reshape(1, Cout, 1, 1)


if __name__ == "__main__":
    key = jax.random.PRNGKey(0)
    kx, kp = jax.random.split(key)

    # Small spatial size, module's native channel dims (512 -> 384 -> 256).
    N, Cin, H, W = 2, 512, 8, 8
    x = jax.random.normal(kx, (N, Cin, H, W), jnp.float32)
    params = init_params(kp, input_dim=Cin, mid_dim=384, output_dim=256)

    out = jax.block_until_ready(dimension_adapter(x, params))
    ref = jax.block_until_ready(reference(x, params))

    assert out.shape == (N, 256, H, W)
    # bf16 MXU operands (with f32 accumulation) vs a pure-f32 reference ->
    # slightly looser tolerance than the f32-only version.
    assert jnp.allclose(out, ref, rtol=3e-2, atol=3e-2), "mismatch vs reference"

    print("KERNEL_OK")
</pallas_src>

<mosaic_0001>
module attributes {stable_mosaic.version = 11 : i64} {
  func.func @conv3x3_stats_kernel(%arg0: i32, %arg1: memref<1x10x10x512xbf16, #tpu.memory_space<vmem>>, %arg2: memref<9x512x384xbf16, #tpu.memory_space<vmem>>, %arg3: memref<1x8x8x384xf32, #tpu.memory_space<vmem>>, %arg4: memref<1x2x384xf32, #tpu.memory_space<vmem>>) attributes {dimension_semantics = [#tpu.dimension_semantics<parallel>], iteration_bounds = array<i64: 2>, scalar_prefetch = 0 : i64, scratch_operands = 0 : i64, tpu.core_type = #tpu.core_type<tc>, window_params = [{transform_indices = @transform_0, window_bounds = array<i64: 1, 10, 10, 512>}, {pipeline_mode = #tpu.pipeline_mode<synchronous>, transform_indices = @transform_1, window_bounds = array<i64: 9, 512, 384>}, {transform_indices = @transform_2, window_bounds = array<i64: 1, 8, 8, 384>}, {transform_indices = @transform_3, window_bounds = array<i64: 1, 2, 384>}]} {
    %cst = arith.constant 0.000000e+00 : f32
    %0 = vector.broadcast %cst : f32 to vector<64x384xf32>
    %c0 = arith.constant 0 : index
    %c0_0 = arith.constant 0 : index
    %c0_1 = arith.constant 0 : index
    %c0_2 = arith.constant 0 : index
    %1 = vector.load %arg1[%c0, %c0_0, %c0_1, %c0_2] : memref<1x10x10x512xbf16, #tpu.memory_space<vmem>>, vector<1x10x8x512xbf16>
    %2 = vector.extract_strided_slice %1 {offsets = [0, 0, 0, 0], sizes = [1, 8, 8, 512], strides = [1, 1, 1, 1]} : vector<1x10x8x512xbf16> to vector<1x8x8x512xbf16>
    %3 = vector.shape_cast %2 : vector<1x8x8x512xbf16> to vector<8x8x512xbf16>
    %4 = vector.shape_cast %3 : vector<8x8x512xbf16> to vector<64x512xbf16>
    %c0_3 = arith.constant 0 : index
    %c0_4 = arith.constant 0 : index
    %c0_5 = arith.constant 0 : index
    %5 = vector.load %arg2[%c0_3, %c0_4, %c0_5] : memref<9x512x384xbf16, #tpu.memory_space<vmem>>, vector<1x512x384xbf16>
    %6 = vector.shape_cast %5 : vector<1x512x384xbf16> to vector<512x384xbf16>
    %cst_6 = arith.constant dense<0.000000e+00> : vector<64x384xf32>
    %7 = tpu.matmul %4, %6, %cst_6 {dimension_numbers = #tpu.dot_dimension_numbers<[1], [0], [0], [1], [0, 0, 1, 1], [], []>} : vector<64x512xbf16>, vector<512x384xbf16>, vector<64x384xf32> -> vector<64x384xf32>
    %8 = arith.addf %0, %7 : vector<64x384xf32>
    %9 = vector.extract_strided_slice %1 {offsets = [0, 1, 0, 0], sizes = [1, 8, 8, 512], strides = [1, 1, 1, 1]} : vector<1x10x8x512xbf16> to vector<1x8x8x512xbf16>
    %10 = vector.shape_cast %9 : vector<1x8x8x512xbf16> to vector<8x8x512xbf16>
    %11 = vector.shape_cast %10 : vector<8x8x512xbf16> to vector<64x512xbf16>
    %c3 = arith.constant 3 : index
    %c0_7 = arith.constant 0 : index
    %c0_8 = arith.constant 0 : index
    %12 = vector.load %arg2[%c3, %c0_7, %c0_8] : memref<9x512x384xbf16, #tpu.memory_space<vmem>>, vector<1x512x384xbf16>
    %13 = vector.shape_cast %12 : vector<1x512x384xbf16> to vector<512x384xbf16>
    %cst_9 = arith.constant dense<0.000000e+00> : vector<64x384xf32>
    %14 = tpu.matmul %11, %13, %cst_9 {dimension_numbers = #tpu.dot_dimension_numbers<[1], [0], [0], [1], [0, 0, 1, 1], [], []>} : vector<64x512xbf16>, vector<512x384xbf16>, vector<64x384xf32> -> vector<64x384xf32>
    %15 = arith.addf %8, %14 : vector<64x384xf32>
    %16 = vector.extract_strided_slice %1 {offsets = [0, 2, 0, 0], sizes = [1, 8, 8, 512], strides = [1, 1, 1, 1]} : vector<1x10x8x512xbf16> to vector<1x8x8x512xbf16>
    %17 = vector.shape_cast %16 : vector<1x8x8x512xbf16> to vector<8x8x512xbf16>
    %18 = vector.shape_cast %17 : vector<8x8x512xbf16> to vector<64x512xbf16>
    %c6 = arith.constant 6 : index
    %c0_10 = arith.constant 0 : index
    %c0_11 = arith.constant 0 : index
    %19 = vector.load %arg2[%c6, %c0_10, %c0_11] : memref<9x512x384xbf16, #tpu.memory_space<vmem>>, vector<1x512x384xbf16>
    %20 = vector.shape_cast %19 : vector<1x512x384xbf16> to vector<512x384xbf16>
    %cst_12 = arith.constant dense<0.000000e+00> : vector<64x384xf32>
    %21 = tpu.matmul %18, %20, %cst_12 {dimension_numbers = #tpu.dot_dimension_numbers<[1], [0], [0], [1], [0, 0, 1, 1], [], []>} : vector<64x512xbf16>, vector<512x384xbf16>, vector<64x384xf32> -> vector<64x384xf32>
    %22 = arith.addf %15, %21 : vector<64x384xf32>
    %c0_13 = arith.constant 0 : index
    %c0_14 = arith.constant 0 : index
    %c1 = arith.constant 1 : index
    %c0_15 = arith.constant 0 : index
    %23 = vector.load %arg1[%c0_13, %c0_14, %c1, %c0_15] : memref<1x10x10x512xbf16, #tpu.memory_space<vmem>>, vector<1x10x8x512xbf16>
    %24 = vector.extract_strided_slice %23 {offsets = [0, 0, 0, 0], sizes = [1, 8, 8, 512], strides = [1, 1, 1, 1]} : vector<1x10x8x512xbf16> to vector<1x8x8x512xbf16>
    %25 = vector.shape_cast %24 : vector<1x8x8x512xbf16> to vector<8x8x512xbf16>
    %26 = vector.shape_cast %25 : vector<8x8x512xbf16> to vector<64x512xbf16>
    %c1_16 = arith.constant 1 : index
    %c0_17 = arith.constant 0 : index
    %c0_18 = arith.constant 0 : index
    %27 = vector.load %arg2[%c1_16, %c0_17, %c0_18] : memref<9x512x384xbf16, #tpu.memory_space<vmem>>, vector<1x512x384xbf16>
    %28 = vector.shape_cast %27 : vector<1x512x384xbf16> to vector<512x384xbf16>
    %cst_19 = arith.constant dense<0.000000e+00> : vector<64x384xf32>
    %29 = tpu.matmul %26, %28, %cst_19 {dimension_numbers = #tpu.dot_dimension_numbers<[1], [0], [0], [1], [0, 0, 1, 1], [], []>} : vector<64x512xbf16>, vector<512x384xbf16>, vector<64x384xf32> -> vector<64x384xf32>
    %30 = arith.addf %22, %29 : vector<64x384xf32>
    %31 = vector.extract_strided_slice %23 {offsets = [0, 1, 0, 0], sizes = [1, 8, 8, 512], strides = [1, 1, 1, 1]} : vector<1x10x8x512xbf16> to vector<1x8x8x512xbf16>
    %32 = vector.shape_cast %31 : vector<1x8x8x512xbf16> to vector<8x8x512xbf16>
    %33 = vector.shape_cast %32 : vector<8x8x512xbf16> to vector<64x512xbf16>
    %c4 = arith.constant 4 : index
    %c0_20 = arith.constant 0 : index
    %c0_21 = arith.constant 0 : index
    %34 = vector.load %arg2[%c4, %c0_20, %c0_21] : memref<9x512x384xbf16, #tpu.memory_space<vmem>>, vector<1x512x384xbf16>
    %35 = vector.shape_cast %34 : vector<1x512x384xbf16> to vector<512x384xbf16>
    %cst_22 = arith.constant dense<0.000000e+00> : vector<64x384xf32>
    %36 = tpu.matmul %33, %35, %cst_22 {dimension_numbers = #tpu.dot_dimension_numbers<[1], [0], [0], [1], [0, 0, 1, 1], [], []>} : vector<64x512xbf16>, vector<512x384xbf16>, vector<64x384xf32> -> vector<64x384xf32>
    %37 = arith.addf %30, %36 : vector<64x384xf32>
    %38 = vector.extract_strided_slice %23 {offsets = [0, 2, 0, 0], sizes = [1, 8, 8, 512], strides = [1, 1, 1, 1]} : vector<1x10x8x512xbf16> to vector<1x8x8x512xbf16>
    %39 = vector.shape_cast %38 : vector<1x8x8x512xbf16> to vector<8x8x512xbf16>
    %40 = vector.shape_cast %39 : vector<8x8x512xbf16> to vector<64x512xbf16>
    %c7 = arith.constant 7 : index
    %c0_23 = arith.constant 0 : index
    %c0_24 = arith.constant 0 : index
    %41 = vector.load %arg2[%c7, %c0_23, %c0_24] : memref<9x512x384xbf16, #tpu.memory_space<vmem>>, vector<1x512x384xbf16>
    %42 = vector.shape_cast %41 : vector<1x512x384xbf16> to vector<512x384xbf16>
    %cst_25 = arith.constant dense<0.000000e+00> : vector<64x384xf32>
    %43 = tpu.matmul %40, %42, %cst_25 {dimension_numbers = #tpu.dot_dimension_numbers<[1], [0], [0], [1], [0, 0, 1, 1], [], []>} : vector<64x512xbf16>, vector<512x384xbf16>, vector<64x384xf32> -> vector<64x384xf32>
    %44 = arith.addf %37, %43 : vector<64x384xf32>
    %c0_26 = arith.constant 0 : index
    %c0_27 = arith.constant 0 : index
    %c2 = arith.constant 2 : index
    %c0_28 = arith.constant 0 : index
    %45 = vector.load %arg1[%c0_26, %c0_27, %c2, %c0_28] : memref<1x10x10x512xbf16, #tpu.memory_space<vmem>>, vector<1x10x8x512xbf16>
    %46 = vector.extract_strided_slice %45 {offsets = [0, 0, 0, 0], sizes = [1, 8, 8, 512], strides = [1, 1, 1, 1]} : vector<1x10x8x512xbf16> to vector<1x8x8x512xbf16>
    %47 = vector.shape_cast %46 : vector<1x8x8x512xbf16> to vector<8x8x512xbf16>
    %48 = vector.shape_cast %47 : vector<8x8x512xbf16> to vector<64x512xbf16>
    %c2_29 = arith.constant 2 : index
    %c0_30 = arith.constant 0 : index
    %c0_31 = arith.constant 0 : index
    %49 = vector.load %arg2[%c2_29, %c0_30, %c0_31] : memref<9x512x384xbf16, #tpu.memory_space<vmem>>, vector<1x512x384xbf16>
    %50 = vector.shape_cast %49 : vector<1x512x384xbf16> to vector<512x384xbf16>
    %cst_32 = arith.constant dense<0.000000e+00> : vector<64x384xf32>
    %51 = tpu.matmul %48, %50, %cst_32 {dimension_numbers = #tpu.dot_dimension_numbers<[1], [0], [0], [1], [0, 0, 1, 1], [], []>} : vector<64x512xbf16>, vector<512x384xbf16>, vector<64x384xf32> -> vector<64x384xf32>
    %52 = arith.addf %44, %51 : vector<64x384xf32>
    %53 = vector.extract_strided_slice %45 {offsets = [0, 1, 0, 0], sizes = [1, 8, 8, 512], strides = [1, 1, 1, 1]} : vector<1x10x8x512xbf16> to vector<1x8x8x512xbf16>
    %54 = vector.shape_cast %53 : vector<1x8x8x512xbf16> to vector<8x8x512xbf16>
    %55 = vector.shape_cast %54 : vector<8x8x512xbf16> to vector<64x512xbf16>
    %c5 = arith.constant 5 : index
    %c0_33 = arith.constant 0 : index
    %c0_34 = arith.constant 0 : index
    %56 = vector.load %arg2[%c5, %c0_33, %c0_34] : memref<9x512x384xbf16, #tpu.memory_space<vmem>>, vector<1x512x384xbf16>
    %57 = vector.shape_cast %56 : vector<1x512x384xbf16> to vector<512x384xbf16>
    %cst_35 = arith.constant dense<0.000000e+00> : vector<64x384xf32>
    %58 = tpu.matmul %55, %57, %cst_35 {dimension_numbers = #tpu.dot_dimension_numbers<[1], [0], [0], [1], [0, 0, 1, 1], [], []>} : vector<64x512xbf16>, vector<512x384xbf16>, vector<64x384xf32> -> vector<64x384xf32>
    %59 = arith.addf %52, %58 : vector<64x384xf32>
    %60 = vector.extract_strided_slice %45 {offsets = [0, 2, 0, 0], sizes = [1, 8, 8, 512], strides = [1, 1, 1, 1]} : vector<1x10x8x512xbf16> to vector<1x8x8x512xbf16>
    %61 = vector.shape_cast %60 : vector<1x8x8x512xbf16> to vector<8x8x512xbf16>
    %62 = vector.shape_cast %61 : vector<8x8x512xbf16> to vector<64x512xbf16>
    %c8 = arith.constant 8 : index
    %c0_36 = arith.constant 0 : index
    %c0_37 = arith.constant 0 : index
    %63 = vector.load %arg2[%c8, %c0_36, %c0_37] : memref<9x512x384xbf16, #tpu.memory_space<vmem>>, vector<1x512x384xbf16>
    %64 = vector.shape_cast %63 : vector<1x512x384xbf16> to vector<512x384xbf16>
    %cst_38 = arith.constant dense<0.000000e+00> : vector<64x384xf32>
    %65 = tpu.matmul %62, %64, %cst_38 {dimension_numbers = #tpu.dot_dimension_numbers<[1], [0], [0], [1], [0, 0, 1, 1], [], []>} : vector<64x512xbf16>, vector<512x384xbf16>, vector<64x384xf32> -> vector<64x384xf32>
    %66 = arith.addf %59, %65 : vector<64x384xf32>
    %67 = vector.shape_cast %66 : vector<64x384xf32> to vector<1x8x8x384xf32>
    %c0_39 = arith.constant 0 : index
    %c0_40 = arith.constant 0 : index
    %c0_41 = arith.constant 0 : index
    %c0_42 = arith.constant 0 : index
    %68 = vector.load %arg3[%c0_39, %c0_40, %c0_41, %c0_42] : memref<1x8x8x384xf32, #tpu.memory_space<vmem>>, vector<1x8x8x384xf32>
    tpu.vector_store %arg3[%c0_39, %c0_40, %c0_41, %c0_42], %67 {strides = array<i32>} : memref<1x8x8x384xf32, #tpu.memory_space<vmem>>, vector<1x8x8x384xf32>,
    %cst_43 = arith.constant dense<0.000000e+00> : vector<384xf32>
    %69 = vector.multi_reduction <add>, %66, %cst_43 [0] : vector<64x384xf32> to vector<384xf32>
    %70 = vector.shape_cast %69 : vector<384xf32> to vector<1x384xf32>
    %71 = arith.mulf %66, %66 : vector<64x384xf32>
    %cst_44 = arith.constant dense<0.000000e+00> : vector<384xf32>
    %72 = vector.multi_reduction <add>, %71, %cst_44 [0] : vector<64x384xf32> to vector<384xf32>
    %73 = vector.shape_cast %72 : vector<384xf32> to vector<1x384xf32>
    %74 = tpu.concatenate %70, %73 in 0 : vector<1x384xf32>, vector<1x384xf32> -> vector<2x384xf32>
    %75 = vector.shape_cast %74 : vector<2x384xf32> to vector<1x2x384xf32>
    %c0_45 = arith.constant 0 : index
    %c0_46 = arith.constant 0 : index
    %c0_47 = arith.constant 0 : index
    %76 = vector.load %arg4[%c0_45, %c0_46, %c0_47] : memref<1x2x384xf32, #tpu.memory_space<vmem>>, vector<1x2x384xf32>
    tpu.vector_store %arg4[%c0_45, %c0_46, %c0_47], %75 {strides = array<i32>} : memref<1x2x384xf32, #tpu.memory_space<vmem>>, vector<1x2x384xf32>,
    return
  }
  func.func @transform_0(%arg0: i32) -> (i32, i32, i32, i32) {
    %c0_i32 = arith.constant 0 : i32
    %c0_i32_0 = arith.constant 0 : i32
    %c0_i32_1 = arith.constant 0 : i32
    %c0_i32_2 = arith.constant 0 : i32
    return %arg0, %c0_i32, %c0_i32_0, %c0_i32_1 : i32, i32, i32, i32
  }
  func.func @transform_1(%arg0: i32) -> (i32, i32, i32) {
    %c0_i32 = arith.constant 0 : i32
    %c0_i32_0 = arith.constant 0 : i32
    %c0_i32_1 = arith.constant 0 : i32
    %c0_i32_2 = arith.constant 0 : i32
    return %c0_i32, %c0_i32_0, %c0_i32_1 : i32, i32, i32
  }
  func.func @transform_2(%arg0: i32) -> (i32, i32, i32, i32) {
    %c0_i32 = arith.constant 0 : i32
    %c0_i32_0 = arith.constant 0 : i32
    %c0_i32_1 = arith.constant 0 : i32
    %c0_i32_2 = arith.constant 0 : i32
    return %arg0, %c0_i32, %c0_i32_0, %c0_i32_1 : i32, i32, i32, i32
  }
  func.func @transform_3(%arg0: i32) -> (i32, i32, i32) {
    %c0_i32 = arith.constant 0 : i32
    %c0_i32_0 = arith.constant 0 : i32
    %c0_i32_1 = arith.constant 0 : i32
    return %arg0, %c0_i32, %c0_i32_0 : i32, i32, i32
  }
}

module attributes {stable_mosaic.version = 11 : i64} {
  func.func @bn_relu_conv1x1_kernel(%arg0: i32, %arg1: memref<1x8x8x384xf32, #tpu.memory_space<vmem>>, %arg2: memref<1x384xf32, #tpu.memory_space<vmem>>, %arg3: memref<1x384xf32, #tpu.memory_space<vmem>>, %arg4: memref<384x256xbf16, #tpu.memory_space<vmem>>, %arg5: memref<1x256xf32, #tpu.memory_space<vmem>>, %arg6: memref<1x8x8x256xf32, #tpu.memory_space<vmem>>) attributes {dimension_semantics = [#tpu.dimension_semantics<parallel>], iteration_bounds = array<i64: 2>, scalar_prefetch = 0 : i64, scratch_operands = 0 : i64, tpu.core_type = #tpu.core_type<tc>, window_params = [{transform_indices = @transform_0, window_bounds = array<i64: 1, 8, 8, 384>}, {pipeline_mode = #tpu.pipeline_mode<synchronous>, transform_indices = @transform_1, window_bounds = array<i64: 1, 384>}, {pipeline_mode = #tpu.pipeline_mode<synchronous>, transform_indices = @transform_2, window_bounds = array<i64: 1, 384>}, {pipeline_mode = #tpu.pipeline_mode<synchronous>, transform_indices = @transform_3, window_bounds = array<i64: 384, 256>}, {pipeline_mode = #tpu.pipeline_mode<synchronous>, transform_indices = @transform_4, window_bounds = array<i64: 1, 256>}, {transform_indices = @transform_5, window_bounds = array<i64: 1, 8, 8, 256>}]} {
    %c0 = arith.constant 0 : index
    %c0_0 = arith.constant 0 : index
    %c0_1 = arith.constant 0 : index
    %c0_2 = arith.constant 0 : index
    %0 = vector.load %arg1[%c0, %c0_0, %c0_1, %c0_2] : memref<1x8x8x384xf32, #tpu.memory_space<vmem>>, vector<1x8x8x384xf32>
    %1 = vector.shape_cast %0 : vector<1x8x8x384xf32> to vector<64x384xf32>
    %c0_3 = arith.constant 0 : index
    %c0_4 = arith.constant 0 : index
    %2 = vector.load %arg2[%c0_3, %c0_4] : memref<1x384xf32, #tpu.memory_space<vmem>>, vector<1x384xf32>
    %3 = vector.broadcast %2 : vector<1x384xf32> to vector<64x384xf32>
    %4 = arith.mulf %1, %3 : vector<64x384xf32>
    %c0_5 = arith.constant 0 : index
    %c0_6 = arith.constant 0 : index
    %5 = vector.load %arg3[%c0_5, %c0_6] : memref<1x384xf32, #tpu.memory_space<vmem>>, vector<1x384xf32>
    %6 = vector.broadcast %5 : vector<1x384xf32> to vector<64x384xf32>
    %7 = arith.addf %4, %6 : vector<64x384xf32>
    %cst = arith.constant 0.000000e+00 : f32
    %8 = vector.broadcast %cst : f32 to vector<64x384xf32>
    %9 = arith.maximumf %7, %8 : vector<64x384xf32>
    %10 = arith.truncf %9 : vector<64x384xf32> to vector<64x384xbf16>
    %c0_7 = arith.constant 0 : index
    %c0_8 = arith.constant 0 : index
    %11 = vector.load %arg4[%c0_7, %c0_8] : memref<384x256xbf16, #tpu.memory_space<vmem>>, vector<384x256xbf16>
    %cst_9 = arith.constant dense<0.000000e+00> : vector<64x256xf32>
    %12 = tpu.matmul %10, %11, %cst_9 {dimension_numbers = #tpu.dot_dimension_numbers<[1], [0], [0], [1], [0, 0, 1, 1], [], []>} : vector<64x384xbf16>, vector<384x256xbf16>, vector<64x256xf32> -> vector<64x256xf32>
    %c0_10 = arith.constant 0 : index
    %c0_11 = arith.constant 0 : index
    %13 = vector.load %arg5[%c0_10, %c0_11] : memref<1x256xf32, #tpu.memory_space<vmem>>, vector<1x256xf32>
    %14 = vector.broadcast %13 : vector<1x256xf32> to vector<64x256xf32>
    %15 = arith.addf %12, %14 : vector<64x256xf32>
    %16 = vector.shape_cast %15 : vector<64x256xf32> to vector<1x8x8x256xf32>
    %c0_12 = arith.constant 0 : index
    %c0_13 = arith.constant 0 : index
    %c0_14 = arith.constant 0 : index
    %c0_15 = arith.constant 0 : index
    %17 = vector.load %arg6[%c0_12, %c0_13, %c0_14, %c0_15] : memref<1x8x8x256xf32, #tpu.memory_space<vmem>>, vector<1x8x8x256xf32>
    tpu.vector_store %arg6[%c0_12, %c0_13, %c0_14, %c0_15], %16 {strides = array<i32>} : memref<1x8x8x256xf32, #tpu.memory_space<vmem>>, vector<1x8x8x256xf32>,
    return
  }
  func.func @transform_0(%arg0: i32) -> (i32, i32, i32, i32) {
    %c0_i32 = arith.constant 0 : i32
    %c0_i32_0 = arith.constant 0 : i32
    %c0_i32_1 = arith.constant 0 : i32
    %c0_i32_2 = arith.constant 0 : i32
    return %arg0, %c0_i32, %c0_i32_0, %c0_i32_1 : i32, i32, i32, i32
  }
  func.func @transform_1(%arg0: i32) -> (i32, i32) {
    %c0_i32 = arith.constant 0 : i32
    %c0_i32_0 = arith.constant 0 : i32
    %c0_i32_1 = arith.constant 0 : i32
    return %c0_i32, %c0_i32_0 : i32, i32
  }
  func.func @transform_2(%arg0: i32) -> (i32, i32) {
    %c0_i32 = arith.constant 0 : i32
    %c0_i32_0 = arith.constant 0 : i32
    %c0_i32_1 = arith.constant 0 : i32
    return %c0_i32, %c0_i32_0 : i32, i32
  }
  func.func @transform_3(%arg0: i32) -> (i32, i32) {
    %c0_i32 = arith.constant 0 : i32
    %c0_i32_0 = arith.constant 0 : i32
    %c0_i32_1 = arith.constant 0 : i32
    return %c0_i32, %c0_i32_0 : i32, i32
  }
  func.func @transform_4(%arg0: i32) -> (i32, i32) {
    %c0_i32 = arith.constant 0 : i32
    %c0_i32_0 = arith.constant 0 : i32
    %c0_i32_1 = arith.constant 0 : i32
    return %c0_i32, %c0_i32_0 : i32, i32
  }
  func.func @transform_5(%arg0: i32) -> (i32, i32, i32, i32) {
    %c0_i32 = arith.constant 0 : i32
    %c0_i32_0 = arith.constant 0 : i32
    %c0_i32_1 = arith.constant 0 : i32
    %c0_i32_2 = arith.constant 0 : i32
    return %arg0, %c0_i32, %c0_i32_0, %c0_i32_1 : i32, i32, i32, i32
  }
}

</mosaic_0001>

<llo_original>
// kernel: dimension_adapter.3
$region0: #{dimension_adapter.3}
  #allocation0 [shape = 'u32[]', space=smem, size = 0x4, offset = 0x4, fixed_abs, tag = 'smem constant byte address 0x4 - core index']
  #allocation1 [shape = 'u32[144,128]{1,0:T(1,128)}', space=vmem, size = 0x12000, scoped, tag = 'internal scratch']
  %s0 = inlined_call_operand.vmem [shape: f32[2,8,8,384], index: 0, kind: input, shape index: {}]
  %s1 = inlined_call_operand.vmem [shape: f32[1,384], index: 1, kind: input, shape index: {}]
  %s2 = inlined_call_operand.vmem [shape: f32[1,384], index: 2, kind: input, shape index: {}]
  %s3 = inlined_call_operand.vmem [shape: bf16[384,256], index: 3, kind: input, shape index: {}]
  %s4 = inlined_call_operand.vmem [shape: f32[1,256], index: 4, kind: input, shape index: {}]
  %s5 = inlined_call_operand.hbm [shape: f32[2,8,8,256], index: 5, kind: output, shape index: {}]
  %s6 = sld [smem:[#allocation0]]
  $region53: #{dimension_adapter.3} parent=0
    _
  %s8 = ssub.s32 1, %s6
  %s9 = scalar_select 0, %s8, %s6
  $region1: #{dimension_adapter.3} parent=0
    #allocation2 [shape = 'u8[131072]{0}', space=vmem, size = 0x20000, scoped, tag = 'output window, operand 0']
    #allocation3 [shape = 's32[2]{0}', space=sflag, size = 0x8, scoped, tag = 'scoped memory for dimension_adapter.3']
    %10 = vsyncpa [#allocation3], 0
    %s11 = scalar_lea.sflag [#allocation3], 1
    %12 = vsyncpa %s11, 0
    loop: start=0, step=1, limit=4
    $region2: #{dimension_adapter.3} parent=1 // loop_pre_header
      _
    $region3: #{dimension_adapter.3} parent=1 // loop_header
      %s14 = sphi 0, %s18
      %p15 = scmp.ge.s32.totalorder %s14, 4
      %s24 = sphi 0, %s26
      %s27 = sphi 0, %s24
      %s28 = sphi 0, %s27
      %s44 = sphi 0, %s28
      %s48 = sphi 0, %s48
      %s50 = sphi 0, %s48
      %s51 = sphi 0, %s50
      %s65 = sphi 0, %s51
      %s69 = sphi 0, %s69
      %s71 = sphi 0, %s69
      %s72 = sphi 0, %s71
      %s86 = sphi 0, %s72
      %s90 = sphi 0, %s90
      %s92 = sphi 0, %s90
      %s93 = sphi 0, %s92
      %s107 = sphi 0, %s93
      %s111 = sphi 0, %s111
      %s113 = sphi 0, %s111
      %s114 = sphi 0, %s113
      %s128 = sphi 0, %s114
      %s134 = sphi 0, %s136
      %s137 = sphi 0, %s134
      %s138 = sphi 0, %s137
      %s154 = sphi 0, %s138
    $region4: #{dimension_adapter.3} parent=1 // loop_header_branch
      %17 = sbr.rel (%p15) target = $region8
    $region5: #{dimension_adapter.3} parent=1 // loop_body
      %s19 = ssub.s32 %s14, 1
      %s20 = ssub.s32 %s14, 2
      %s21 = sadd.s32 %s14, 1
      %s22 = ssub.s32 %s14, %s21
      %p23 = scmp.eq.s32.totalorder %s22, 0
      %s25 = sadd.s32 %s24, 1
      %s26 = scalar_select %p23, %s24, %s25
      %p29 = pneg %p23
      %p30 = scmp.eq.s32.totalorder %s14, 1
      %p31 = por %p29, %p30
      %p32 = scmp.ne.s32.totalorder %s24, %s27
      %p33 = scmp.eq.s32.totalorder %s14, 0
      %p34 = por %p32, %p33
      %p35 = scmp.ne.s32.totalorder %s24, %s27
      %p36 = scmp.eq.s32.totalorder %s19, 1
      %p37 = por %p35, %p36
      %p38 = scmp.ne.s32.totalorder %s27, %s28
      %p39 = scmp.eq.s32.totalorder %s19, 0
      %p40 = por %p38, %p39
      %p41 = scmp.ne.s32.totalorder %s27, %s28
      %p42 = scmp.eq.s32.totalorder %s20, 1
      %p43 = por %p41, %p42
      %p45 = scmp.ne.s32.totalorder %s28, %s44
      %p46 = scmp.eq.s32.totalorder %s20, 0
      %p47 = por %p45, %p46
      %s49 = sadd.s32 %s48, 1
      %p52 = scmp.eq.s32.totalorder %s14, 1
      %p53 = scmp.ne.s32.totalorder %s48, %s50
      %p54 = scmp.eq.s32.totalorder %s14, 0
      %p55 = por %p53, %p54
      %p56 = scmp.ne.s32.totalorder %s48, %s50
      %p57 = scmp.eq.s32.totalorder %s19, 1
      %p58 = por %p56, %p57
      %p59 = scmp.ne.s32.totalorder %s50, %s51
      %p60 = scmp.eq.s32.totalorder %s19, 0
      %p61 = por %p59, %p60
      %p62 = scmp.ne.s32.totalorder %s50, %s51
      %p63 = scmp.eq.s32.totalorder %s20, 1
      %p64 = por %p62, %p63
      %p66 = scmp.ne.s32.totalorder %s51, %s65
      %p67 = scmp.eq.s32.totalorder %s20, 0
      %p68 = por %p66, %p67
      %s70 = sadd.s32 %s69, 1
      %p73 = scmp.eq.s32.totalorder %s14, 1
      %p74 = scmp.ne.s32.totalorder %s69, %s71
      %p75 = scmp.eq.s32.totalorder %s14, 0
      %p76 = por %p74, %p75
      %p77 = scmp.ne.s32.totalorder %s69, %s71
      %p78 = scmp.eq.s32.totalorder %s19, 1
      %p79 = por %p77, %p78
      %p80 = scmp.ne.s32.totalorder %s71, %s72
      %p81 = scmp.eq.s32.totalorder %s19, 0
      %p82 = por %p80, %p81
      %p83 = scmp.ne.s32.totalorder %s71, %s72
      %p84 = scmp.eq.s32.totalorder %s20, 1
      %p85 = por %p83, %p84
      %p87 = scmp.ne.s32.totalorder %s72, %s86
      %p88 = scmp.eq.s32.totalorder %s20, 0
      %p89 = por %p87, %p88
      %s91 = sadd.s32 %s90, 1
      %p94 = scmp.eq.s32.totalorder %s14, 1
      %p95 = scmp.ne.s32.totalorder %s90, %s92
      %p96 = scmp.eq.s32.totalorder %s14, 0
      %p97 = por %p95, %p96
      %p98 = scmp.ne.s32.totalorder %s90, %s92
      %p99 = scmp.eq.s32.totalorder %s19, 1
      %p100 = por %p98, %p99
      %p101 = scmp.ne.s32.totalorder %s92, %s93
      %p102 = scmp.eq.s32.totalorder %s19, 0
      %p103 = por %p101, %p102
      %p104 = scmp.ne.s32.totalorder %s92, %s93
      %p105 = scmp.eq.s32.totalorder %s20, 1
      %p106 = por %p104, %p105
      %p108 = scmp.ne.s32.totalorder %s93, %s107
      %p109 = scmp.eq.s32.totalorder %s20, 0
      %p110 = por %p108, %p109
      %s112 = sadd.s32 %s111, 1
      %p115 = scmp.eq.s32.totalorder %s14, 1
      %p116 = scmp.ne.s32.totalorder %s111, %s113
      %p117 = scmp.eq.s32.totalorder %s14, 0
      %p118 = por %p116, %p117
      %p119 = scmp.ne.s32.totalorder %s111, %s113
      %p120 = scmp.eq.s32.totalorder %s19, 1
      %p121 = por %p119, %p120
      %p122 = scmp.ne.s32.totalorder %s113, %s114
      %p123 = scmp.eq.s32.totalorder %s19, 0
      %p124 = por %p122, %p123
      %p125 = scmp.ne.s32.totalorder %s113, %s114
      %p126 = scmp.eq.s32.totalorder %s20, 1
      %p127 = por %p125, %p126
      %p129 = scmp.ne.s32.totalorder %s114, %s128
      %p130 = scmp.eq.s32.totalorder %s20, 0
      %p131 = por %p129, %p130
      %s132 = ssub.s32 %s14, %s21
      %p133 = scmp.eq.s32.totalorder %s132, 0
      %s135 = sadd.s32 %s134, 1
      %s136 = scalar_select %p133, %s134, %s135
      %p139 = pneg %p133
      %p140 = scmp.eq.s32.totalorder %s14, 1
      %p141 = por %p139, %p140
      %p142 = scmp.ne.s32.totalorder %s134, %s137
      %p143 = scmp.eq.s32.totalorder %s14, 0
      %p144 = por %p142, %p143
      %p145 = scmp.ne.s32.totalorder %s134, %s137
      %p146 = scmp.eq.s32.totalorder %s19, 1
      %p147 = por %p145, %p146
      %p148 = scmp.ne.s32.totalorder %s137, %s138
      %p149 = scmp.eq.s32.totalorder %s19, 0
      %p150 = por %p148, %p149
      %p151 = scmp.ne.s32.totalorder %s137, %s138
      %p152 = scmp.eq.s32.totalorder %s20, 1
      %p153 = por %p151, %p152
      %p155 = scmp.ne.s32.totalorder %s138, %s154
      %p156 = scmp.eq.s32.totalorder %s20, 0
      %p157 = por %p155, %p156
      %p158 = scmp.le.s32.totalorder 1, %s14
      %p159 = scmp.lt.s32.totalorder %s14, 3
      %p160 = pnand %p158, %p159
      %p161 = pneg %p160
      // Predicated region
      $region9: #{dimension_adapter.3} parent=5 // pred_check
        _
      $region10: #{dimension_adapter.3} parent=5 // pred_check_branch
        %163 = sbr.rel (%p160) target = $region12
      $region11: #{dimension_adapter.3} parent=5 // pred_region
        %s164 = ssub.s32 %s14, 1
        // Predicated region
        $region13: #{dimension_adapter.3} parent=11 // pred_check
          %p165 = pneg %p61
        $region14: #{dimension_adapter.3} parent=11 // pred_check_branch
          %167 = sbr.rel (%p165) target = $region16
        $region15: #{dimension_adapter.3} parent=11 // pred_region
          _
        $region16: #{dimension_adapter.3} parent=11 // pred_fallthru
          _
        // Predicated region
        $region17: #{dimension_adapter.3} parent=11 // pred_check
          %p168 = pneg %p82
        $region18: #{dimension_adapter.3} parent=11 // pred_check_branch
          %170 = sbr.rel (%p168) target = $region20
        $region19: #{dimension_adapter.3} parent=11 // pred_region
          _
        $region20: #{dimension_adapter.3} parent=11 // pred_fallthru
          _
        // Predicated region
        $region21: #{dimension_adapter.3} parent=11 // pred_check
          %p171 = pneg %p103
        $region22: #{dimension_adapter.3} parent=11 // pred_check_branch
          %173 = sbr.rel (%p171) target = $region24
        $region23: #{dimension_adapter.3} parent=11 // pred_region
          _
        $region24: #{dimension_adapter.3} parent=11 // pred_fallthru
          _
        // Predicated region
        $region25: #{dimension_adapter.3} parent=11 // pred_check
          %p174 = pneg %p124
        $region26: #{dimension_adapter.3} parent=11 // pred_check_branch
          %176 = sbr.rel (%p174) target = $region28
        $region27: #{dimension_adapter.3} parent=11 // pred_region
          _
        $region28: #{dimension_adapter.3} parent=11 // pred_fallthru
          _
      $region12: #{dimension_adapter.3} parent=5 // pred_fallthru
        _
      %p177 = scmp.lt.s32.totalorder %s14, 2
      // Predicated region
      $region29: #{dimension_adapter.3} parent=5 // pred_check
        %p178 = pneg %p177
      $region30: #{dimension_adapter.3} parent=5 // pred_check_branch
        %180 = sbr.rel (%p178) target = $region32
      $region31: #{dimension_adapter.3} parent=5 // pred_region
        // Predicated region
        $region33: #{dimension_adapter.3} parent=31 // pred_check
          %p181 = pneg %p34
        $region34: #{dimension_adapter.3} parent=31 // pred_check_branch
          %183 = sbr.rel (%p181) target = $region36
        $region35: #{dimension_adapter.3} parent=31 // pred_region
          %p184 = scmp.lt.s32.totalorder %s14, 1
          %s185 = scalar_select %p184, %s14, 1
          %s186 = smul.addr %s185, 24
          %s187 = smul.addr %s186, 8
          %s188 = scalar_lea.vmem %s0, %s187
        $region36: #{dimension_adapter.3} parent=31 // pred_fallthru
          _
      $region32: #{dimension_adapter.3} parent=5 // pred_fallthru
        _
      %p189 = scmp.le.s32.totalorder 1, %s14
      %p190 = scmp.lt.s32.totalorder %s14, 3
      %p191 = pnand %p189, %p190
      %p192 = pneg %p191
      // Predicated region
      $region37: #{dimension_adapter.3} parent=5 // pred_check
        _
      $region38: #{dimension_adapter.3} parent=5 // pred_check_branch
        %194 = sbr.rel (%p191) target = $region40
      $region39: #{dimension_adapter.3} parent=5 // pred_region
        %s195 = ssub.s32 %s14, 1
        %p196 = scmp.lt.s32.totalorder %s19, 1
        %s197 = scalar_select %p196, %s19, 1
        %s198 = smul.addr %s197, 24
        %s199 = smul.addr %s198, 8
        %s200 = scalar_lea.vmem %s0, %s199
        %p201 = pneg %p40
        %p202 = pneg %p37
        %p203 = pneg %p61
        %p204 = pneg %p58
        %p205 = pneg %p82
        %p206 = pneg %p79
        %p207 = pneg %p103
        %p208 = pneg %p100
        %p209 = pneg %p124
        %p210 = pneg %p121
        %p211 = pneg %p150
        %p212 = pneg %p147
        %s213 = sand.u32 %s137, 1
        %s214 = scalar_lea.sflag [#allocation3], %s213
        %s215 = sand.u32 %s137, 1
        %s216 = smul.addr %s215, 128
        %s217 = scalar_lea.vmem [#allocation2], %s216
        %p218 = scmp.lt.s32.totalorder %s19, 1
        %s219 = scalar_select %p218, %s19, 1
        %s220 = smul.addr %s219, 24
        %s221 = smul.addr %s220, 8
        %s222 = scalar_lea.vmem %s0, %s221
        %v224 = vld [vmem:[%s222] sm:$0xff]
        %v225 = vld [vmem:[%s222 + $0x8] sm:$0xff]
        %v226 = vld [vmem:[%s222 + $0x10] sm:$0xff]
        %v227 = vld [vmem:[%s222 + $0x18] sm:$0xff]
        %v228 = vld [vmem:[%s222 + $0x20] sm:$0xff]
        %v229 = vld [vmem:[%s222 + $0x28] sm:$0xff]
        %v230 = vld [vmem:[%s222 + $0x30] sm:$0xff]
        %v231 = vld [vmem:[%s222 + $0x38] sm:$0xff]
        %v232 = vld [vmem:[%s222 + $0x40] sm:$0xff]
        %v233 = vld [vmem:[%s222 + $0x48] sm:$0xff]
        %v234 = vld [vmem:[%s222 + $0x50] sm:$0xff]
        %v235 = vld [vmem:[%s222 + $0x58] sm:$0xff]
        %v236 = vld [vmem:[%s222 + $0x60] sm:$0xff]
        %v237 = vld [vmem:[%s222 + $0x68] sm:$0xff]
        %v238 = vld [vmem:[%s222 + $0x70] sm:$0xff]
        %v239 = vld [vmem:[%s222 + $0x78] sm:$0xff]
        %v240 = vld [vmem:[%s222 + $0x80] sm:$0xff]
        %v241 = vld [vmem:[%s222 + $0x88] sm:$0xff]
        %v242 = vld [vmem:[%s222 + $0x90] sm:$0xff]
        %v243 = vld [vmem:[%s222 + $0x98] sm:$0xff]
        %v244 = vld [vmem:[%s222 + $0xa0] sm:$0xff]
        %v245 = vld [vmem:[%s222 + $0xa8] sm:$0xff]
        %v246 = vld [vmem:[%s222 + $0xb0] sm:$0xff]
        %v247 = vld [vmem:[%s222 + $0xb8] sm:$0xff]
        %v248 = vld [vmem:[%s1] sm:$0x7]
        %v250 = vlaneseq
        %v251 = vshrl.u32 %v250, 7
        %v252 = vsub.s32 0, %v251
        %v253 = vrot.slane %v248, %v252
        %v254 = vlaneseq
        %v255 = vshrl.u32 %v254, 7
        %v256 = vsub.s32 1, %v255
        %v257 = vrot.slane %v248, %v256
        %v258 = vlaneseq
        %v259 = vshrl.u32 %v258, 7
        %v260 = vsub.s32 2, %v259
        %v261 = vrot.slane %v248, %v260
        %v265 = vmul.f32 %v224, %v253
        %v266 = vmul.f32 %v225, %v257
        %v267 = vmul.f32 %v226, %v261
        %v268 = vmul.f32 %v227, %v253
        %v269 = vmul.f32 %v228, %v257
        %v270 = vmul.f32 %v229, %v261
        %v271 = vmul.f32 %v230, %v253
        %v272 = vmul.f32 %v231, %v257
        %v273 = vmul.f32 %v232, %v261
        %v274 = vmul.f32 %v233, %v253
        %v275 = vmul.f32 %v234, %v257
        %v276 = vmul.f32 %v235, %v261
        %v277 = vmul.f32 %v236, %v253
        %v278 = vmul.f32 %v237, %v257
        %v279 = vmul.f32 %v238, %v261
        %v280 = vmul.f32 %v239, %v253
        %v281 = vmul.f32 %v240, %v257
        %v282 = vmul.f32 %v241, %v261
        %v283 = vmul.f32 %v242, %v253
        %v284 = vmul.f32 %v243, %v257
        %v285 = vmul.f32 %v244, %v261
        %v286 = vmul.f32 %v245, %v253
        %v287 = vmul.f32 %v246, %v257
        %v288 = vmul.f32 %v247, %v261
        %v289 = vld [vmem:[%s2] sm:$0x7]
        %v291 = vlaneseq
        %v292 = vshrl.u32 %v291, 7
        %v293 = vsub.s32 0, %v292
        %v294 = vrot.slane %v289, %v293
        %v295 = vlaneseq
        %v296 = vshrl.u32 %v295, 7
        %v297 = vsub.s32 1, %v296
        %v298 = vrot.slane %v289, %v297
        %v299 = vlaneseq
        %v300 = vshrl.u32 %v299, 7
        %v301 = vsub.s32 2, %v300
        %v302 = vrot.slane %v289, %v301
        %v306 = vadd.f32 %v265, %v294
        %v307 = vadd.f32 %v266, %v298
        %v308 = vadd.f32 %v267, %v302
        %v309 = vadd.f32 %v268, %v294
        %v310 = vadd.f32 %v269, %v298
        %v311 = vadd.f32 %v270, %v302
        %v312 = vadd.f32 %v271, %v294
        %v313 = vadd.f32 %v272, %v298
        %v314 = vadd.f32 %v273, %v302
        %v315 = vadd.f32 %v274, %v294
        %v316 = vadd.f32 %v275, %v298
        %v317 = vadd.f32 %v276, %v302
        %v318 = vadd.f32 %v277, %v294
        %v319 = vadd.f32 %v278, %v298
        %v320 = vadd.f32 %v279, %v302
        %v321 = vadd.f32 %v280, %v294
        %v322 = vadd.f32 %v281, %v298
        %v323 = vadd.f32 %v282, %v302
        %v324 = vadd.f32 %v283, %v294
        %v325 = vadd.f32 %v284, %v298
        %v326 = vadd.f32 %v285, %v302
        %v327 = vadd.f32 %v286, %v294
        %v328 = vadd.f32 %v287, %v298
        %v329 = vadd.f32 %v288, %v302
        %v330 = vmax.f32 %v306, 0.0
        %v331 = vmax.f32 %v307, 0.0
        %v332 = vmax.f32 %v308, 0.0
        %v333 = vmax.f32 %v309, 0.0
        %v334 = vmax.f32 %v310, 0.0
        %v335 = vmax.f32 %v311, 0.0
        %v336 = vmax.f32 %v312, 0.0
        %v337 = vmax.f32 %v313, 0.0
        %v338 = vmax.f32 %v314, 0.0
        %v339 = vmax.f32 %v315, 0.0
        %v340 = vmax.f32 %v316, 0.0
        %v341 = vmax.f32 %v317, 0.0
        %v342 = vmax.f32 %v318, 0.0
        %v343 = vmax.f32 %v319, 0.0
        %v344 = vmax.f32 %v320, 0.0
        %v345 = vmax.f32 %v321, 0.0
        %v346 = vmax.f32 %v322, 0.0
        %v347 = vmax.f32 %v323, 0.0
        %v348 = vmax.f32 %v324, 0.0
        %v349 = vmax.f32 %v325, 0.0
        %v350 = vmax.f32 %v326, 0.0
        %v351 = vmax.f32 %v327, 0.0
        %v352 = vmax.f32 %v328, 0.0
        %v353 = vmax.f32 %v329, 0.0
        %v354 = vpack.c.bf16 %v333, %v330
        %v355 = vpack.c.bf16 %v334, %v331
        %v356 = vpack.c.bf16 %v335, %v332
        %v357 = vpack.c.bf16 %v339, %v336
        %v358 = vpack.c.bf16 %v340, %v337
        %v359 = vpack.c.bf16 %v341, %v338
        %v360 = vpack.c.bf16 %v345, %v342
        %v361 = vpack.c.bf16 %v346, %v343
        %v362 = vpack.c.bf16 %v347, %v344
        %v363 = vpack.c.bf16 %v351, %v348
        %v364 = vpack.c.bf16 %v352, %v349
        %v365 = vpack.c.bf16 %v353, %v350
        %v366 = vld [vmem:[%s3] sm:$0xff]
        %v367 = vld [vmem:[%s3 + $0x8] sm:$0xff]
        %v368 = vld [vmem:[%s3 + $0x10] sm:$0xff]
        %v369 = vld [vmem:[%s3 + $0x18] sm:$0xff]
        %v370 = vld [vmem:[%s3 + $0x20] sm:$0xff]
        %v371 = vld [vmem:[%s3 + $0x28] sm:$0xff]
        %v372 = vld [vmem:[%s3 + $0x30] sm:$0xff]
        %v373 = vld [vmem:[%s3 + $0x38] sm:$0xff]
        %v374 = vld [vmem:[%s3 + $0x40] sm:$0xff]
        %v375 = vld [vmem:[%s3 + $0x48] sm:$0xff]
        %v376 = vld [vmem:[%s3 + $0x50] sm:$0xff]
        %v377 = vld [vmem:[%s3 + $0x58] sm:$0xff]
        %v378 = vld [vmem:[%s3 + $0x60] sm:$0xff]
        %v379 = vld [vmem:[%s3 + $0x68] sm:$0xff]
        %v380 = vld [vmem:[%s3 + $0x70] sm:$0xff]
        %v381 = vld [vmem:[%s3 + $0x78] sm:$0xff]
        %v382 = vld [vmem:[%s3 + $0x80] sm:$0xff]
        %v383 = vld [vmem:[%s3 + $0x88] sm:$0xff]
        %v384 = vld [vmem:[%s3 + $0x90] sm:$0xff]
        %v385 = vld [vmem:[%s3 + $0x98] sm:$0xff]
        %v386 = vld [vmem:[%s3 + $0xa0] sm:$0xff]
        %v387 = vld [vmem:[%s3 + $0xa8] sm:$0xff]
        %v388 = vld [vmem:[%s3 + $0xb0] sm:$0xff]
        %v389 = vld [vmem:[%s3 + $0xb8] sm:$0xff]
        %v390 = vld [vmem:[%s3 + $0xc0] sm:$0xff]
        %v391 = vld [vmem:[%s3 + $0xc8] sm:$0xff]
        %v392 = vld [vmem:[%s3 + $0xd0] sm:$0xff]
        %v393 = vld [vmem:[%s3 + $0xd8] sm:$0xff]
        %v394 = vld [vmem:[%s3 + $0xe0] sm:$0xff]
        %v395 = vld [vmem:[%s3 + $0xe8] sm:$0xff]
        %v396 = vld [vmem:[%s3 + $0xf0] sm:$0xff]
        %v397 = vld [vmem:[%s3 + $0xf8] sm:$0xff]
        %v398 = vld [vmem:[%s3 + $0x100] sm:$0xff]
        %v399 = vld [vmem:[%s3 + $0x108] sm:$0xff]
        %v400 = vld [vmem:[%s3 + $0x110] sm:$0xff]
        %v401 = vld [vmem:[%s3 + $0x118] sm:$0xff]
        %v402 = vld [vmem:[%s3 + $0x120] sm:$0xff]
        %v403 = vld [vmem:[%s3 + $0x128] sm:$0xff]
        %v404 = vld [vmem:[%s3 + $0x130] sm:$0xff]
        %v405 = vld [vmem:[%s3 + $0x138] sm:$0xff]
        %v406 = vld [vmem:[%s3 + $0x140] sm:$0xff]
        %v407 = vld [vmem:[%s3 + $0x148] sm:$0xff]
        %v408 = vld [vmem:[%s3 + $0x150] sm:$0xff]
        %v409 = vld [vmem:[%s3 + $0x158] sm:$0xff]
        %v410 = vld [vmem:[%s3 + $0x160] sm:$0xff]
        %v411 = vld [vmem:[%s3 + $0x168] sm:$0xff]
        %v412 = vld [vmem:[%s3 + $0x170] sm:$0xff]
        %v413 = vld [vmem:[%s3 + $0x178] sm:$0xff]
        %v414 = vld [vmem:[%s4] sm:$0x3]
        %v416 = vlaneseq
        %v417 = vshrl.u32 %v416, 7
        %v418 = vsub.s32 0, %v417
        %v419 = vrot.slane %v414, %v418
        %v420 = vlaneseq
        %v421 = vshrl.u32 %v420, 7
        %v422 = vsub.s32 1, %v421
        %v423 = vrot.slane %v414, %v422
        %v474 = vunpack.c.l.b16 %v366
        %v475 = vunpack.c.h.b16 %v366
        %v476 = vunpack.c.l.b16 %v367
        %v477 = vunpack.c.h.b16 %v367
        %v478 = vunpack.c.l.b16 %v368
        %v479 = vunpack.c.h.b16 %v368
        %v480 = vunpack.c.l.b16 %v369
        %v481 = vunpack.c.h.b16 %v369
        %v482 = vunpack.c.l.b16 %v370
        %v483 = vunpack.c.h.b16 %v370
        %v484 = vunpack.c.l.b16 %v371
        %v485 = vunpack.c.h.b16 %v371
        %v486 = vunpack.c.l.b16 %v372
        %v487 = vunpack.c.h.b16 %v372
        %v488 = vunpack.c.l.b16 %v373
        %v489 = vunpack.c.h.b16 %v373
        %v490 = vunpack.c.l.b16 %v374
        %v491 = vunpack.c.h.b16 %v374
        %v492 = vunpack.c.l.b16 %v375
        %v493 = vunpack.c.h.b16 %v375
        %v494 = vunpack.c.l.b16 %v376
        %v495 = vunpack.c.h.b16 %v376
        %v496 = vunpack.c.l.b16 %v377
        %v497 = vunpack.c.h.b16 %v377
        %v498 = vunpack.c.l.b16 %v378
        %v499 = vunpack.c.h.b16 %v378
        %v500 = vunpack.c.l.b16 %v379
        %v501 = vunpack.c.h.b16 %v379
        %v502 = vunpack.c.l.b16 %v380
        %v503 = vunpack.c.h.b16 %v380
        %v504 = vunpack.c.l.b16 %v381
        %v505 = vunpack.c.h.b16 %v381
        %v506 = vunpack.c.l.b16 %v382
        %v507 = vunpack.c.h.b16 %v382
        %v508 = vunpack.c.l.b16 %v383
        %v509 = vunpack.c.h.b16 %v383
        %v510 = vunpack.c.l.b16 %v384
        %v511 = vunpack.c.h.b16 %v384
        %v512 = vunpack.c.l.b16 %v385
        %v513 = vunpack.c.h.b16 %v385
        %v514 = vunpack.c.l.b16 %v386
        %v515 = vunpack.c.h.b16 %v386
        %v516 = vunpack.c.l.b16 %v387
        %v517 = vunpack.c.h.b16 %v387
        %v518 = vunpack.c.l.b16 %v388
        %v519 = vunpack.c.h.b16 %v388
        %v520 = vunpack.c.l.b16 %v389
        %v521 = vunpack.c.h.b16 %v389
        %v522 = vunpack.c.l.b16 %v390
        %v523 = vunpack.c.h.b16 %v390
        %v524 = vunpack.c.l.b16 %v391
        %v525 = vunpack.c.h.b16 %v391
        %v526 = vunpack.c.l.b16 %v392
        %v527 = vunpack.c.h.b16 %v392
        %v528 = vunpack.c.l.b16 %v393
        %v529 = vunpack.c.h.b16 %v393
        %v530 = vunpack.c.l.b16 %v394
        %v531 = vunpack.c.h.b16 %v394
        %v532 = vunpack.c.l.b16 %v395
        %v533 = vunpack.c.h.b16 %v395
        %v534 = vunpack.c.l.b16 %v396
        %v535 = vunpack.c.h.b16 %v396
        %v536 = vunpack.c.l.b16 %v397
        %v537 = vunpack.c.h.b16 %v397
        %v538 = vunpack.c.l.b16 %v398
        %v539 = vunpack.c.h.b16 %v398
        %v540 = vunpack.c.l.b16 %v399
        %v541 = vunpack.c.h.b16 %v399
        %v542 = vunpack.c.l.b16 %v400
        %v543 = vunpack.c.h.b16 %v400
        %v544 = vunpack.c.l.b16 %v401
        %v545 = vunpack.c.h.b16 %v401
        %v546 = vunpack.c.l.b16 %v402
        %v547 = vunpack.c.h.b16 %v402
        %v548 = vunpack.c.l.b16 %v403
        %v549 = vunpack.c.h.b16 %v403
        %v550 = vunpack.c.l.b16 %v404
        %v551 = vunpack.c.h.b16 %v404
        %v552 = vunpack.c.l.b16 %v405
        %v553 = vunpack.c.h.b16 %v405
        %v554 = vunpack.c.l.b16 %v406
        %v555 = vunpack.c.h.b16 %v406
        %v556 = vunpack.c.l.b16 %v407
        %v557 = vunpack.c.h.b16 %v407
        %v558 = vunpack.c.l.b16 %v408
        %v559 = vunpack.c.h.b16 %v408
        %v560 = vunpack.c.l.b16 %v409
        %v561 = vunpack.c.h.b16 %v409
        %v562 = vunpack.c.l.b16 %v410
        %v563 = vunpack.c.h.b16 %v410
        %v564 = vunpack.c.l.b16 %v411
        %v565 = vunpack.c.h.b16 %v411
        %v566 = vunpack.c.l.b16 %v412
        %v567 = vunpack.c.h.b16 %v412
        %v568 = vunpack.c.l.b16 %v413
        %v569 = vunpack.c.h.b16 %v413
        %v570 = vpack.c.b16 %v476, %v474
        %v571 = vpack.c.b16 %v477, %v475
        %v572 = vpack.c.b16 %v480, %v478
        %v573 = vpack.c.b16 %v481, %v479
        %v574 = vpack.c.b16 %v484, %v482
        %v575 = vpack.c.b16 %v485, %v483
        %v576 = vpack.c.b16 %v488, %v486
        %v577 = vpack.c.b16 %v489, %v487
        %v578 = vpack.c.b16 %v492, %v490
        %v579 = vpack.c.b16 %v493, %v491
        %v580 = vpack.c.b16 %v496, %v494
        %v581 = vpack.c.b16 %v497, %v495
        %v582 = vpack.c.b16 %v500, %v498
        %v583 = vpack.c.b16 %v501, %v499
        %v584 = vpack.c.b16 %v504, %v502
        %v585 = vpack.c.b16 %v505, %v503
        %v586 = vpack.c.b16 %v508, %v506
        %v587 = vpack.c.b16 %v509, %v507
        %v588 = vpack.c.b16 %v512, %v510
        %v589 = vpack.c.b16 %v513, %v511
        %v590 = vpack.c.b16 %v516, %v514
        %v591 = vpack.c.b16 %v517, %v515
        %v592 = vpack.c.b16 %v520, %v518
        %v593 = vpack.c.b16 %v521, %v519
        %v594 = vpack.c.b16 %v524, %v522
        %v595 = vpack.c.b16 %v525, %v523
        %v596 = vpack.c.b16 %v528, %v526
        %v597 = vpack.c.b16 %v529, %v527
        %v598 = vpack.c.b16 %v532, %v530
        %v599 = vpack.c.b16 %v533, %v531
        %v600 = vpack.c.b16 %v536, %v534
        %v601 = vpack.c.b16 %v537, %v535
        %v602 = vpack.c.b16 %v540, %v538
        %v603 = vpack.c.b16 %v541, %v539
        %v604 = vpack.c.b16 %v544, %v542
        %v605 = vpack.c.b16 %v545, %v543
        %v606 = vpack.c.b16 %v548, %v546
        %v607 = vpack.c.b16 %v549, %v547
        %v608 = vpack.c.b16 %v552, %v550
        %v609 = vpack.c.b16 %v553, %v551
        %v610 = vpack.c.b16 %v556, %v554
        %v611 = vpack.c.b16 %v557, %v555
        %v612 = vpack.c.b16 %v560, %v558
        %v613 = vpack.c.b16 %v561, %v559
        %v614 = vpack.c.b16 %v564, %v562
        %v615 = vpack.c.b16 %v565, %v563
        %v616 = vpack.c.b16 %v568, %v566
        %v617 = vpack.c.b16 %v569, %v567
        %666 = vmatprep.subr.bf16.mxu0 %v585
        %667 = vmatpush1.bf16.msra.mxu0 %v584
        %668 = vmatprep.subr.bf16.mxu0 %v583
        %669 = vmatpush1.bf16.msra.mxu0 %v582
        %670 = vmatprep.subr.bf16.mxu0 %v581
        %671 = vmatpush1.bf16.msra.mxu0 %v580
        %672 = vmatprep.subr.bf16.mxu0 %v579
        %673 = vmatpush1.bf16.msra.mxu0 %v578
        %674 = vmatprep.subr.bf16.mxu0 %v577
        %675 = vmatpush1.bf16.msra.mxu0 %v576
        %676 = vmatprep.subr.bf16.mxu0 %v575
        %677 = vmatpush1.bf16.msra.mxu0 %v574
        %678 = vmatprep.subr.bf16.mxu0 %v573
        %679 = vmatpush1.bf16.msra.mxu0 %v572
        %680 = vmatprep.subr.bf16.mxu0 %v571
        %681 = vmatpush1.bf16.msra.mxu0 %v570
        %682 = vmatprep.subr.bf16.mxu0 %v601
        %683 = vmatpush2.bf16.msra.mxu0 %v600
        %684 = vmatprep.subr.bf16.mxu0 %v599
        %685 = vmatpush2.bf16.msra.mxu0 %v598
        %686 = vmatprep.subr.bf16.mxu0 %v597
        %687 = vmatpush2.bf16.msra.mxu0 %v596
        %688 = vmatprep.subr.bf16.mxu0 %v595
        %689 = vmatpush2.bf16.msra.mxu0 %v594
        %690 = vmatprep.subr.bf16.mxu0 %v593
        %691 = vmatpush2.bf16.msra.mxu0 %v592
        %692 = vmatprep.subr.bf16.mxu0 %v591
        %693 = vmatpush2.bf16.msra.mxu0 %v590
        %694 = vmatprep.subr.bf16.mxu0 %v589
        %695 = vmatpush2.bf16.msra.mxu0 %v588
        %696 = vmatprep.subr.bf16.mxu0 %v587
        %697 = vmatpush2.bf16.msra.mxu0 %v586
        %698 = vmatprep.mubr.bf16.mxu0 %v355
        %699 = vmatmul.mubr.bf16.gmra.mxu0 %v354
        %v700 = vpop.f32.mrf.mxu0
        %v701 = vadd.f32 %v419, %v700
        %v702 = vpop.f32.mrf.mxu0
        %v703 = vadd.f32 %v423, %v702
        %v704 = vpop.f32.mrf.mxu0
        %v705 = vadd.f32 %v419, %v704
        %v706 = vpop.f32.mrf.mxu0
        %v707 = vadd.f32 %v423, %v706
        %708 = vmatprep.mubr.bf16.mxu0 %v358
        %709 = vmatmul.mubr.bf16.gmra.mxu0 %v357
        %v710 = vpop.f32.mrf.mxu0
        %v711 = vadd.f32 %v419, %v710
        %v712 = vpop.f32.mrf.mxu0
        %v713 = vadd.f32 %v423, %v712
        %v714 = vpop.f32.mrf.mxu0
        %v715 = vadd.f32 %v419, %v714
        %v716 = vpop.f32.mrf.mxu0
        %v717 = vadd.f32 %v423, %v716
        %718 = vmatprep.mubr.bf16.mxu0 %v361
        %719 = vmatmul.mubr.bf16.gmra.mxu0 %v360
        %v720 = vpop.f32.mrf.mxu0
        %v721 = vadd.f32 %v419, %v720
        %v722 = vpop.f32.mrf.mxu0
        %v723 = vadd.f32 %v423, %v722
        %v724 = vpop.f32.mrf.mxu0
        %v725 = vadd.f32 %v419, %v724
        %v726 = vpop.f32.mrf.mxu0
        %v727 = vadd.f32 %v423, %v726
        %728 = vmatprep.mubr.bf16.mxu0 %v364
        %729 = vmatmul.mubr.bf16.gmra.mxu0 %v363
        %v730 = vpop.f32.mrf.mxu0
        %v731 = vadd.f32 %v419, %v730
        %v732 = vpop.f32.mrf.mxu0
        %v733 = vadd.f32 %v423, %v732
        %v734 = vpop.f32.mrf.mxu0
        %v735 = vadd.f32 %v419, %v734
        %v736 = vpop.f32.mrf.mxu0
        %v737 = vadd.f32 %v423, %v736
        %738 = vdwg.mxu0
        %739 = vmatprep.subr.bf16.mxu0 %v617
        %740 = vmatpush1.bf16.msra.mxu0 %v616
        %741 = vmatprep.subr.bf16.mxu0 %v615
        %742 = vmatpush1.bf16.msra.mxu0 %v614
        %743 = vmatprep.subr.bf16.mxu0 %v613
        %744 = vmatpush1.bf16.msra.mxu0 %v612
        %745 = vmatprep.subr.bf16.mxu0 %v611
        %746 = vmatpush1.bf16.msra.mxu0 %v610
        %747 = vmatprep.subr.bf16.mxu0 %v609
        %748 = vmatpush1.bf16.msra.mxu0 %v608
        %749 = vmatprep.subr.bf16.mxu0 %v607
        %750 = vmatpush1.bf16.msra.mxu0 %v606
        %751 = vmatprep.subr.bf16.mxu0 %v605
        %752 = vmatpush1.bf16.msra.mxu0 %v604
        %753 = vmatprep.subr.bf16.mxu0 %v603
        %754 = vmatpush1.bf16.msra.mxu0 %v602
        %755 = vmatprep.subr.bf16.mxu0 0
        %756 = vmatpush2.bf16.msra.mxu0 0
        %757 = vmatprep.subr.bf16.mxu0 0
        %758 = vmatpush2.bf16.msra.mxu0 0
        %759 = vmatprep.subr.bf16.mxu0 0
        %760 = vmatpush2.bf16.msra.mxu0 0
        %761 = vmatprep.subr.bf16.mxu0 0
        %762 = vmatpush2.bf16.msra.mxu0 0
        %763 = vmatprep.subr.bf16.mxu0 0
        %764 = vmatpush2.bf16.msra.mxu0 0
        %765 = vmatprep.subr.bf16.mxu0 0
        %766 = vmatpush2.bf16.msra.mxu0 0
        %767 = vmatprep.subr.bf16.mxu0 0
        %768 = vmatpush2.bf16.msra.mxu0 0
        %769 = vmatprep.subr.bf16.mxu0 0
        %770 = vmatpush2.bf16.msra.mxu0 0
        %771 = vmatprep.mubr.bf16.mxu0 0
        %772 = vmatmul.mubr.bf16.gmra.mxu0 %v356
        %v773 = vpop.f32.mrf.mxu0
        %v774 = vadd.f32 %v701, %v773
        %v775 = vpop.f32.mrf.mxu0
        %v776 = vadd.f32 %v703, %v775
        %v777 = vpop.f32.mrf.mxu0
        %v778 = vadd.f32 %v705, %v777
        %v779 = vpop.f32.mrf.mxu0
        %v780 = vadd.f32 %v707, %v779
        %781 = vmatprep.mubr.bf16.mxu0 0
        %782 = vmatmul.mubr.bf16.gmra.mxu0 %v359
        %v783 = vpop.f32.mrf.mxu0
        %v784 = vadd.f32 %v711, %v783
        %v785 = vpop.f32.mrf.mxu0
        %v786 = vadd.f32 %v713, %v785
        %v787 = vpop.f32.mrf.mxu0
        %v788 = vadd.f32 %v715, %v787
        %v789 = vpop.f32.mrf.mxu0
        %v790 = vadd.f32 %v717, %v789
        %791 = vmatprep.mubr.bf16.mxu0 0
        %792 = vmatmul.mubr.bf16.gmra.mxu0 %v362
        %v793 = vpop.f32.mrf.mxu0
        %v794 = vadd.f32 %v721, %v793
        %v795 = vpop.f32.mrf.mxu0
        %v796 = vadd.f32 %v723, %v795
        %v797 = vpop.f32.mrf.mxu0
        %v798 = vadd.f32 %v725, %v797
        %v799 = vpop.f32.mrf.mxu0
        %v800 = vadd.f32 %v727, %v799
        %801 = vmatprep.mubr.bf16.mxu0 0
        %802 = vmatmul.mubr.bf16.gmra.mxu0 %v365
        %v803 = vpop.f32.mrf.mxu0
        %v804 = vadd.f32 %v731, %v803
        %v805 = vpop.f32.mrf.mxu0
        %v806 = vadd.f32 %v733, %v805
        %v807 = vpop.f32.mrf.mxu0
        %v808 = vadd.f32 %v735, %v807
        %v809 = vpop.f32.mrf.mxu0
        %v810 = vadd.f32 %v737, %v809
        %811 = vdwg.mxu0
        %812 = vst [vmem:[%s217] sm:$0xff] %v774
        %813 = vst [vmem:[%s217 + $0x8] sm:$0xff] %v776
        %814 = vst [vmem:[%s217 + $0x10] sm:$0xff] %v778
        %815 = vst [vmem:[%s217 + $0x18] sm:$0xff] %v780
        %816 = vst [vmem:[%s217 + $0x20] sm:$0xff] %v784
        %817 = vst [vmem:[%s217 + $0x28] sm:$0xff] %v786
        %818 = vst [vmem:[%s217 + $0x30] sm:$0xff] %v788
        %819 = vst [vmem:[%s217 + $0x38] sm:$0xff] %v790
        %820 = vst [vmem:[%s217 + $0x40] sm:$0xff] %v794
        %821 = vst [vmem:[%s217 + $0x48] sm:$0xff] %v796
        %822 = vst [vmem:[%s217 + $0x50] sm:$0xff] %v798
        %823 = vst [vmem:[%s217 + $0x58] sm:$0xff] %v800
        %824 = vst [vmem:[%s217 + $0x60] sm:$0xff] %v804
        %825 = vst [vmem:[%s217 + $0x68] sm:$0xff] %v806
        %826 = vst [vmem:[%s217 + $0x70] sm:$0xff] %v808
        %827 = vst [vmem:[%s217 + $0x78] sm:$0xff] %v810
        %s828 = sand.u32 %s137, 1
        %s829 = scalar_lea.sflag [#allocation3], %s828
        %s830 = sand.u32 %s137, 1
        %s831 = smul.addr %s830, 128
        %s832 = scalar_lea.vmem [#allocation2], %s831
        // Predicated region
        $region41: #{dimension_adapter.3} parent=39 // pred_check
          %p833 = pneg %p147
        $region42: #{dimension_adapter.3} parent=39 // pred_check_branch
          %835 = sbr.rel (%p833) target = $region44
        $region43: #{dimension_adapter.3} parent=39 // pred_region
          %s837 = ssub.s32 2048, 2048
          %838 = vsyncadd %s829, %s837
          %s839 = smul.addr %s19, 16
          %s840 = smul.addr %s839, 128
          %s841 = scalar_lea.hbm %s5, %s840
          %s842 = sshll.u32 %s832, 4
          %s843 = int_to_ptr.vmem [resolvable:$true] %s842
          %848 = dma.vmem_to_hbm [thread:$0]  %s843, 2048, %s841, %s829, 256, 256, 16
        $region44: #{dimension_adapter.3} parent=39 // pred_fallthru
          _
      $region40: #{dimension_adapter.3} parent=5 // pred_fallthru
        _
      %p849 = scmp.le.s32.totalorder 2, %s14
      // Predicated region
      $region45: #{dimension_adapter.3} parent=5 // pred_check
        %p850 = pneg %p849
      $region46: #{dimension_adapter.3} parent=5 // pred_check_branch
        %852 = sbr.rel (%p850) target = $region48
      $region47: #{dimension_adapter.3} parent=5 // pred_region
        %s853 = ssub.s32 %s14, 2
        // Predicated region
        $region49: #{dimension_adapter.3} parent=47 // pred_check
          %p854 = pneg %p153
        $region50: #{dimension_adapter.3} parent=47 // pred_check_branch
          %856 = sbr.rel (%p854) target = $region52
        $region51: #{dimension_adapter.3} parent=47 // pred_region
          %s857 = sand.u32 %s138, 1
          %s858 = scalar_lea.sflag [#allocation3], %s857
          %s859 = sand.u32 %s138, 1
          %s860 = smul.addr %s859, 128
          %s861 = scalar_lea.vmem [#allocation2], %s860
          %862 = dma.done %s858, 2048
        $region52: #{dimension_adapter.3} parent=47 // pred_fallthru
          _
      $region48: #{dimension_adapter.3} parent=5 // pred_fallthru
        _
    $region6: #{dimension_adapter.3} parent=1 // loop_footer
      %s18 = sadd.s32 1, %s14
    $region7: #{dimension_adapter.3} parent=1 // loop_footer_branch
      %13 = sbr.rel target = $region3
    $region8: #{dimension_adapter.3} parent=1 // loop_exit
      _
    %863 = vsyncpa [#allocation3], 1
    %s864 = scalar_lea.sflag [#allocation3], 1
    %865 = vsyncpa %s864, 1

// kernel: dimension_adapter.2
$region0: #{dimension_adapter.2}
  #allocation0 [shape = 'u32[]', space=smem, size = 0x4, offset = 0x4, fixed_abs, tag = 'smem constant byte address 0x4 - core index']
  #allocation1 [shape = 'u32[144,128]{1,0:T(1,128)}', space=vmem, size = 0x12000, scoped, tag = 'internal scratch']
  %s0 = inlined_call_operand.vmem [shape: bf16[2,10,10,512], index: 0, kind: input, shape index: {}]
  %s1 = inlined_call_operand.vmem [shape: bf16[9,512,384], index: 1, kind: input, shape index: {}]
  %s2 = inlined_call_operand.vmem [shape: f32[2,8,8,384], index: 2, kind: output, shape index: {0}]
  %s3 = inlined_call_operand.vmem [shape: f32[2,2,384], index: 3, kind: output, shape index: {1}]
  %4 = xla_tuple %s2, %s3
  %s5 = sld [smem:[#allocation0]]
  $region49: #{dimension_adapter.2} parent=0
    _
  %s7 = ssub.s32 1, %s5
  %s8 = scalar_select 0, %s7, %s5
  loop: start=0, step=1, limit=4
  $region2: #{dimension_adapter.2} parent=0 // loop_pre_header
    _
  $region3: #{dimension_adapter.2} parent=0 // loop_header
    %s10 = sphi 0, %s14
    %p11 = scmp.ge.s32.totalorder %s10, 4
    %s20 = sphi 0, %s22
    %s23 = sphi 0, %s20
    %s24 = sphi 0, %s23
    %s40 = sphi 0, %s24
    %s44 = sphi 0, %s44
    %s46 = sphi 0, %s44
    %s47 = sphi 0, %s46
    %s61 = sphi 0, %s47
    %s67 = sphi 0, %s69
    %s70 = sphi 0, %s67
    %s71 = sphi 0, %s70
    %s87 = sphi 0, %s71
    %s93 = sphi 0, %s95
    %s96 = sphi 0, %s93
    %s97 = sphi 0, %s96
    %s113 = sphi 0, %s97
  $region4: #{dimension_adapter.2} parent=0 // loop_header_branch
    %13 = sbr.rel (%p11) target = $region8
  $region5: #{dimension_adapter.2} parent=0 // loop_body
    %s15 = ssub.s32 %s10, 1
    %s16 = ssub.s32 %s10, 2
    %s17 = sadd.s32 %s10, 1
    %s18 = ssub.s32 %s10, %s17
    %p19 = scmp.eq.s32.totalorder %s18, 0
    %s21 = sadd.s32 %s20, 1
    %s22 = scalar_select %p19, %s20, %s21
    %p25 = pneg %p19
    %p26 = scmp.eq.s32.totalorder %s10, 1
    %p27 = por %p25, %p26
    %p28 = scmp.ne.s32.totalorder %s20, %s23
    %p29 = scmp.eq.s32.totalorder %s10, 0
    %p30 = por %p28, %p29
    %p31 = scmp.ne.s32.totalorder %s20, %s23
    %p32 = scmp.eq.s32.totalorder %s15, 1
    %p33 = por %p31, %p32
    %p34 = scmp.ne.s32.totalorder %s23, %s24
    %p35 = scmp.eq.s32.totalorder %s15, 0
    %p36 = por %p34, %p35
    %p37 = scmp.ne.s32.totalorder %s23, %s24
    %p38 = scmp.eq.s32.totalorder %s16, 1
    %p39 = por %p37, %p38
    %p41 = scmp.ne.s32.totalorder %s24, %s40
    %p42 = scmp.eq.s32.totalorder %s16, 0
    %p43 = por %p41, %p42
    %s45 = sadd.s32 %s44, 1
    %p48 = scmp.eq.s32.totalorder %s10, 1
    %p49 = scmp.ne.s32.totalorder %s44, %s46
    %p50 = scmp.eq.s32.totalorder %s10, 0
    %p51 = por %p49, %p50
    %p52 = scmp.ne.s32.totalorder %s44, %s46
    %p53 = scmp.eq.s32.totalorder %s15, 1
    %p54 = por %p52, %p53
    %p55 = scmp.ne.s32.totalorder %s46, %s47
    %p56 = scmp.eq.s32.totalorder %s15, 0
    %p57 = por %p55, %p56
    %p58 = scmp.ne.s32.totalorder %s46, %s47
    %p59 = scmp.eq.s32.totalorder %s16, 1
    %p60 = por %p58, %p59
    %p62 = scmp.ne.s32.totalorder %s47, %s61
    %p63 = scmp.eq.s32.totalorder %s16, 0
    %p64 = por %p62, %p63
    %s65 = ssub.s32 %s10, %s17
    %p66 = scmp.eq.s32.totalorder %s65, 0
    %s68 = sadd.s32 %s67, 1
    %s69 = scalar_select %p66, %s67, %s68
    %p72 = pneg %p66
    %p73 = scmp.eq.s32.totalorder %s10, 1
    %p74 = por %p72, %p73
    %p75 = scmp.ne.s32.totalorder %s67, %s70
    %p76 = scmp.eq.s32.totalorder %s10, 0
    %p77 = por %p75, %p76
    %p78 = scmp.ne.s32.totalorder %s67, %s70
    %p79 = scmp.eq.s32.totalorder %s15, 1
    %p80 = por %p78, %p79
    %p81 = scmp.ne.s32.totalorder %s70, %s71
    %p82 = scmp.eq.s32.totalorder %s15, 0
    %p83 = por %p81, %p82
    %p84 = scmp.ne.s32.totalorder %s70, %s71
    %p85 = scmp.eq.s32.totalorder %s16, 1
    %p86 = por %p84, %p85
    %p88 = scmp.ne.s32.totalorder %s71, %s87
    %p89 = scmp.eq.s32.totalorder %s16, 0
    %p90 = por %p88, %p89
    %s91 = ssub.s32 %s10, %s17
    %p92 = scmp.eq.s32.totalorder %s91, 0
    %s94 = sadd.s32 %s93, 1
    %s95 = scalar_select %p92, %s93, %s94
    %p98 = pneg %p92
    %p99 = scmp.eq.s32.totalorder %s10, 1
    %p100 = por %p98, %p99
    %p101 = scmp.ne.s32.totalorder %s93, %s96
    %p102 = scmp.eq.s32.totalorder %s10, 0
    %p103 = por %p101, %p102
    %p104 = scmp.ne.s32.totalorder %s93, %s96
    %p105 = scmp.eq.s32.totalorder %s15, 1
    %p106 = por %p104, %p105
    %p107 = scmp.ne.s32.totalorder %s96, %s97
    %p108 = scmp.eq.s32.totalorder %s15, 0
    %p109 = por %p107, %p108
    %p110 = scmp.ne.s32.totalorder %s96, %s97
    %p111 = scmp.eq.s32.totalorder %s16, 1
    %p112 = por %p110, %p111
    %p114 = scmp.ne.s32.totalorder %s97, %s113
    %p115 = scmp.eq.s32.totalorder %s16, 0
    %p116 = por %p114, %p115
    %p117 = scmp.le.s32.totalorder 1, %s10
    %p118 = scmp.lt.s32.totalorder %s10, 3
    %p119 = pnand %p117, %p118
    %p120 = pneg %p119
    // Predicated region
    $region9: #{dimension_adapter.2} parent=5 // pred_check
      _
    $region10: #{dimension_adapter.2} parent=5 // pred_check_branch
      %122 = sbr.rel (%p119) target = $region12
    $region11: #{dimension_adapter.2} parent=5 // pred_region
      %s123 = ssub.s32 %s10, 1
      // Predicated region
      $region13: #{dimension_adapter.2} parent=11 // pred_check
        %p124 = pneg %p57
      $region14: #{dimension_adapter.2} parent=11 // pred_check_branch
        %126 = sbr.rel (%p124) target = $region16
      $region15: #{dimension_adapter.2} parent=11 // pred_region
        _
      $region16: #{dimension_adapter.2} parent=11 // pred_fallthru
        _
    $region12: #{dimension_adapter.2} parent=5 // pred_fallthru
      _
    %p127 = scmp.lt.s32.totalorder %s10, 2
    // Predicated region
    $region17: #{dimension_adapter.2} parent=5 // pred_check
      %p128 = pneg %p127
    $region18: #{dimension_adapter.2} parent=5 // pred_check_branch
      %130 = sbr.rel (%p128) target = $region20
    $region19: #{dimension_adapter.2} parent=5 // pred_region
      // Predicated region
      $region21: #{dimension_adapter.2} parent=19 // pred_check
        %p131 = pneg %p30
      $region22: #{dimension_adapter.2} parent=19 // pred_check_branch
        %133 = sbr.rel (%p131) target = $region24
      $region23: #{dimension_adapter.2} parent=19 // pred_region
        %p134 = scmp.lt.s32.totalorder %s10, 1
        %s135 = scalar_select %p134, %s10, 1
        %s136 = smul.addr %s135, 80
        %s137 = smul.addr %s136, 4
        %s138 = scalar_lea.vmem %s0, %s137
      $region24: #{dimension_adapter.2} parent=19 // pred_fallthru
        _
    $region20: #{dimension_adapter.2} parent=5 // pred_fallthru
      _
    %p139 = scmp.le.s32.totalorder 1, %s10
    %p140 = scmp.lt.s32.totalorder %s10, 3
    %p141 = pnand %p139, %p140
    %p142 = pneg %p141
    // Predicated region
    $region25: #{dimension_adapter.2} parent=5 // pred_check
      _
    $region26: #{dimension_adapter.2} parent=5 // pred_check_branch
      %144 = sbr.rel (%p141) target = $region28
    $region27: #{dimension_adapter.2} parent=5 // pred_region
      %s145 = ssub.s32 %s10, 1
      %p146 = scmp.lt.s32.totalorder %s15, 1
      %s147 = scalar_select %p146, %s15, 1
      %s148 = smul.addr %s147, 80
      %s149 = smul.addr %s148, 4
      %s150 = scalar_lea.vmem %s0, %s149
      %p151 = pneg %p36
      %p152 = pneg %p33
      %p153 = pneg %p57
      %p154 = pneg %p54
      %p155 = pneg %p83
      %p156 = pneg %p80
      %p157 = scmp.lt.s32.totalorder %s15, 1
      %s158 = scalar_select %p157, %s15, 1
      %s159 = smul.addr %s158, 24
      %s160 = smul.addr %s159, 8
      %s161 = scalar_lea.vmem %s2, %s160
      %p162 = pneg %p109
      %p163 = pneg %p106
      %p164 = scmp.lt.s32.totalorder %s15, 1
      %s165 = scalar_select %p164, %s15, 1
      %s166 = smul.addr %s165, 3
      %s167 = smul.addr %s166, 2
      %s168 = scalar_lea.vmem %s3, %s167
      %p169 = scmp.lt.s32.totalorder %s15, 1
      %s170 = scalar_select %p169, %s15, 1
      %s171 = smul.addr %s170, 80
      %s172 = smul.addr %s171, 4
      %s173 = scalar_lea.vmem %s0, %s172
      %p174 = scmp.lt.s32.totalorder %s15, 1
      %s175 = scalar_select %p174, %s15, 1
      %s176 = smul.addr %s175, 24
      %s177 = smul.addr %s176, 8
      %s178 = scalar_lea.vmem %s2, %s177
      %p179 = scmp.lt.s32.totalorder %s15, 1
      %s180 = scalar_select %p179, %s15, 1
      %s181 = smul.addr %s180, 3
      %s182 = smul.addr %s181, 2
      %s183 = scalar_lea.vmem %s3, %s182
      %v185 = vld [vmem:[%s173] sm:$0xff]
      %v186 = vld [vmem:[%s173 + $0x8] sm:$0xff]
      %v187 = vld [vmem:[%s173 + $0x20] sm:$0xff]
      %v188 = vld [vmem:[%s173 + $0x28] sm:$0xff]
      %v189 = vld [vmem:[%s173 + $0x40] sm:$0xff]
      %v190 = vld [vmem:[%s173 + $0x48] sm:$0xff]
      %v191 = vld [vmem:[%s173 + $0x60] sm:$0xff]
      %v192 = vld [vmem:[%s173 + $0x68] sm:$0xff]
      %v193 = vld [vmem:[%s173 + $0x80] sm:$0xff]
      %v194 = vld [vmem:[%s173 + $0x88] sm:$0xff]
      %v195 = vld [vmem:[%s173 + $0xa0] sm:$0xff]
      %v196 = vld [vmem:[%s173 + $0xa8] sm:$0xff]
      %v197 = vld [vmem:[%s173 + $0xc0] sm:$0xff]
      %v198 = vld [vmem:[%s173 + $0xc8] sm:$0xff]
      %v199 = vld [vmem:[%s173 + $0xe0] sm:$0xff]
      %v200 = vld [vmem:[%s173 + $0xe8] sm:$0xff]
      %v201 = vld [vmem:[%s173 + $0x100] sm:$0xff]
      %v202 = vld [vmem:[%s173 + $0x108] sm:$0xff]
      %v203 = vld [vmem:[%s173 + $0x120] sm:$0xff]
      %v204 = vld [vmem:[%s173 + $0x128] sm:$0xff]
      %v205 = vld [vmem:[%s1] sm:$0xff]
      %v206 = vld [vmem:[%s1 + $0x8] sm:$0xf]
      %v207 = vld [vmem:[%s1 + $0xc] sm:$0xff]
      %v208 = vld [vmem:[%s1 + $0x14] sm:$0xf]
      %v209 = vld [vmem:[%s1 + $0x18] sm:$0xff]
      %v210 = vld [vmem:[%s1 + $0x20] sm:$0xf]
      %v211 = vld [vmem:[%s1 + $0x24] sm:$0xff]
      %v212 = vld [vmem:[%s1 + $0x2c] sm:$0xf]
      %v213 = vld [vmem:[%s1 + $0x30] sm:$0xff]
      %v214 = vld [vmem:[%s1 + $0x38] sm:$0xf]
      %v215 = vld [vmem:[%s1 + $0x3c] sm:$0xff]
      %v216 = vld [vmem:[%s1 + $0x44] sm:$0xf]
      %v217 = vld [vmem:[%s1 + $0x48] sm:$0xff]
      %v218 = vld [vmem:[%s1 + $0x50] sm:$0xf]
      %v219 = vld [vmem:[%s1 + $0x54] sm:$0xff]
      %v220 = vld [vmem:[%s1 + $0x5c] sm:$0xf]
      %v221 = vld [vmem:[%s1 + $0x60] sm:$0xff]
      %v222 = vld [vmem:[%s1 + $0x68] sm:$0xf]
      %v223 = vld [vmem:[%s1 + $0x6c] sm:$0xff]
      %v224 = vld [vmem:[%s1 + $0x74] sm:$0xf]
      %v225 = vld [vmem:[%s1 + $0x78] sm:$0xff]
      %v226 = vld [vmem:[%s1 + $0x80] sm:$0xf]
      %v227 = vld [vmem:[%s1 + $0x84] sm:$0xff]
      %v228 = vld [vmem:[%s1 + $0x8c] sm:$0xf]
      %v229 = vld [vmem:[%s1 + $0x90] sm:$0xff]
      %v230 = vld [vmem:[%s1 + $0x98] sm:$0xf]
      %v231 = vld [vmem:[%s1 + $0x9c] sm:$0xff]
      %v232 = vld [vmem:[%s1 + $0xa4] sm:$0xf]
      %v233 = vld [vmem:[%s1 + $0xa8] sm:$0xff]
      %v234 = vld [vmem:[%s1 + $0xb0] sm:$0xf]
      %v235 = vld [vmem:[%s1 + $0xb4] sm:$0xff]
      %v236 = vld [vmem:[%s1 + $0xbc] sm:$0xf]
      %v237 = vld [vmem:[%s1 + $0xc0] sm:$0xff]
      %v238 = vld [vmem:[%s1 + $0xc8] sm:$0xf]
      %v239 = vld [vmem:[%s1 + $0xcc] sm:$0xff]
      %v240 = vld [vmem:[%s1 + $0xd4] sm:$0xf]
      %v241 = vld [vmem:[%s1 + $0xd8] sm:$0xff]
      %v242 = vld [vmem:[%s1 + $0xe0] sm:$0xf]
      %v243 = vld [vmem:[%s1 + $0xe4] sm:$0xff]
      %v244 = vld [vmem:[%s1 + $0xec] sm:$0xf]
      %v245 = vld [vmem:[%s1 + $0xf0] sm:$0xff]
      %v246 = vld [vmem:[%s1 + $0xf8] sm:$0xf]
      %v247 = vld [vmem:[%s1 + $0xfc] sm:$0xff]
      %v248 = vld [vmem:[%s1 + $0x104] sm:$0xf]
      %v249 = vld [vmem:[%s1 + $0x108] sm:$0xff]
      %v250 = vld [vmem:[%s1 + $0x110] sm:$0xf]
      %v251 = vld [vmem:[%s1 + $0x114] sm:$0xff]
      %v252 = vld [vmem:[%s1 + $0x11c] sm:$0xf]
      %v253 = vld [vmem:[%s1 + $0x120] sm:$0xff]
      %v254 = vld [vmem:[%s1 + $0x128] sm:$0xf]
      %v255 = vld [vmem:[%s1 + $0x12c] sm:$0xff]
      %v256 = vld [vmem:[%s1 + $0x134] sm:$0xf]
      %v257 = vld [vmem:[%s1 + $0x138] sm:$0xff]
      %v258 = vld [vmem:[%s1 + $0x140] sm:$0xf]
      %v259 = vld [vmem:[%s1 + $0x144] sm:$0xff]
      %v260 = vld [vmem:[%s1 + $0x14c] sm:$0xf]
      %v261 = vld [vmem:[%s1 + $0x150] sm:$0xff]
      %v262 = vld [vmem:[%s1 + $0x158] sm:$0xf]
      %v263 = vld [vmem:[%s1 + $0x15c] sm:$0xff]
      %v264 = vld [vmem:[%s1 + $0x164] sm:$0xf]
      %v265 = vld [vmem:[%s1 + $0x168] sm:$0xff]
      %v266 = vld [vmem:[%s1 + $0x170] sm:$0xf]
      %v267 = vld [vmem:[%s1 + $0x174] sm:$0xff]
      %v268 = vld [vmem:[%s1 + $0x17c] sm:$0xf]
      %v269 = vld [vmem:[%s1 + $0x180] sm:$0xff]
      %v270 = vld [vmem:[%s1 + $0x188] sm:$0xf]
      %v271 = vld [vmem:[%s1 + $0x18c] sm:$0xff]
      %v272 = vld [vmem:[%s1 + $0x194] sm:$0xf]
      %v273 = vld [vmem:[%s1 + $0x198] sm:$0xff]
      %v274 = vld [vmem:[%s1 + $0x1a0] sm:$0xf]
      %v275 = vld [vmem:[%s1 + $0x1a4] sm:$0xff]
      %v276 = vld [vmem:[%s1 + $0x1ac] sm:$0xf]
      %v277 = vld [vmem:[%s1 + $0x1b0] sm:$0xff]
      %v278 = vld [vmem:[%s1 + $0x1b8] sm:$0xf]
      %v279 = vld [vmem:[%s1 + $0x1bc] sm:$0xff]
      %v280 = vld [vmem:[%s1 + $0x1c4] sm:$0xf]
      %v281 = vld [vmem:[%s1 + $0x1c8] sm:$0xff]
      %v282 = vld [vmem:[%s1 + $0x1d0] sm:$0xf]
      %v283 = vld [vmem:[%s1 + $0x1d4] sm:$0xff]
      %v284 = vld [vmem:[%s1 + $0x1dc] sm:$0xf]
      %v285 = vld [vmem:[%s1 + $0x1e0] sm:$0xff]
      %v286 = vld [vmem:[%s1 + $0x1e8] sm:$0xf]
      %v287 = vld [vmem:[%s1 + $0x1ec] sm:$0xff]
      %v288 = vld [vmem:[%s1 + $0x1f4] sm:$0xf]
      %v289 = vld [vmem:[%s1 + $0x1f8] sm:$0xff]
      %v290 = vld [vmem:[%s1 + $0x200] sm:$0xf]
      %v291 = vld [vmem:[%s1 + $0x204] sm:$0xff]
      %v292 = vld [vmem:[%s1 + $0x20c] sm:$0xf]
      %v293 = vld [vmem:[%s1 + $0x210] sm:$0xff]
      %v294 = vld [vmem:[%s1 + $0x218] sm:$0xf]
      %v295 = vld [vmem:[%s1 + $0x21c] sm:$0xff]
      %v296 = vld [vmem:[%s1 + $0x224] sm:$0xf]
      %v297 = vld [vmem:[%s1 + $0x228] sm:$0xff]
      %v298 = vld [vmem:[%s1 + $0x230] sm:$0xf]
      %v299 = vld [vmem:[%s1 + $0x234] sm:$0xff]
      %v300 = vld [vmem:[%s1 + $0x23c] sm:$0xf]
      %v301 = vld [vmem:[%s1 + $0x240] sm:$0xff]
      %v302 = vld [vmem:[%s1 + $0x248] sm:$0xf]
      %v303 = vld [vmem:[%s1 + $0x24c] sm:$0xff]
      %v304 = vld [vmem:[%s1 + $0x254] sm:$0xf]
      %v305 = vld [vmem:[%s1 + $0x258] sm:$0xff]
      %v306 = vld [vmem:[%s1 + $0x260] sm:$0xf]
      %v307 = vld [vmem:[%s1 + $0x264] sm:$0xff]
      %v308 = vld [vmem:[%s1 + $0x26c] sm:$0xf]
      %v309 = vld [vmem:[%s1 + $0x270] sm:$0xff]
      %v310 = vld [vmem:[%s1 + $0x278] sm:$0xf]
      %v311 = vld [vmem:[%s1 + $0x27c] sm:$0xff]
      %v312 = vld [vmem:[%s1 + $0x284] sm:$0xf]
      %v313 = vld [vmem:[%s1 + $0x288] sm:$0xff]
      %v314 = vld [vmem:[%s1 + $0x290] sm:$0xf]
      %v315 = vld [vmem:[%s1 + $0x294] sm:$0xff]
      %v316 = vld [vmem:[%s1 + $0x29c] sm:$0xf]
      %v317 = vld [vmem:[%s1 + $0x2a0] sm:$0xff]
      %v318 = vld [vmem:[%s1 + $0x2a8] sm:$0xf]
      %v319 = vld [vmem:[%s1 + $0x2ac] sm:$0xff]
      %v320 = vld [vmem:[%s1 + $0x2b4] sm:$0xf]
      %v321 = vld [vmem:[%s1 + $0x2b8] sm:$0xff]
      %v322 = vld [vmem:[%s1 + $0x2c0] sm:$0xf]
      %v323 = vld [vmem:[%s1 + $0x2c4] sm:$0xff]
      %v324 = vld [vmem:[%s1 + $0x2cc] sm:$0xf]
      %v325 = vld [vmem:[%s1 + $0x2d0] sm:$0xff]
      %v326 = vld [vmem:[%s1 + $0x2d8] sm:$0xf]
      %v327 = vld [vmem:[%s1 + $0x2dc] sm:$0xff]
      %v328 = vld [vmem:[%s1 + $0x2e4] sm:$0xf]
      %v329 = vld [vmem:[%s1 + $0x2e8] sm:$0xff]
      %v330 = vld [vmem:[%s1 + $0x2f0] sm:$0xf]
      %v331 = vld [vmem:[%s1 + $0x2f4] sm:$0xff]
      %v332 = vld [vmem:[%s1 + $0x2fc] sm:$0xf]
      %s333 = scalar_lea.vmem %s1, 2304
      %v334 = vld [vmem:[%s333] sm:$0xff]
      %v335 = vld [vmem:[%s333 + $0x8] sm:$0xf]
      %v336 = vld [vmem:[%s333 + $0xc] sm:$0xff]
      %v337 = vld [vmem:[%s333 + $0x14] sm:$0xf]
      %v338 = vld [vmem:[%s333 + $0x18] sm:$0xff]
      %v339 = vld [vmem:[%s333 + $0x20] sm:$0xf]
      %v340 = vld [vmem:[%s333 + $0x24] sm:$0xff]
      %v341 = vld [vmem:[%s333 + $0x2c] sm:$0xf]
      %v342 = vld [vmem:[%s333 + $0x30] sm:$0xff]
      %v343 = vld [vmem:[%s333 + $0x38] sm:$0xf]
      %v344 = vld [vmem:[%s333 + $0x3c] sm:$0xff]
      %v345 = vld [vmem:[%s333 + $0x44] sm:$0xf]
      %v346 = vld [vmem:[%s333 + $0x48] sm:$0xff]
      %v347 = vld [vmem:[%s333 + $0x50] sm:$0xf]
      %v348 = vld [vmem:[%s333 + $0x54] sm:$0xff]
      %v349 = vld [vmem:[%s333 + $0x5c] sm:$0xf]
      %v350 = vld [vmem:[%s333 + $0x60] sm:$0xff]
      %v351 = vld [vmem:[%s333 + $0x68] sm:$0xf]
      %v352 = vld [vmem:[%s333 + $0x6c] sm:$0xff]
      %v353 = vld [vmem:[%s333 + $0x74] sm:$0xf]
      %v354 = vld [vmem:[%s333 + $0x78] sm:$0xff]
      %v355 = vld [vmem:[%s333 + $0x80] sm:$0xf]
      %v356 = vld [vmem:[%s333 + $0x84] sm:$0xff]
      %v357 = vld [vmem:[%s333 + $0x8c] sm:$0xf]
      %v358 = vld [vmem:[%s333 + $0x90] sm:$0xff]
      %v359 = vld [vmem:[%s333 + $0x98] sm:$0xf]
      %v360 = vld [vmem:[%s333 + $0x9c] sm:$0xff]
      %v361 = vld [vmem:[%s333 + $0xa4] sm:$0xf]
      %v362 = vld [vmem:[%s333 + $0xa8] sm:$0xff]
      %v363 = vld [vmem:[%s333 + $0xb0] sm:$0xf]
      %v364 = vld [vmem:[%s333 + $0xb4] sm:$0xff]
      %v365 = vld [vmem:[%s333 + $0xbc] sm:$0xf]
      %v366 = vld [vmem:[%s333 + $0xc0] sm:$0xff]
      %v367 = vld [vmem:[%s333 + $0xc8] sm:$0xf]
      %v368 = vld [vmem:[%s333 + $0xcc] sm:$0xff]
      %v369 = vld [vmem:[%s333 + $0xd4] sm:$0xf]
      %v370 = vld [vmem:[%s333 + $0xd8] sm:$0xff]
      %v371 = vld [vmem:[%s333 + $0xe0] sm:$0xf]
      %v372 = vld [vmem:[%s333 + $0xe4] sm:$0xff]
      %v373 = vld [vmem:[%s333 + $0xec] sm:$0xf]
      %v374 = vld [vmem:[%s333 + $0xf0] sm:$0xff]
      %v375 = vld [vmem:[%s333 + $0xf8] sm:$0xf]
      %v376 = vld [vmem:[%s333 + $0xfc] sm:$0xff]
      %v377 = vld [vmem:[%s333 + $0x104] sm:$0xf]
      %v378 = vld [vmem:[%s333 + $0x108] sm:$0xff]
      %v379 = vld [vmem:[%s333 + $0x110] sm:$0xf]
      %v380 = vld [vmem:[%s333 + $0x114] sm:$0xff]
      %v381 = vld [vmem:[%s333 + $0x11c] sm:$0xf]
      %v382 = vld [vmem:[%s333 + $0x120] sm:$0xff]
      %v383 = vld [vmem:[%s333 + $0x128] sm:$0xf]
      %v384 = vld [vmem:[%s333 + $0x12c] sm:$0xff]
      %v385 = vld [vmem:[%s333 + $0x134] sm:$0xf]
      %v386 = vld [vmem:[%s333 + $0x138] sm:$0xff]
      %v387 = vld [vmem:[%s333 + $0x140] sm:$0xf]
      %v388 = vld [vmem:[%s333 + $0x144] sm:$0xff]
      %v389 = vld [vmem:[%s333 + $0x14c] sm:$0xf]
      %v390 = vld [vmem:[%s333 + $0x150] sm:$0xff]
      %v391 = vld [vmem:[%s333 + $0x158] sm:$0xf]
      %v392 = vld [vmem:[%s333 + $0x15c] sm:$0xff]
      %v393 = vld [vmem:[%s333 + $0x164] sm:$0xf]
      %v394 = vld [vmem:[%s333 + $0x168] sm:$0xff]
      %v395 = vld [vmem:[%s333 + $0x170] sm:$0xf]
      %v396 = vld [vmem:[%s333 + $0x174] sm:$0xff]
      %v397 = vld [vmem:[%s333 + $0x17c] sm:$0xf]
      %v398 = vld [vmem:[%s333 + $0x180] sm:$0xff]
      %v399 = vld [vmem:[%s333 + $0x188] sm:$0xf]
      %v400 = vld [vmem:[%s333 + $0x18c] sm:$0xff]
      %v401 = vld [vmem:[%s333 + $0x194] sm:$0xf]
      %v402 = vld [vmem:[%s333 + $0x198] sm:$0xff]
      %v403 = vld [vmem:[%s333 + $0x1a0] sm:$0xf]
      %v404 = vld [vmem:[%s333 + $0x1a4] sm:$0xff]
      %v405 = vld [vmem:[%s333 + $0x1ac] sm:$0xf]
      %v406 = vld [vmem:[%s333 + $0x1b0] sm:$0xff]
      %v407 = vld [vmem:[%s333 + $0x1b8] sm:$0xf]
      %v408 = vld [vmem:[%s333 + $0x1bc] sm:$0xff]
      %v409 = vld [vmem:[%s333 + $0x1c4] sm:$0xf]
      %v410 = vld [vmem:[%s333 + $0x1c8] sm:$0xff]
      %v411 = vld [vmem:[%s333 + $0x1d0] sm:$0xf]
      %v412 = vld [vmem:[%s333 + $0x1d4] sm:$0xff]
      %v413 = vld [vmem:[%s333 + $0x1dc] sm:$0xf]
      %v414 = vld [vmem:[%s333 + $0x1e0] sm:$0xff]
      %v415 = vld [vmem:[%s333 + $0x1e8] sm:$0xf]
      %v416 = vld [vmem:[%s333 + $0x1ec] sm:$0xff]
      %v417 = vld [vmem:[%s333 + $0x1f4] sm:$0xf]
      %v418 = vld [vmem:[%s333 + $0x1f8] sm:$0xff]
      %v419 = vld [vmem:[%s333 + $0x200] sm:$0xf]
      %v420 = vld [vmem:[%s333 + $0x204] sm:$0xff]
      %v421 = vld [vmem:[%s333 + $0x20c] sm:$0xf]
      %v422 = vld [vmem:[%s333 + $0x210] sm:$0xff]
      %v423 = vld [vmem:[%s333 + $0x218] sm:$0xf]
      %v424 = vld [vmem:[%s333 + $0x21c] sm:$0xff]
      %v425 = vld [vmem:[%s333 + $0x224] sm:$0xf]
      %v426 = vld [vmem:[%s333 + $0x228] sm:$0xff]
      %v427 = vld [vmem:[%s333 + $0x230] sm:$0xf]
      %v428 = vld [vmem:[%s333 + $0x234] sm:$0xff]
      %v429 = vld [vmem:[%s333 + $0x23c] sm:$0xf]
      %v430 = vld [vmem:[%s333 + $0x240] sm:$0xff]
      %v431 = vld [vmem:[%s333 + $0x248] sm:$0xf]
      %v432 = vld [vmem:[%s333 + $0x24c] sm:$0xff]
      %v433 = vld [vmem:[%s333 + $0x254] sm:$0xf]
      %v434 = vld [vmem:[%s333 + $0x258] sm:$0xff]
      %v435 = vld [vmem:[%s333 + $0x260] sm:$0xf]
      %v436 = vld [vmem:[%s333 + $0x264] sm:$0xff]
      %v437 = vld [vmem:[%s333 + $0x26c] sm:$0xf]
      %v438 = vld [vmem:[%s333 + $0x270] sm:$0xff]
      %v439 = vld [vmem:[%s333 + $0x278] sm:$0xf]
      %v440 = vld [vmem:[%s333 + $0x27c] sm:$0xff]
      %v441 = vld [vmem:[%s333 + $0x284] sm:$0xf]
      %v442 = vld [vmem:[%s333 + $0x288] sm:$0xff]
      %v443 = vld [vmem:[%s333 + $0x290] sm:$0xf]
      %v444 = vld [vmem:[%s333 + $0x294] sm:$0xff]
      %v445 = vld [vmem:[%s333 + $0x29c] sm:$0xf]
      %v446 = vld [vmem:[%s333 + $0x2a0] sm:$0xff]
      %v447 = vld [vmem:[%s333 + $0x2a8] sm:$0xf]
      %v448 = vld [vmem:[%s333 + $0x2ac] sm:$0xff]
      %v449 = vld [vmem:[%s333 + $0x2b4] sm:$0xf]
      %v450 = vld [vmem:[%s333 + $0x2b8] sm:$0xff]
      %v451 = vld [vmem:[%s333 + $0x2c0] sm:$0xf]
      %v452 = vld [vmem:[%s333 + $0x2c4] sm:$0xff]
      %v453 = vld [vmem:[%s333 + $0x2cc] sm:$0xf]
      %v454 = vld [vmem:[%s333 + $0x2d0] sm:$0xff]
      %v455 = vld [vmem:[%s333 + $0x2d8] sm:$0xf]
      %v456 = vld [vmem:[%s333 + $0x2dc] sm:$0xff]
      %v457 = vld [vmem:[%s333 + $0x2e4] sm:$0xf]
      %v458 = vld [vmem:[%s333 + $0x2e8] sm:$0xff]
      %v459 = vld [vmem:[%s333 + $0x2f0] sm:$0xf]
      %v460 = vld [vmem:[%s333 + $0x2f4] sm:$0xff]
      %v461 = vld [vmem:[%s333 + $0x2fc] sm:$0xf]
      %v478 = vunpack.c.l.b16 %v187
      %v479 = vunpack.c.h.b16 %v187
      %v480 = vunpack.c.l.b16 %v188
      %v481 = vunpack.c.h.b16 %v188
      %v482 = vunpack.c.l.b16 %v189
      %v483 = vunpack.c.h.b16 %v189
      %v484 = vunpack.c.l.b16 %v190
      %v485 = vunpack.c.h.b16 %v190
      %v486 = vunpack.c.l.b16 %v191
      %v487 = vunpack.c.h.b16 %v191
      %v488 = vunpack.c.l.b16 %v192
      %v489 = vunpack.c.h.b16 %v192
      %v490 = vunpack.c.l.b16 %v193
      %v491 = vunpack.c.h.b16 %v193
      %v492 = vunpack.c.l.b16 %v194
      %v493 = vunpack.c.h.b16 %v194
      %v494 = vunpack.c.l.b16 %v195
      %v495 = vunpack.c.h.b16 %v195
      %v496 = vunpack.c.l.b16 %v196
      %v497 = vunpack.c.h.b16 %v196
      %v498 = vunpack.c.l.b16 %v197
      %v499 = vunpack.c.h.b16 %v197
      %v500 = vunpack.c.l.b16 %v198
      %v501 = vunpack.c.h.b16 %v198
      %v502 = vunpack.c.l.b16 %v199
      %v503 = vunpack.c.h.b16 %v199
      %v504 = vunpack.c.l.b16 %v200
      %v505 = vunpack.c.h.b16 %v200
      %v506 = vunpack.c.l.b16 %v201
      %v507 = vunpack.c.h.b16 %v201
      %v508 = vunpack.c.l.b16 %v202
      %v509 = vunpack.c.h.b16 %v202
      %v510 = vpack.c.b16 %v482, %v478
      %v511 = vpack.c.b16 %v483, %v479
      %v512 = vpack.c.b16 %v484, %v480
      %v513 = vpack.c.b16 %v485, %v481
      %v514 = vpack.c.b16 %v490, %v486
      %v515 = vpack.c.b16 %v491, %v487
      %v516 = vpack.c.b16 %v492, %v488
      %v517 = vpack.c.b16 %v493, %v489
      %v518 = vpack.c.b16 %v498, %v494
      %v519 = vpack.c.b16 %v499, %v495
      %v520 = vpack.c.b16 %v500, %v496
      %v521 = vpack.c.b16 %v501, %v497
      %v522 = vpack.c.b16 %v506, %v502
      %v523 = vpack.c.b16 %v507, %v503
      %v524 = vpack.c.b16 %v508, %v504
      %v525 = vpack.c.b16 %v509, %v505
      %v670 = vunpack.c.l.b16 %v334
      %v671 = vunpack.c.h.b16 %v334
      %v672 = vunpack.c.l.b16 %v335
      %v673 = vunpack.c.l.b16 %v336
      %v674 = vunpack.c.h.b16 %v336
      %v675 = vunpack.c.l.b16 %v337
      %v676 = vunpack.c.l.b16 %v338
      %v677 = vunpack.c.h.b16 %v338
      %v678 = vunpack.c.l.b16 %v339
      %v679 = vunpack.c.l.b16 %v340
      %v680 = vunpack.c.h.b16 %v340
      %v681 = vunpack.c.l.b16 %v341
      %v682 = vunpack.c.l.b16 %v342
      %v683 = vunpack.c.h.b16 %v342
      %v684 = vunpack.c.l.b16 %v343
      %v685 = vunpack.c.l.b16 %v344
      %v686 = vunpack.c.h.b16 %v344
      %v687 = vunpack.c.l.b16 %v345
      %v688 = vunpack.c.l.b16 %v346
      %v689 = vunpack.c.h.b16 %v346
      %v690 = vunpack.c.l.b16 %v347
      %v691 = vunpack.c.l.b16 %v348
      %v692 = vunpack.c.h.b16 %v348
      %v693 = vunpack.c.l.b16 %v349
      %v694 = vunpack.c.l.b16 %v350
      %v695 = vunpack.c.h.b16 %v350
      %v696 = vunpack.c.l.b16 %v351
      %v697 = vunpack.c.l.b16 %v352
      %v698 = vunpack.c.h.b16 %v352
      %v699 = vunpack.c.l.b16 %v353
      %v700 = vunpack.c.l.b16 %v354
      %v701 = vunpack.c.h.b16 %v354
      %v702 = vunpack.c.l.b16 %v355
      %v703 = vunpack.c.l.b16 %v356
      %v704 = vunpack.c.h.b16 %v356
      %v705 = vunpack.c.l.b16 %v357
      %v706 = vunpack.c.l.b16 %v358
      %v707 = vunpack.c.h.b16 %v358
      %v708 = vunpack.c.l.b16 %v359
      %v709 = vunpack.c.l.b16 %v360
      %v710 = vunpack.c.h.b16 %v360
      %v711 = vunpack.c.l.b16 %v361
      %v712 = vunpack.c.l.b16 %v362
      %v713 = vunpack.c.h.b16 %v362
      %v714 = vunpack.c.l.b16 %v363
      %v715 = vunpack.c.l.b16 %v364
      %v716 = vunpack.c.h.b16 %v364
      %v717 = vunpack.c.l.b16 %v365
      %v718 = vunpack.c.l.b16 %v366
      %v719 = vunpack.c.h.b16 %v366
      %v720 = vunpack.c.l.b16 %v367
      %v721 = vunpack.c.l.b16 %v368
      %v722 = vunpack.c.h.b16 %v368
      %v723 = vunpack.c.l.b16 %v369
      %v724 = vunpack.c.l.b16 %v370
      %v725 = vunpack.c.h.b16 %v370
      %v726 = vunpack.c.l.b16 %v371
      %v727 = vunpack.c.l.b16 %v372
      %v728 = vunpack.c.h.b16 %v372
      %v729 = vunpack.c.l.b16 %v373
      %v730 = vunpack.c.l.b16 %v374
      %v731 = vunpack.c.h.b16 %v374
      %v732 = vunpack.c.l.b16 %v375
      %v733 = vunpack.c.l.b16 %v376
      %v734 = vunpack.c.h.b16 %v376
      %v735 = vunpack.c.l.b16 %v377
      %v736 = vunpack.c.l.b16 %v378
      %v737 = vunpack.c.h.b16 %v378
      %v738 = vunpack.c.l.b16 %v379
      %v739 = vunpack.c.l.b16 %v380
      %v740 = vunpack.c.h.b16 %v380
      %v741 = vunpack.c.l.b16 %v381
      %v742 = vunpack.c.l.b16 %v382
      %v743 = vunpack.c.h.b16 %v382
      %v744 = vunpack.c.l.b16 %v383
      %v745 = vunpack.c.l.b16 %v384
      %v746 = vunpack.c.h.b16 %v384
      %v747 = vunpack.c.l.b16 %v385
      %v748 = vunpack.c.l.b16 %v386
      %v749 = vunpack.c.h.b16 %v386
      %v750 = vunpack.c.l.b16 %v387
      %v751 = vunpack.c.l.b16 %v388
      %v752 = vunpack.c.h.b16 %v388
      %v753 = vunpack.c.l.b16 %v389
      %v754 = vunpack.c.l.b16 %v390
      %v755 = vunpack.c.h.b16 %v390
      %v756 = vunpack.c.l.b16 %v391
      %v757 = vunpack.c.l.b16 %v392
      %v758 = vunpack.c.h.b16 %v392
      %v759 = vunpack.c.l.b16 %v393
      %v760 = vunpack.c.l.b16 %v394
      %v761 = vunpack.c.h.b16 %v394
      %v762 = vunpack.c.l.b16 %v395
      %v763 = vunpack.c.l.b16 %v396
      %v764 = vunpack.c.h.b16 %v396
      %v765 = vunpack.c.l.b16 %v397
      %v766 = vunpack.c.l.b16 %v398
      %v767 = vunpack.c.h.b16 %v398
      %v768 = vunpack.c.l.b16 %v399
      %v769 = vunpack.c.l.b16 %v400
      %v770 = vunpack.c.h.b16 %v400
      %v771 = vunpack.c.l.b16 %v401
      %v772 = vunpack.c.l.b16 %v402
      %v773 = vunpack.c.h.b16 %v402
      %v774 = vunpack.c.l.b16 %v403
      %v775 = vunpack.c.l.b16 %v404
      %v776 = vunpack.c.h.b16 %v404
      %v777 = vunpack.c.l.b16 %v405
      %v778 = vunpack.c.l.b16 %v406
      %v779 = vunpack.c.h.b16 %v406
      %v780 = vunpack.c.l.b16 %v407
      %v781 = vunpack.c.l.b16 %v408
      %v782 = vunpack.c.h.b16 %v408
      %v783 = vunpack.c.l.b16 %v409
      %v784 = vunpack.c.l.b16 %v410
      %v785 = vunpack.c.h.b16 %v410
      %v786 = vunpack.c.l.b16 %v411
      %v787 = vunpack.c.l.b16 %v412
      %v788 = vunpack.c.h.b16 %v412
      %v789 = vunpack.c.l.b16 %v413
      %v790 = vunpack.c.l.b16 %v414
      %v791 = vunpack.c.h.b16 %v414
      %v792 = vunpack.c.l.b16 %v415
      %v793 = vunpack.c.l.b16 %v416
      %v794 = vunpack.c.h.b16 %v416
      %v795 = vunpack.c.l.b16 %v417
      %v796 = vunpack.c.l.b16 %v418
      %v797 = vunpack.c.h.b16 %v418
      %v798 = vunpack.c.l.b16 %v419
      %v799 = vunpack.c.l.b16 %v420
      %v800 = vunpack.c.h.b16 %v420
      %v801 = vunpack.c.l.b16 %v421
      %v802 = vunpack.c.l.b16 %v422
      %v803 = vunpack.c.h.b16 %v422
      %v804 = vunpack.c.l.b16 %v423
      %v805 = vunpack.c.l.b16 %v424
      %v806 = vunpack.c.h.b16 %v424
      %v807 = vunpack.c.l.b16 %v425
      %v808 = vunpack.c.l.b16 %v426
      %v809 = vunpack.c.h.b16 %v426
      %v810 = vunpack.c.l.b16 %v427
      %v811 = vunpack.c.l.b16 %v428
      %v812 = vunpack.c.h.b16 %v428
      %v813 = vunpack.c.l.b16 %v429
      %v814 = vunpack.c.l.b16 %v430
      %v815 = vunpack.c.h.b16 %v430
      %v816 = vunpack.c.l.b16 %v431
      %v817 = vunpack.c.l.b16 %v432
      %v818 = vunpack.c.h.b16 %v432
      %v819 = vunpack.c.l.b16 %v433
      %v820 = vunpack.c.l.b16 %v434
      %v821 = vunpack.c.h.b16 %v434
      %v822 = vunpack.c.l.b16 %v435
      %v823 = vunpack.c.l.b16 %v436
      %v824 = vunpack.c.h.b16 %v436
      %v825 = vunpack.c.l.b16 %v437
      %v826 = vunpack.c.l.b16 %v438
      %v827 = vunpack.c.h.b16 %v438
      %v828 = vunpack.c.l.b16 %v439
      %v829 = vunpack.c.l.b16 %v440
      %v830 = vunpack.c.h.b16 %v440
      %v831 = vunpack.c.l.b16 %v441
      %v832 = vunpack.c.l.b16 %v442
      %v833 = vunpack.c.h.b16 %v442
      %v834 = vunpack.c.l.b16 %v443
      %v835 = vunpack.c.l.b16 %v444
      %v836 = vunpack.c.h.b16 %v444
      %v837 = vunpack.c.l.b16 %v445
      %v838 = vunpack.c.l.b16 %v446
      %v839 = vunpack.c.h.b16 %v446
      %v840 = vunpack.c.l.b16 %v447
      %v841 = vunpack.c.l.b16 %v448
      %v842 = vunpack.c.h.b16 %v448
      %v843 = vunpack.c.l.b16 %v449
      %v844 = vunpack.c.l.b16 %v450
      %v845 = vunpack.c.h.b16 %v450
      %v846 = vunpack.c.l.b16 %v451
      %v847 = vunpack.c.l.b16 %v452
      %v848 = vunpack.c.h.b16 %v452
      %v849 = vunpack.c.l.b16 %v453
      %v850 = vunpack.c.l.b16 %v454
      %v851 = vunpack.c.h.b16 %v454
      %v852 = vunpack.c.l.b16 %v455
      %v853 = vunpack.c.l.b16 %v456
      %v854 = vunpack.c.h.b16 %v456
      %v855 = vunpack.c.l.b16 %v457
      %v856 = vunpack.c.l.b16 %v458
      %v857 = vunpack.c.h.b16 %v458
      %v858 = vunpack.c.l.b16 %v459
      %v859 = vunpack.c.l.b16 %v460
      %v860 = vunpack.c.h.b16 %v460
      %v861 = vunpack.c.l.b16 %v461
      %v862 = vpack.c.b16 %v673, %v670
      %v863 = vpack.c.b16 %v674, %v671
      %v864 = vpack.c.b16 %v675, %v672
      %v865 = vpack.c.b16 %v679, %v676
      %v866 = vpack.c.b16 %v680, %v677
      %v867 = vpack.c.b16 %v681, %v678
      %v868 = vpack.c.b16 %v685, %v682
      %v869 = vpack.c.b16 %v686, %v683
      %v870 = vpack.c.b16 %v687, %v684
      %v871 = vpack.c.b16 %v691, %v688
      %v872 = vpack.c.b16 %v692, %v689
      %v873 = vpack.c.b16 %v693, %v690
      %v874 = vpack.c.b16 %v697, %v694
      %v875 = vpack.c.b16 %v698, %v695
      %v876 = vpack.c.b16 %v699, %v696
      %v877 = vpack.c.b16 %v703, %v700
      %v878 = vpack.c.b16 %v704, %v701
      %v879 = vpack.c.b16 %v705, %v702
      %v880 = vpack.c.b16 %v709, %v706
      %v881 = vpack.c.b16 %v710, %v707
      %v882 = vpack.c.b16 %v711, %v708
      %v883 = vpack.c.b16 %v715, %v712
      %v884 = vpack.c.b16 %v716, %v713
      %v885 = vpack.c.b16 %v717, %v714
      %v886 = vpack.c.b16 %v721, %v718
      %v887 = vpack.c.b16 %v722, %v719
      %v888 = vpack.c.b16 %v723, %v720
      %v889 = vpack.c.b16 %v727, %v724
      %v890 = vpack.c.b16 %v728, %v725
      %v891 = vpack.c.b16 %v729, %v726
      %v892 = vpack.c.b16 %v733, %v730
      %v893 = vpack.c.b16 %v734, %v731
      %v894 = vpack.c.b16 %v735, %v732
      %v895 = vpack.c.b16 %v739, %v736
      %v896 = vpack.c.b16 %v740, %v737
      %v897 = vpack.c.b16 %v741, %v738
      %v898 = vpack.c.b16 %v745, %v742
      %v899 = vpack.c.b16 %v746, %v743
      %v900 = vpack.c.b16 %v747, %v744
      %v901 = vpack.c.b16 %v751, %v748
      %v902 = vpack.c.b16 %v752, %v749
      %v903 = vpack.c.b16 %v753, %v750
      %v904 = vpack.c.b16 %v757, %v754
      %v905 = vpack.c.b16 %v758, %v755
      %v906 = vpack.c.b16 %v759, %v756
      %v907 = vpack.c.b16 %v763, %v760
      %v908 = vpack.c.b16 %v764, %v761
      %v909 = vpack.c.b16 %v765, %v762
      %v910 = vpack.c.b16 %v769, %v766
      %v911 = vpack.c.b16 %v770, %v767
      %v912 = vpack.c.b16 %v771, %v768
      %v913 = vpack.c.b16 %v775, %v772
      %v914 = vpack.c.b16 %v776, %v773
      %v915 = vpack.c.b16 %v777, %v774
      %v916 = vpack.c.b16 %v781, %v778
      %v917 = vpack.c.b16 %v782, %v779
      %v918 = vpack.c.b16 %v783, %v780
      %v919 = vpack.c.b16 %v787, %v784
      %v920 = vpack.c.b16 %v788, %v785
      %v921 = vpack.c.b16 %v789, %v786
      %v922 = vpack.c.b16 %v793, %v790
      %v923 = vpack.c.b16 %v794, %v791
      %v924 = vpack.c.b16 %v795, %v792
      %v925 = vpack.c.b16 %v799, %v796
      %v926 = vpack.c.b16 %v800, %v797
      %v927 = vpack.c.b16 %v801, %v798
      %v928 = vpack.c.b16 %v805, %v802
      %v929 = vpack.c.b16 %v806, %v803
      %v930 = vpack.c.b16 %v807, %v804
      %v931 = vpack.c.b16 %v811, %v808
      %v932 = vpack.c.b16 %v812, %v809
      %v933 = vpack.c.b16 %v813, %v810
      %v934 = vpack.c.b16 %v817, %v814
      %v935 = vpack.c.b16 %v818, %v815
      %v936 = vpack.c.b16 %v819, %v816
      %v937 = vpack.c.b16 %v823, %v820
      %v938 = vpack.c.b16 %v824, %v821
      %v939 = vpack.c.b16 %v825, %v822
      %v940 = vpack.c.b16 %v829, %v826
      %v941 = vpack.c.b16 %v830, %v827
      %v942 = vpack.c.b16 %v831, %v828
      %v943 = vpack.c.b16 %v835, %v832
      %v944 = vpack.c.b16 %v836, %v833
      %v945 = vpack.c.b16 %v837, %v834
      %v946 = vpack.c.b16 %v841, %v838
      %v947 = vpack.c.b16 %v842, %v839
      %v948 = vpack.c.b16 %v843, %v840
      %v949 = vpack.c.b16 %v847, %v844
      %v950 = vpack.c.b16 %v848, %v845
      %v951 = vpack.c.b16 %v849, %v846
      %v952 = vpack.c.b16 %v853, %v850
      %v953 = vpack.c.b16 %v854, %v851
      %v954 = vpack.c.b16 %v855, %v852
      %v955 = vpack.c.b16 %v859, %v856
      %v956 = vpack.c.b16 %v860, %v857
      %v957 = vpack.c.b16 %v861, %v858
      %1054 = vmatprep.subr.bf16.mxu0 %v884
      %1055 = vmatpush1.bf16.msra.mxu0 %v883
      %1056 = vmatprep.subr.bf16.mxu0 %v881
      %1057 = vmatpush1.bf16.msra.mxu0 %v880
      %1058 = vmatprep.subr.bf16.mxu0 %v878
      %1059 = vmatpush1.bf16.msra.mxu0 %v877
      %1060 = vmatprep.subr.bf16.mxu0 %v875
      %1061 = vmatpush1.bf16.msra.mxu0 %v874
      %1062 = vmatprep.subr.bf16.mxu0 %v872
      %1063 = vmatpush1.bf16.msra.mxu0 %v871
      %1064 = vmatprep.subr.bf16.mxu0 %v869
      %1065 = vmatpush1.bf16.msra.mxu0 %v868
      %1066 = vmatprep.subr.bf16.mxu0 %v866
      %1067 = vmatpush1.bf16.msra.mxu0 %v865
      %1068 = vmatprep.subr.bf16.mxu0 %v863
      %1069 = vmatpush1.bf16.msra.mxu0 %v862
      %1070 = vmatprep.subr.bf16.mxu0 %v908
      %1071 = vmatpush2.bf16.msra.mxu0 %v907
      %1072 = vmatprep.subr.bf16.mxu0 %v905
      %1073 = vmatpush2.bf16.msra.mxu0 %v904
      %1074 = vmatprep.subr.bf16.mxu0 %v902
      %1075 = vmatpush2.bf16.msra.mxu0 %v901
      %1076 = vmatprep.subr.bf16.mxu0 %v899
      %1077 = vmatpush2.bf16.msra.mxu0 %v898
      %1078 = vmatprep.subr.bf16.mxu0 %v896
      %1079 = vmatpush2.bf16.msra.mxu0 %v895
      %1080 = vmatprep.subr.bf16.mxu0 %v893
      %1081 = vmatpush2.bf16.msra.mxu0 %v892
      %1082 = vmatprep.subr.bf16.mxu0 %v890
      %1083 = vmatpush2.bf16.msra.mxu0 %v889
      %1084 = vmatprep.subr.bf16.mxu0 %v887
      %1085 = vmatpush2.bf16.msra.mxu0 %v886
      %1086 = vmatprep.mubr.bf16.mxu0 %v511
      %1087 = vmatmul.mubr.bf16.gmra.mxu0 %v510
      %v1088 = vpop.f32.mrf.mxu0
      %v1089 = vadd.f32 0.0, %v1088
      %v1090 = vpop.f32.mrf.mxu0
      %v1091 = vadd.f32 0.0, %v1090
      %v1092 = vpop.f32.mrf.mxu0
      %v1093 = vadd.f32 0.0, %v1092
      %v1094 = vpop.f32.mrf.mxu0
      %v1095 = vadd.f32 0.0, %v1094
      %1096 = vmatprep.mubr.bf16.mxu0 %v515
      %1097 = vmatmul.mubr.bf16.gmra.mxu0 %v514
      %v1098 = vpop.f32.mrf.mxu0
      %v1099 = vadd.f32 0.0, %v1098
      %v1100 = vpop.f32.mrf.mxu0
      %v1101 = vadd.f32 0.0, %v1100
      %v1102 = vpop.f32.mrf.mxu0
      %v1103 = vadd.f32 0.0, %v1102
      %v1104 = vpop.f32.mrf.mxu0
      %v1105 = vadd.f32 0.0, %v1104
      %1106 = vmatprep.mubr.bf16.mxu0 %v519
      %1107 = vmatmul.mubr.bf16.gmra.mxu0 %v518
      %v1108 = vpop.f32.mrf.mxu0
      %v1109 = vadd.f32 0.0, %v1108
      %v1110 = vpop.f32.mrf.mxu0
      %v1111 = vadd.f32 0.0, %v1110
      %v1112 = vpop.f32.mrf.mxu0
      %v1113 = vadd.f32 0.0, %v1112
      %v1114 = vpop.f32.mrf.mxu0
      %v1115 = vadd.f32 0.0, %v1114
      %1116 = vmatprep.mubr.bf16.mxu0 %v523
      %1117 = vmatmul.mubr.bf16.gmra.mxu0 %v522
      %v1118 = vpop.f32.mrf.mxu0
      %v1119 = vadd.f32 0.0, %v1118
      %v1120 = vpop.f32.mrf.mxu0
      %v1121 = vadd.f32 0.0, %v1120
      %v1122 = vpop.f32.mrf.mxu0
      %v1123 = vadd.f32 0.0, %v1122
      %v1124 = vpop.f32.mrf.mxu0
      %v1125 = vadd.f32 0.0, %v1124
      %1126 = vdwg.mxu0
      %1127 = vmatprep.subr.bf16.mxu0 %v932
      %1128 = vmatpush1.bf16.msra.mxu0 %v931
      %1129 = vmatprep.subr.bf16.mxu0 %v929
      %1130 = vmatpush1.bf16.msra.mxu0 %v928
      %1131 = vmatprep.subr.bf16.mxu0 %v926
      %1132 = vmatpush1.bf16.msra.mxu0 %v925
      %1133 = vmatprep.subr.bf16.mxu0 %v923
      %1134 = vmatpush1.bf16.msra.mxu0 %v922
      %1135 = vmatprep.subr.bf16.mxu0 %v920
      %1136 = vmatpush1.bf16.msra.mxu0 %v919
      %1137 = vmatprep.subr.bf16.mxu0 %v917
      %1138 = vmatpush1.bf16.msra.mxu0 %v916
      %1139 = vmatprep.subr.bf16.mxu0 %v914
      %1140 = vmatpush1.bf16.msra.mxu0 %v913
      %1141 = vmatprep.subr.bf16.mxu0 %v911
      %1142 = vmatpush1.bf16.msra.mxu0 %v910
      %1143 = vmatprep.subr.bf16.mxu0 %v956
      %1144 = vmatpush2.bf16.msra.mxu0 %v955
      %1145 = vmatprep.subr.bf16.mxu0 %v953
      %1146 = vmatpush2.bf16.msra.mxu0 %v952
      %1147 = vmatprep.subr.bf16.mxu0 %v950
      %1148 = vmatpush2.bf16.msra.mxu0 %v949
      %1149 = vmatprep.subr.bf16.mxu0 %v947
      %1150 = vmatpush2.bf16.msra.mxu0 %v946
      %1151 = vmatprep.subr.bf16.mxu0 %v944
      %1152 = vmatpush2.bf16.msra.mxu0 %v943
      %1153 = vmatprep.subr.bf16.mxu0 %v941
      %1154 = vmatpush2.bf16.msra.mxu0 %v940
      %1155 = vmatprep.subr.bf16.mxu0 %v938
      %1156 = vmatpush2.bf16.msra.mxu0 %v937
      %1157 = vmatprep.subr.bf16.mxu0 %v935
      %1158 = vmatpush2.bf16.msra.mxu0 %v934
      %1159 = vmatprep.mubr.bf16.mxu0 %v513
      %1160 = vmatmul.mubr.bf16.gmra.mxu0 %v512
      %v1161 = vpop.f32.mrf.mxu0
      %v1162 = vadd.f32 %v1089, %v1161
      %v1163 = vpop.f32.mrf.mxu0
      %v1164 = vadd.f32 %v1091, %v1163
      %v1165 = vpop.f32.mrf.mxu0
      %v1166 = vadd.f32 %v1093, %v1165
      %v1167 = vpop.f32.mrf.mxu0
      %v1168 = vadd.f32 %v1095, %v1167
      %1169 = vmatprep.mubr.bf16.mxu0 %v517
      %1170 = vmatmul.mubr.bf16.gmra.mxu0 %v516
      %v1171 = vpop.f32.mrf.mxu0
      %v1172 = vadd.f32 %v1099, %v1171
      %v1173 = vpop.f32.mrf.mxu0
      %v1174 = vadd.f32 %v1101, %v1173
      %v1175 = vpop.f32.mrf.mxu0
      %v1176 = vadd.f32 %v1103, %v1175
      %v1177 = vpop.f32.mrf.mxu0
      %v1178 = vadd.f32 %v1105, %v1177
      %1179 = vmatprep.mubr.bf16.mxu0 %v521
      %1180 = vmatmul.mubr.bf16.gmra.mxu0 %v520
      %v1181 = vpop.f32.mrf.mxu0
      %v1182 = vadd.f32 %v1109, %v1181
      %v1183 = vpop.f32.mrf.mxu0
      %v1184 = vadd.f32 %v1111, %v1183
      %v1185 = vpop.f32.mrf.mxu0
      %v1186 = vadd.f32 %v1113, %v1185
      %v1187 = vpop.f32.mrf.mxu0
      %v1188 = vadd.f32 %v1115, %v1187
      %1189 = vmatprep.mubr.bf16.mxu0 %v525
      %1190 = vmatmul.mubr.bf16.gmra.mxu0 %v524
      %v1191 = vpop.f32.mrf.mxu0
      %v1192 = vadd.f32 %v1119, %v1191
      %v1193 = vpop.f32.mrf.mxu0
      %v1194 = vadd.f32 %v1121, %v1193
      %v1195 = vpop.f32.mrf.mxu0
      %v1196 = vadd.f32 %v1123, %v1195
      %v1197 = vpop.f32.mrf.mxu0
      %v1198 = vadd.f32 %v1125, %v1197
      %1199 = vdwg.mxu0
      %1200 = vmatprep.subr.bf16.mxu0 0
      %1201 = vmatpush1.bf16.msra.mxu0 %v885
      %1202 = vmatprep.subr.bf16.mxu0 0
      %1203 = vmatpush1.bf16.msra.mxu0 %v882
      %1204 = vmatprep.subr.bf16.mxu0 0
      %1205 = vmatpush1.bf16.msra.mxu0 %v879
      %1206 = vmatprep.subr.bf16.mxu0 0
      %1207 = vmatpush1.bf16.msra.mxu0 %v876
      %1208 = vmatprep.subr.bf16.mxu0 0
      %1209 = vmatpush1.bf16.msra.mxu0 %v873
      %1210 = vmatprep.subr.bf16.mxu0 0
      %1211 = vmatpush1.bf16.msra.mxu0 %v870
      %1212 = vmatprep.subr.bf16.mxu0 0
      %1213 = vmatpush1.bf16.msra.mxu0 %v867
      %1214 = vmatprep.subr.bf16.mxu0 0
      %1215 = vmatpush1.bf16.msra.mxu0 %v864
      %1216 = vmatprep.subr.bf16.mxu0 0
      %1217 = vmatpush2.bf16.msra.mxu0 %v909
      %1218 = vmatprep.subr.bf16.mxu0 0
      %1219 = vmatpush2.bf16.msra.mxu0 %v906
      %1220 = vmatprep.subr.bf16.mxu0 0
      %1221 = vmatpush2.bf16.msra.mxu0 %v903
      %1222 = vmatprep.subr.bf16.mxu0 0
      %1223 = vmatpush2.bf16.msra.mxu0 %v900
      %1224 = vmatprep.subr.bf16.mxu0 0
      %1225 = vmatpush2.bf16.msra.mxu0 %v897
      %1226 = vmatprep.subr.bf16.mxu0 0
      %1227 = vmatpush2.bf16.msra.mxu0 %v894
      %1228 = vmatprep.subr.bf16.mxu0 0
      %1229 = vmatpush2.bf16.msra.mxu0 %v891
      %1230 = vmatprep.subr.bf16.mxu0 0
      %1231 = vmatpush2.bf16.msra.mxu0 %v888
      %1232 = vmatprep.mubr.bf16.mxu0 %v511
      %1233 = vmatmul.mubr.bf16.gmra.mxu0 %v510
      %v1234 = vpop.f32.mrf.mxu0
      %v1235 = vadd.f32 0.0, %v1234
      %v1236 = vpop.f32.mrf.mxu0
      %v1237 = vpop.f32.mrf.mxu0
      %v1238 = vadd.f32 0.0, %v1237
      %v1239 = vpop.f32.mrf.mxu0
      %1240 = vmatprep.mubr.bf16.mxu0 %v515
      %1241 = vmatmul.mubr.bf16.gmra.mxu0 %v514
      %v1242 = vpop.f32.mrf.mxu0
      %v1243 = vadd.f32 0.0, %v1242
      %v1244 = vpop.f32.mrf.mxu0
      %v1245 = vpop.f32.mrf.mxu0
      %v1246 = vadd.f32 0.0, %v1245
      %v1247 = vpop.f32.mrf.mxu0
      %1248 = vmatprep.mubr.bf16.mxu0 %v519
      %1249 = vmatmul.mubr.bf16.gmra.mxu0 %v518
      %v1250 = vpop.f32.mrf.mxu0
      %v1251 = vadd.f32 0.0, %v1250
      %v1252 = vpop.f32.mrf.mxu0
      %v1253 = vpop.f32.mrf.mxu0
      %v1254 = vadd.f32 0.0, %v1253
      %v1255 = vpop.f32.mrf.mxu0
      %1256 = vmatprep.mubr.bf16.mxu0 %v523
      %1257 = vmatmul.mubr.bf16.gmra.mxu0 %v522
      %v1258 = vpop.f32.mrf.mxu0
      %v1259 = vadd.f32 0.0, %v1258
      %v1260 = vpop.f32.mrf.mxu0
      %v1261 = vpop.f32.mrf.mxu0
      %v1262 = vadd.f32 0.0, %v1261
      %v1263 = vpop.f32.mrf.mxu0
      %1264 = vdwg.mxu0
      %1265 = vmatprep.subr.bf16.mxu0 0
      %1266 = vmatpush1.bf16.msra.mxu0 %v933
      %1267 = vmatprep.subr.bf16.mxu0 0
      %1268 = vmatpush1.bf16.msra.mxu0 %v930
      %1269 = vmatprep.subr.bf16.mxu0 0
      %1270 = vmatpush1.bf16.msra.mxu0 %v927
      %1271 = vmatprep.subr.bf16.mxu0 0
      %1272 = vmatpush1.bf16.msra.mxu0 %v924
      %1273 = vmatprep.subr.bf16.mxu0 0
      %1274 = vmatpush1.bf16.msra.mxu0 %v921
      %1275 = vmatprep.subr.bf16.mxu0 0
      %1276 = vmatpush1.bf16.msra.mxu0 %v918
      %1277 = vmatprep.subr.bf16.mxu0 0
      %1278 = vmatpush1.bf16.msra.mxu0 %v915
      %1279 = vmatprep.subr.bf16.mxu0 0
      %1280 = vmatpush1.bf16.msra.mxu0 %v912
      %1281 = vmatprep.subr.bf16.mxu0 0
      %1282 = vmatpush2.bf16.msra.mxu0 %v957
      %1283 = vmatprep.subr.bf16.mxu0 0
      %1284 = vmatpush2.bf16.msra.mxu0 %v954
      %1285 = vmatprep.subr.bf16.mxu0 0
      %1286 = vmatpush2.bf16.msra.mxu0 %v951
      %1287 = vmatprep.subr.bf16.mxu0 0
      %1288 = vmatpush2.bf16.msra.mxu0 %v948
      %1289 = vmatprep.subr.bf16.mxu0 0
      %1290 = vmatpush2.bf16.msra.mxu0 %v945
      %1291 = vmatprep.subr.bf16.mxu0 0
      %1292 = vmatpush2.bf16.msra.mxu0 %v942
      %1293 = vmatprep.subr.bf16.mxu0 0
      %1294 = vmatpush2.bf16.msra.mxu0 %v939
      %1295 = vmatprep.subr.bf16.mxu0 0
      %1296 = vmatpush2.bf16.msra.mxu0 %v936
      %1297 = vmatprep.mubr.bf16.mxu0 %v513
      %1298 = vmatmul.mubr.bf16.gmra.mxu0 %v512
      %v1299 = vpop.f32.mrf.mxu0
      %v1300 = vadd.f32 %v1235, %v1299
      %v1301 = vpop.f32.mrf.mxu0
      %v1302 = vpop.f32.mrf.mxu0
      %v1303 = vadd.f32 %v1238, %v1302
      %v1304 = vpop.f32.mrf.mxu0
      %1305 = vmatprep.mubr.bf16.mxu0 %v517
      %1306 = vmatmul.mubr.bf16.gmra.mxu0 %v516
      %v1307 = vpop.f32.mrf.mxu0
      %v1308 = vadd.f32 %v1243, %v1307
      %v1309 = vpop.f32.mrf.mxu0
      %v1310 = vpop.f32.mrf.mxu0
      %v1311 = vadd.f32 %v1246, %v1310
      %v1312 = vpop.f32.mrf.mxu0
      %1313 = vmatprep.mubr.bf16.mxu0 %v521
      %1314 = vmatmul.mubr.bf16.gmra.mxu0 %v520
      %v1315 = vpop.f32.mrf.mxu0
      %v1316 = vadd.f32 %v1251, %v1315
      %v1317 = vpop.f32.mrf.mxu0
      %v1318 = vpop.f32.mrf.mxu0
      %v1319 = vadd.f32 %v1254, %v1318
      %v1320 = vpop.f32.mrf.mxu0
      %1321 = vmatprep.mubr.bf16.mxu0 %v525
      %1322 = vmatmul.mubr.bf16.gmra.mxu0 %v524
      %v1323 = vpop.f32.mrf.mxu0
      %v1324 = vadd.f32 %v1259, %v1323
      %v1325 = vpop.f32.mrf.mxu0
      %v1326 = vpop.f32.mrf.mxu0
      %v1327 = vadd.f32 %v1262, %v1326
      %v1328 = vpop.f32.mrf.mxu0
      %1329 = vdwg.mxu0
      %v1332 = vunpack.c.l.b16 %v185
      %v1333 = vunpack.c.h.b16 %v185
      %v1334 = vunpack.c.l.b16 %v186
      %v1335 = vunpack.c.h.b16 %v186
      %v1336 = vpack.c.b16 %v478, %v1332
      %v1337 = vpack.c.b16 %v479, %v1333
      %v1338 = vpack.c.b16 %v480, %v1334
      %v1339 = vpack.c.b16 %v481, %v1335
      %v1340 = vpack.c.b16 %v486, %v482
      %v1341 = vpack.c.b16 %v487, %v483
      %v1342 = vpack.c.b16 %v488, %v484
      %v1343 = vpack.c.b16 %v489, %v485
      %v1344 = vpack.c.b16 %v494, %v490
      %v1345 = vpack.c.b16 %v495, %v491
      %v1346 = vpack.c.b16 %v496, %v492
      %v1347 = vpack.c.b16 %v497, %v493
      %v1348 = vpack.c.b16 %v502, %v498
      %v1349 = vpack.c.b16 %v503, %v499
      %v1350 = vpack.c.b16 %v504, %v500
      %v1351 = vpack.c.b16 %v505, %v501
      %v1496 = vunpack.c.l.b16 %v205
      %v1497 = vunpack.c.h.b16 %v205
      %v1498 = vunpack.c.l.b16 %v206
      %v1499 = vunpack.c.l.b16 %v207
      %v1500 = vunpack.c.h.b16 %v207
      %v1501 = vunpack.c.l.b16 %v208
      %v1502 = vunpack.c.l.b16 %v209
      %v1503 = vunpack.c.h.b16 %v209
      %v1504 = vunpack.c.l.b16 %v210
      %v1505 = vunpack.c.l.b16 %v211
      %v1506 = vunpack.c.h.b16 %v211
      %v1507 = vunpack.c.l.b16 %v212
      %v1508 = vunpack.c.l.b16 %v213
      %v1509 = vunpack.c.h.b16 %v213
      %v1510 = vunpack.c.l.b16 %v214
      %v1511 = vunpack.c.l.b16 %v215
      %v1512 = vunpack.c.h.b16 %v215
      %v1513 = vunpack.c.l.b16 %v216
      %v1514 = vunpack.c.l.b16 %v217
      %v1515 = vunpack.c.h.b16 %v217
      %v1516 = vunpack.c.l.b16 %v218
      %v1517 = vunpack.c.l.b16 %v219
      %v1518 = vunpack.c.h.b16 %v219
      %v1519 = vunpack.c.l.b16 %v220
      %v1520 = vunpack.c.l.b16 %v221
      %v1521 = vunpack.c.h.b16 %v221
      %v1522 = vunpack.c.l.b16 %v222
      %v1523 = vunpack.c.l.b16 %v223
      %v1524 = vunpack.c.h.b16 %v223
      %v1525 = vunpack.c.l.b16 %v224
      %v1526 = vunpack.c.l.b16 %v225
      %v1527 = vunpack.c.h.b16 %v225
      %v1528 = vunpack.c.l.b16 %v226
      %v1529 = vunpack.c.l.b16 %v227
      %v1530 = vunpack.c.h.b16 %v227
      %v1531 = vunpack.c.l.b16 %v228
      %v1532 = vunpack.c.l.b16 %v229
      %v1533 = vunpack.c.h.b16 %v229
      %v1534 = vunpack.c.l.b16 %v230
      %v1535 = vunpack.c.l.b16 %v231
      %v1536 = vunpack.c.h.b16 %v231
      %v1537 = vunpack.c.l.b16 %v232
      %v1538 = vunpack.c.l.b16 %v233
      %v1539 = vunpack.c.h.b16 %v233
      %v1540 = vunpack.c.l.b16 %v234
      %v1541 = vunpack.c.l.b16 %v235
      %v1542 = vunpack.c.h.b16 %v235
      %v1543 = vunpack.c.l.b16 %v236
      %v1544 = vunpack.c.l.b16 %v237
      %v1545 = vunpack.c.h.b16 %v237
      %v1546 = vunpack.c.l.b16 %v238
      %v1547 = vunpack.c.l.b16 %v239
      %v1548 = vunpack.c.h.b16 %v239
      %v1549 = vunpack.c.l.b16 %v240
      %v1550 = vunpack.c.l.b16 %v241
      %v1551 = vunpack.c.h.b16 %v241
      %v1552 = vunpack.c.l.b16 %v242
      %v1553 = vunpack.c.l.b16 %v243
      %v1554 = vunpack.c.h.b16 %v243
      %v1555 = vunpack.c.l.b16 %v244
      %v1556 = vunpack.c.l.b16 %v245
      %v1557 = vunpack.c.h.b16 %v245
      %v1558 = vunpack.c.l.b16 %v246
      %v1559 = vunpack.c.l.b16 %v247
      %v1560 = vunpack.c.h.b16 %v247
      %v1561 = vunpack.c.l.b16 %v248
      %v1562 = vunpack.c.l.b16 %v249
      %v1563 = vunpack.c.h.b16 %v249
      %v1564 = vunpack.c.l.b16 %v250
      %v1565 = vunpack.c.l.b16 %v251
      %v1566 = vunpack.c.h.b16 %v251
      %v1567 = vunpack.c.l.b16 %v252
      %v1568 = vunpack.c.l.b16 %v253
      %v1569 = vunpack.c.h.b16 %v253
      %v1570 = vunpack.c.l.b16 %v254
      %v1571 = vunpack.c.l.b16 %v255
      %v1572 = vunpack.c.h.b16 %v255
      %v1573 = vunpack.c.l.b16 %v256
      %v1574 = vunpack.c.l.b16 %v257
      %v1575 = vunpack.c.h.b16 %v257
      %v1576 = vunpack.c.l.b16 %v258
      %v1577 = vunpack.c.l.b16 %v259
      %v1578 = vunpack.c.h.b16 %v259
      %v1579 = vunpack.c.l.b16 %v260
      %v1580 = vunpack.c.l.b16 %v261
      %v1581 = vunpack.c.h.b16 %v261
      %v1582 = vunpack.c.l.b16 %v262
      %v1583 = vunpack.c.l.b16 %v263
      %v1584 = vunpack.c.h.b16 %v263
      %v1585 = vunpack.c.l.b16 %v264
      %v1586 = vunpack.c.l.b16 %v265
      %v1587 = vunpack.c.h.b16 %v265
      %v1588 = vunpack.c.l.b16 %v266
      %v1589 = vunpack.c.l.b16 %v267
      %v1590 = vunpack.c.h.b16 %v267
      %v1591 = vunpack.c.l.b16 %v268
      %v1592 = vunpack.c.l.b16 %v269
      %v1593 = vunpack.c.h.b16 %v269
      %v1594 = vunpack.c.l.b16 %v270
      %v1595 = vunpack.c.l.b16 %v271
      %v1596 = vunpack.c.h.b16 %v271
      %v1597 = vunpack.c.l.b16 %v272
      %v1598 = vunpack.c.l.b16 %v273
      %v1599 = vunpack.c.h.b16 %v273
      %v1600 = vunpack.c.l.b16 %v274
      %v1601 = vunpack.c.l.b16 %v275
      %v1602 = vunpack.c.h.b16 %v275
      %v1603 = vunpack.c.l.b16 %v276
      %v1604 = vunpack.c.l.b16 %v277
      %v1605 = vunpack.c.h.b16 %v277
      %v1606 = vunpack.c.l.b16 %v278
      %v1607 = vunpack.c.l.b16 %v279
      %v1608 = vunpack.c.h.b16 %v279
      %v1609 = vunpack.c.l.b16 %v280
      %v1610 = vunpack.c.l.b16 %v281
      %v1611 = vunpack.c.h.b16 %v281
      %v1612 = vunpack.c.l.b16 %v282
      %v1613 = vunpack.c.l.b16 %v283
      %v1614 = vunpack.c.h.b16 %v283
      %v1615 = vunpack.c.l.b16 %v284
      %v1616 = vunpack.c.l.b16 %v285
      %v1617 = vunpack.c.h.b16 %v285
      %v1618 = vunpack.c.l.b16 %v286
      %v1619 = vunpack.c.l.b16 %v287
      %v1620 = vunpack.c.h.b16 %v287
      %v1621 = vunpack.c.l.b16 %v288
      %v1622 = vunpack.c.l.b16 %v289
      %v1623 = vunpack.c.h.b16 %v289
      %v1624 = vunpack.c.l.b16 %v290
      %v1625 = vunpack.c.l.b16 %v291
      %v1626 = vunpack.c.h.b16 %v291
      %v1627 = vunpack.c.l.b16 %v292
      %v1628 = vunpack.c.l.b16 %v293
      %v1629 = vunpack.c.h.b16 %v293
      %v1630 = vunpack.c.l.b16 %v294
      %v1631 = vunpack.c.l.b16 %v295
      %v1632 = vunpack.c.h.b16 %v295
      %v1633 = vunpack.c.l.b16 %v296
      %v1634 = vunpack.c.l.b16 %v297
      %v1635 = vunpack.c.h.b16 %v297
      %v1636 = vunpack.c.l.b16 %v298
      %v1637 = vunpack.c.l.b16 %v299
      %v1638 = vunpack.c.h.b16 %v299
      %v1639 = vunpack.c.l.b16 %v300
      %v1640 = vunpack.c.l.b16 %v301
      %v1641 = vunpack.c.h.b16 %v301
      %v1642 = vunpack.c.l.b16 %v302
      %v1643 = vunpack.c.l.b16 %v303
      %v1644 = vunpack.c.h.b16 %v303
      %v1645 = vunpack.c.l.b16 %v304
      %v1646 = vunpack.c.l.b16 %v305
      %v1647 = vunpack.c.h.b16 %v305
      %v1648 = vunpack.c.l.b16 %v306
      %v1649 = vunpack.c.l.b16 %v307
      %v1650 = vunpack.c.h.b16 %v307
      %v1651 = vunpack.c.l.b16 %v308
      %v1652 = vunpack.c.l.b16 %v309
      %v1653 = vunpack.c.h.b16 %v309
      %v1654 = vunpack.c.l.b16 %v310
      %v1655 = vunpack.c.l.b16 %v311
      %v1656 = vunpack.c.h.b16 %v311
      %v1657 = vunpack.c.l.b16 %v312
      %v1658 = vunpack.c.l.b16 %v313
      %v1659 = vunpack.c.h.b16 %v313
      %v1660 = vunpack.c.l.b16 %v314
      %v1661 = vunpack.c.l.b16 %v315
      %v1662 = vunpack.c.h.b16 %v315
      %v1663 = vunpack.c.l.b16 %v316
      %v1664 = vunpack.c.l.b16 %v317
      %v1665 = vunpack.c.h.b16 %v317
      %v1666 = vunpack.c.l.b16 %v318
      %v1667 = vunpack.c.l.b16 %v319
      %v1668 = vunpack.c.h.b16 %v319
      %v1669 = vunpack.c.l.b16 %v320
      %v1670 = vunpack.c.l.b16 %v321
      %v1671 = vunpack.c.h.b16 %v321
      %v1672 = vunpack.c.l.b16 %v322
      %v1673 = vunpack.c.l.b16 %v323
      %v1674 = vunpack.c.h.b16 %v323
      %v1675 = vunpack.c.l.b16 %v324
      %v1676 = vunpack.c.l.b16 %v325
      %v1677 = vunpack.c.h.b16 %v325
      %v1678 = vunpack.c.l.b16 %v326
      %v1679 = vunpack.c.l.b16 %v327
      %v1680 = vunpack.c.h.b16 %v327
      %v1681 = vunpack.c.l.b16 %v328
      %v1682 = vunpack.c.l.b16 %v329
      %v1683 = vunpack.c.h.b16 %v329
      %v1684 = vunpack.c.l.b16 %v330
      %v1685 = vunpack.c.l.b16 %v331
      %v1686 = vunpack.c.h.b16 %v331
      %v1687 = vunpack.c.l.b16 %v332
      %v1688 = vpack.c.b16 %v1499, %v1496
      %v1689 = vpack.c.b16 %v1500, %v1497
      %v1690 = vpack.c.b16 %v1501, %v1498
      %v1691 = vpack.c.b16 %v1505, %v1502
      %v1692 = vpack.c.b16 %v1506, %v1503
      %v1693 = vpack.c.b16 %v1507, %v1504
      %v1694 = vpack.c.b16 %v1511, %v1508
      %v1695 = vpack.c.b16 %v1512, %v1509
      %v1696 = vpack.c.b16 %v1513, %v1510
      %v1697 = vpack.c.b16 %v1517, %v1514
      %v1698 = vpack.c.b16 %v1518, %v1515
      %v1699 = vpack.c.b16 %v1519, %v1516
      %v1700 = vpack.c.b16 %v1523, %v1520
      %v1701 = vpack.c.b16 %v1524, %v1521
      %v1702 = vpack.c.b16 %v1525, %v1522
      %v1703 = vpack.c.b16 %v1529, %v1526
      %v1704 = vpack.c.b16 %v1530, %v1527
      %v1705 = vpack.c.b16 %v1531, %v1528
      %v1706 = vpack.c.b16 %v1535, %v1532
      %v1707 = vpack.c.b16 %v1536, %v1533
      %v1708 = vpack.c.b16 %v1537, %v1534
      %v1709 = vpack.c.b16 %v1541, %v1538
      %v1710 = vpack.c.b16 %v1542, %v1539
      %v1711 = vpack.c.b16 %v1543, %v1540
      %v1712 = vpack.c.b16 %v1547, %v1544
      %v1713 = vpack.c.b16 %v1548, %v1545
      %v1714 = vpack.c.b16 %v1549, %v1546
      %v1715 = vpack.c.b16 %v1553, %v1550
      %v1716 = vpack.c.b16 %v1554, %v1551
      %v1717 = vpack.c.b16 %v1555, %v1552
      %v1718 = vpack.c.b16 %v1559, %v1556
      %v1719 = vpack.c.b16 %v1560, %v1557
      %v1720 = vpack.c.b16 %v1561, %v1558
      %v1721 = vpack.c.b16 %v1565, %v1562
      %v1722 = vpack.c.b16 %v1566, %v1563
      %v1723 = vpack.c.b16 %v1567, %v1564
      %v1724 = vpack.c.b16 %v1571, %v1568
      %v1725 = vpack.c.b16 %v1572, %v1569
      %v1726 = vpack.c.b16 %v1573, %v1570
      %v1727 = vpack.c.b16 %v1577, %v1574
      %v1728 = vpack.c.b16 %v1578, %v1575
      %v1729 = vpack.c.b16 %v1579, %v1576
      %v1730 = vpack.c.b16 %v1583, %v1580
      %v1731 = vpack.c.b16 %v1584, %v1581
      %v1732 = vpack.c.b16 %v1585, %v1582
      %v1733 = vpack.c.b16 %v1589, %v1586
      %v1734 = vpack.c.b16 %v1590, %v1587
      %v1735 = vpack.c.b16 %v1591, %v1588
      %v1736 = vpack.c.b16 %v1595, %v1592
      %v1737 = vpack.c.b16 %v1596, %v1593
      %v1738 = vpack.c.b16 %v1597, %v1594
      %v1739 = vpack.c.b16 %v1601, %v1598
      %v1740 = vpack.c.b16 %v1602, %v1599
      %v1741 = vpack.c.b16 %v1603, %v1600
      %v1742 = vpack.c.b16 %v1607, %v1604
      %v1743 = vpack.c.b16 %v1608, %v1605
      %v1744 = vpack.c.b16 %v1609, %v1606
      %v1745 = vpack.c.b16 %v1613, %v1610
      %v1746 = vpack.c.b16 %v1614, %v1611
      %v1747 = vpack.c.b16 %v1615, %v1612
      %v1748 = vpack.c.b16 %v1619, %v1616
      %v1749 = vpack.c.b16 %v1620, %v1617
      %v1750 = vpack.c.b16 %v1621, %v1618
      %v1751 = vpack.c.b16 %v1625, %v1622
      %v1752 = vpack.c.b16 %v1626, %v1623
      %v1753 = vpack.c.b16 %v1627, %v1624
      %v1754 = vpack.c.b16 %v1631, %v1628
      %v1755 = vpack.c.b16 %v1632, %v1629
      %v1756 = vpack.c.b16 %v1633, %v1630
      %v1757 = vpack.c.b16 %v1637, %v1634
      %v1758 = vpack.c.b16 %v1638, %v1635
      %v1759 = vpack.c.b16 %v1639, %v1636
      %v1760 = vpack.c.b16 %v1643, %v1640
      %v1761 = vpack.c.b16 %v1644, %v1641
      %v1762 = vpack.c.b16 %v1645, %v1642
      %v1763 = vpack.c.b16 %v1649, %v1646
      %v1764 = vpack.c.b16 %v1650, %v1647
      %v1765 = vpack.c.b16 %v1651, %v1648
      %v1766 = vpack.c.b16 %v1655, %v1652
      %v1767 = vpack.c.b16 %v1656, %v1653
      %v1768 = vpack.c.b16 %v1657, %v1654
      %v1769 = vpack.c.b16 %v1661, %v1658
      %v1770 = vpack.c.b16 %v1662, %v1659
      %v1771 = vpack.c.b16 %v1663, %v1660
      %v1772 = vpack.c.b16 %v1667, %v1664
      %v1773 = vpack.c.b16 %v1668, %v1665
      %v1774 = vpack.c.b16 %v1669, %v1666
      %v1775 = vpack.c.b16 %v1673, %v1670
      %v1776 = vpack.c.b16 %v1674, %v1671
      %v1777 = vpack.c.b16 %v1675, %v1672
      %v1778 = vpack.c.b16 %v1679, %v1676
      %v1779 = vpack.c.b16 %v1680, %v1677
      %v1780 = vpack.c.b16 %v1681, %v1678
      %v1781 = vpack.c.b16 %v1685, %v1682
      %v1782 = vpack.c.b16 %v1686, %v1683
      %v1783 = vpack.c.b16 %v1687, %v1684
      %1880 = vmatprep.subr.bf16.mxu0 %v1710
      %1881 = vmatpush1.bf16.msra.mxu0 %v1709
      %1882 = vmatprep.subr.bf16.mxu0 %v1707
      %1883 = vmatpush1.bf16.msra.mxu0 %v1706
      %1884 = vmatprep.subr.bf16.mxu0 %v1704
      %1885 = vmatpush1.bf16.msra.mxu0 %v1703
      %1886 = vmatprep.subr.bf16.mxu0 %v1701
      %1887 = vmatpush1.bf16.msra.mxu0 %v1700
      %1888 = vmatprep.subr.bf16.mxu0 %v1698
      %1889 = vmatpush1.bf16.msra.mxu0 %v1697
      %1890 = vmatprep.subr.bf16.mxu0 %v1695
      %1891 = vmatpush1.bf16.msra.mxu0 %v1694
      %1892 = vmatprep.subr.bf16.mxu0 %v1692
      %1893 = vmatpush1.bf16.msra.mxu0 %v1691
      %1894 = vmatprep.subr.bf16.mxu0 %v1689
      %1895 = vmatpush1.bf16.msra.mxu0 %v1688
      %1896 = vmatprep.subr.bf16.mxu0 %v1734
      %1897 = vmatpush2.bf16.msra.mxu0 %v1733
      %1898 = vmatprep.subr.bf16.mxu0 %v1731
      %1899 = vmatpush2.bf16.msra.mxu0 %v1730
      %1900 = vmatprep.subr.bf16.mxu0 %v1728
      %1901 = vmatpush2.bf16.msra.mxu0 %v1727
      %1902 = vmatprep.subr.bf16.mxu0 %v1725
      %1903 = vmatpush2.bf16.msra.mxu0 %v1724
      %1904 = vmatprep.subr.bf16.mxu0 %v1722
      %1905 = vmatpush2.bf16.msra.mxu0 %v1721
      %1906 = vmatprep.subr.bf16.mxu0 %v1719
      %1907 = vmatpush2.bf16.msra.mxu0 %v1718
      %1908 = vmatprep.subr.bf16.mxu0 %v1716
      %1909 = vmatpush2.bf16.msra.mxu0 %v1715
      %1910 = vmatprep.subr.bf16.mxu0 %v1713
      %1911 = vmatpush2.bf16.msra.mxu0 %v1712
      %1912 = vmatprep.mubr.bf16.mxu0 %v1337
      %1913 = vmatmul.mubr.bf16.gmra.mxu0 %v1336
      %v1914 = vpop.f32.mrf.mxu0
      %v1915 = vadd.f32 %v1162, %v1914
      %v1916 = vpop.f32.mrf.mxu0
      %v1917 = vadd.f32 %v1164, %v1916
      %v1918 = vpop.f32.mrf.mxu0
      %v1919 = vadd.f32 %v1166, %v1918
      %v1920 = vpop.f32.mrf.mxu0
      %v1921 = vadd.f32 %v1168, %v1920
      %1922 = vmatprep.mubr.bf16.mxu0 %v1341
      %1923 = vmatmul.mubr.bf16.gmra.mxu0 %v1340
      %v1924 = vpop.f32.mrf.mxu0
      %v1925 = vadd.f32 %v1172, %v1924
      %v1926 = vpop.f32.mrf.mxu0
      %v1927 = vadd.f32 %v1174, %v1926
      %v1928 = vpop.f32.mrf.mxu0
      %v1929 = vadd.f32 %v1176, %v1928
      %v1930 = vpop.f32.mrf.mxu0
      %v1931 = vadd.f32 %v1178, %v1930
      %1932 = vmatprep.mubr.bf16.mxu0 %v1345
      %1933 = vmatmul.mubr.bf16.gmra.mxu0 %v1344
      %v1934 = vpop.f32.mrf.mxu0
      %v1935 = vadd.f32 %v1182, %v1934
      %v1936 = vpop.f32.mrf.mxu0
      %v1937 = vadd.f32 %v1184, %v1936
      %v1938 = vpop.f32.mrf.mxu0
      %v1939 = vadd.f32 %v1186, %v1938
      %v1940 = vpop.f32.mrf.mxu0
      %v1941 = vadd.f32 %v1188, %v1940
      %1942 = vmatprep.mubr.bf16.mxu0 %v1349
      %1943 = vmatmul.mubr.bf16.gmra.mxu0 %v1348
      %v1944 = vpop.f32.mrf.mxu0
      %v1945 = vadd.f32 %v1192, %v1944
      %v1946 = vpop.f32.mrf.mxu0
      %v1947 = vadd.f32 %v1194, %v1946
      %v1948 = vpop.f32.mrf.mxu0
      %v1949 = vadd.f32 %v1196, %v1948
      %v1950 = vpop.f32.mrf.mxu0
      %v1951 = vadd.f32 %v1198, %v1950
      %1952 = vdwg.mxu0
      %1953 = vmatprep.subr.bf16.mxu0 %v1758
      %1954 = vmatpush1.bf16.msra.mxu0 %v1757
      %1955 = vmatprep.subr.bf16.mxu0 %v1755
      %1956 = vmatpush1.bf16.msra.mxu0 %v1754
      %1957 = vmatprep.subr.bf16.mxu0 %v1752
      %1958 = vmatpush1.bf16.msra.mxu0 %v1751
      %1959 = vmatprep.subr.bf16.mxu0 %v1749
      %1960 = vmatpush1.bf16.msra.mxu0 %v1748
      %1961 = vmatprep.subr.bf16.mxu0 %v1746
      %1962 = vmatpush1.bf16.msra.mxu0 %v1745
      %1963 = vmatprep.subr.bf16.mxu0 %v1743
      %1964 = vmatpush1.bf16.msra.mxu0 %v1742
      %1965 = vmatprep.subr.bf16.mxu0 %v1740
      %1966 = vmatpush1.bf16.msra.mxu0 %v1739
      %1967 = vmatprep.subr.bf16.mxu0 %v1737
      %1968 = vmatpush1.bf16.msra.mxu0 %v1736
      %1969 = vmatprep.subr.bf16.mxu0 %v1782
      %1970 = vmatpush2.bf16.msra.mxu0 %v1781
      %1971 = vmatprep.subr.bf16.mxu0 %v1779
      %1972 = vmatpush2.bf16.msra.mxu0 %v1778
      %1973 = vmatprep.subr.bf16.mxu0 %v1776
      %1974 = vmatpush2.bf16.msra.mxu0 %v1775
      %1975 = vmatprep.subr.bf16.mxu0 %v1773
      %1976 = vmatpush2.bf16.msra.mxu0 %v1772
      %1977 = vmatprep.subr.bf16.mxu0 %v1770
      %1978 = vmatpush2.bf16.msra.mxu0 %v1769
      %1979 = vmatprep.subr.bf16.mxu0 %v1767
      %1980 = vmatpush2.bf16.msra.mxu0 %v1766
      %1981 = vmatprep.subr.bf16.mxu0 %v1764
      %1982 = vmatpush2.bf16.msra.mxu0 %v1763
      %1983 = vmatprep.subr.bf16.mxu0 %v1761
      %1984 = vmatpush2.bf16.msra.mxu0 %v1760
      %1985 = vmatprep.mubr.bf16.mxu0 %v1339
      %1986 = vmatmul.mubr.bf16.gmra.mxu0 %v1338
      %v1987 = vpop.f32.mrf.mxu0
      %v1988 = vadd.f32 %v1915, %v1987
      %v1989 = vpop.f32.mrf.mxu0
      %v1990 = vadd.f32 %v1917, %v1989
      %v1991 = vpop.f32.mrf.mxu0
      %v1992 = vadd.f32 %v1919, %v1991
      %v1993 = vpop.f32.mrf.mxu0
      %v1994 = vadd.f32 %v1921, %v1993
      %1995 = vmatprep.mubr.bf16.mxu0 %v1343
      %1996 = vmatmul.mubr.bf16.gmra.mxu0 %v1342
      %v1997 = vpop.f32.mrf.mxu0
      %v1998 = vadd.f32 %v1925, %v1997
      %v1999 = vpop.f32.mrf.mxu0
      %v2000 = vadd.f32 %v1927, %v1999
      %v2001 = vpop.f32.mrf.mxu0
      %v2002 = vadd.f32 %v1929, %v2001
      %v2003 = vpop.f32.mrf.mxu0
      %v2004 = vadd.f32 %v1931, %v2003
      %2005 = vmatprep.mubr.bf16.mxu0 %v1347
      %2006 = vmatmul.mubr.bf16.gmra.mxu0 %v1346
      %v2007 = vpop.f32.mrf.mxu0
      %v2008 = vadd.f32 %v1935, %v2007
      %v2009 = vpop.f32.mrf.mxu0
      %v2010 = vadd.f32 %v1937, %v2009
      %v2011 = vpop.f32.mrf.mxu0
      %v2012 = vadd.f32 %v1939, %v2011
      %v2013 = vpop.f32.mrf.mxu0
      %v2014 = vadd.f32 %v1941, %v2013
      %2015 = vmatprep.mubr.bf16.mxu0 %v1351
      %2016 = vmatmul.mubr.bf16.gmra.mxu0 %v1350
      %v2017 = vpop.f32.mrf.mxu0
      %v2018 = vadd.f32 %v1945, %v2017
      %v2019 = vpop.f32.mrf.mxu0
      %v2020 = vadd.f32 %v1947, %v2019
      %v2021 = vpop.f32.mrf.mxu0
      %v2022 = vadd.f32 %v1949, %v2021
      %v2023 = vpop.f32.mrf.mxu0
      %v2024 = vadd.f32 %v1951, %v2023
      %2025 = vdwg.mxu0
      %2026 = vmatprep.subr.bf16.mxu0 0
      %2027 = vmatpush1.bf16.msra.mxu0 %v1711
      %2028 = vmatprep.subr.bf16.mxu0 0
      %2029 = vmatpush1.bf16.msra.mxu0 %v1708
      %2030 = vmatprep.subr.bf16.mxu0 0
      %2031 = vmatpush1.bf16.msra.mxu0 %v1705
      %2032 = vmatprep.subr.bf16.mxu0 0
      %2033 = vmatpush1.bf16.msra.mxu0 %v1702
      %2034 = vmatprep.subr.bf16.mxu0 0
      %2035 = vmatpush1.bf16.msra.mxu0 %v1699
      %2036 = vmatprep.subr.bf16.mxu0 0
      %2037 = vmatpush1.bf16.msra.mxu0 %v1696
      %2038 = vmatprep.subr.bf16.mxu0 0
      %2039 = vmatpush1.bf16.msra.mxu0 %v1693
      %2040 = vmatprep.subr.bf16.mxu0 0
      %2041 = vmatpush1.bf16.msra.mxu0 %v1690
      %2042 = vmatprep.subr.bf16.mxu0 0
      %2043 = vmatpush2.bf16.msra.mxu0 %v1735
      %2044 = vmatprep.subr.bf16.mxu0 0
      %2045 = vmatpush2.bf16.msra.mxu0 %v1732
      %2046 = vmatprep.subr.bf16.mxu0 0
      %2047 = vmatpush2.bf16.msra.mxu0 %v1729
      %2048 = vmatprep.subr.bf16.mxu0 0
      %2049 = vmatpush2.bf16.msra.mxu0 %v1726
      %2050 = vmatprep.subr.bf16.mxu0 0
      %2051 = vmatpush2.bf16.msra.mxu0 %v1723
      %2052 = vmatprep.subr.bf16.mxu0 0
      %2053 = vmatpush2.bf16.msra.mxu0 %v1720
      %2054 = vmatprep.subr.bf16.mxu0 0
      %2055 = vmatpush2.bf16.msra.mxu0 %v1717
      %2056 = vmatprep.subr.bf16.mxu0 0
      %2057 = vmatpush2.bf16.msra.mxu0 %v1714
      %2058 = vmatprep.mubr.bf16.mxu0 %v1337
      %2059 = vmatmul.mubr.bf16.gmra.mxu0 %v1336
      %v2060 = vpop.f32.mrf.mxu0
      %v2061 = vadd.f32 %v1300, %v2060
      %v2062 = vpop.f32.mrf.mxu0
      %v2063 = vpop.f32.mrf.mxu0
      %v2064 = vadd.f32 %v1303, %v2063
      %v2065 = vpop.f32.mrf.mxu0
      %2066 = vmatprep.mubr.bf16.mxu0 %v1341
      %2067 = vmatmul.mubr.bf16.gmra.mxu0 %v1340
      %v2068 = vpop.f32.mrf.mxu0
      %v2069 = vadd.f32 %v1308, %v2068
      %v2070 = vpop.f32.mrf.mxu0
      %v2071 = vpop.f32.mrf.mxu0
      %v2072 = vadd.f32 %v1311, %v2071
      %v2073 = vpop.f32.mrf.mxu0
      %2074 = vmatprep.mubr.bf16.mxu0 %v1345
      %2075 = vmatmul.mubr.bf16.gmra.mxu0 %v1344
      %v2076 = vpop.f32.mrf.mxu0
      %v2077 = vadd.f32 %v1316, %v2076
      %v2078 = vpop.f32.mrf.mxu0
      %v2079 = vpop.f32.mrf.mxu0
      %v2080 = vadd.f32 %v1319, %v2079
      %v2081 = vpop.f32.mrf.mxu0
      %2082 = vmatprep.mubr.bf16.mxu0 %v1349
      %2083 = vmatmul.mubr.bf16.gmra.mxu0 %v1348
      %v2084 = vpop.f32.mrf.mxu0
      %v2085 = vadd.f32 %v1324, %v2084
      %v2086 = vpop.f32.mrf.mxu0
      %v2087 = vpop.f32.mrf.mxu0
      %v2088 = vadd.f32 %v1327, %v2087
      %v2089 = vpop.f32.mrf.mxu0
      %2090 = vdwg.mxu0
      %2091 = vmatprep.subr.bf16.mxu0 0
      %2092 = vmatpush1.bf16.msra.mxu0 %v1759
      %2093 = vmatprep.subr.bf16.mxu0 0
      %2094 = vmatpush1.bf16.msra.mxu0 %v1756
      %2095 = vmatprep.subr.bf16.mxu0 0
      %2096 = vmatpush1.bf16.msra.mxu0 %v1753
      %2097 = vmatprep.subr.bf16.mxu0 0
      %2098 = vmatpush1.bf16.msra.mxu0 %v1750
      %2099 = vmatprep.subr.bf16.mxu0 0
      %2100 = vmatpush1.bf16.msra.mxu0 %v1747
      %2101 = vmatprep.subr.bf16.mxu0 0
      %2102 = vmatpush1.bf16.msra.mxu0 %v1744
      %2103 = vmatprep.subr.bf16.mxu0 0
      %2104 = vmatpush1.bf16.msra.mxu0 %v1741
      %2105 = vmatprep.subr.bf16.mxu0 0
      %2106 = vmatpush1.bf16.msra.mxu0 %v1738
      %2107 = vmatprep.subr.bf16.mxu0 0
      %2108 = vmatpush2.bf16.msra.mxu0 %v1783
      %2109 = vmatprep.subr.bf16.mxu0 0
      %2110 = vmatpush2.bf16.msra.mxu0 %v1780
      %2111 = vmatprep.subr.bf16.mxu0 0
      %2112 = vmatpush2.bf16.msra.mxu0 %v1777
      %2113 = vmatprep.subr.bf16.mxu0 0
      %2114 = vmatpush2.bf16.msra.mxu0 %v1774
      %2115 = vmatprep.subr.bf16.mxu0 0
      %2116 = vmatpush2.bf16.msra.mxu0 %v1771
      %2117 = vmatprep.subr.bf16.mxu0 0
      %2118 = vmatpush2.bf16.msra.mxu0 %v1768
      %2119 = vmatprep.subr.bf16.mxu0 0
      %2120 = vmatpush2.bf16.msra.mxu0 %v1765
      %2121 = vmatprep.subr.bf16.mxu0 0
      %2122 = vmatpush2.bf16.msra.mxu0 %v1762
      %2123 = vmatprep.mubr.bf16.mxu0 %v1339
      %2124 = vmatmul.mubr.bf16.gmra.mxu0 %v1338
      %v2125 = vpop.f32.mrf.mxu0
      %v2126 = vadd.f32 %v2061, %v2125
      %v2127 = vpop.f32.mrf.mxu0
      %v2128 = vpop.f32.mrf.mxu0
      %v2129 = vadd.f32 %v2064, %v2128
      %v2130 = vpop.f32.mrf.mxu0
      %2131 = vmatprep.mubr.bf16.mxu0 %v1343
      %2132 = vmatmul.mubr.bf16.gmra.mxu0 %v1342
      %v2133 = vpop.f32.mrf.mxu0
      %v2134 = vadd.f32 %v2069, %v2133
      %v2135 = vpop.f32.mrf.mxu0
      %v2136 = vpop.f32.mrf.mxu0
      %v2137 = vadd.f32 %v2072, %v2136
      %v2138 = vpop.f32.mrf.mxu0
      %2139 = vmatprep.mubr.bf16.mxu0 %v1347
      %2140 = vmatmul.mubr.bf16.gmra.mxu0 %v1346
      %v2141 = vpop.f32.mrf.mxu0
      %v2142 = vadd.f32 %v2077, %v2141
      %v2143 = vpop.f32.mrf.mxu0
      %v2144 = vpop.f32.mrf.mxu0
      %v2145 = vadd.f32 %v2080, %v2144
      %v2146 = vpop.f32.mrf.mxu0
      %2147 = vmatprep.mubr.bf16.mxu0 %v1351
      %2148 = vmatmul.mubr.bf16.gmra.mxu0 %v1350
      %v2149 = vpop.f32.mrf.mxu0
      %v2150 = vadd.f32 %v2085, %v2149
      %v2151 = vpop.f32.mrf.mxu0
      %v2152 = vpop.f32.mrf.mxu0
      %v2153 = vadd.f32 %v2088, %v2152
      %v2154 = vpop.f32.mrf.mxu0
      %2155 = vdwg.mxu0
      %s2156 = scalar_lea.vmem %s1, 4608
      %v2157 = vld [vmem:[%s2156] sm:$0xff]
      %v2158 = vld [vmem:[%s2156 + $0x8] sm:$0xf]
      %v2159 = vld [vmem:[%s2156 + $0xc] sm:$0xff]
      %v2160 = vld [vmem:[%s2156 + $0x14] sm:$0xf]
      %v2161 = vld [vmem:[%s2156 + $0x18] sm:$0xff]
      %v2162 = vld [vmem:[%s2156 + $0x20] sm:$0xf]
      %v2163 = vld [vmem:[%s2156 + $0x24] sm:$0xff]
      %v2164 = vld [vmem:[%s2156 + $0x2c] sm:$0xf]
      %v2165 = vld [vmem:[%s2156 + $0x30] sm:$0xff]
      %v2166 = vld [vmem:[%s2156 + $0x38] sm:$0xf]
      %v2167 = vld [vmem:[%s2156 + $0x3c] sm:$0xff]
      %v2168 = vld [vmem:[%s2156 + $0x44] sm:$0xf]
      %v2169 = vld [vmem:[%s2156 + $0x48] sm:$0xff]
      %v2170 = vld [vmem:[%s2156 + $0x50] sm:$0xf]
      %v2171 = vld [vmem:[%s2156 + $0x54] sm:$0xff]
      %v2172 = vld [vmem:[%s2156 + $0x5c] sm:$0xf]
      %v2173 = vld [vmem:[%s2156 + $0x60] sm:$0xff]
      %v2174 = vld [vmem:[%s2156 + $0x68] sm:$0xf]
      %v2175 = vld [vmem:[%s2156 + $0x6c] sm:$0xff]
      %v2176 = vld [vmem:[%s2156 + $0x74] sm:$0xf]
      %v2177 = vld [vmem:[%s2156 + $0x78] sm:$0xff]
      %v2178 = vld [vmem:[%s2156 + $0x80] sm:$0xf]
      %v2179 = vld [vmem:[%s2156 + $0x84] sm:$0xff]
      %v2180 = vld [vmem:[%s2156 + $0x8c] sm:$0xf]
      %v2181 = vld [vmem:[%s2156 + $0x90] sm:$0xff]
      %v2182 = vld [vmem:[%s2156 + $0x98] sm:$0xf]
      %v2183 = vld [vmem:[%s2156 + $0x9c] sm:$0xff]
      %v2184 = vld [vmem:[%s2156 + $0xa4] sm:$0xf]
      %v2185 = vld [vmem:[%s2156 + $0xa8] sm:$0xff]
      %v2186 = vld [vmem:[%s2156 + $0xb0] sm:$0xf]
      %v2187 = vld [vmem:[%s2156 + $0xb4] sm:$0xff]
      %v2188 = vld [vmem:[%s2156 + $0xbc] sm:$0xf]
      %v2189 = vld [vmem:[%s2156 + $0xc0] sm:$0xff]
      %v2190 = vld [vmem:[%s2156 + $0xc8] sm:$0xf]
      %v2191 = vld [vmem:[%s2156 + $0xcc] sm:$0xff]
      %v2192 = vld [vmem:[%s2156 + $0xd4] sm:$0xf]
      %v2193 = vld [vmem:[%s2156 + $0xd8] sm:$0xff]
      %v2194 = vld [vmem:[%s2156 + $0xe0] sm:$0xf]
      %v2195 = vld [vmem:[%s2156 + $0xe4] sm:$0xff]
      %v2196 = vld [vmem:[%s2156 + $0xec] sm:$0xf]
      %v2197 = vld [vmem:[%s2156 + $0xf0] sm:$0xff]
      %v2198 = vld [vmem:[%s2156 + $0xf8] sm:$0xf]
      %v2199 = vld [vmem:[%s2156 + $0xfc] sm:$0xff]
      %v2200 = vld [vmem:[%s2156 + $0x104] sm:$0xf]
      %v2201 = vld [vmem:[%s2156 + $0x108] sm:$0xff]
      %v2202 = vld [vmem:[%s2156 + $0x110] sm:$0xf]
      %v2203 = vld [vmem:[%s2156 + $0x114] sm:$0xff]
      %v2204 = vld [vmem:[%s2156 + $0x11c] sm:$0xf]
      %v2205 = vld [vmem:[%s2156 + $0x120] sm:$0xff]
      %v2206 = vld [vmem:[%s2156 + $0x128] sm:$0xf]
      %v2207 = vld [vmem:[%s2156 + $0x12c] sm:$0xff]
      %v2208 = vld [vmem:[%s2156 + $0x134] sm:$0xf]
      %v2209 = vld [vmem:[%s2156 + $0x138] sm:$0xff]
      %v2210 = vld [vmem:[%s2156 + $0x140] sm:$0xf]
      %v2211 = vld [vmem:[%s2156 + $0x144] sm:$0xff]
      %v2212 = vld [vmem:[%s2156 + $0x14c] sm:$0xf]
      %v2213 = vld [vmem:[%s2156 + $0x150] sm:$0xff]
      %v2214 = vld [vmem:[%s2156 + $0x158] sm:$0xf]
      %v2215 = vld [vmem:[%s2156 + $0x15c] sm:$0xff]
      %v2216 = vld [vmem:[%s2156 + $0x164] sm:$0xf]
      %v2217 = vld [vmem:[%s2156 + $0x168] sm:$0xff]
      %v2218 = vld [vmem:[%s2156 + $0x170] sm:$0xf]
      %v2219 = vld [vmem:[%s2156 + $0x174] sm:$0xff]
      %v2220 = vld [vmem:[%s2156 + $0x17c] sm:$0xf]
      %v2221 = vld [vmem:[%s2156 + $0x180] sm:$0xff]
      %v2222 = vld [vmem:[%s2156 + $0x188] sm:$0xf]
      %v2223 = vld [vmem:[%s2156 + $0x18c] sm:$0xff]
      %v2224 = vld [vmem:[%s2156 + $0x194] sm:$0xf]
      %v2225 = vld [vmem:[%s2156 + $0x198] sm:$0xff]
      %v2226 = vld [vmem:[%s2156 + $0x1a0] sm:$0xf]
      %v2227 = vld [vmem:[%s2156 + $0x1a4] sm:$0xff]
      %v2228 = vld [vmem:[%s2156 + $0x1ac] sm:$0xf]
      %v2229 = vld [vmem:[%s2156 + $0x1b0] sm:$0xff]
      %v2230 = vld [vmem:[%s2156 + $0x1b8] sm:$0xf]
      %v2231 = vld [vmem:[%s2156 + $0x1bc] sm:$0xff]
      %v2232 = vld [vmem:[%s2156 + $0x1c4] sm:$0xf]
      %v2233 = vld [vmem:[%s2156 + $0x1c8] sm:$0xff]
      %v2234 = vld [vmem:[%s2156 + $0x1d0] sm:$0xf]
      %v2235 = vld [vmem:[%s2156 + $0x1d4] sm:$0xff]
      %v2236 = vld [vmem:[%s2156 + $0x1dc] sm:$0xf]
      %v2237 = vld [vmem:[%s2156 + $0x1e0] sm:$0xff]
      %v2238 = vld [vmem:[%s2156 + $0x1e8] sm:$0xf]
      %v2239 = vld [vmem:[%s2156 + $0x1ec] sm:$0xff]
      %v2240 = vld [vmem:[%s2156 + $0x1f4] sm:$0xf]
      %v2241 = vld [vmem:[%s2156 + $0x1f8] sm:$0xff]
      %v2242 = vld [vmem:[%s2156 + $0x200] sm:$0xf]
      %v2243 = vld [vmem:[%s2156 + $0x204] sm:$0xff]
      %v2244 = vld [vmem:[%s2156 + $0x20c] sm:$0xf]
      %v2245 = vld [vmem:[%s2156 + $0x210] sm:$0xff]
      %v2246 = vld [vmem:[%s2156 + $0x218] sm:$0xf]
      %v2247 = vld [vmem:[%s2156 + $0x21c] sm:$0xff]
      %v2248 = vld [vmem:[%s2156 + $0x224] sm:$0xf]
      %v2249 = vld [vmem:[%s2156 + $0x228] sm:$0xff]
      %v2250 = vld [vmem:[%s2156 + $0x230] sm:$0xf]
      %v2251 = vld [vmem:[%s2156 + $0x234] sm:$0xff]
      %v2252 = vld [vmem:[%s2156 + $0x23c] sm:$0xf]
      %v2253 = vld [vmem:[%s2156 + $0x240] sm:$0xff]
      %v2254 = vld [vmem:[%s2156 + $0x248] sm:$0xf]
      %v2255 = vld [vmem:[%s2156 + $0x24c] sm:$0xff]
      %v2256 = vld [vmem:[%s2156 + $0x254] sm:$0xf]
      %v2257 = vld [vmem:[%s2156 + $0x258] sm:$0xff]
      %v2258 = vld [vmem:[%s2156 + $0x260] sm:$0xf]
      %v2259 = vld [vmem:[%s2156 + $0x264] sm:$0xff]
      %v2260 = vld [vmem:[%s2156 + $0x26c] sm:$0xf]
      %v2261 = vld [vmem:[%s2156 + $0x270] sm:$0xff]
      %v2262 = vld [vmem:[%s2156 + $0x278] sm:$0xf]
      %v2263 = vld [vmem:[%s2156 + $0x27c] sm:$0xff]
      %v2264 = vld [vmem:[%s2156 + $0x284] sm:$0xf]
      %v2265 = vld [vmem:[%s2156 + $0x288] sm:$0xff]
      %v2266 = vld [vmem:[%s2156 + $0x290] sm:$0xf]
      %v2267 = vld [vmem:[%s2156 + $0x294] sm:$0xff]
      %v2268 = vld [vmem:[%s2156 + $0x29c] sm:$0xf]
      %v2269 = vld [vmem:[%s2156 + $0x2a0] sm:$0xff]
      %v2270 = vld [vmem:[%s2156 + $0x2a8] sm:$0xf]
      %v2271 = vld [vmem:[%s2156 + $0x2ac] sm:$0xff]
      %v2272 = vld [vmem:[%s2156 + $0x2b4] sm:$0xf]
      %v2273 = vld [vmem:[%s2156 + $0x2b8] sm:$0xff]
      %v2274 = vld [vmem:[%s2156 + $0x2c0] sm:$0xf]
      %v2275 = vld [vmem:[%s2156 + $0x2c4] sm:$0xff]
      %v2276 = vld [vmem:[%s2156 + $0x2cc] sm:$0xf]
      %v2277 = vld [vmem:[%s2156 + $0x2d0] sm:$0xff]
      %v2278 = vld [vmem:[%s2156 + $0x2d8] sm:$0xf]
      %v2279 = vld [vmem:[%s2156 + $0x2dc] sm:$0xff]
      %v2280 = vld [vmem:[%s2156 + $0x2e4] sm:$0xf]
      %v2281 = vld [vmem:[%s2156 + $0x2e8] sm:$0xff]
      %v2282 = vld [vmem:[%s2156 + $0x2f0] sm:$0xf]
      %v2283 = vld [vmem:[%s2156 + $0x2f4] sm:$0xff]
      %v2284 = vld [vmem:[%s2156 + $0x2fc] sm:$0xf]
      %v2287 = vunpack.c.l.b16 %v203
      %v2288 = vunpack.c.h.b16 %v203
      %v2289 = vunpack.c.l.b16 %v204
      %v2290 = vunpack.c.h.b16 %v204
      %v2291 = vpack.c.b16 %v2287, %v506
      %v2292 = vpack.c.b16 %v2288, %v507
      %v2293 = vpack.c.b16 %v2289, %v508
      %v2294 = vpack.c.b16 %v2290, %v509
      %v2427 = vunpack.c.l.b16 %v2157
      %v2428 = vunpack.c.h.b16 %v2157
      %v2429 = vunpack.c.l.b16 %v2158
      %v2430 = vunpack.c.l.b16 %v2159
      %v2431 = vunpack.c.h.b16 %v2159
      %v2432 = vunpack.c.l.b16 %v2160
      %v2433 = vunpack.c.l.b16 %v2161
      %v2434 = vunpack.c.h.b16 %v2161
      %v2435 = vunpack.c.l.b16 %v2162
      %v2436 = vunpack.c.l.b16 %v2163
      %v2437 = vunpack.c.h.b16 %v2163
      %v2438 = vunpack.c.l.b16 %v2164
      %v2439 = vunpack.c.l.b16 %v2165
      %v2440 = vunpack.c.h.b16 %v2165
      %v2441 = vunpack.c.l.b16 %v2166
      %v2442 = vunpack.c.l.b16 %v2167
      %v2443 = vunpack.c.h.b16 %v2167
      %v2444 = vunpack.c.l.b16 %v2168
      %v2445 = vunpack.c.l.b16 %v2169
      %v2446 = vunpack.c.h.b16 %v2169
      %v2447 = vunpack.c.l.b16 %v2170
      %v2448 = vunpack.c.l.b16 %v2171
      %v2449 = vunpack.c.h.b16 %v2171
      %v2450 = vunpack.c.l.b16 %v2172
      %v2451 = vunpack.c.l.b16 %v2173
      %v2452 = vunpack.c.h.b16 %v2173
      %v2453 = vunpack.c.l.b16 %v2174
      %v2454 = vunpack.c.l.b16 %v2175
      %v2455 = vunpack.c.h.b16 %v2175
      %v2456 = vunpack.c.l.b16 %v2176
      %v2457 = vunpack.c.l.b16 %v2177
      %v2458 = vunpack.c.h.b16 %v2177
      %v2459 = vunpack.c.l.b16 %v2178
      %v2460 = vunpack.c.l.b16 %v2179
      %v2461 = vunpack.c.h.b16 %v2179
      %v2462 = vunpack.c.l.b16 %v2180
      %v2463 = vunpack.c.l.b16 %v2181
      %v2464 = vunpack.c.h.b16 %v2181
      %v2465 = vunpack.c.l.b16 %v2182
      %v2466 = vunpack.c.l.b16 %v2183
      %v2467 = vunpack.c.h.b16 %v2183
      %v2468 = vunpack.c.l.b16 %v2184
      %v2469 = vunpack.c.l.b16 %v2185
      %v2470 = vunpack.c.h.b16 %v2185
      %v2471 = vunpack.c.l.b16 %v2186
      %v2472 = vunpack.c.l.b16 %v2187
      %v2473 = vunpack.c.h.b16 %v2187
      %v2474 = vunpack.c.l.b16 %v2188
      %v2475 = vunpack.c.l.b16 %v2189
      %v2476 = vunpack.c.h.b16 %v2189
      %v2477 = vunpack.c.l.b16 %v2190
      %v2478 = vunpack.c.l.b16 %v2191
      %v2479 = vunpack.c.h.b16 %v2191
      %v2480 = vunpack.c.l.b16 %v2192
      %v2481 = vunpack.c.l.b16 %v2193
      %v2482 = vunpack.c.h.b16 %v2193
      %v2483 = vunpack.c.l.b16 %v2194
      %v2484 = vunpack.c.l.b16 %v2195
      %v2485 = vunpack.c.h.b16 %v2195
      %v2486 = vunpack.c.l.b16 %v2196
      %v2487 = vunpack.c.l.b16 %v2197
      %v2488 = vunpack.c.h.b16 %v2197
      %v2489 = vunpack.c.l.b16 %v2198
      %v2490 = vunpack.c.l.b16 %v2199
      %v2491 = vunpack.c.h.b16 %v2199
      %v2492 = vunpack.c.l.b16 %v2200
      %v2493 = vunpack.c.l.b16 %v2201
      %v2494 = vunpack.c.h.b16 %v2201
      %v2495 = vunpack.c.l.b16 %v2202
      %v2496 = vunpack.c.l.b16 %v2203
      %v2497 = vunpack.c.h.b16 %v2203
      %v2498 = vunpack.c.l.b16 %v2204
      %v2499 = vunpack.c.l.b16 %v2205
      %v2500 = vunpack.c.h.b16 %v2205
      %v2501 = vunpack.c.l.b16 %v2206
      %v2502 = vunpack.c.l.b16 %v2207
      %v2503 = vunpack.c.h.b16 %v2207
      %v2504 = vunpack.c.l.b16 %v2208
      %v2505 = vunpack.c.l.b16 %v2209
      %v2506 = vunpack.c.h.b16 %v2209
      %v2507 = vunpack.c.l.b16 %v2210
      %v2508 = vunpack.c.l.b16 %v2211
      %v2509 = vunpack.c.h.b16 %v2211
      %v2510 = vunpack.c.l.b16 %v2212
      %v2511 = vunpack.c.l.b16 %v2213
      %v2512 = vunpack.c.h.b16 %v2213
      %v2513 = vunpack.c.l.b16 %v2214
      %v2514 = vunpack.c.l.b16 %v2215
      %v2515 = vunpack.c.h.b16 %v2215
      %v2516 = vunpack.c.l.b16 %v2216
      %v2517 = vunpack.c.l.b16 %v2217
      %v2518 = vunpack.c.h.b16 %v2217
      %v2519 = vunpack.c.l.b16 %v2218
      %v2520 = vunpack.c.l.b16 %v2219
      %v2521 = vunpack.c.h.b16 %v2219
      %v2522 = vunpack.c.l.b16 %v2220
      %v2523 = vunpack.c.l.b16 %v2221
      %v2524 = vunpack.c.h.b16 %v2221
      %v2525 = vunpack.c.l.b16 %v2222
      %v2526 = vunpack.c.l.b16 %v2223
      %v2527 = vunpack.c.h.b16 %v2223
      %v2528 = vunpack.c.l.b16 %v2224
      %v2529 = vunpack.c.l.b16 %v2225
      %v2530 = vunpack.c.h.b16 %v2225
      %v2531 = vunpack.c.l.b16 %v2226
      %v2532 = vunpack.c.l.b16 %v2227
      %v2533 = vunpack.c.h.b16 %v2227
      %v2534 = vunpack.c.l.b16 %v2228
      %v2535 = vunpack.c.l.b16 %v2229
      %v2536 = vunpack.c.h.b16 %v2229
      %v2537 = vunpack.c.l.b16 %v2230
      %v2538 = vunpack.c.l.b16 %v2231
      %v2539 = vunpack.c.h.b16 %v2231
      %v2540 = vunpack.c.l.b16 %v2232
      %v2541 = vunpack.c.l.b16 %v2233
      %v2542 = vunpack.c.h.b16 %v2233
      %v2543 = vunpack.c.l.b16 %v2234
      %v2544 = vunpack.c.l.b16 %v2235
      %v2545 = vunpack.c.h.b16 %v2235
      %v2546 = vunpack.c.l.b16 %v2236
      %v2547 = vunpack.c.l.b16 %v2237
      %v2548 = vunpack.c.h.b16 %v2237
      %v2549 = vunpack.c.l.b16 %v2238
      %v2550 = vunpack.c.l.b16 %v2239
      %v2551 = vunpack.c.h.b16 %v2239
      %v2552 = vunpack.c.l.b16 %v2240
      %v2553 = vunpack.c.l.b16 %v2241
      %v2554 = vunpack.c.h.b16 %v2241
      %v2555 = vunpack.c.l.b16 %v2242
      %v2556 = vunpack.c.l.b16 %v2243
      %v2557 = vunpack.c.h.b16 %v2243
      %v2558 = vunpack.c.l.b16 %v2244
      %v2559 = vunpack.c.l.b16 %v2245
      %v2560 = vunpack.c.h.b16 %v2245
      %v2561 = vunpack.c.l.b16 %v2246
      %v2562 = vunpack.c.l.b16 %v2247
      %v2563 = vunpack.c.h.b16 %v2247
      %v2564 = vunpack.c.l.b16 %v2248
      %v2565 = vunpack.c.l.b16 %v2249
      %v2566 = vunpack.c.h.b16 %v2249
      %v2567 = vunpack.c.l.b16 %v2250
      %v2568 = vunpack.c.l.b16 %v2251
      %v2569 = vunpack.c.h.b16 %v2251
      %v2570 = vunpack.c.l.b16 %v2252
      %v2571 = vunpack.c.l.b16 %v2253
      %v2572 = vunpack.c.h.b16 %v2253
      %v2573 = vunpack.c.l.b16 %v2254
      %v2574 = vunpack.c.l.b16 %v2255
      %v2575 = vunpack.c.h.b16 %v2255
      %v2576 = vunpack.c.l.b16 %v2256
      %v2577 = vunpack.c.l.b16 %v2257
      %v2578 = vunpack.c.h.b16 %v2257
      %v2579 = vunpack.c.l.b16 %v2258
      %v2580 = vunpack.c.l.b16 %v2259
      %v2581 = vunpack.c.h.b16 %v2259
      %v2582 = vunpack.c.l.b16 %v2260
      %v2583 = vunpack.c.l.b16 %v2261
      %v2584 = vunpack.c.h.b16 %v2261
      %v2585 = vunpack.c.l.b16 %v2262
      %v2586 = vunpack.c.l.b16 %v2263
      %v2587 = vunpack.c.h.b16 %v2263
      %v2588 = vunpack.c.l.b16 %v2264
      %v2589 = vunpack.c.l.b16 %v2265
      %v2590 = vunpack.c.h.b16 %v2265
      %v2591 = vunpack.c.l.b16 %v2266
      %v2592 = vunpack.c.l.b16 %v2267
      %v2593 = vunpack.c.h.b16 %v2267
      %v2594 = vunpack.c.l.b16 %v2268
      %v2595 = vunpack.c.l.b16 %v2269
      %v2596 = vunpack.c.h.b16 %v2269
      %v2597 = vunpack.c.l.b16 %v2270
      %v2598 = vunpack.c.l.b16 %v2271
      %v2599 = vunpack.c.h.b16 %v2271
      %v2600 = vunpack.c.l.b16 %v2272
      %v2601 = vunpack.c.l.b16 %v2273
      %v2602 = vunpack.c.h.b16 %v2273
      %v2603 = vunpack.c.l.b16 %v2274
      %v2604 = vunpack.c.l.b16 %v2275
      %v2605 = vunpack.c.h.b16 %v2275
      %v2606 = vunpack.c.l.b16 %v2276
      %v2607 = vunpack.c.l.b16 %v2277
      %v2608 = vunpack.c.h.b16 %v2277
      %v2609 = vunpack.c.l.b16 %v2278
      %v2610 = vunpack.c.l.b16 %v2279
      %v2611 = vunpack.c.h.b16 %v2279
      %v2612 = vunpack.c.l.b16 %v2280
      %v2613 = vunpack.c.l.b16 %v2281
      %v2614 = vunpack.c.h.b16 %v2281
      %v2615 = vunpack.c.l.b16 %v2282
      %v2616 = vunpack.c.l.b16 %v2283
      %v2617 = vunpack.c.h.b16 %v2283
      %v2618 = vunpack.c.l.b16 %v2284
      %v2619 = vpack.c.b16 %v2430, %v2427
      %v2620 = vpack.c.b16 %v2431, %v2428
      %v2621 = vpack.c.b16 %v2432, %v2429
      %v2622 = vpack.c.b16 %v2436, %v2433
      %v2623 = vpack.c.b16 %v2437, %v2434
      %v2624 = vpack.c.b16 %v2438, %v2435
      %v2625 = vpack.c.b16 %v2442, %v2439
      %v2626 = vpack.c.b16 %v2443, %v2440
      %v2627 = vpack.c.b16 %v2444, %v2441
      %v2628 = vpack.c.b16 %v2448, %v2445
      %v2629 = vpack.c.b16 %v2449, %v2446
      %v2630 = vpack.c.b16 %v2450, %v2447
      %v2631 = vpack.c.b16 %v2454, %v2451
      %v2632 = vpack.c.b16 %v2455, %v2452
      %v2633 = vpack.c.b16 %v2456, %v2453
      %v2634 = vpack.c.b16 %v2460, %v2457
      %v2635 = vpack.c.b16 %v2461, %v2458
      %v2636 = vpack.c.b16 %v2462, %v2459
      %v2637 = vpack.c.b16 %v2466, %v2463
      %v2638 = vpack.c.b16 %v2467, %v2464
      %v2639 = vpack.c.b16 %v2468, %v2465
      %v2640 = vpack.c.b16 %v2472, %v2469
      %v2641 = vpack.c.b16 %v2473, %v2470
      %v2642 = vpack.c.b16 %v2474, %v2471
      %v2643 = vpack.c.b16 %v2478, %v2475
      %v2644 = vpack.c.b16 %v2479, %v2476
      %v2645 = vpack.c.b16 %v2480, %v2477
      %v2646 = vpack.c.b16 %v2484, %v2481
      %v2647 = vpack.c.b16 %v2485, %v2482
      %v2648 = vpack.c.b16 %v2486, %v2483
      %v2649 = vpack.c.b16 %v2490, %v2487
      %v2650 = vpack.c.b16 %v2491, %v2488
      %v2651 = vpack.c.b16 %v2492, %v2489
      %v2652 = vpack.c.b16 %v2496, %v2493
      %v2653 = vpack.c.b16 %v2497, %v2494
      %v2654 = vpack.c.b16 %v2498, %v2495
      %v2655 = vpack.c.b16 %v2502, %v2499
      %v2656 = vpack.c.b16 %v2503, %v2500
      %v2657 = vpack.c.b16 %v2504, %v2501
      %v2658 = vpack.c.b16 %v2508, %v2505
      %v2659 = vpack.c.b16 %v2509, %v2506
      %v2660 = vpack.c.b16 %v2510, %v2507
      %v2661 = vpack.c.b16 %v2514, %v2511
      %v2662 = vpack.c.b16 %v2515, %v2512
      %v2663 = vpack.c.b16 %v2516, %v2513
      %v2664 = vpack.c.b16 %v2520, %v2517
      %v2665 = vpack.c.b16 %v2521, %v2518
      %v2666 = vpack.c.b16 %v2522, %v2519
      %v2667 = vpack.c.b16 %v2526, %v2523
      %v2668 = vpack.c.b16 %v2527, %v2524
      %v2669 = vpack.c.b16 %v2528, %v2525
      %v2670 = vpack.c.b16 %v2532, %v2529
      %v2671 = vpack.c.b16 %v2533, %v2530
      %v2672 = vpack.c.b16 %v2534, %v2531
      %v2673 = vpack.c.b16 %v2538, %v2535
      %v2674 = vpack.c.b16 %v2539, %v2536
      %v2675 = vpack.c.b16 %v2540, %v2537
      %v2676 = vpack.c.b16 %v2544, %v2541
      %v2677 = vpack.c.b16 %v2545, %v2542
      %v2678 = vpack.c.b16 %v2546, %v2543
      %v2679 = vpack.c.b16 %v2550, %v2547
      %v2680 = vpack.c.b16 %v2551, %v2548
      %v2681 = vpack.c.b16 %v2552, %v2549
      %v2682 = vpack.c.b16 %v2556, %v2553
      %v2683 = vpack.c.b16 %v2557, %v2554
      %v2684 = vpack.c.b16 %v2558, %v2555
      %v2685 = vpack.c.b16 %v2562, %v2559
      %v2686 = vpack.c.b16 %v2563, %v2560
      %v2687 = vpack.c.b16 %v2564, %v2561
      %v2688 = vpack.c.b16 %v2568, %v2565
      %v2689 = vpack.c.b16 %v2569, %v2566
      %v2690 = vpack.c.b16 %v2570, %v2567
      %v2691 = vpack.c.b16 %v2574, %v2571
      %v2692 = vpack.c.b16 %v2575, %v2572
      %v2693 = vpack.c.b16 %v2576, %v2573
      %v2694 = vpack.c.b16 %v2580, %v2577
      %v2695 = vpack.c.b16 %v2581, %v2578
      %v2696 = vpack.c.b16 %v2582, %v2579
      %v2697 = vpack.c.b16 %v2586, %v2583
      %v2698 = vpack.c.b16 %v2587, %v2584
      %v2699 = vpack.c.b16 %v2588, %v2585
      %v2700 = vpack.c.b16 %v2592, %v2589
      %v2701 = vpack.c.b16 %v2593, %v2590
      %v2702 = vpack.c.b16 %v2594, %v2591
      %v2703 = vpack.c.b16 %v2598, %v2595
      %v2704 = vpack.c.b16 %v2599, %v2596
      %v2705 = vpack.c.b16 %v2600, %v2597
      %v2706 = vpack.c.b16 %v2604, %v2601
      %v2707 = vpack.c.b16 %v2605, %v2602
      %v2708 = vpack.c.b16 %v2606, %v2603
      %v2709 = vpack.c.b16 %v2610, %v2607
      %v2710 = vpack.c.b16 %v2611, %v2608
      %v2711 = vpack.c.b16 %v2612, %v2609
      %v2712 = vpack.c.b16 %v2616, %v2613
      %v2713 = vpack.c.b16 %v2617, %v2614
      %v2714 = vpack.c.b16 %v2618, %v2615
      %2811 = vmatprep.subr.bf16.mxu0 %v2641
      %2812 = vmatpush1.bf16.msra.mxu0 %v2640
      %2813 = vmatprep.subr.bf16.mxu0 %v2638
      %2814 = vmatpush1.bf16.msra.mxu0 %v2637
      %2815 = vmatprep.subr.bf16.mxu0 %v2635
      %2816 = vmatpush1.bf16.msra.mxu0 %v2634
      %2817 = vmatprep.subr.bf16.mxu0 %v2632
      %2818 = vmatpush1.bf16.msra.mxu0 %v2631
      %2819 = vmatprep.subr.bf16.mxu0 %v2629
      %2820 = vmatpush1.bf16.msra.mxu0 %v2628
      %2821 = vmatprep.subr.bf16.mxu0 %v2626
      %2822 = vmatpush1.bf16.msra.mxu0 %v2625
      %2823 = vmatprep.subr.bf16.mxu0 %v2623
      %2824 = vmatpush1.bf16.msra.mxu0 %v2622
      %2825 = vmatprep.subr.bf16.mxu0 %v2620
      %2826 = vmatpush1.bf16.msra.mxu0 %v2619
      %2827 = vmatprep.subr.bf16.mxu0 %v2665
      %2828 = vmatpush2.bf16.msra.mxu0 %v2664
      %2829 = vmatprep.subr.bf16.mxu0 %v2662
      %2830 = vmatpush2.bf16.msra.mxu0 %v2661
      %2831 = vmatprep.subr.bf16.mxu0 %v2659
      %2832 = vmatpush2.bf16.msra.mxu0 %v2658
      %2833 = vmatprep.subr.bf16.mxu0 %v2656
      %2834 = vmatpush2.bf16.msra.mxu0 %v2655
      %2835 = vmatprep.subr.bf16.mxu0 %v2653
      %2836 = vmatpush2.bf16.msra.mxu0 %v2652
      %2837 = vmatprep.subr.bf16.mxu0 %v2650
      %2838 = vmatpush2.bf16.msra.mxu0 %v2649
      %2839 = vmatprep.subr.bf16.mxu0 %v2647
      %2840 = vmatpush2.bf16.msra.mxu0 %v2646
      %2841 = vmatprep.subr.bf16.mxu0 %v2644
      %2842 = vmatpush2.bf16.msra.mxu0 %v2643
      %2843 = vmatprep.mubr.bf16.mxu0 %v1341
      %2844 = vmatmul.mubr.bf16.gmra.mxu0 %v1340
      %v2845 = vpop.f32.mrf.mxu0
      %v2846 = vadd.f32 0.0, %v2845
      %v2847 = vpop.f32.mrf.mxu0
      %v2848 = vadd.f32 0.0, %v2847
      %v2849 = vpop.f32.mrf.mxu0
      %v2850 = vadd.f32 0.0, %v2849
      %v2851 = vpop.f32.mrf.mxu0
      %v2852 = vadd.f32 0.0, %v2851
      %2853 = vmatprep.mubr.bf16.mxu0 %v1345
      %2854 = vmatmul.mubr.bf16.gmra.mxu0 %v1344
      %v2855 = vpop.f32.mrf.mxu0
      %v2856 = vadd.f32 0.0, %v2855
      %v2857 = vpop.f32.mrf.mxu0
      %v2858 = vadd.f32 0.0, %v2857
      %v2859 = vpop.f32.mrf.mxu0
      %v2860 = vadd.f32 0.0, %v2859
      %v2861 = vpop.f32.mrf.mxu0
      %v2862 = vadd.f32 0.0, %v2861
      %2863 = vmatprep.mubr.bf16.mxu0 %v1349
      %2864 = vmatmul.mubr.bf16.gmra.mxu0 %v1348
      %v2865 = vpop.f32.mrf.mxu0
      %v2866 = vadd.f32 0.0, %v2865
      %v2867 = vpop.f32.mrf.mxu0
      %v2868 = vadd.f32 0.0, %v2867
      %v2869 = vpop.f32.mrf.mxu0
      %v2870 = vadd.f32 0.0, %v2869
      %v2871 = vpop.f32.mrf.mxu0
      %v2872 = vadd.f32 0.0, %v2871
      %2873 = vmatprep.mubr.bf16.mxu0 %v2292
      %2874 = vmatmul.mubr.bf16.gmra.mxu0 %v2291
      %v2875 = vpop.f32.mrf.mxu0
      %v2876 = vadd.f32 0.0, %v2875
      %v2877 = vpop.f32.mrf.mxu0
      %v2878 = vadd.f32 0.0, %v2877
      %v2879 = vpop.f32.mrf.mxu0
      %v2880 = vadd.f32 0.0, %v2879
      %v2881 = vpop.f32.mrf.mxu0
      %v2882 = vadd.f32 0.0, %v2881
      %2883 = vdwg.mxu0
      %2884 = vmatprep.subr.bf16.mxu0 %v2689
      %2885 = vmatpush1.bf16.msra.mxu0 %v2688
      %2886 = vmatprep.subr.bf16.mxu0 %v2686
      %2887 = vmatpush1.bf16.msra.mxu0 %v2685
      %2888 = vmatprep.subr.bf16.mxu0 %v2683
      %2889 = vmatpush1.bf16.msra.mxu0 %v2682
      %2890 = vmatprep.subr.bf16.mxu0 %v2680
      %2891 = vmatpush1.bf16.msra.mxu0 %v2679
      %2892 = vmatprep.subr.bf16.mxu0 %v2677
      %2893 = vmatpush1.bf16.msra.mxu0 %v2676
      %2894 = vmatprep.subr.bf16.mxu0 %v2674
      %2895 = vmatpush1.bf16.msra.mxu0 %v2673
      %2896 = vmatprep.subr.bf16.mxu0 %v2671
      %2897 = vmatpush1.bf16.msra.mxu0 %v2670
      %2898 = vmatprep.subr.bf16.mxu0 %v2668
      %2899 = vmatpush1.bf16.msra.mxu0 %v2667
      %2900 = vmatprep.subr.bf16.mxu0 %v2713
      %2901 = vmatpush2.bf16.msra.mxu0 %v2712
      %2902 = vmatprep.subr.bf16.mxu0 %v2710
      %2903 = vmatpush2.bf16.msra.mxu0 %v2709
      %2904 = vmatprep.subr.bf16.mxu0 %v2707
      %2905 = vmatpush2.bf16.msra.mxu0 %v2706
      %2906 = vmatprep.subr.bf16.mxu0 %v2704
      %2907 = vmatpush2.bf16.msra.mxu0 %v2703
      %2908 = vmatprep.subr.bf16.mxu0 %v2701
      %2909 = vmatpush2.bf16.msra.mxu0 %v2700
      %2910 = vmatprep.subr.bf16.mxu0 %v2698
      %2911 = vmatpush2.bf16.msra.mxu0 %v2697
      %2912 = vmatprep.subr.bf16.mxu0 %v2695
      %2913 = vmatpush2.bf16.msra.mxu0 %v2694
      %2914 = vmatprep.subr.bf16.mxu0 %v2692
      %2915 = vmatpush2.bf16.msra.mxu0 %v2691
      %2916 = vmatprep.mubr.bf16.mxu0 %v1343
      %2917 = vmatmul.mubr.bf16.gmra.mxu0 %v1342
      %v2918 = vpop.f32.mrf.mxu0
      %v2919 = vadd.f32 %v2846, %v2918
      %v2920 = vpop.f32.mrf.mxu0
      %v2921 = vadd.f32 %v2848, %v2920
      %v2922 = vpop.f32.mrf.mxu0
      %v2923 = vadd.f32 %v2850, %v2922
      %v2924 = vpop.f32.mrf.mxu0
      %v2925 = vadd.f32 %v2852, %v2924
      %2926 = vmatprep.mubr.bf16.mxu0 %v1347
      %2927 = vmatmul.mubr.bf16.gmra.mxu0 %v1346
      %v2928 = vpop.f32.mrf.mxu0
      %v2929 = vadd.f32 %v2856, %v2928
      %v2930 = vpop.f32.mrf.mxu0
      %v2931 = vadd.f32 %v2858, %v2930
      %v2932 = vpop.f32.mrf.mxu0
      %v2933 = vadd.f32 %v2860, %v2932
      %v2934 = vpop.f32.mrf.mxu0
      %v2935 = vadd.f32 %v2862, %v2934
      %2936 = vmatprep.mubr.bf16.mxu0 %v1351
      %2937 = vmatmul.mubr.bf16.gmra.mxu0 %v1350
      %v2938 = vpop.f32.mrf.mxu0
      %v2939 = vadd.f32 %v2866, %v2938
      %v2940 = vpop.f32.mrf.mxu0
      %v2941 = vadd.f32 %v2868, %v2940
      %v2942 = vpop.f32.mrf.mxu0
      %v2943 = vadd.f32 %v2870, %v2942
      %v2944 = vpop.f32.mrf.mxu0
      %v2945 = vadd.f32 %v2872, %v2944
      %2946 = vmatprep.mubr.bf16.mxu0 %v2294
      %2947 = vmatmul.mubr.bf16.gmra.mxu0 %v2293
      %v2948 = vpop.f32.mrf.mxu0
      %v2949 = vadd.f32 %v2876, %v2948
      %v2950 = vpop.f32.mrf.mxu0
      %v2951 = vadd.f32 %v2878, %v2950
      %v2952 = vpop.f32.mrf.mxu0
      %v2953 = vadd.f32 %v2880, %v2952
      %v2954 = vpop.f32.mrf.mxu0
      %v2955 = vadd.f32 %v2882, %v2954
      %2956 = vdwg.mxu0
      %2957 = vmatprep.subr.bf16.mxu0 0
      %2958 = vmatpush1.bf16.msra.mxu0 %v2642
      %2959 = vmatprep.subr.bf16.mxu0 0
      %2960 = vmatpush1.bf16.msra.mxu0 %v2639
      %2961 = vmatprep.subr.bf16.mxu0 0
      %2962 = vmatpush1.bf16.msra.mxu0 %v2636
      %2963 = vmatprep.subr.bf16.mxu0 0
      %2964 = vmatpush1.bf16.msra.mxu0 %v2633
      %2965 = vmatprep.subr.bf16.mxu0 0
      %2966 = vmatpush1.bf16.msra.mxu0 %v2630
      %2967 = vmatprep.subr.bf16.mxu0 0
      %2968 = vmatpush1.bf16.msra.mxu0 %v2627
      %2969 = vmatprep.subr.bf16.mxu0 0
      %2970 = vmatpush1.bf16.msra.mxu0 %v2624
      %2971 = vmatprep.subr.bf16.mxu0 0
      %2972 = vmatpush1.bf16.msra.mxu0 %v2621
      %2973 = vmatprep.subr.bf16.mxu0 0
      %2974 = vmatpush2.bf16.msra.mxu0 %v2666
      %2975 = vmatprep.subr.bf16.mxu0 0
      %2976 = vmatpush2.bf16.msra.mxu0 %v2663
      %2977 = vmatprep.subr.bf16.mxu0 0
      %2978 = vmatpush2.bf16.msra.mxu0 %v2660
      %2979 = vmatprep.subr.bf16.mxu0 0
      %2980 = vmatpush2.bf16.msra.mxu0 %v2657
      %2981 = vmatprep.subr.bf16.mxu0 0
      %2982 = vmatpush2.bf16.msra.mxu0 %v2654
      %2983 = vmatprep.subr.bf16.mxu0 0
      %2984 = vmatpush2.bf16.msra.mxu0 %v2651
      %2985 = vmatprep.subr.bf16.mxu0 0
      %2986 = vmatpush2.bf16.msra.mxu0 %v2648
      %2987 = vmatprep.subr.bf16.mxu0 0
      %2988 = vmatpush2.bf16.msra.mxu0 %v2645
      %2989 = vmatprep.mubr.bf16.mxu0 %v1341
      %2990 = vmatmul.mubr.bf16.gmra.mxu0 %v1340
      %v2991 = vpop.f32.mrf.mxu0
      %v2992 = vadd.f32 0.0, %v2991
      %v2993 = vpop.f32.mrf.mxu0
      %v2994 = vpop.f32.mrf.mxu0
      %v2995 = vadd.f32 0.0, %v2994
      %v2996 = vpop.f32.mrf.mxu0
      %2997 = vmatprep.mubr.bf16.mxu0 %v1345
      %2998 = vmatmul.mubr.bf16.gmra.mxu0 %v1344
      %v2999 = vpop.f32.mrf.mxu0
      %v3000 = vadd.f32 0.0, %v2999
      %v3001 = vpop.f32.mrf.mxu0
      %v3002 = vpop.f32.mrf.mxu0
      %v3003 = vadd.f32 0.0, %v3002
      %v3004 = vpop.f32.mrf.mxu0
      %3005 = vmatprep.mubr.bf16.mxu0 %v1349
      %3006 = vmatmul.mubr.bf16.gmra.mxu0 %v1348
      %v3007 = vpop.f32.mrf.mxu0
      %v3008 = vadd.f32 0.0, %v3007
      %v3009 = vpop.f32.mrf.mxu0
      %v3010 = vpop.f32.mrf.mxu0
      %v3011 = vadd.f32 0.0, %v3010
      %v3012 = vpop.f32.mrf.mxu0
      %3013 = vmatprep.mubr.bf16.mxu0 %v2292
      %3014 = vmatmul.mubr.bf16.gmra.mxu0 %v2291
      %v3015 = vpop.f32.mrf.mxu0
      %v3016 = vadd.f32 0.0, %v3015
      %v3017 = vpop.f32.mrf.mxu0
      %v3018 = vpop.f32.mrf.mxu0
      %v3019 = vadd.f32 0.0, %v3018
      %v3020 = vpop.f32.mrf.mxu0
      %3021 = vdwg.mxu0
      %3022 = vmatprep.subr.bf16.mxu0 0
      %3023 = vmatpush1.bf16.msra.mxu0 %v2690
      %3024 = vmatprep.subr.bf16.mxu0 0
      %3025 = vmatpush1.bf16.msra.mxu0 %v2687
      %3026 = vmatprep.subr.bf16.mxu0 0
      %3027 = vmatpush1.bf16.msra.mxu0 %v2684
      %3028 = vmatprep.subr.bf16.mxu0 0
      %3029 = vmatpush1.bf16.msra.mxu0 %v2681
      %3030 = vmatprep.subr.bf16.mxu0 0
      %3031 = vmatpush1.bf16.msra.mxu0 %v2678
      %3032 = vmatprep.subr.bf16.mxu0 0
      %3033 = vmatpush1.bf16.msra.mxu0 %v2675
      %3034 = vmatprep.subr.bf16.mxu0 0
      %3035 = vmatpush1.bf16.msra.mxu0 %v2672
      %3036 = vmatprep.subr.bf16.mxu0 0
      %3037 = vmatpush1.bf16.msra.mxu0 %v2669
      %3038 = vmatprep.subr.bf16.mxu0 0
      %3039 = vmatpush2.bf16.msra.mxu0 %v2714
      %3040 = vmatprep.subr.bf16.mxu0 0
      %3041 = vmatpush2.bf16.msra.mxu0 %v2711
      %3042 = vmatprep.subr.bf16.mxu0 0
      %3043 = vmatpush2.bf16.msra.mxu0 %v2708
      %3044 = vmatprep.subr.bf16.mxu0 0
      %3045 = vmatpush2.bf16.msra.mxu0 %v2705
      %3046 = vmatprep.subr.bf16.mxu0 0
      %3047 = vmatpush2.bf16.msra.mxu0 %v2702
      %3048 = vmatprep.subr.bf16.mxu0 0
      %3049 = vmatpush2.bf16.msra.mxu0 %v2699
      %3050 = vmatprep.subr.bf16.mxu0 0
      %3051 = vmatpush2.bf16.msra.mxu0 %v2696
      %3052 = vmatprep.subr.bf16.mxu0 0
      %3053 = vmatpush2.bf16.msra.mxu0 %v2693
      %3054 = vmatprep.mubr.bf16.mxu0 %v1343
      %3055 = vmatmul.mubr.bf16.gmra.mxu0 %v1342
      %v3056 = vpop.f32.mrf.mxu0
      %v3057 = vadd.f32 %v2992, %v3056
      %v3058 = vpop.f32.mrf.mxu0
      %v3059 = vpop.f32.mrf.mxu0
      %v3060 = vadd.f32 %v2995, %v3059
      %v3061 = vpop.f32.mrf.mxu0
      %3062 = vmatprep.mubr.bf16.mxu0 %v1347
      %3063 = vmatmul.mubr.bf16.gmra.mxu0 %v1346
      %v3064 = vpop.f32.mrf.mxu0
      %v3065 = vadd.f32 %v3000, %v3064
      %v3066 = vpop.f32.mrf.mxu0
      %v3067 = vpop.f32.mrf.mxu0
      %v3068 = vadd.f32 %v3003, %v3067
      %v3069 = vpop.f32.mrf.mxu0
      %3070 = vmatprep.mubr.bf16.mxu0 %v1351
      %3071 = vmatmul.mubr.bf16.gmra.mxu0 %v1350
      %v3072 = vpop.f32.mrf.mxu0
      %v3073 = vadd.f32 %v3008, %v3072
      %v3074 = vpop.f32.mrf.mxu0
      %v3075 = vpop.f32.mrf.mxu0
      %v3076 = vadd.f32 %v3011, %v3075
      %v3077 = vpop.f32.mrf.mxu0
      %3078 = vmatprep.mubr.bf16.mxu0 %v2294
      %3079 = vmatmul.mubr.bf16.gmra.mxu0 %v2293
      %v3080 = vpop.f32.mrf.mxu0
      %v3081 = vadd.f32 %v3016, %v3080
      %v3082 = vpop.f32.mrf.mxu0
      %v3083 = vpop.f32.mrf.mxu0
      %v3084 = vadd.f32 %v3019, %v3083
      %v3085 = vpop.f32.mrf.mxu0
      %3086 = vdwg.mxu0
      %v3087 = vadd.f32 %v1988, %v2919
      %v3088 = vadd.f32 %v1990, %v2921
      %v3089 = vadd.f32 %v2126, %v3057
      %v3090 = vadd.f32 %v1992, %v2923
      %v3091 = vadd.f32 %v1994, %v2925
      %v3092 = vadd.f32 %v2129, %v3060
      %v3093 = vadd.f32 %v1998, %v2929
      %v3094 = vadd.f32 %v2000, %v2931
      %v3095 = vadd.f32 %v2134, %v3065
      %v3096 = vadd.f32 %v2002, %v2933
      %v3097 = vadd.f32 %v2004, %v2935
      %v3098 = vadd.f32 %v2137, %v3068
      %v3099 = vadd.f32 %v2008, %v2939
      %v3100 = vadd.f32 %v2010, %v2941
      %v3101 = vadd.f32 %v2142, %v3073
      %v3102 = vadd.f32 %v2012, %v2943
      %v3103 = vadd.f32 %v2014, %v2945
      %v3104 = vadd.f32 %v2145, %v3076
      %v3105 = vadd.f32 %v2018, %v2949
      %v3106 = vadd.f32 %v2020, %v2951
      %v3107 = vadd.f32 %v2150, %v3081
      %v3108 = vadd.f32 %v2022, %v2953
      %v3109 = vadd.f32 %v2024, %v2955
      %v3110 = vadd.f32 %v2153, %v3084
      %v3111 = vld [vmem:[%s173] sm:$0xff]
      %v3112 = vld [vmem:[%s173 + $0x8] sm:$0xff]
      %v3113 = vld [vmem:[%s173 + $0x10] sm:$0x11]
      %v3114 = vld [vmem:[%s173 + $0x18] sm:$0x11]
      %v3115 = vld [vmem:[%s173 + $0x20] sm:$0xff]
      %v3116 = vld [vmem:[%s173 + $0x28] sm:$0xff]
      %v3117 = vld [vmem:[%s173 + $0x30] sm:$0x11]
      %v3118 = vld [vmem:[%s173 + $0x38] sm:$0x11]
      %v3119 = vld [vmem:[%s173 + $0x40] sm:$0xff]
      %v3120 = vld [vmem:[%s173 + $0x48] sm:$0xff]
      %v3121 = vld [vmem:[%s173 + $0x50] sm:$0x11]
      %v3122 = vld [vmem:[%s173 + $0x58] sm:$0x11]
      %v3123 = vld [vmem:[%s173 + $0x60] sm:$0xff]
      %v3124 = vld [vmem:[%s173 + $0x68] sm:$0xff]
      %v3125 = vld [vmem:[%s173 + $0x70] sm:$0x11]
      %v3126 = vld [vmem:[%s173 + $0x78] sm:$0x11]
      %v3127 = vld [vmem:[%s173 + $0x80] sm:$0xff]
      %v3128 = vld [vmem:[%s173 + $0x88] sm:$0xff]
      %v3129 = vld [vmem:[%s173 + $0x90] sm:$0x11]
      %v3130 = vld [vmem:[%s173 + $0x98] sm:$0x11]
      %v3131 = vld [vmem:[%s173 + $0xa0] sm:$0xff]
      %v3132 = vld [vmem:[%s173 + $0xa8] sm:$0xff]
      %v3133 = vld [vmem:[%s173 + $0xb0] sm:$0x11]
      %v3134 = vld [vmem:[%s173 + $0xb8] sm:$0x11]
      %v3135 = vld [vmem:[%s173 + $0xc0] sm:$0xff]
      %v3136 = vld [vmem:[%s173 + $0xc8] sm:$0xff]
      %v3137 = vld [vmem:[%s173 + $0xd0] sm:$0x11]
      %v3138 = vld [vmem:[%s173 + $0xd8] sm:$0x11]
      %v3139 = vld [vmem:[%s173 + $0xe0] sm:$0xff]
      %v3140 = vld [vmem:[%s173 + $0xe8] sm:$0xff]
      %v3141 = vld [vmem:[%s173 + $0xf0] sm:$0x11]
      %v3142 = vld [vmem:[%s173 + $0xf8] sm:$0x11]
      %v3143 = vld [vmem:[%s173 + $0x100] sm:$0xff]
      %v3144 = vld [vmem:[%s173 + $0x108] sm:$0xff]
      %v3145 = vld [vmem:[%s173 + $0x110] sm:$0x11]
      %v3146 = vld [vmem:[%s173 + $0x118] sm:$0x11]
      %v3147 = vld [vmem:[%s173 + $0x120] sm:$0xff]
      %v3148 = vld [vmem:[%s173 + $0x128] sm:$0xff]
      %v3149 = vld [vmem:[%s173 + $0x130] sm:$0x11]
      %v3150 = vld [vmem:[%s173 + $0x138] sm:$0x11]
      %vm3151 = vsmask.f32 3328
      %vm3152 = vsmask.f32 7440
      %vm3153 = vmor %vm3151, %vm3152
      %v3155 = vshrl.u32 %v3111, 16
      %v3157 = vrot.slane %v3155, 4
      %v3158 = vshll.u32 %v3111, 16
      %v3160 = vrot.slane %v3158, 5
      %v3161 = vor.u32 %v3157, %v3160
      %v3162 = vrot.slane %v3161, 4
      %v3164 = vshll.u32 %v3113, 16
      %v3166 = vrot.slane %v3164, 5
      %v3167 = vsel %vm3153, %v3162, %v3166
      %v3169 = vshrl.u32 %v3112, 16
      %v3171 = vrot.slane %v3169, 4
      %v3172 = vshll.u32 %v3112, 16
      %v3174 = vrot.slane %v3172, 5
      %v3175 = vor.u32 %v3171, %v3174
      %v3176 = vrot.slane %v3175, 4
      %v3178 = vshll.u32 %v3114, 16
      %v3180 = vrot.slane %v3178, 5
      %v3181 = vsel %vm3153, %v3176, %v3180
      %v3183 = vshrl.u32 %v3115, 16
      %v3185 = vrot.slane %v3183, 4
      %v3186 = vshll.u32 %v3115, 16
      %v3188 = vrot.slane %v3186, 5
      %v3189 = vor.u32 %v3185, %v3188
      %v3190 = vrot.slane %v3189, 4
      %v3192 = vshll.u32 %v3117, 16
      %v3194 = vrot.slane %v3192, 5
      %v3195 = vsel %vm3153, %v3190, %v3194
      %v3197 = vshrl.u32 %v3116, 16
      %v3199 = vrot.slane %v3197, 4
      %v3200 = vshll.u32 %v3116, 16
      %v3202 = vrot.slane %v3200, 5
      %v3203 = vor.u32 %v3199, %v3202
      %v3204 = vrot.slane %v3203, 4
      %v3206 = vshll.u32 %v3118, 16
      %v3208 = vrot.slane %v3206, 5
      %v3209 = vsel %vm3153, %v3204, %v3208
      %v3211 = vshrl.u32 %v3119, 16
      %v3213 = vrot.slane %v3211, 4
      %v3214 = vshll.u32 %v3119, 16
      %v3216 = vrot.slane %v3214, 5
      %v3217 = vor.u32 %v3213, %v3216
      %v3218 = vrot.slane %v3217, 4
      %v3220 = vshll.u32 %v3121, 16
      %v3222 = vrot.slane %v3220, 5
      %v3223 = vsel %vm3153, %v3218, %v3222
      %v3225 = vshrl.u32 %v3120, 16
      %v3227 = vrot.slane %v3225, 4
      %v3228 = vshll.u32 %v3120, 16
      %v3230 = vrot.slane %v3228, 5
      %v3231 = vor.u32 %v3227, %v3230
      %v3232 = vrot.slane %v3231, 4
      %v3234 = vshll.u32 %v3122, 16
      %v3236 = vrot.slane %v3234, 5
      %v3237 = vsel %vm3153, %v3232, %v3236
      %v3239 = vshrl.u32 %v3123, 16
      %v3241 = vrot.slane %v3239, 4
      %v3242 = vshll.u32 %v3123, 16
      %v3244 = vrot.slane %v3242, 5
      %v3245 = vor.u32 %v3241, %v3244
      %v3246 = vrot.slane %v3245, 4
      %v3248 = vshll.u32 %v3125, 16
      %v3250 = vrot.slane %v3248, 5
      %v3251 = vsel %vm3153, %v3246, %v3250
      %v3253 = vshrl.u32 %v3124, 16
      %v3255 = vrot.slane %v3253, 4
      %v3256 = vshll.u32 %v3124, 16
      %v3258 = vrot.slane %v3256, 5
      %v3259 = vor.u32 %v3255, %v3258
      %v3260 = vrot.slane %v3259, 4
      %v3262 = vshll.u32 %v3126, 16
      %v3264 = vrot.slane %v3262, 5
      %v3265 = vsel %vm3153, %v3260, %v3264
      %v3267 = vshrl.u32 %v3127, 16
      %v3269 = vrot.slane %v3267, 4
      %v3270 = vshll.u32 %v3127, 16
      %v3272 = vrot.slane %v3270, 5
      %v3273 = vor.u32 %v3269, %v3272
      %v3274 = vrot.slane %v3273, 4
      %v3276 = vshll.u32 %v3129, 16
      %v3278 = vrot.slane %v3276, 5
      %v3279 = vsel %vm3153, %v3274, %v3278
      %v3281 = vshrl.u32 %v3128, 16
      %v3283 = vrot.slane %v3281, 4
      %v3284 = vshll.u32 %v3128, 16
      %v3286 = vrot.slane %v3284, 5
      %v3287 = vor.u32 %v3283, %v3286
      %v3288 = vrot.slane %v3287, 4
      %v3290 = vshll.u32 %v3130, 16
      %v3292 = vrot.slane %v3290, 5
      %v3293 = vsel %vm3153, %v3288, %v3292
      %v3295 = vshrl.u32 %v3131, 16
      %v3297 = vrot.slane %v3295, 4
      %v3298 = vshll.u32 %v3131, 16
      %v3300 = vrot.slane %v3298, 5
      %v3301 = vor.u32 %v3297, %v3300
      %v3302 = vrot.slane %v3301, 4
      %v3304 = vshll.u32 %v3133, 16
      %v3306 = vrot.slane %v3304, 5
      %v3307 = vsel %vm3153, %v3302, %v3306
      %v3309 = vshrl.u32 %v3132, 16
      %v3311 = vrot.slane %v3309, 4
      %v3312 = vshll.u32 %v3132, 16
      %v3314 = vrot.slane %v3312, 5
      %v3315 = vor.u32 %v3311, %v3314
      %v3316 = vrot.slane %v3315, 4
      %v3318 = vshll.u32 %v3134, 16
      %v3320 = vrot.slane %v3318, 5
      %v3321 = vsel %vm3153, %v3316, %v3320
      %v3323 = vshrl.u32 %v3135, 16
      %v3325 = vrot.slane %v3323, 4
      %v3326 = vshll.u32 %v3135, 16
      %v3328 = vrot.slane %v3326, 5
      %v3329 = vor.u32 %v3325, %v3328
      %v3330 = vrot.slane %v3329, 4
      %v3332 = vshll.u32 %v3137, 16
      %v3334 = vrot.slane %v3332, 5
      %v3335 = vsel %vm3153, %v3330, %v3334
      %v3337 = vshrl.u32 %v3136, 16
      %v3339 = vrot.slane %v3337, 4
      %v3340 = vshll.u32 %v3136, 16
      %v3342 = vrot.slane %v3340, 5
      %v3343 = vor.u32 %v3339, %v3342
      %v3344 = vrot.slane %v3343, 4
      %v3346 = vshll.u32 %v3138, 16
      %v3348 = vrot.slane %v3346, 5
      %v3349 = vsel %vm3153, %v3344, %v3348
      %v3351 = vshrl.u32 %v3139, 16
      %v3353 = vrot.slane %v3351, 4
      %v3354 = vshll.u32 %v3139, 16
      %v3356 = vrot.slane %v3354, 5
      %v3357 = vor.u32 %v3353, %v3356
      %v3358 = vrot.slane %v3357, 4
      %v3360 = vshll.u32 %v3141, 16
      %v3362 = vrot.slane %v3360, 5
      %v3363 = vsel %vm3153, %v3358, %v3362
      %v3365 = vshrl.u32 %v3140, 16
      %v3367 = vrot.slane %v3365, 4
      %v3368 = vshll.u32 %v3140, 16
      %v3370 = vrot.slane %v3368, 5
      %v3371 = vor.u32 %v3367, %v3370
      %v3372 = vrot.slane %v3371, 4
      %v3374 = vshll.u32 %v3142, 16
      %v3376 = vrot.slane %v3374, 5
      %v3377 = vsel %vm3153, %v3372, %v3376
      %s3378 = scalar_lea.vmem %s1, 768
      %v3379 = vld [vmem:[%s3378] sm:$0xff]
      %v3380 = vld [vmem:[%s3378 + $0x8] sm:$0xf]
      %v3381 = vld [vmem:[%s3378 + $0xc] sm:$0xff]
      %v3382 = vld [vmem:[%s3378 + $0x14] sm:$0xf]
      %v3383 = vld [vmem:[%s3378 + $0x18] sm:$0xff]
      %v3384 = vld [vmem:[%s3378 + $0x20] sm:$0xf]
      %v3385 = vld [vmem:[%s3378 + $0x24] sm:$0xff]
      %v3386 = vld [vmem:[%s3378 + $0x2c] sm:$0xf]
      %v3387 = vld [vmem:[%s3378 + $0x30] sm:$0xff]
      %v3388 = vld [vmem:[%s3378 + $0x38] sm:$0xf]
      %v3389 = vld [vmem:[%s3378 + $0x3c] sm:$0xff]
      %v3390 = vld [vmem:[%s3378 + $0x44] sm:$0xf]
      %v3391 = vld [vmem:[%s3378 + $0x48] sm:$0xff]
      %v3392 = vld [vmem:[%s3378 + $0x50] sm:$0xf]
      %v3393 = vld [vmem:[%s3378 + $0x54] sm:$0xff]
      %v3394 = vld [vmem:[%s3378 + $0x5c] sm:$0xf]
      %v3395 = vld [vmem:[%s3378 + $0x60] sm:$0xff]
      %v3396 = vld [vmem:[%s3378 + $0x68] sm:$0xf]
      %v3397 = vld [vmem:[%s3378 + $0x6c] sm:$0xff]
      %v3398 = vld [vmem:[%s3378 + $0x74] sm:$0xf]
      %v3399 = vld [vmem:[%s3378 + $0x78] sm:$0xff]
      %v3400 = vld [vmem:[%s3378 + $0x80] sm:$0xf]
      %v3401 = vld [vmem:[%s3378 + $0x84] sm:$0xff]
      %v3402 = vld [vmem:[%s3378 + $0x8c] sm:$0xf]
      %v3403 = vld [vmem:[%s3378 + $0x90] sm:$0xff]
      %v3404 = vld [vmem:[%s3378 + $0x98] sm:$0xf]
      %v3405 = vld [vmem:[%s3378 + $0x9c] sm:$0xff]
      %v3406 = vld [vmem:[%s3378 + $0xa4] sm:$0xf]
      %v3407 = vld [vmem:[%s3378 + $0xa8] sm:$0xff]
      %v3408 = vld [vmem:[%s3378 + $0xb0] sm:$0xf]
      %v3409 = vld [vmem:[%s3378 + $0xb4] sm:$0xff]
      %v3410 = vld [vmem:[%s3378 + $0xbc] sm:$0xf]
      %v3411 = vld [vmem:[%s3378 + $0xc0] sm:$0xff]
      %v3412 = vld [vmem:[%s3378 + $0xc8] sm:$0xf]
      %v3413 = vld [vmem:[%s3378 + $0xcc] sm:$0xff]
      %v3414 = vld [vmem:[%s3378 + $0xd4] sm:$0xf]
      %v3415 = vld [vmem:[%s3378 + $0xd8] sm:$0xff]
      %v3416 = vld [vmem:[%s3378 + $0xe0] sm:$0xf]
      %v3417 = vld [vmem:[%s3378 + $0xe4] sm:$0xff]
      %v3418 = vld [vmem:[%s3378 + $0xec] sm:$0xf]
      %v3419 = vld [vmem:[%s3378 + $0xf0] sm:$0xff]
      %v3420 = vld [vmem:[%s3378 + $0xf8] sm:$0xf]
      %v3421 = vld [vmem:[%s3378 + $0xfc] sm:$0xff]
      %v3422 = vld [vmem:[%s3378 + $0x104] sm:$0xf]
      %v3423 = vld [vmem:[%s3378 + $0x108] sm:$0xff]
      %v3424 = vld [vmem:[%s3378 + $0x110] sm:$0xf]
      %v3425 = vld [vmem:[%s3378 + $0x114] sm:$0xff]
      %v3426 = vld [vmem:[%s3378 + $0x11c] sm:$0xf]
      %v3427 = vld [vmem:[%s3378 + $0x120] sm:$0xff]
      %v3428 = vld [vmem:[%s3378 + $0x128] sm:$0xf]
      %v3429 = vld [vmem:[%s3378 + $0x12c] sm:$0xff]
      %v3430 = vld [vmem:[%s3378 + $0x134] sm:$0xf]
      %v3431 = vld [vmem:[%s3378 + $0x138] sm:$0xff]
      %v3432 = vld [vmem:[%s3378 + $0x140] sm:$0xf]
      %v3433 = vld [vmem:[%s3378 + $0x144] sm:$0xff]
      %v3434 = vld [vmem:[%s3378 + $0x14c] sm:$0xf]
      %v3435 = vld [vmem:[%s3378 + $0x150] sm:$0xff]
      %v3436 = vld [vmem:[%s3378 + $0x158] sm:$0xf]
      %v3437 = vld [vmem:[%s3378 + $0x15c] sm:$0xff]
      %v3438 = vld [vmem:[%s3378 + $0x164] sm:$0xf]
      %v3439 = vld [vmem:[%s3378 + $0x168] sm:$0xff]
      %v3440 = vld [vmem:[%s3378 + $0x170] sm:$0xf]
      %v3441 = vld [vmem:[%s3378 + $0x174] sm:$0xff]
      %v3442 = vld [vmem:[%s3378 + $0x17c] sm:$0xf]
      %v3443 = vld [vmem:[%s3378 + $0x180] sm:$0xff]
      %v3444 = vld [vmem:[%s3378 + $0x188] sm:$0xf]
      %v3445 = vld [vmem:[%s3378 + $0x18c] sm:$0xff]
      %v3446 = vld [vmem:[%s3378 + $0x194] sm:$0xf]
      %v3447 = vld [vmem:[%s3378 + $0x198] sm:$0xff]
      %v3448 = vld [vmem:[%s3378 + $0x1a0] sm:$0xf]
      %v3449 = vld [vmem:[%s3378 + $0x1a4] sm:$0xff]
      %v3450 = vld [vmem:[%s3378 + $0x1ac] sm:$0xf]
      %v3451 = vld [vmem:[%s3378 + $0x1b0] sm:$0xff]
      %v3452 = vld [vmem:[%s3378 + $0x1b8] sm:$0xf]
      %v3453 = vld [vmem:[%s3378 + $0x1bc] sm:$0xff]
      %v3454 = vld [vmem:[%s3378 + $0x1c4] sm:$0xf]
      %v3455 = vld [vmem:[%s3378 + $0x1c8] sm:$0xff]
      %v3456 = vld [vmem:[%s3378 + $0x1d0] sm:$0xf]
      %v3457 = vld [vmem:[%s3378 + $0x1d4] sm:$0xff]
      %v3458 = vld [vmem:[%s3378 + $0x1dc] sm:$0xf]
      %v3459 = vld [vmem:[%s3378 + $0x1e0] sm:$0xff]
      %v3460 = vld [vmem:[%s3378 + $0x1e8] sm:$0xf]
      %v3461 = vld [vmem:[%s3378 + $0x1ec] sm:$0xff]
      %v3462 = vld [vmem:[%s3378 + $0x1f4] sm:$0xf]
      %v3463 = vld [vmem:[%s3378 + $0x1f8] sm:$0xff]
      %v3464 = vld [vmem:[%s3378 + $0x200] sm:$0xf]
      %v3465 = vld [vmem:[%s3378 + $0x204] sm:$0xff]
      %v3466 = vld [vmem:[%s3378 + $0x20c] sm:$0xf]
      %v3467 = vld [vmem:[%s3378 + $0x210] sm:$0xff]
      %v3468 = vld [vmem:[%s3378 + $0x218] sm:$0xf]
      %v3469 = vld [vmem:[%s3378 + $0x21c] sm:$0xff]
      %v3470 = vld [vmem:[%s3378 + $0x224] sm:$0xf]
      %v3471 = vld [vmem:[%s3378 + $0x228] sm:$0xff]
      %v3472 = vld [vmem:[%s3378 + $0x230] sm:$0xf]
      %v3473 = vld [vmem:[%s3378 + $0x234] sm:$0xff]
      %v3474 = vld [vmem:[%s3378 + $0x23c] sm:$0xf]
      %v3475 = vld [vmem:[%s3378 + $0x240] sm:$0xff]
      %v3476 = vld [vmem:[%s3378 + $0x248] sm:$0xf]
      %v3477 = vld [vmem:[%s3378 + $0x24c] sm:$0xff]
      %v3478 = vld [vmem:[%s3378 + $0x254] sm:$0xf]
      %v3479 = vld [vmem:[%s3378 + $0x258] sm:$0xff]
      %v3480 = vld [vmem:[%s3378 + $0x260] sm:$0xf]
      %v3481 = vld [vmem:[%s3378 + $0x264] sm:$0xff]
      %v3482 = vld [vmem:[%s3378 + $0x26c] sm:$0xf]
      %v3483 = vld [vmem:[%s3378 + $0x270] sm:$0xff]
      %v3484 = vld [vmem:[%s3378 + $0x278] sm:$0xf]
      %v3485 = vld [vmem:[%s3378 + $0x27c] sm:$0xff]
      %v3486 = vld [vmem:[%s3378 + $0x284] sm:$0xf]
      %v3487 = vld [vmem:[%s3378 + $0x288] sm:$0xff]
      %v3488 = vld [vmem:[%s3378 + $0x290] sm:$0xf]
      %v3489 = vld [vmem:[%s3378 + $0x294] sm:$0xff]
      %v3490 = vld [vmem:[%s3378 + $0x29c] sm:$0xf]
      %v3491 = vld [vmem:[%s3378 + $0x2a0] sm:$0xff]
      %v3492 = vld [vmem:[%s3378 + $0x2a8] sm:$0xf]
      %v3493 = vld [vmem:[%s3378 + $0x2ac] sm:$0xff]
      %v3494 = vld [vmem:[%s3378 + $0x2b4] sm:$0xf]
      %v3495 = vld [vmem:[%s3378 + $0x2b8] sm:$0xff]
      %v3496 = vld [vmem:[%s3378 + $0x2c0] sm:$0xf]
      %v3497 = vld [vmem:[%s3378 + $0x2c4] sm:$0xff]
      %v3498 = vld [vmem:[%s3378 + $0x2cc] sm:$0xf]
      %v3499 = vld [vmem:[%s3378 + $0x2d0] sm:$0xff]
      %v3500 = vld [vmem:[%s3378 + $0x2d8] sm:$0xf]
      %v3501 = vld [vmem:[%s3378 + $0x2dc] sm:$0xff]
      %v3502 = vld [vmem:[%s3378 + $0x2e4] sm:$0xf]
      %v3503 = vld [vmem:[%s3378 + $0x2e8] sm:$0xff]
      %v3504 = vld [vmem:[%s3378 + $0x2f0] sm:$0xf]
      %v3505 = vld [vmem:[%s3378 + $0x2f4] sm:$0xff]
      %v3506 = vld [vmem:[%s3378 + $0x2fc] sm:$0xf]
      %v3507 = vunpack.c.l.b16 %v3167
      %v3508 = vunpack.c.h.b16 %v3167
      %v3509 = vunpack.c.l.b16 %v3181
      %v3510 = vunpack.c.h.b16 %v3181
      %v3511 = vunpack.c.l.b16 %v3195
      %v3512 = vunpack.c.h.b16 %v3195
      %v3513 = vunpack.c.l.b16 %v3209
      %v3514 = vunpack.c.h.b16 %v3209
      %v3515 = vunpack.c.l.b16 %v3223
      %v3516 = vunpack.c.h.b16 %v3223
      %v3517 = vunpack.c.l.b16 %v3237
      %v3518 = vunpack.c.h.b16 %v3237
      %v3519 = vunpack.c.l.b16 %v3251
      %v3520 = vunpack.c.h.b16 %v3251
      %v3521 = vunpack.c.l.b16 %v3265
      %v3522 = vunpack.c.h.b16 %v3265
      %v3523 = vunpack.c.l.b16 %v3279
      %v3524 = vunpack.c.h.b16 %v3279
      %v3525 = vunpack.c.l.b16 %v3293
      %v3526 = vunpack.c.h.b16 %v3293
      %v3527 = vunpack.c.l.b16 %v3307
      %v3528 = vunpack.c.h.b16 %v3307
      %v3529 = vunpack.c.l.b16 %v3321
      %v3530 = vunpack.c.h.b16 %v3321
      %v3531 = vunpack.c.l.b16 %v3335
      %v3532 = vunpack.c.h.b16 %v3335
      %v3533 = vunpack.c.l.b16 %v3349
      %v3534 = vunpack.c.h.b16 %v3349
      %v3535 = vunpack.c.l.b16 %v3363
      %v3536 = vunpack.c.h.b16 %v3363
      %v3537 = vunpack.c.l.b16 %v3377
      %v3538 = vunpack.c.h.b16 %v3377
      %v3539 = vpack.c.b16 %v3511, %v3507
      %v3540 = vpack.c.b16 %v3512, %v3508
      %v3541 = vpack.c.b16 %v3513, %v3509
      %v3542 = vpack.c.b16 %v3514, %v3510
      %v3543 = vpack.c.b16 %v3519, %v3515
      %v3544 = vpack.c.b16 %v3520, %v3516
      %v3545 = vpack.c.b16 %v3521, %v3517
      %v3546 = vpack.c.b16 %v3522, %v3518
      %v3547 = vpack.c.b16 %v3527, %v3523
      %v3548 = vpack.c.b16 %v3528, %v3524
      %v3549 = vpack.c.b16 %v3529, %v3525
      %v3550 = vpack.c.b16 %v3530, %v3526
      %v3551 = vpack.c.b16 %v3535, %v3531
      %v3552 = vpack.c.b16 %v3536, %v3532
      %v3553 = vpack.c.b16 %v3537, %v3533
      %v3554 = vpack.c.b16 %v3538, %v3534
      %v3699 = vunpack.c.l.b16 %v3379
      %v3700 = vunpack.c.h.b16 %v3379
      %v3701 = vunpack.c.l.b16 %v3380
      %v3702 = vunpack.c.l.b16 %v3381
      %v3703 = vunpack.c.h.b16 %v3381
      %v3704 = vunpack.c.l.b16 %v3382
      %v3705 = vunpack.c.l.b16 %v3383
      %v3706 = vunpack.c.h.b16 %v3383
      %v3707 = vunpack.c.l.b16 %v3384
      %v3708 = vunpack.c.l.b16 %v3385
      %v3709 = vunpack.c.h.b16 %v3385
      %v3710 = vunpack.c.l.b16 %v3386
      %v3711 = vunpack.c.l.b16 %v3387
      %v3712 = vunpack.c.h.b16 %v3387
      %v3713 = vunpack.c.l.b16 %v3388
      %v3714 = vunpack.c.l.b16 %v3389
      %v3715 = vunpack.c.h.b16 %v3389
      %v3716 = vunpack.c.l.b16 %v3390
      %v3717 = vunpack.c.l.b16 %v3391
      %v3718 = vunpack.c.h.b16 %v3391
      %v3719 = vunpack.c.l.b16 %v3392
      %v3720 = vunpack.c.l.b16 %v3393
      %v3721 = vunpack.c.h.b16 %v3393
      %v3722 = vunpack.c.l.b16 %v3394
      %v3723 = vunpack.c.l.b16 %v3395
      %v3724 = vunpack.c.h.b16 %v3395
      %v3725 = vunpack.c.l.b16 %v3396
      %v3726 = vunpack.c.l.b16 %v3397
      %v3727 = vunpack.c.h.b16 %v3397
      %v3728 = vunpack.c.l.b16 %v3398
      %v3729 = vunpack.c.l.b16 %v3399
      %v3730 = vunpack.c.h.b16 %v3399
      %v3731 = vunpack.c.l.b16 %v3400
      %v3732 = vunpack.c.l.b16 %v3401
      %v3733 = vunpack.c.h.b16 %v3401
      %v3734 = vunpack.c.l.b16 %v3402
      %v3735 = vunpack.c.l.b16 %v3403
      %v3736 = vunpack.c.h.b16 %v3403
      %v3737 = vunpack.c.l.b16 %v3404
      %v3738 = vunpack.c.l.b16 %v3405
      %v3739 = vunpack.c.h.b16 %v3405
      %v3740 = vunpack.c.l.b16 %v3406
      %v3741 = vunpack.c.l.b16 %v3407
      %v3742 = vunpack.c.h.b16 %v3407
      %v3743 = vunpack.c.l.b16 %v3408
      %v3744 = vunpack.c.l.b16 %v3409
      %v3745 = vunpack.c.h.b16 %v3409
      %v3746 = vunpack.c.l.b16 %v3410
      %v3747 = vunpack.c.l.b16 %v3411
      %v3748 = vunpack.c.h.b16 %v3411
      %v3749 = vunpack.c.l.b16 %v3412
      %v3750 = vunpack.c.l.b16 %v3413
      %v3751 = vunpack.c.h.b16 %v3413
      %v3752 = vunpack.c.l.b16 %v3414
      %v3753 = vunpack.c.l.b16 %v3415
      %v3754 = vunpack.c.h.b16 %v3415
      %v3755 = vunpack.c.l.b16 %v3416
      %v3756 = vunpack.c.l.b16 %v3417
      %v3757 = vunpack.c.h.b16 %v3417
      %v3758 = vunpack.c.l.b16 %v3418
      %v3759 = vunpack.c.l.b16 %v3419
      %v3760 = vunpack.c.h.b16 %v3419
      %v3761 = vunpack.c.l.b16 %v3420
      %v3762 = vunpack.c.l.b16 %v3421
      %v3763 = vunpack.c.h.b16 %v3421
      %v3764 = vunpack.c.l.b16 %v3422
      %v3765 = vunpack.c.l.b16 %v3423
      %v3766 = vunpack.c.h.b16 %v3423
      %v3767 = vunpack.c.l.b16 %v3424
      %v3768 = vunpack.c.l.b16 %v3425
      %v3769 = vunpack.c.h.b16 %v3425
      %v3770 = vunpack.c.l.b16 %v3426
      %v3771 = vunpack.c.l.b16 %v3427
      %v3772 = vunpack.c.h.b16 %v3427
      %v3773 = vunpack.c.l.b16 %v3428
      %v3774 = vunpack.c.l.b16 %v3429
      %v3775 = vunpack.c.h.b16 %v3429
      %v3776 = vunpack.c.l.b16 %v3430
      %v3777 = vunpack.c.l.b16 %v3431
      %v3778 = vunpack.c.h.b16 %v3431
      %v3779 = vunpack.c.l.b16 %v3432
      %v3780 = vunpack.c.l.b16 %v3433
      %v3781 = vunpack.c.h.b16 %v3433
      %v3782 = vunpack.c.l.b16 %v3434
      %v3783 = vunpack.c.l.b16 %v3435
      %v3784 = vunpack.c.h.b16 %v3435
      %v3785 = vunpack.c.l.b16 %v3436
      %v3786 = vunpack.c.l.b16 %v3437
      %v3787 = vunpack.c.h.b16 %v3437
      %v3788 = vunpack.c.l.b16 %v3438
      %v3789 = vunpack.c.l.b16 %v3439
      %v3790 = vunpack.c.h.b16 %v3439
      %v3791 = vunpack.c.l.b16 %v3440
      %v3792 = vunpack.c.l.b16 %v3441
      %v3793 = vunpack.c.h.b16 %v3441
      %v3794 = vunpack.c.l.b16 %v3442
      %v3795 = vunpack.c.l.b16 %v3443
      %v3796 = vunpack.c.h.b16 %v3443
      %v3797 = vunpack.c.l.b16 %v3444
      %v3798 = vunpack.c.l.b16 %v3445
      %v3799 = vunpack.c.h.b16 %v3445
      %v3800 = vunpack.c.l.b16 %v3446
      %v3801 = vunpack.c.l.b16 %v3447
      %v3802 = vunpack.c.h.b16 %v3447
      %v3803 = vunpack.c.l.b16 %v3448
      %v3804 = vunpack.c.l.b16 %v3449
      %v3805 = vunpack.c.h.b16 %v3449
      %v3806 = vunpack.c.l.b16 %v3450
      %v3807 = vunpack.c.l.b16 %v3451
      %v3808 = vunpack.c.h.b16 %v3451
      %v3809 = vunpack.c.l.b16 %v3452
      %v3810 = vunpack.c.l.b16 %v3453
      %v3811 = vunpack.c.h.b16 %v3453
      %v3812 = vunpack.c.l.b16 %v3454
      %v3813 = vunpack.c.l.b16 %v3455
      %v3814 = vunpack.c.h.b16 %v3455
      %v3815 = vunpack.c.l.b16 %v3456
      %v3816 = vunpack.c.l.b16 %v3457
      %v3817 = vunpack.c.h.b16 %v3457
      %v3818 = vunpack.c.l.b16 %v3458
      %v3819 = vunpack.c.l.b16 %v3459
      %v3820 = vunpack.c.h.b16 %v3459
      %v3821 = vunpack.c.l.b16 %v3460
      %v3822 = vunpack.c.l.b16 %v3461
      %v3823 = vunpack.c.h.b16 %v3461
      %v3824 = vunpack.c.l.b16 %v3462
      %v3825 = vunpack.c.l.b16 %v3463
      %v3826 = vunpack.c.h.b16 %v3463
      %v3827 = vunpack.c.l.b16 %v3464
      %v3828 = vunpack.c.l.b16 %v3465
      %v3829 = vunpack.c.h.b16 %v3465
      %v3830 = vunpack.c.l.b16 %v3466
      %v3831 = vunpack.c.l.b16 %v3467
      %v3832 = vunpack.c.h.b16 %v3467
      %v3833 = vunpack.c.l.b16 %v3468
      %v3834 = vunpack.c.l.b16 %v3469
      %v3835 = vunpack.c.h.b16 %v3469
      %v3836 = vunpack.c.l.b16 %v3470
      %v3837 = vunpack.c.l.b16 %v3471
      %v3838 = vunpack.c.h.b16 %v3471
      %v3839 = vunpack.c.l.b16 %v3472
      %v3840 = vunpack.c.l.b16 %v3473
      %v3841 = vunpack.c.h.b16 %v3473
      %v3842 = vunpack.c.l.b16 %v3474
      %v3843 = vunpack.c.l.b16 %v3475
      %v3844 = vunpack.c.h.b16 %v3475
      %v3845 = vunpack.c.l.b16 %v3476
      %v3846 = vunpack.c.l.b16 %v3477
      %v3847 = vunpack.c.h.b16 %v3477
      %v3848 = vunpack.c.l.b16 %v3478
      %v3849 = vunpack.c.l.b16 %v3479
      %v3850 = vunpack.c.h.b16 %v3479
      %v3851 = vunpack.c.l.b16 %v3480
      %v3852 = vunpack.c.l.b16 %v3481
      %v3853 = vunpack.c.h.b16 %v3481
      %v3854 = vunpack.c.l.b16 %v3482
      %v3855 = vunpack.c.l.b16 %v3483
      %v3856 = vunpack.c.h.b16 %v3483
      %v3857 = vunpack.c.l.b16 %v3484
      %v3858 = vunpack.c.l.b16 %v3485
      %v3859 = vunpack.c.h.b16 %v3485
      %v3860 = vunpack.c.l.b16 %v3486
      %v3861 = vunpack.c.l.b16 %v3487
      %v3862 = vunpack.c.h.b16 %v3487
      %v3863 = vunpack.c.l.b16 %v3488
      %v3864 = vunpack.c.l.b16 %v3489
      %v3865 = vunpack.c.h.b16 %v3489
      %v3866 = vunpack.c.l.b16 %v3490
      %v3867 = vunpack.c.l.b16 %v3491
      %v3868 = vunpack.c.h.b16 %v3491
      %v3869 = vunpack.c.l.b16 %v3492
      %v3870 = vunpack.c.l.b16 %v3493
      %v3871 = vunpack.c.h.b16 %v3493
      %v3872 = vunpack.c.l.b16 %v3494
      %v3873 = vunpack.c.l.b16 %v3495
      %v3874 = vunpack.c.h.b16 %v3495
      %v3875 = vunpack.c.l.b16 %v3496
      %v3876 = vunpack.c.l.b16 %v3497
      %v3877 = vunpack.c.h.b16 %v3497
      %v3878 = vunpack.c.l.b16 %v3498
      %v3879 = vunpack.c.l.b16 %v3499
      %v3880 = vunpack.c.h.b16 %v3499
      %v3881 = vunpack.c.l.b16 %v3500
      %v3882 = vunpack.c.l.b16 %v3501
      %v3883 = vunpack.c.h.b16 %v3501
      %v3884 = vunpack.c.l.b16 %v3502
      %v3885 = vunpack.c.l.b16 %v3503
      %v3886 = vunpack.c.h.b16 %v3503
      %v3887 = vunpack.c.l.b16 %v3504
      %v3888 = vunpack.c.l.b16 %v3505
      %v3889 = vunpack.c.h.b16 %v3505
      %v3890 = vunpack.c.l.b16 %v3506
      %v3891 = vpack.c.b16 %v3702, %v3699
      %v3892 = vpack.c.b16 %v3703, %v3700
      %v3893 = vpack.c.b16 %v3704, %v3701
      %v3894 = vpack.c.b16 %v3708, %v3705
      %v3895 = vpack.c.b16 %v3709, %v3706
      %v3896 = vpack.c.b16 %v3710, %v3707
      %v3897 = vpack.c.b16 %v3714, %v3711
      %v3898 = vpack.c.b16 %v3715, %v3712
      %v3899 = vpack.c.b16 %v3716, %v3713
      %v3900 = vpack.c.b16 %v3720, %v3717
      %v3901 = vpack.c.b16 %v3721, %v3718
      %v3902 = vpack.c.b16 %v3722, %v3719
      %v3903 = vpack.c.b16 %v3726, %v3723
      %v3904 = vpack.c.b16 %v3727, %v3724
      %v3905 = vpack.c.b16 %v3728, %v3725
      %v3906 = vpack.c.b16 %v3732, %v3729
      %v3907 = vpack.c.b16 %v3733, %v3730
      %v3908 = vpack.c.b16 %v3734, %v3731
      %v3909 = vpack.c.b16 %v3738, %v3735
      %v3910 = vpack.c.b16 %v3739, %v3736
      %v3911 = vpack.c.b16 %v3740, %v3737
      %v3912 = vpack.c.b16 %v3744, %v3741
      %v3913 = vpack.c.b16 %v3745, %v3742
      %v3914 = vpack.c.b16 %v3746, %v3743
      %v3915 = vpack.c.b16 %v3750, %v3747
      %v3916 = vpack.c.b16 %v3751, %v3748
      %v3917 = vpack.c.b16 %v3752, %v3749
      %v3918 = vpack.c.b16 %v3756, %v3753
      %v3919 = vpack.c.b16 %v3757, %v3754
      %v3920 = vpack.c.b16 %v3758, %v3755
      %v3921 = vpack.c.b16 %v3762, %v3759
      %v3922 = vpack.c.b16 %v3763, %v3760
      %v3923 = vpack.c.b16 %v3764, %v3761
      %v3924 = vpack.c.b16 %v3768, %v3765
      %v3925 = vpack.c.b16 %v3769, %v3766
      %v3926 = vpack.c.b16 %v3770, %v3767
      %v3927 = vpack.c.b16 %v3774, %v3771
      %v3928 = vpack.c.b16 %v3775, %v3772
      %v3929 = vpack.c.b16 %v3776, %v3773
      %v3930 = vpack.c.b16 %v3780, %v3777
      %v3931 = vpack.c.b16 %v3781, %v3778
      %v3932 = vpack.c.b16 %v3782, %v3779
      %v3933 = vpack.c.b16 %v3786, %v3783
      %v3934 = vpack.c.b16 %v3787, %v3784
      %v3935 = vpack.c.b16 %v3788, %v3785
      %v3936 = vpack.c.b16 %v3792, %v3789
      %v3937 = vpack.c.b16 %v3793, %v3790
      %v3938 = vpack.c.b16 %v3794, %v3791
      %v3939 = vpack.c.b16 %v3798, %v3795
      %v3940 = vpack.c.b16 %v3799, %v3796
      %v3941 = vpack.c.b16 %v3800, %v3797
      %v3942 = vpack.c.b16 %v3804, %v3801
      %v3943 = vpack.c.b16 %v3805, %v3802
      %v3944 = vpack.c.b16 %v3806, %v3803
      %v3945 = vpack.c.b16 %v3810, %v3807
      %v3946 = vpack.c.b16 %v3811, %v3808
      %v3947 = vpack.c.b16 %v3812, %v3809
      %v3948 = vpack.c.b16 %v3816, %v3813
      %v3949 = vpack.c.b16 %v3817, %v3814
      %v3950 = vpack.c.b16 %v3818, %v3815
      %v3951 = vpack.c.b16 %v3822, %v3819
      %v3952 = vpack.c.b16 %v3823, %v3820
      %v3953 = vpack.c.b16 %v3824, %v3821
      %v3954 = vpack.c.b16 %v3828, %v3825
      %v3955 = vpack.c.b16 %v3829, %v3826
      %v3956 = vpack.c.b16 %v3830, %v3827
      %v3957 = vpack.c.b16 %v3834, %v3831
      %v3958 = vpack.c.b16 %v3835, %v3832
      %v3959 = vpack.c.b16 %v3836, %v3833
      %v3960 = vpack.c.b16 %v3840, %v3837
      %v3961 = vpack.c.b16 %v3841, %v3838
      %v3962 = vpack.c.b16 %v3842, %v3839
      %v3963 = vpack.c.b16 %v3846, %v3843
      %v3964 = vpack.c.b16 %v3847, %v3844
      %v3965 = vpack.c.b16 %v3848, %v3845
      %v3966 = vpack.c.b16 %v3852, %v3849
      %v3967 = vpack.c.b16 %v3853, %v3850
      %v3968 = vpack.c.b16 %v3854, %v3851
      %v3969 = vpack.c.b16 %v3858, %v3855
      %v3970 = vpack.c.b16 %v3859, %v3856
      %v3971 = vpack.c.b16 %v3860, %v3857
      %v3972 = vpack.c.b16 %v3864, %v3861
      %v3973 = vpack.c.b16 %v3865, %v3862
      %v3974 = vpack.c.b16 %v3866, %v3863
      %v3975 = vpack.c.b16 %v3870, %v3867
      %v3976 = vpack.c.b16 %v3871, %v3868
      %v3977 = vpack.c.b16 %v3872, %v3869
      %v3978 = vpack.c.b16 %v3876, %v3873
      %v3979 = vpack.c.b16 %v3877, %v3874
      %v3980 = vpack.c.b16 %v3878, %v3875
      %v3981 = vpack.c.b16 %v3882, %v3879
      %v3982 = vpack.c.b16 %v3883, %v3880
      %v3983 = vpack.c.b16 %v3884, %v3881
      %v3984 = vpack.c.b16 %v3888, %v3885
      %v3985 = vpack.c.b16 %v3889, %v3886
      %v3986 = vpack.c.b16 %v3890, %v3887
      %4083 = vmatprep.subr.bf16.mxu0 %v3913
      %4084 = vmatpush1.bf16.msra.mxu0 %v3912
      %4085 = vmatprep.subr.bf16.mxu0 %v3910
      %4086 = vmatpush1.bf16.msra.mxu0 %v3909
      %4087 = vmatprep.subr.bf16.mxu0 %v3907
      %4088 = vmatpush1.bf16.msra.mxu0 %v3906
      %4089 = vmatprep.subr.bf16.mxu0 %v3904
      %4090 = vmatpush1.bf16.msra.mxu0 %v3903
      %4091 = vmatprep.subr.bf16.mxu0 %v3901
      %4092 = vmatpush1.bf16.msra.mxu0 %v3900
      %4093 = vmatprep.subr.bf16.mxu0 %v3898
      %4094 = vmatpush1.bf16.msra.mxu0 %v3897
      %4095 = vmatprep.subr.bf16.mxu0 %v3895
      %4096 = vmatpush1.bf16.msra.mxu0 %v3894
      %4097 = vmatprep.subr.bf16.mxu0 %v3892
      %4098 = vmatpush1.bf16.msra.mxu0 %v3891
      %4099 = vmatprep.subr.bf16.mxu0 %v3937
      %4100 = vmatpush2.bf16.msra.mxu0 %v3936
      %4101 = vmatprep.subr.bf16.mxu0 %v3934
      %4102 = vmatpush2.bf16.msra.mxu0 %v3933
      %4103 = vmatprep.subr.bf16.mxu0 %v3931
      %4104 = vmatpush2.bf16.msra.mxu0 %v3930
      %4105 = vmatprep.subr.bf16.mxu0 %v3928
      %4106 = vmatpush2.bf16.msra.mxu0 %v3927
      %4107 = vmatprep.subr.bf16.mxu0 %v3925
      %4108 = vmatpush2.bf16.msra.mxu0 %v3924
      %4109 = vmatprep.subr.bf16.mxu0 %v3922
      %4110 = vmatpush2.bf16.msra.mxu0 %v3921
      %4111 = vmatprep.subr.bf16.mxu0 %v3919
      %4112 = vmatpush2.bf16.msra.mxu0 %v3918
      %4113 = vmatprep.subr.bf16.mxu0 %v3916
      %4114 = vmatpush2.bf16.msra.mxu0 %v3915
      %4115 = vmatprep.mubr.bf16.mxu0 %v3540
      %4116 = vmatmul.mubr.bf16.gmra.mxu0 %v3539
      %v4117 = vpop.f32.mrf.mxu0
      %v4118 = vadd.f32 0.0, %v4117
      %v4119 = vpop.f32.mrf.mxu0
      %v4120 = vadd.f32 0.0, %v4119
      %v4121 = vpop.f32.mrf.mxu0
      %v4122 = vadd.f32 0.0, %v4121
      %v4123 = vpop.f32.mrf.mxu0
      %v4124 = vadd.f32 0.0, %v4123
      %4125 = vmatprep.mubr.bf16.mxu0 %v3544
      %4126 = vmatmul.mubr.bf16.gmra.mxu0 %v3543
      %v4127 = vpop.f32.mrf.mxu0
      %v4128 = vadd.f32 0.0, %v4127
      %v4129 = vpop.f32.mrf.mxu0
      %v4130 = vadd.f32 0.0, %v4129
      %v4131 = vpop.f32.mrf.mxu0
      %v4132 = vadd.f32 0.0, %v4131
      %v4133 = vpop.f32.mrf.mxu0
      %v4134 = vadd.f32 0.0, %v4133
      %4135 = vmatprep.mubr.bf16.mxu0 %v3548
      %4136 = vmatmul.mubr.bf16.gmra.mxu0 %v3547
      %v4137 = vpop.f32.mrf.mxu0
      %v4138 = vadd.f32 0.0, %v4137
      %v4139 = vpop.f32.mrf.mxu0
      %v4140 = vadd.f32 0.0, %v4139
      %v4141 = vpop.f32.mrf.mxu0
      %v4142 = vadd.f32 0.0, %v4141
      %v4143 = vpop.f32.mrf.mxu0
      %v4144 = vadd.f32 0.0, %v4143
      %4145 = vmatprep.mubr.bf16.mxu0 %v3552
      %4146 = vmatmul.mubr.bf16.gmra.mxu0 %v3551
      %v4147 = vpop.f32.mrf.mxu0
      %v4148 = vadd.f32 0.0, %v4147
      %v4149 = vpop.f32.mrf.mxu0
      %v4150 = vadd.f32 0.0, %v4149
      %v4151 = vpop.f32.mrf.mxu0
      %v4152 = vadd.f32 0.0, %v4151
      %v4153 = vpop.f32.mrf.mxu0
      %v4154 = vadd.f32 0.0, %v4153
      %4155 = vdwg.mxu0
      %4156 = vmatprep.subr.bf16.mxu0 %v3961
      %4157 = vmatpush1.bf16.msra.mxu0 %v3960
      %4158 = vmatprep.subr.bf16.mxu0 %v3958
      %4159 = vmatpush1.bf16.msra.mxu0 %v3957
      %4160 = vmatprep.subr.bf16.mxu0 %v3955
      %4161 = vmatpush1.bf16.msra.mxu0 %v3954
      %4162 = vmatprep.subr.bf16.mxu0 %v3952
      %4163 = vmatpush1.bf16.msra.mxu0 %v3951
      %4164 = vmatprep.subr.bf16.mxu0 %v3949
      %4165 = vmatpush1.bf16.msra.mxu0 %v3948
      %4166 = vmatprep.subr.bf16.mxu0 %v3946
      %4167 = vmatpush1.bf16.msra.mxu0 %v3945
      %4168 = vmatprep.subr.bf16.mxu0 %v3943
      %4169 = vmatpush1.bf16.msra.mxu0 %v3942
      %4170 = vmatprep.subr.bf16.mxu0 %v3940
      %4171 = vmatpush1.bf16.msra.mxu0 %v3939
      %4172 = vmatprep.subr.bf16.mxu0 %v3985
      %4173 = vmatpush2.bf16.msra.mxu0 %v3984
      %4174 = vmatprep.subr.bf16.mxu0 %v3982
      %4175 = vmatpush2.bf16.msra.mxu0 %v3981
      %4176 = vmatprep.subr.bf16.mxu0 %v3979
      %4177 = vmatpush2.bf16.msra.mxu0 %v3978
      %4178 = vmatprep.subr.bf16.mxu0 %v3976
      %4179 = vmatpush2.bf16.msra.mxu0 %v3975
      %4180 = vmatprep.subr.bf16.mxu0 %v3973
      %4181 = vmatpush2.bf16.msra.mxu0 %v3972
      %4182 = vmatprep.subr.bf16.mxu0 %v3970
      %4183 = vmatpush2.bf16.msra.mxu0 %v3969
      %4184 = vmatprep.subr.bf16.mxu0 %v3967
      %4185 = vmatpush2.bf16.msra.mxu0 %v3966
      %4186 = vmatprep.subr.bf16.mxu0 %v3964
      %4187 = vmatpush2.bf16.msra.mxu0 %v3963
      %4188 = vmatprep.mubr.bf16.mxu0 %v3542
      %4189 = vmatmul.mubr.bf16.gmra.mxu0 %v3541
      %v4190 = vpop.f32.mrf.mxu0
      %v4191 = vadd.f32 %v4118, %v4190
      %v4192 = vpop.f32.mrf.mxu0
      %v4193 = vadd.f32 %v4120, %v4192
      %v4194 = vpop.f32.mrf.mxu0
      %v4195 = vadd.f32 %v4122, %v4194
      %v4196 = vpop.f32.mrf.mxu0
      %v4197 = vadd.f32 %v4124, %v4196
      %4198 = vmatprep.mubr.bf16.mxu0 %v3546
      %4199 = vmatmul.mubr.bf16.gmra.mxu0 %v3545
      %v4200 = vpop.f32.mrf.mxu0
      %v4201 = vadd.f32 %v4128, %v4200
      %v4202 = vpop.f32.mrf.mxu0
      %v4203 = vadd.f32 %v4130, %v4202
      %v4204 = vpop.f32.mrf.mxu0
      %v4205 = vadd.f32 %v4132, %v4204
      %v4206 = vpop.f32.mrf.mxu0
      %v4207 = vadd.f32 %v4134, %v4206
      %4208 = vmatprep.mubr.bf16.mxu0 %v3550
      %4209 = vmatmul.mubr.bf16.gmra.mxu0 %v3549
      %v4210 = vpop.f32.mrf.mxu0
      %v4211 = vadd.f32 %v4138, %v4210
      %v4212 = vpop.f32.mrf.mxu0
      %v4213 = vadd.f32 %v4140, %v4212
      %v4214 = vpop.f32.mrf.mxu0
      %v4215 = vadd.f32 %v4142, %v4214
      %v4216 = vpop.f32.mrf.mxu0
      %v4217 = vadd.f32 %v4144, %v4216
      %4218 = vmatprep.mubr.bf16.mxu0 %v3554
      %4219 = vmatmul.mubr.bf16.gmra.mxu0 %v3553
      %v4220 = vpop.f32.mrf.mxu0
      %v4221 = vadd.f32 %v4148, %v4220
      %v4222 = vpop.f32.mrf.mxu0
      %v4223 = vadd.f32 %v4150, %v4222
      %v4224 = vpop.f32.mrf.mxu0
      %v4225 = vadd.f32 %v4152, %v4224
      %v4226 = vpop.f32.mrf.mxu0
      %v4227 = vadd.f32 %v4154, %v4226
      %4228 = vdwg.mxu0
      %4229 = vmatprep.subr.bf16.mxu0 0
      %4230 = vmatpush1.bf16.msra.mxu0 %v3914
      %4231 = vmatprep.subr.bf16.mxu0 0
      %4232 = vmatpush1.bf16.msra.mxu0 %v3911
      %4233 = vmatprep.subr.bf16.mxu0 0
      %4234 = vmatpush1.bf16.msra.mxu0 %v3908
      %4235 = vmatprep.subr.bf16.mxu0 0
      %4236 = vmatpush1.bf16.msra.mxu0 %v3905
      %4237 = vmatprep.subr.bf16.mxu0 0
      %4238 = vmatpush1.bf16.msra.mxu0 %v3902
      %4239 = vmatprep.subr.bf16.mxu0 0
      %4240 = vmatpush1.bf16.msra.mxu0 %v3899
      %4241 = vmatprep.subr.bf16.mxu0 0
      %4242 = vmatpush1.bf16.msra.mxu0 %v3896
      %4243 = vmatprep.subr.bf16.mxu0 0
      %4244 = vmatpush1.bf16.msra.mxu0 %v3893
      %4245 = vmatprep.subr.bf16.mxu0 0
      %4246 = vmatpush2.bf16.msra.mxu0 %v3938
      %4247 = vmatprep.subr.bf16.mxu0 0
      %4248 = vmatpush2.bf16.msra.mxu0 %v3935
      %4249 = vmatprep.subr.bf16.mxu0 0
      %4250 = vmatpush2.bf16.msra.mxu0 %v3932
      %4251 = vmatprep.subr.bf16.mxu0 0
      %4252 = vmatpush2.bf16.msra.mxu0 %v3929
      %4253 = vmatprep.subr.bf16.mxu0 0
      %4254 = vmatpush2.bf16.msra.mxu0 %v3926
      %4255 = vmatprep.subr.bf16.mxu0 0
      %4256 = vmatpush2.bf16.msra.mxu0 %v3923
      %4257 = vmatprep.subr.bf16.mxu0 0
      %4258 = vmatpush2.bf16.msra.mxu0 %v3920
      %4259 = vmatprep.subr.bf16.mxu0 0
      %4260 = vmatpush2.bf16.msra.mxu0 %v3917
      %4261 = vmatprep.mubr.bf16.mxu0 %v3540
      %4262 = vmatmul.mubr.bf16.gmra.mxu0 %v3539
      %v4263 = vpop.f32.mrf.mxu0
      %v4264 = vadd.f32 0.0, %v4263
      %v4265 = vpop.f32.mrf.mxu0
      %v4266 = vpop.f32.mrf.mxu0
      %v4267 = vadd.f32 0.0, %v4266
      %v4268 = vpop.f32.mrf.mxu0
      %4269 = vmatprep.mubr.bf16.mxu0 %v3544
      %4270 = vmatmul.mubr.bf16.gmra.mxu0 %v3543
      %v4271 = vpop.f32.mrf.mxu0
      %v4272 = vadd.f32 0.0, %v4271
      %v4273 = vpop.f32.mrf.mxu0
      %v4274 = vpop.f32.mrf.mxu0
      %v4275 = vadd.f32 0.0, %v4274
      %v4276 = vpop.f32.mrf.mxu0
      %4277 = vmatprep.mubr.bf16.mxu0 %v3548
      %4278 = vmatmul.mubr.bf16.gmra.mxu0 %v3547
      %v4279 = vpop.f32.mrf.mxu0
      %v4280 = vadd.f32 0.0, %v4279
      %v4281 = vpop.f32.mrf.mxu0
      %v4282 = vpop.f32.mrf.mxu0
      %v4283 = vadd.f32 0.0, %v4282
      %v4284 = vpop.f32.mrf.mxu0
      %4285 = vmatprep.mubr.bf16.mxu0 %v3552
      %4286 = vmatmul.mubr.bf16.gmra.mxu0 %v3551
      %v4287 = vpop.f32.mrf.mxu0
      %v4288 = vadd.f32 0.0, %v4287
      %v4289 = vpop.f32.mrf.mxu0
      %v4290 = vpop.f32.mrf.mxu0
      %v4291 = vadd.f32 0.0, %v4290
      %v4292 = vpop.f32.mrf.mxu0
      %4293 = vdwg.mxu0
      %4294 = vmatprep.subr.bf16.mxu0 0
      %4295 = vmatpush1.bf16.msra.mxu0 %v3962
      %4296 = vmatprep.subr.bf16.mxu0 0
      %4297 = vmatpush1.bf16.msra.mxu0 %v3959
      %4298 = vmatprep.subr.bf16.mxu0 0
      %4299 = vmatpush1.bf16.msra.mxu0 %v3956
      %4300 = vmatprep.subr.bf16.mxu0 0
      %4301 = vmatpush1.bf16.msra.mxu0 %v3953
      %4302 = vmatprep.subr.bf16.mxu0 0
      %4303 = vmatpush1.bf16.msra.mxu0 %v3950
      %4304 = vmatprep.subr.bf16.mxu0 0
      %4305 = vmatpush1.bf16.msra.mxu0 %v3947
      %4306 = vmatprep.subr.bf16.mxu0 0
      %4307 = vmatpush1.bf16.msra.mxu0 %v3944
      %4308 = vmatprep.subr.bf16.mxu0 0
      %4309 = vmatpush1.bf16.msra.mxu0 %v3941
      %4310 = vmatprep.subr.bf16.mxu0 0
      %4311 = vmatpush2.bf16.msra.mxu0 %v3986
      %4312 = vmatprep.subr.bf16.mxu0 0
      %4313 = vmatpush2.bf16.msra.mxu0 %v3983
      %4314 = vmatprep.subr.bf16.mxu0 0
      %4315 = vmatpush2.bf16.msra.mxu0 %v3980
      %4316 = vmatprep.subr.bf16.mxu0 0
      %4317 = vmatpush2.bf16.msra.mxu0 %v3977
      %4318 = vmatprep.subr.bf16.mxu0 0
      %4319 = vmatpush2.bf16.msra.mxu0 %v3974
      %4320 = vmatprep.subr.bf16.mxu0 0
      %4321 = vmatpush2.bf16.msra.mxu0 %v3971
      %4322 = vmatprep.subr.bf16.mxu0 0
      %4323 = vmatpush2.bf16.msra.mxu0 %v3968
      %4324 = vmatprep.subr.bf16.mxu0 0
      %4325 = vmatpush2.bf16.msra.mxu0 %v3965
      %4326 = vmatprep.mubr.bf16.mxu0 %v3542
      %4327 = vmatmul.mubr.bf16.gmra.mxu0 %v3541
      %v4328 = vpop.f32.mrf.mxu0
      %v4329 = vadd.f32 %v4264, %v4328
      %v4330 = vpop.f32.mrf.mxu0
      %v4331 = vpop.f32.mrf.mxu0
      %v4332 = vadd.f32 %v4267, %v4331
      %v4333 = vpop.f32.mrf.mxu0
      %4334 = vmatprep.mubr.bf16.mxu0 %v3546
      %4335 = vmatmul.mubr.bf16.gmra.mxu0 %v3545
      %v4336 = vpop.f32.mrf.mxu0
      %v4337 = vadd.f32 %v4272, %v4336
      %v4338 = vpop.f32.mrf.mxu0
      %v4339 = vpop.f32.mrf.mxu0
      %v4340 = vadd.f32 %v4275, %v4339
      %v4341 = vpop.f32.mrf.mxu0
      %4342 = vmatprep.mubr.bf16.mxu0 %v3550
      %4343 = vmatmul.mubr.bf16.gmra.mxu0 %v3549
      %v4344 = vpop.f32.mrf.mxu0
      %v4345 = vadd.f32 %v4280, %v4344
      %v4346 = vpop.f32.mrf.mxu0
      %v4347 = vpop.f32.mrf.mxu0
      %v4348 = vadd.f32 %v4283, %v4347
      %v4349 = vpop.f32.mrf.mxu0
      %4350 = vmatprep.mubr.bf16.mxu0 %v3554
      %4351 = vmatmul.mubr.bf16.gmra.mxu0 %v3553
      %v4352 = vpop.f32.mrf.mxu0
      %v4353 = vadd.f32 %v4288, %v4352
      %v4354 = vpop.f32.mrf.mxu0
      %v4355 = vpop.f32.mrf.mxu0
      %v4356 = vadd.f32 %v4291, %v4355
      %v4357 = vpop.f32.mrf.mxu0
      %4358 = vdwg.mxu0
      %v4359 = vadd.f32 %v3087, %v4191
      %v4360 = vadd.f32 %v3088, %v4193
      %v4361 = vadd.f32 %v3089, %v4329
      %v4362 = vadd.f32 %v3090, %v4195
      %v4363 = vadd.f32 %v3091, %v4197
      %v4364 = vadd.f32 %v3092, %v4332
      %v4365 = vadd.f32 %v3093, %v4201
      %v4366 = vadd.f32 %v3094, %v4203
      %v4367 = vadd.f32 %v3095, %v4337
      %v4368 = vadd.f32 %v3096, %v4205
      %v4369 = vadd.f32 %v3097, %v4207
      %v4370 = vadd.f32 %v3098, %v4340
      %v4371 = vadd.f32 %v3099, %v4211
      %v4372 = vadd.f32 %v3100, %v4213
      %v4373 = vadd.f32 %v3101, %v4345
      %v4374 = vadd.f32 %v3102, %v4215
      %v4375 = vadd.f32 %v3103, %v4217
      %v4376 = vadd.f32 %v3104, %v4348
      %v4377 = vadd.f32 %v3105, %v4221
      %v4378 = vadd.f32 %v3106, %v4223
      %v4379 = vadd.f32 %v3107, %v4353
      %v4380 = vadd.f32 %v3108, %v4225
      %v4381 = vadd.f32 %v3109, %v4227
      %v4382 = vadd.f32 %v3110, %v4356
      %v4384 = vshrl.u32 %v3143, 16
      %v4386 = vrot.slane %v4384, 4
      %v4387 = vshll.u32 %v3143, 16
      %v4389 = vrot.slane %v4387, 5
      %v4390 = vor.u32 %v4386, %v4389
      %v4391 = vrot.slane %v4390, 4
      %v4393 = vshll.u32 %v3145, 16
      %v4395 = vrot.slane %v4393, 5
      %v4396 = vsel %vm3153, %v4391, %v4395
      %v4398 = vshrl.u32 %v3144, 16
      %v4400 = vrot.slane %v4398, 4
      %v4401 = vshll.u32 %v3144, 16
      %v4403 = vrot.slane %v4401, 5
      %v4404 = vor.u32 %v4400, %v4403
      %v4405 = vrot.slane %v4404, 4
      %v4407 = vshll.u32 %v3146, 16
      %v4409 = vrot.slane %v4407, 5
      %v4410 = vsel %vm3153, %v4405, %v4409
      %s4411 = scalar_lea.vmem %s1, 3072
      %v4412 = vld [vmem:[%s4411] sm:$0xff]
      %v4413 = vld [vmem:[%s4411 + $0x8] sm:$0xf]
      %v4414 = vld [vmem:[%s4411 + $0xc] sm:$0xff]
      %v4415 = vld [vmem:[%s4411 + $0x14] sm:$0xf]
      %v4416 = vld [vmem:[%s4411 + $0x18] sm:$0xff]
      %v4417 = vld [vmem:[%s4411 + $0x20] sm:$0xf]
      %v4418 = vld [vmem:[%s4411 + $0x24] sm:$0xff]
      %v4419 = vld [vmem:[%s4411 + $0x2c] sm:$0xf]
      %v4420 = vld [vmem:[%s4411 + $0x30] sm:$0xff]
      %v4421 = vld [vmem:[%s4411 + $0x38] sm:$0xf]
      %v4422 = vld [vmem:[%s4411 + $0x3c] sm:$0xff]
      %v4423 = vld [vmem:[%s4411 + $0x44] sm:$0xf]
      %v4424 = vld [vmem:[%s4411 + $0x48] sm:$0xff]
      %v4425 = vld [vmem:[%s4411 + $0x50] sm:$0xf]
      %v4426 = vld [vmem:[%s4411 + $0x54] sm:$0xff]
      %v4427 = vld [vmem:[%s4411 + $0x5c] sm:$0xf]
      %v4428 = vld [vmem:[%s4411 + $0x60] sm:$0xff]
      %v4429 = vld [vmem:[%s4411 + $0x68] sm:$0xf]
      %v4430 = vld [vmem:[%s4411 + $0x6c] sm:$0xff]
      %v4431 = vld [vmem:[%s4411 + $0x74] sm:$0xf]
      %v4432 = vld [vmem:[%s4411 + $0x78] sm:$0xff]
      %v4433 = vld [vmem:[%s4411 + $0x80] sm:$0xf]
      %v4434 = vld [vmem:[%s4411 + $0x84] sm:$0xff]
      %v4435 = vld [vmem:[%s4411 + $0x8c] sm:$0xf]
      %v4436 = vld [vmem:[%s4411 + $0x90] sm:$0xff]
      %v4437 = vld [vmem:[%s4411 + $0x98] sm:$0xf]
      %v4438 = vld [vmem:[%s4411 + $0x9c] sm:$0xff]
      %v4439 = vld [vmem:[%s4411 + $0xa4] sm:$0xf]
      %v4440 = vld [vmem:[%s4411 + $0xa8] sm:$0xff]
      %v4441 = vld [vmem:[%s4411 + $0xb0] sm:$0xf]
      %v4442 = vld [vmem:[%s4411 + $0xb4] sm:$0xff]
      %v4443 = vld [vmem:[%s4411 + $0xbc] sm:$0xf]
      %v4444 = vld [vmem:[%s4411 + $0xc0] sm:$0xff]
      %v4445 = vld [vmem:[%s4411 + $0xc8] sm:$0xf]
      %v4446 = vld [vmem:[%s4411 + $0xcc] sm:$0xff]
      %v4447 = vld [vmem:[%s4411 + $0xd4] sm:$0xf]
      %v4448 = vld [vmem:[%s4411 + $0xd8] sm:$0xff]
      %v4449 = vld [vmem:[%s4411 + $0xe0] sm:$0xf]
      %v4450 = vld [vmem:[%s4411 + $0xe4] sm:$0xff]
      %v4451 = vld [vmem:[%s4411 + $0xec] sm:$0xf]
      %v4452 = vld [vmem:[%s4411 + $0xf0] sm:$0xff]
      %v4453 = vld [vmem:[%s4411 + $0xf8] sm:$0xf]
      %v4454 = vld [vmem:[%s4411 + $0xfc] sm:$0xff]
      %v4455 = vld [vmem:[%s4411 + $0x104] sm:$0xf]
      %v4456 = vld [vmem:[%s4411 + $0x108] sm:$0xff]
      %v4457 = vld [vmem:[%s4411 + $0x110] sm:$0xf]
      %v4458 = vld [vmem:[%s4411 + $0x114] sm:$0xff]
      %v4459 = vld [vmem:[%s4411 + $0x11c] sm:$0xf]
      %v4460 = vld [vmem:[%s4411 + $0x120] sm:$0xff]
      %v4461 = vld [vmem:[%s4411 + $0x128] sm:$0xf]
      %v4462 = vld [vmem:[%s4411 + $0x12c] sm:$0xff]
      %v4463 = vld [vmem:[%s4411 + $0x134] sm:$0xf]
      %v4464 = vld [vmem:[%s4411 + $0x138] sm:$0xff]
      %v4465 = vld [vmem:[%s4411 + $0x140] sm:$0xf]
      %v4466 = vld [vmem:[%s4411 + $0x144] sm:$0xff]
      %v4467 = vld [vmem:[%s4411 + $0x14c] sm:$0xf]
      %v4468 = vld [vmem:[%s4411 + $0x150] sm:$0xff]
      %v4469 = vld [vmem:[%s4411 + $0x158] sm:$0xf]
      %v4470 = vld [vmem:[%s4411 + $0x15c] sm:$0xff]
      %v4471 = vld [vmem:[%s4411 + $0x164] sm:$0xf]
      %v4472 = vld [vmem:[%s4411 + $0x168] sm:$0xff]
      %v4473 = vld [vmem:[%s4411 + $0x170] sm:$0xf]
      %v4474 = vld [vmem:[%s4411 + $0x174] sm:$0xff]
      %v4475 = vld [vmem:[%s4411 + $0x17c] sm:$0xf]
      %v4476 = vld [vmem:[%s4411 + $0x180] sm:$0xff]
      %v4477 = vld [vmem:[%s4411 + $0x188] sm:$0xf]
      %v4478 = vld [vmem:[%s4411 + $0x18c] sm:$0xff]
      %v4479 = vld [vmem:[%s4411 + $0x194] sm:$0xf]
      %v4480 = vld [vmem:[%s4411 + $0x198] sm:$0xff]
      %v4481 = vld [vmem:[%s4411 + $0x1a0] sm:$0xf]
      %v4482 = vld [vmem:[%s4411 + $0x1a4] sm:$0xff]
      %v4483 = vld [vmem:[%s4411 + $0x1ac] sm:$0xf]
      %v4484 = vld [vmem:[%s4411 + $0x1b0] sm:$0xff]
      %v4485 = vld [vmem:[%s4411 + $0x1b8] sm:$0xf]
      %v4486 = vld [vmem:[%s4411 + $0x1bc] sm:$0xff]
      %v4487 = vld [vmem:[%s4411 + $0x1c4] sm:$0xf]
      %v4488 = vld [vmem:[%s4411 + $0x1c8] sm:$0xff]
      %v4489 = vld [vmem:[%s4411 + $0x1d0] sm:$0xf]
      %v4490 = vld [vmem:[%s4411 + $0x1d4] sm:$0xff]
      %v4491 = vld [vmem:[%s4411 + $0x1dc] sm:$0xf]
      %v4492 = vld [vmem:[%s4411 + $0x1e0] sm:$0xff]
      %v4493 = vld [vmem:[%s4411 + $0x1e8] sm:$0xf]
      %v4494 = vld [vmem:[%s4411 + $0x1ec] sm:$0xff]
      %v4495 = vld [vmem:[%s4411 + $0x1f4] sm:$0xf]
      %v4496 = vld [vmem:[%s4411 + $0x1f8] sm:$0xff]
      %v4497 = vld [vmem:[%s4411 + $0x200] sm:$0xf]
      %v4498 = vld [vmem:[%s4411 + $0x204] sm:$0xff]
      %v4499 = vld [vmem:[%s4411 + $0x20c] sm:$0xf]
      %v4500 = vld [vmem:[%s4411 + $0x210] sm:$0xff]
      %v4501 = vld [vmem:[%s4411 + $0x218] sm:$0xf]
      %v4502 = vld [vmem:[%s4411 + $0x21c] sm:$0xff]
      %v4503 = vld [vmem:[%s4411 + $0x224] sm:$0xf]
      %v4504 = vld [vmem:[%s4411 + $0x228] sm:$0xff]
      %v4505 = vld [vmem:[%s4411 + $0x230] sm:$0xf]
      %v4506 = vld [vmem:[%s4411 + $0x234] sm:$0xff]
      %v4507 = vld [vmem:[%s4411 + $0x23c] sm:$0xf]
      %v4508 = vld [vmem:[%s4411 + $0x240] sm:$0xff]
      %v4509 = vld [vmem:[%s4411 + $0x248] sm:$0xf]
      %v4510 = vld [vmem:[%s4411 + $0x24c] sm:$0xff]
      %v4511 = vld [vmem:[%s4411 + $0x254] sm:$0xf]
      %v4512 = vld [vmem:[%s4411 + $0x258] sm:$0xff]
      %v4513 = vld [vmem:[%s4411 + $0x260] sm:$0xf]
      %v4514 = vld [vmem:[%s4411 + $0x264] sm:$0xff]
      %v4515 = vld [vmem:[%s4411 + $0x26c] sm:$0xf]
      %v4516 = vld [vmem:[%s4411 + $0x270] sm:$0xff]
      %v4517 = vld [vmem:[%s4411 + $0x278] sm:$0xf]
      %v4518 = vld [vmem:[%s4411 + $0x27c] sm:$0xff]
      %v4519 = vld [vmem:[%s4411 + $0x284] sm:$0xf]
      %v4520 = vld [vmem:[%s4411 + $0x288] sm:$0xff]
      %v4521 = vld [vmem:[%s4411 + $0x290] sm:$0xf]
      %v4522 = vld [vmem:[%s4411 + $0x294] sm:$0xff]
      %v4523 = vld [vmem:[%s4411 + $0x29c] sm:$0xf]
      %v4524 = vld [vmem:[%s4411 + $0x2a0] sm:$0xff]
      %v4525 = vld [vmem:[%s4411 + $0x2a8] sm:$0xf]
      %v4526 = vld [vmem:[%s4411 + $0x2ac] sm:$0xff]
      %v4527 = vld [vmem:[%s4411 + $0x2b4] sm:$0xf]
      %v4528 = vld [vmem:[%s4411 + $0x2b8] sm:$0xff]
      %v4529 = vld [vmem:[%s4411 + $0x2c0] sm:$0xf]
      %v4530 = vld [vmem:[%s4411 + $0x2c4] sm:$0xff]
      %v4531 = vld [vmem:[%s4411 + $0x2cc] sm:$0xf]
      %v4532 = vld [vmem:[%s4411 + $0x2d0] sm:$0xff]
      %v4533 = vld [vmem:[%s4411 + $0x2d8] sm:$0xf]
      %v4534 = vld [vmem:[%s4411 + $0x2dc] sm:$0xff]
      %v4535 = vld [vmem:[%s4411 + $0x2e4] sm:$0xf]
      %v4536 = vld [vmem:[%s4411 + $0x2e8] sm:$0xff]
      %v4537 = vld [vmem:[%s4411 + $0x2f0] sm:$0xf]
      %v4538 = vld [vmem:[%s4411 + $0x2f4] sm:$0xff]
      %v4539 = vld [vmem:[%s4411 + $0x2fc] sm:$0xf]
      %v4540 = vunpack.c.l.b16 %v4396
      %v4541 = vunpack.c.h.b16 %v4396
      %v4542 = vunpack.c.l.b16 %v4410
      %v4543 = vunpack.c.h.b16 %v4410
      %v4544 = vpack.c.b16 %v3515, %v3511
      %v4545 = vpack.c.b16 %v3516, %v3512
      %v4546 = vpack.c.b16 %v3517, %v3513
      %v4547 = vpack.c.b16 %v3518, %v3514
      %v4548 = vpack.c.b16 %v3523, %v3519
      %v4549 = vpack.c.b16 %v3524, %v3520
      %v4550 = vpack.c.b16 %v3525, %v3521
      %v4551 = vpack.c.b16 %v3526, %v3522
      %v4552 = vpack.c.b16 %v3531, %v3527
      %v4553 = vpack.c.b16 %v3532, %v3528
      %v4554 = vpack.c.b16 %v3533, %v3529
      %v4555 = vpack.c.b16 %v3534, %v3530
      %v4556 = vpack.c.b16 %v4540, %v3535
      %v4557 = vpack.c.b16 %v4541, %v3536
      %v4558 = vpack.c.b16 %v4542, %v3537
      %v4559 = vpack.c.b16 %v4543, %v3538
      %v4704 = vunpack.c.l.b16 %v4412
      %v4705 = vunpack.c.h.b16 %v4412
      %v4706 = vunpack.c.l.b16 %v4413
      %v4707 = vunpack.c.l.b16 %v4414
      %v4708 = vunpack.c.h.b16 %v4414
      %v4709 = vunpack.c.l.b16 %v4415
      %v4710 = vunpack.c.l.b16 %v4416
      %v4711 = vunpack.c.h.b16 %v4416
      %v4712 = vunpack.c.l.b16 %v4417
      %v4713 = vunpack.c.l.b16 %v4418
      %v4714 = vunpack.c.h.b16 %v4418
      %v4715 = vunpack.c.l.b16 %v4419
      %v4716 = vunpack.c.l.b16 %v4420
      %v4717 = vunpack.c.h.b16 %v4420
      %v4718 = vunpack.c.l.b16 %v4421
      %v4719 = vunpack.c.l.b16 %v4422
      %v4720 = vunpack.c.h.b16 %v4422
      %v4721 = vunpack.c.l.b16 %v4423
      %v4722 = vunpack.c.l.b16 %v4424
      %v4723 = vunpack.c.h.b16 %v4424
      %v4724 = vunpack.c.l.b16 %v4425
      %v4725 = vunpack.c.l.b16 %v4426
      %v4726 = vunpack.c.h.b16 %v4426
      %v4727 = vunpack.c.l.b16 %v4427
      %v4728 = vunpack.c.l.b16 %v4428
      %v4729 = vunpack.c.h.b16 %v4428
      %v4730 = vunpack.c.l.b16 %v4429
      %v4731 = vunpack.c.l.b16 %v4430
      %v4732 = vunpack.c.h.b16 %v4430
      %v4733 = vunpack.c.l.b16 %v4431
      %v4734 = vunpack.c.l.b16 %v4432
      %v4735 = vunpack.c.h.b16 %v4432
      %v4736 = vunpack.c.l.b16 %v4433
      %v4737 = vunpack.c.l.b16 %v4434
      %v4738 = vunpack.c.h.b16 %v4434
      %v4739 = vunpack.c.l.b16 %v4435
      %v4740 = vunpack.c.l.b16 %v4436
      %v4741 = vunpack.c.h.b16 %v4436
      %v4742 = vunpack.c.l.b16 %v4437
      %v4743 = vunpack.c.l.b16 %v4438
      %v4744 = vunpack.c.h.b16 %v4438
      %v4745 = vunpack.c.l.b16 %v4439
      %v4746 = vunpack.c.l.b16 %v4440
      %v4747 = vunpack.c.h.b16 %v4440
      %v4748 = vunpack.c.l.b16 %v4441
      %v4749 = vunpack.c.l.b16 %v4442
      %v4750 = vunpack.c.h.b16 %v4442
      %v4751 = vunpack.c.l.b16 %v4443
      %v4752 = vunpack.c.l.b16 %v4444
      %v4753 = vunpack.c.h.b16 %v4444
      %v4754 = vunpack.c.l.b16 %v4445
      %v4755 = vunpack.c.l.b16 %v4446
      %v4756 = vunpack.c.h.b16 %v4446
      %v4757 = vunpack.c.l.b16 %v4447
      %v4758 = vunpack.c.l.b16 %v4448
      %v4759 = vunpack.c.h.b16 %v4448
      %v4760 = vunpack.c.l.b16 %v4449
      %v4761 = vunpack.c.l.b16 %v4450
      %v4762 = vunpack.c.h.b16 %v4450
      %v4763 = vunpack.c.l.b16 %v4451
      %v4764 = vunpack.c.l.b16 %v4452
      %v4765 = vunpack.c.h.b16 %v4452
      %v4766 = vunpack.c.l.b16 %v4453
      %v4767 = vunpack.c.l.b16 %v4454
      %v4768 = vunpack.c.h.b16 %v4454
      %v4769 = vunpack.c.l.b16 %v4455
      %v4770 = vunpack.c.l.b16 %v4456
      %v4771 = vunpack.c.h.b16 %v4456
      %v4772 = vunpack.c.l.b16 %v4457
      %v4773 = vunpack.c.l.b16 %v4458
      %v4774 = vunpack.c.h.b16 %v4458
      %v4775 = vunpack.c.l.b16 %v4459
      %v4776 = vunpack.c.l.b16 %v4460
      %v4777 = vunpack.c.h.b16 %v4460
      %v4778 = vunpack.c.l.b16 %v4461
      %v4779 = vunpack.c.l.b16 %v4462
      %v4780 = vunpack.c.h.b16 %v4462
      %v4781 = vunpack.c.l.b16 %v4463
      %v4782 = vunpack.c.l.b16 %v4464
      %v4783 = vunpack.c.h.b16 %v4464
      %v4784 = vunpack.c.l.b16 %v4465
      %v4785 = vunpack.c.l.b16 %v4466
      %v4786 = vunpack.c.h.b16 %v4466
      %v4787 = vunpack.c.l.b16 %v4467
      %v4788 = vunpack.c.l.b16 %v4468
      %v4789 = vunpack.c.h.b16 %v4468
      %v4790 = vunpack.c.l.b16 %v4469
      %v4791 = vunpack.c.l.b16 %v4470
      %v4792 = vunpack.c.h.b16 %v4470
      %v4793 = vunpack.c.l.b16 %v4471
      %v4794 = vunpack.c.l.b16 %v4472
      %v4795 = vunpack.c.h.b16 %v4472
      %v4796 = vunpack.c.l.b16 %v4473
      %v4797 = vunpack.c.l.b16 %v4474
      %v4798 = vunpack.c.h.b16 %v4474
      %v4799 = vunpack.c.l.b16 %v4475
      %v4800 = vunpack.c.l.b16 %v4476
      %v4801 = vunpack.c.h.b16 %v4476
      %v4802 = vunpack.c.l.b16 %v4477
      %v4803 = vunpack.c.l.b16 %v4478
      %v4804 = vunpack.c.h.b16 %v4478
      %v4805 = vunpack.c.l.b16 %v4479
      %v4806 = vunpack.c.l.b16 %v4480
      %v4807 = vunpack.c.h.b16 %v4480
      %v4808 = vunpack.c.l.b16 %v4481
      %v4809 = vunpack.c.l.b16 %v4482
      %v4810 = vunpack.c.h.b16 %v4482
      %v4811 = vunpack.c.l.b16 %v4483
      %v4812 = vunpack.c.l.b16 %v4484
      %v4813 = vunpack.c.h.b16 %v4484
      %v4814 = vunpack.c.l.b16 %v4485
      %v4815 = vunpack.c.l.b16 %v4486
      %v4816 = vunpack.c.h.b16 %v4486
      %v4817 = vunpack.c.l.b16 %v4487
      %v4818 = vunpack.c.l.b16 %v4488
      %v4819 = vunpack.c.h.b16 %v4488
      %v4820 = vunpack.c.l.b16 %v4489
      %v4821 = vunpack.c.l.b16 %v4490
      %v4822 = vunpack.c.h.b16 %v4490
      %v4823 = vunpack.c.l.b16 %v4491
      %v4824 = vunpack.c.l.b16 %v4492
      %v4825 = vunpack.c.h.b16 %v4492
      %v4826 = vunpack.c.l.b16 %v4493
      %v4827 = vunpack.c.l.b16 %v4494
      %v4828 = vunpack.c.h.b16 %v4494
      %v4829 = vunpack.c.l.b16 %v4495
      %v4830 = vunpack.c.l.b16 %v4496
      %v4831 = vunpack.c.h.b16 %v4496
      %v4832 = vunpack.c.l.b16 %v4497
      %v4833 = vunpack.c.l.b16 %v4498
      %v4834 = vunpack.c.h.b16 %v4498
      %v4835 = vunpack.c.l.b16 %v4499
      %v4836 = vunpack.c.l.b16 %v4500
      %v4837 = vunpack.c.h.b16 %v4500
      %v4838 = vunpack.c.l.b16 %v4501
      %v4839 = vunpack.c.l.b16 %v4502
      %v4840 = vunpack.c.h.b16 %v4502
      %v4841 = vunpack.c.l.b16 %v4503
      %v4842 = vunpack.c.l.b16 %v4504
      %v4843 = vunpack.c.h.b16 %v4504
      %v4844 = vunpack.c.l.b16 %v4505
      %v4845 = vunpack.c.l.b16 %v4506
      %v4846 = vunpack.c.h.b16 %v4506
      %v4847 = vunpack.c.l.b16 %v4507
      %v4848 = vunpack.c.l.b16 %v4508
      %v4849 = vunpack.c.h.b16 %v4508
      %v4850 = vunpack.c.l.b16 %v4509
      %v4851 = vunpack.c.l.b16 %v4510
      %v4852 = vunpack.c.h.b16 %v4510
      %v4853 = vunpack.c.l.b16 %v4511
      %v4854 = vunpack.c.l.b16 %v4512
      %v4855 = vunpack.c.h.b16 %v4512
      %v4856 = vunpack.c.l.b16 %v4513
      %v4857 = vunpack.c.l.b16 %v4514
      %v4858 = vunpack.c.h.b16 %v4514
      %v4859 = vunpack.c.l.b16 %v4515
      %v4860 = vunpack.c.l.b16 %v4516
      %v4861 = vunpack.c.h.b16 %v4516
      %v4862 = vunpack.c.l.b16 %v4517
      %v4863 = vunpack.c.l.b16 %v4518
      %v4864 = vunpack.c.h.b16 %v4518
      %v4865 = vunpack.c.l.b16 %v4519
      %v4866 = vunpack.c.l.b16 %v4520
      %v4867 = vunpack.c.h.b16 %v4520
      %v4868 = vunpack.c.l.b16 %v4521
      %v4869 = vunpack.c.l.b16 %v4522
      %v4870 = vunpack.c.h.b16 %v4522
      %v4871 = vunpack.c.l.b16 %v4523
      %v4872 = vunpack.c.l.b16 %v4524
      %v4873 = vunpack.c.h.b16 %v4524
      %v4874 = vunpack.c.l.b16 %v4525
      %v4875 = vunpack.c.l.b16 %v4526
      %v4876 = vunpack.c.h.b16 %v4526
      %v4877 = vunpack.c.l.b16 %v4527
      %v4878 = vunpack.c.l.b16 %v4528
      %v4879 = vunpack.c.h.b16 %v4528
      %v4880 = vunpack.c.l.b16 %v4529
      %v4881 = vunpack.c.l.b16 %v4530
      %v4882 = vunpack.c.h.b16 %v4530
      %v4883 = vunpack.c.l.b16 %v4531
      %v4884 = vunpack.c.l.b16 %v4532
      %v4885 = vunpack.c.h.b16 %v4532
      %v4886 = vunpack.c.l.b16 %v4533
      %v4887 = vunpack.c.l.b16 %v4534
      %v4888 = vunpack.c.h.b16 %v4534
      %v4889 = vunpack.c.l.b16 %v4535
      %v4890 = vunpack.c.l.b16 %v4536
      %v4891 = vunpack.c.h.b16 %v4536
      %v4892 = vunpack.c.l.b16 %v4537
      %v4893 = vunpack.c.l.b16 %v4538
      %v4894 = vunpack.c.h.b16 %v4538
      %v4895 = vunpack.c.l.b16 %v4539
      %v4896 = vpack.c.b16 %v4707, %v4704
      %v4897 = vpack.c.b16 %v4708, %v4705
      %v4898 = vpack.c.b16 %v4709, %v4706
      %v4899 = vpack.c.b16 %v4713, %v4710
      %v4900 = vpack.c.b16 %v4714, %v4711
      %v4901 = vpack.c.b16 %v4715, %v4712
      %v4902 = vpack.c.b16 %v4719, %v4716
      %v4903 = vpack.c.b16 %v4720, %v4717
      %v4904 = vpack.c.b16 %v4721, %v4718
      %v4905 = vpack.c.b16 %v4725, %v4722
      %v4906 = vpack.c.b16 %v4726, %v4723
      %v4907 = vpack.c.b16 %v4727, %v4724
      %v4908 = vpack.c.b16 %v4731, %v4728
      %v4909 = vpack.c.b16 %v4732, %v4729
      %v4910 = vpack.c.b16 %v4733, %v4730
      %v4911 = vpack.c.b16 %v4737, %v4734
      %v4912 = vpack.c.b16 %v4738, %v4735
      %v4913 = vpack.c.b16 %v4739, %v4736
      %v4914 = vpack.c.b16 %v4743, %v4740
      %v4915 = vpack.c.b16 %v4744, %v4741
      %v4916 = vpack.c.b16 %v4745, %v4742
      %v4917 = vpack.c.b16 %v4749, %v4746
      %v4918 = vpack.c.b16 %v4750, %v4747
      %v4919 = vpack.c.b16 %v4751, %v4748
      %v4920 = vpack.c.b16 %v4755, %v4752
      %v4921 = vpack.c.b16 %v4756, %v4753
      %v4922 = vpack.c.b16 %v4757, %v4754
      %v4923 = vpack.c.b16 %v4761, %v4758
      %v4924 = vpack.c.b16 %v4762, %v4759
      %v4925 = vpack.c.b16 %v4763, %v4760
      %v4926 = vpack.c.b16 %v4767, %v4764
      %v4927 = vpack.c.b16 %v4768, %v4765
      %v4928 = vpack.c.b16 %v4769, %v4766
      %v4929 = vpack.c.b16 %v4773, %v4770
      %v4930 = vpack.c.b16 %v4774, %v4771
      %v4931 = vpack.c.b16 %v4775, %v4772
      %v4932 = vpack.c.b16 %v4779, %v4776
      %v4933 = vpack.c.b16 %v4780, %v4777
      %v4934 = vpack.c.b16 %v4781, %v4778
      %v4935 = vpack.c.b16 %v4785, %v4782
      %v4936 = vpack.c.b16 %v4786, %v4783
      %v4937 = vpack.c.b16 %v4787, %v4784
      %v4938 = vpack.c.b16 %v4791, %v4788
      %v4939 = vpack.c.b16 %v4792, %v4789
      %v4940 = vpack.c.b16 %v4793, %v4790
      %v4941 = vpack.c.b16 %v4797, %v4794
      %v4942 = vpack.c.b16 %v4798, %v4795
      %v4943 = vpack.c.b16 %v4799, %v4796
      %v4944 = vpack.c.b16 %v4803, %v4800
      %v4945 = vpack.c.b16 %v4804, %v4801
      %v4946 = vpack.c.b16 %v4805, %v4802
      %v4947 = vpack.c.b16 %v4809, %v4806
      %v4948 = vpack.c.b16 %v4810, %v4807
      %v4949 = vpack.c.b16 %v4811, %v4808
      %v4950 = vpack.c.b16 %v4815, %v4812
      %v4951 = vpack.c.b16 %v4816, %v4813
      %v4952 = vpack.c.b16 %v4817, %v4814
      %v4953 = vpack.c.b16 %v4821, %v4818
      %v4954 = vpack.c.b16 %v4822, %v4819
      %v4955 = vpack.c.b16 %v4823, %v4820
      %v4956 = vpack.c.b16 %v4827, %v4824
      %v4957 = vpack.c.b16 %v4828, %v4825
      %v4958 = vpack.c.b16 %v4829, %v4826
      %v4959 = vpack.c.b16 %v4833, %v4830
      %v4960 = vpack.c.b16 %v4834, %v4831
      %v4961 = vpack.c.b16 %v4835, %v4832
      %v4962 = vpack.c.b16 %v4839, %v4836
      %v4963 = vpack.c.b16 %v4840, %v4837
      %v4964 = vpack.c.b16 %v4841, %v4838
      %v4965 = vpack.c.b16 %v4845, %v4842
      %v4966 = vpack.c.b16 %v4846, %v4843
      %v4967 = vpack.c.b16 %v4847, %v4844
      %v4968 = vpack.c.b16 %v4851, %v4848
      %v4969 = vpack.c.b16 %v4852, %v4849
      %v4970 = vpack.c.b16 %v4853, %v4850
      %v4971 = vpack.c.b16 %v4857, %v4854
      %v4972 = vpack.c.b16 %v4858, %v4855
      %v4973 = vpack.c.b16 %v4859, %v4856
      %v4974 = vpack.c.b16 %v4863, %v4860
      %v4975 = vpack.c.b16 %v4864, %v4861
      %v4976 = vpack.c.b16 %v4865, %v4862
      %v4977 = vpack.c.b16 %v4869, %v4866
      %v4978 = vpack.c.b16 %v4870, %v4867
      %v4979 = vpack.c.b16 %v4871, %v4868
      %v4980 = vpack.c.b16 %v4875, %v4872
      %v4981 = vpack.c.b16 %v4876, %v4873
      %v4982 = vpack.c.b16 %v4877, %v4874
      %v4983 = vpack.c.b16 %v4881, %v4878
      %v4984 = vpack.c.b16 %v4882, %v4879
      %v4985 = vpack.c.b16 %v4883, %v4880
      %v4986 = vpack.c.b16 %v4887, %v4884
      %v4987 = vpack.c.b16 %v4888, %v4885
      %v4988 = vpack.c.b16 %v4889, %v4886
      %v4989 = vpack.c.b16 %v4893, %v4890
      %v4990 = vpack.c.b16 %v4894, %v4891
      %v4991 = vpack.c.b16 %v4895, %v4892
      %5088 = vmatprep.subr.bf16.mxu0 %v4918
      %5089 = vmatpush1.bf16.msra.mxu0 %v4917
      %5090 = vmatprep.subr.bf16.mxu0 %v4915
      %5091 = vmatpush1.bf16.msra.mxu0 %v4914
      %5092 = vmatprep.subr.bf16.mxu0 %v4912
      %5093 = vmatpush1.bf16.msra.mxu0 %v4911
      %5094 = vmatprep.subr.bf16.mxu0 %v4909
      %5095 = vmatpush1.bf16.msra.mxu0 %v4908
      %5096 = vmatprep.subr.bf16.mxu0 %v4906
      %5097 = vmatpush1.bf16.msra.mxu0 %v4905
      %5098 = vmatprep.subr.bf16.mxu0 %v4903
      %5099 = vmatpush1.bf16.msra.mxu0 %v4902
      %5100 = vmatprep.subr.bf16.mxu0 %v4900
      %5101 = vmatpush1.bf16.msra.mxu0 %v4899
      %5102 = vmatprep.subr.bf16.mxu0 %v4897
      %5103 = vmatpush1.bf16.msra.mxu0 %v4896
      %5104 = vmatprep.subr.bf16.mxu0 %v4942
      %5105 = vmatpush2.bf16.msra.mxu0 %v4941
      %5106 = vmatprep.subr.bf16.mxu0 %v4939
      %5107 = vmatpush2.bf16.msra.mxu0 %v4938
      %5108 = vmatprep.subr.bf16.mxu0 %v4936
      %5109 = vmatpush2.bf16.msra.mxu0 %v4935
      %5110 = vmatprep.subr.bf16.mxu0 %v4933
      %5111 = vmatpush2.bf16.msra.mxu0 %v4932
      %5112 = vmatprep.subr.bf16.mxu0 %v4930
      %5113 = vmatpush2.bf16.msra.mxu0 %v4929
      %5114 = vmatprep.subr.bf16.mxu0 %v4927
      %5115 = vmatpush2.bf16.msra.mxu0 %v4926
      %5116 = vmatprep.subr.bf16.mxu0 %v4924
      %5117 = vmatpush2.bf16.msra.mxu0 %v4923
      %5118 = vmatprep.subr.bf16.mxu0 %v4921
      %5119 = vmatpush2.bf16.msra.mxu0 %v4920
      %5120 = vmatprep.mubr.bf16.mxu0 %v4545
      %5121 = vmatmul.mubr.bf16.gmra.mxu0 %v4544
      %v5122 = vpop.f32.mrf.mxu0
      %v5123 = vadd.f32 0.0, %v5122
      %v5124 = vpop.f32.mrf.mxu0
      %v5125 = vadd.f32 0.0, %v5124
      %v5126 = vpop.f32.mrf.mxu0
      %v5127 = vadd.f32 0.0, %v5126
      %v5128 = vpop.f32.mrf.mxu0
      %v5129 = vadd.f32 0.0, %v5128
      %5130 = vmatprep.mubr.bf16.mxu0 %v4549
      %5131 = vmatmul.mubr.bf16.gmra.mxu0 %v4548
      %v5132 = vpop.f32.mrf.mxu0
      %v5133 = vadd.f32 0.0, %v5132
      %v5134 = vpop.f32.mrf.mxu0
      %v5135 = vadd.f32 0.0, %v5134
      %v5136 = vpop.f32.mrf.mxu0
      %v5137 = vadd.f32 0.0, %v5136
      %v5138 = vpop.f32.mrf.mxu0
      %v5139 = vadd.f32 0.0, %v5138
      %5140 = vmatprep.mubr.bf16.mxu0 %v4553
      %5141 = vmatmul.mubr.bf16.gmra.mxu0 %v4552
      %v5142 = vpop.f32.mrf.mxu0
      %v5143 = vadd.f32 0.0, %v5142
      %v5144 = vpop.f32.mrf.mxu0
      %v5145 = vadd.f32 0.0, %v5144
      %v5146 = vpop.f32.mrf.mxu0
      %v5147 = vadd.f32 0.0, %v5146
      %v5148 = vpop.f32.mrf.mxu0
      %v5149 = vadd.f32 0.0, %v5148
      %5150 = vmatprep.mubr.bf16.mxu0 %v4557
      %5151 = vmatmul.mubr.bf16.gmra.mxu0 %v4556
      %v5152 = vpop.f32.mrf.mxu0
      %v5153 = vadd.f32 0.0, %v5152
      %v5154 = vpop.f32.mrf.mxu0
      %v5155 = vadd.f32 0.0, %v5154
      %v5156 = vpop.f32.mrf.mxu0
      %v5157 = vadd.f32 0.0, %v5156
      %v5158 = vpop.f32.mrf.mxu0
      %v5159 = vadd.f32 0.0, %v5158
      %5160 = vdwg.mxu0
      %5161 = vmatprep.subr.bf16.mxu0 %v4966
      %5162 = vmatpush1.bf16.msra.mxu0 %v4965
      %5163 = vmatprep.subr.bf16.mxu0 %v4963
      %5164 = vmatpush1.bf16.msra.mxu0 %v4962
      %5165 = vmatprep.subr.bf16.mxu0 %v4960
      %5166 = vmatpush1.bf16.msra.mxu0 %v4959
      %5167 = vmatprep.subr.bf16.mxu0 %v4957
      %5168 = vmatpush1.bf16.msra.mxu0 %v4956
      %5169 = vmatprep.subr.bf16.mxu0 %v4954
      %5170 = vmatpush1.bf16.msra.mxu0 %v4953
      %5171 = vmatprep.subr.bf16.mxu0 %v4951
      %5172 = vmatpush1.bf16.msra.mxu0 %v4950
      %5173 = vmatprep.subr.bf16.mxu0 %v4948
      %5174 = vmatpush1.bf16.msra.mxu0 %v4947
      %5175 = vmatprep.subr.bf16.mxu0 %v4945
      %5176 = vmatpush1.bf16.msra.mxu0 %v4944
      %5177 = vmatprep.subr.bf16.mxu0 %v4990
      %5178 = vmatpush2.bf16.msra.mxu0 %v4989
      %5179 = vmatprep.subr.bf16.mxu0 %v4987
      %5180 = vmatpush2.bf16.msra.mxu0 %v4986
      %5181 = vmatprep.subr.bf16.mxu0 %v4984
      %5182 = vmatpush2.bf16.msra.mxu0 %v4983
      %5183 = vmatprep.subr.bf16.mxu0 %v4981
      %5184 = vmatpush2.bf16.msra.mxu0 %v4980
      %5185 = vmatprep.subr.bf16.mxu0 %v4978
      %5186 = vmatpush2.bf16.msra.mxu0 %v4977
      %5187 = vmatprep.subr.bf16.mxu0 %v4975
      %5188 = vmatpush2.bf16.msra.mxu0 %v4974
      %5189 = vmatprep.subr.bf16.mxu0 %v4972
      %5190 = vmatpush2.bf16.msra.mxu0 %v4971
      %5191 = vmatprep.subr.bf16.mxu0 %v4969
      %5192 = vmatpush2.bf16.msra.mxu0 %v4968
      %5193 = vmatprep.mubr.bf16.mxu0 %v4547
      %5194 = vmatmul.mubr.bf16.gmra.mxu0 %v4546
      %v5195 = vpop.f32.mrf.mxu0
      %v5196 = vadd.f32 %v5123, %v5195
      %v5197 = vpop.f32.mrf.mxu0
      %v5198 = vadd.f32 %v5125, %v5197
      %v5199 = vpop.f32.mrf.mxu0
      %v5200 = vadd.f32 %v5127, %v5199
      %v5201 = vpop.f32.mrf.mxu0
      %v5202 = vadd.f32 %v5129, %v5201
      %5203 = vmatprep.mubr.bf16.mxu0 %v4551
      %5204 = vmatmul.mubr.bf16.gmra.mxu0 %v4550
      %v5205 = vpop.f32.mrf.mxu0
      %v5206 = vadd.f32 %v5133, %v5205
      %v5207 = vpop.f32.mrf.mxu0
      %v5208 = vadd.f32 %v5135, %v5207
      %v5209 = vpop.f32.mrf.mxu0
      %v5210 = vadd.f32 %v5137, %v5209
      %v5211 = vpop.f32.mrf.mxu0
      %v5212 = vadd.f32 %v5139, %v5211
      %5213 = vmatprep.mubr.bf16.mxu0 %v4555
      %5214 = vmatmul.mubr.bf16.gmra.mxu0 %v4554
      %v5215 = vpop.f32.mrf.mxu0
      %v5216 = vadd.f32 %v5143, %v5215
      %v5217 = vpop.f32.mrf.mxu0
      %v5218 = vadd.f32 %v5145, %v5217
      %v5219 = vpop.f32.mrf.mxu0
      %v5220 = vadd.f32 %v5147, %v5219
      %v5221 = vpop.f32.mrf.mxu0
      %v5222 = vadd.f32 %v5149, %v5221
      %5223 = vmatprep.mubr.bf16.mxu0 %v4559
      %5224 = vmatmul.mubr.bf16.gmra.mxu0 %v4558
      %v5225 = vpop.f32.mrf.mxu0
      %v5226 = vadd.f32 %v5153, %v5225
      %v5227 = vpop.f32.mrf.mxu0
      %v5228 = vadd.f32 %v5155, %v5227
      %v5229 = vpop.f32.mrf.mxu0
      %v5230 = vadd.f32 %v5157, %v5229
      %v5231 = vpop.f32.mrf.mxu0
      %v5232 = vadd.f32 %v5159, %v5231
      %5233 = vdwg.mxu0
      %5234 = vmatprep.subr.bf16.mxu0 0
      %5235 = vmatpush1.bf16.msra.mxu0 %v4919
      %5236 = vmatprep.subr.bf16.mxu0 0
      %5237 = vmatpush1.bf16.msra.mxu0 %v4916
      %5238 = vmatprep.subr.bf16.mxu0 0
      %5239 = vmatpush1.bf16.msra.mxu0 %v4913
      %5240 = vmatprep.subr.bf16.mxu0 0
      %5241 = vmatpush1.bf16.msra.mxu0 %v4910
      %5242 = vmatprep.subr.bf16.mxu0 0
      %5243 = vmatpush1.bf16.msra.mxu0 %v4907
      %5244 = vmatprep.subr.bf16.mxu0 0
      %5245 = vmatpush1.bf16.msra.mxu0 %v4904
      %5246 = vmatprep.subr.bf16.mxu0 0
      %5247 = vmatpush1.bf16.msra.mxu0 %v4901
      %5248 = vmatprep.subr.bf16.mxu0 0
      %5249 = vmatpush1.bf16.msra.mxu0 %v4898
      %5250 = vmatprep.subr.bf16.mxu0 0
      %5251 = vmatpush2.bf16.msra.mxu0 %v4943
      %5252 = vmatprep.subr.bf16.mxu0 0
      %5253 = vmatpush2.bf16.msra.mxu0 %v4940
      %5254 = vmatprep.subr.bf16.mxu0 0
      %5255 = vmatpush2.bf16.msra.mxu0 %v4937
      %5256 = vmatprep.subr.bf16.mxu0 0
      %5257 = vmatpush2.bf16.msra.mxu0 %v4934
      %5258 = vmatprep.subr.bf16.mxu0 0
      %5259 = vmatpush2.bf16.msra.mxu0 %v4931
      %5260 = vmatprep.subr.bf16.mxu0 0
      %5261 = vmatpush2.bf16.msra.mxu0 %v4928
      %5262 = vmatprep.subr.bf16.mxu0 0
      %5263 = vmatpush2.bf16.msra.mxu0 %v4925
      %5264 = vmatprep.subr.bf16.mxu0 0
      %5265 = vmatpush2.bf16.msra.mxu0 %v4922
      %5266 = vmatprep.mubr.bf16.mxu0 %v4545
      %5267 = vmatmul.mubr.bf16.gmra.mxu0 %v4544
      %v5268 = vpop.f32.mrf.mxu0
      %v5269 = vadd.f32 0.0, %v5268
      %v5270 = vpop.f32.mrf.mxu0
      %v5271 = vpop.f32.mrf.mxu0
      %v5272 = vadd.f32 0.0, %v5271
      %v5273 = vpop.f32.mrf.mxu0
      %5274 = vmatprep.mubr.bf16.mxu0 %v4549
      %5275 = vmatmul.mubr.bf16.gmra.mxu0 %v4548
      %v5276 = vpop.f32.mrf.mxu0
      %v5277 = vadd.f32 0.0, %v5276
      %v5278 = vpop.f32.mrf.mxu0
      %v5279 = vpop.f32.mrf.mxu0
      %v5280 = vadd.f32 0.0, %v5279
      %v5281 = vpop.f32.mrf.mxu0
      %5282 = vmatprep.mubr.bf16.mxu0 %v4553
      %5283 = vmatmul.mubr.bf16.gmra.mxu0 %v4552
      %v5284 = vpop.f32.mrf.mxu0
      %v5285 = vadd.f32 0.0, %v5284
      %v5286 = vpop.f32.mrf.mxu0
      %v5287 = vpop.f32.mrf.mxu0
      %v5288 = vadd.f32 0.0, %v5287
      %v5289 = vpop.f32.mrf.mxu0
      %5290 = vmatprep.mubr.bf16.mxu0 %v4557
      %5291 = vmatmul.mubr.bf16.gmra.mxu0 %v4556
      %v5292 = vpop.f32.mrf.mxu0
      %v5293 = vadd.f32 0.0, %v5292
      %v5294 = vpop.f32.mrf.mxu0
      %v5295 = vpop.f32.mrf.mxu0
      %v5296 = vadd.f32 0.0, %v5295
      %v5297 = vpop.f32.mrf.mxu0
      %5298 = vdwg.mxu0
      %5299 = vmatprep.subr.bf16.mxu0 0
      %5300 = vmatpush1.bf16.msra.mxu0 %v4967
      %5301 = vmatprep.subr.bf16.mxu0 0
      %5302 = vmatpush1.bf16.msra.mxu0 %v4964
      %5303 = vmatprep.subr.bf16.mxu0 0
      %5304 = vmatpush1.bf16.msra.mxu0 %v4961
      %5305 = vmatprep.subr.bf16.mxu0 0
      %5306 = vmatpush1.bf16.msra.mxu0 %v4958
      %5307 = vmatprep.subr.bf16.mxu0 0
      %5308 = vmatpush1.bf16.msra.mxu0 %v4955
      %5309 = vmatprep.subr.bf16.mxu0 0
      %5310 = vmatpush1.bf16.msra.mxu0 %v4952
      %5311 = vmatprep.subr.bf16.mxu0 0
      %5312 = vmatpush1.bf16.msra.mxu0 %v4949
      %5313 = vmatprep.subr.bf16.mxu0 0
      %5314 = vmatpush1.bf16.msra.mxu0 %v4946
      %5315 = vmatprep.subr.bf16.mxu0 0
      %5316 = vmatpush2.bf16.msra.mxu0 %v4991
      %5317 = vmatprep.subr.bf16.mxu0 0
      %5318 = vmatpush2.bf16.msra.mxu0 %v4988
      %5319 = vmatprep.subr.bf16.mxu0 0
      %5320 = vmatpush2.bf16.msra.mxu0 %v4985
      %5321 = vmatprep.subr.bf16.mxu0 0
      %5322 = vmatpush2.bf16.msra.mxu0 %v4982
      %5323 = vmatprep.subr.bf16.mxu0 0
      %5324 = vmatpush2.bf16.msra.mxu0 %v4979
      %5325 = vmatprep.subr.bf16.mxu0 0
      %5326 = vmatpush2.bf16.msra.mxu0 %v4976
      %5327 = vmatprep.subr.bf16.mxu0 0
      %5328 = vmatpush2.bf16.msra.mxu0 %v4973
      %5329 = vmatprep.subr.bf16.mxu0 0
      %5330 = vmatpush2.bf16.msra.mxu0 %v4970
      %5331 = vmatprep.mubr.bf16.mxu0 %v4547
      %5332 = vmatmul.mubr.bf16.gmra.mxu0 %v4546
      %v5333 = vpop.f32.mrf.mxu0
      %v5334 = vadd.f32 %v5269, %v5333
      %v5335 = vpop.f32.mrf.mxu0
      %v5336 = vpop.f32.mrf.mxu0
      %v5337 = vadd.f32 %v5272, %v5336
      %v5338 = vpop.f32.mrf.mxu0
      %5339 = vmatprep.mubr.bf16.mxu0 %v4551
      %5340 = vmatmul.mubr.bf16.gmra.mxu0 %v4550
      %v5341 = vpop.f32.mrf.mxu0
      %v5342 = vadd.f32 %v5277, %v5341
      %v5343 = vpop.f32.mrf.mxu0
      %v5344 = vpop.f32.mrf.mxu0
      %v5345 = vadd.f32 %v5280, %v5344
      %v5346 = vpop.f32.mrf.mxu0
      %5347 = vmatprep.mubr.bf16.mxu0 %v4555
      %5348 = vmatmul.mubr.bf16.gmra.mxu0 %v4554
      %v5349 = vpop.f32.mrf.mxu0
      %v5350 = vadd.f32 %v5285, %v5349
      %v5351 = vpop.f32.mrf.mxu0
      %v5352 = vpop.f32.mrf.mxu0
      %v5353 = vadd.f32 %v5288, %v5352
      %v5354 = vpop.f32.mrf.mxu0
      %5355 = vmatprep.mubr.bf16.mxu0 %v4559
      %5356 = vmatmul.mubr.bf16.gmra.mxu0 %v4558
      %v5357 = vpop.f32.mrf.mxu0
      %v5358 = vadd.f32 %v5293, %v5357
      %v5359 = vpop.f32.mrf.mxu0
      %v5360 = vpop.f32.mrf.mxu0
      %v5361 = vadd.f32 %v5296, %v5360
      %v5362 = vpop.f32.mrf.mxu0
      %5363 = vdwg.mxu0
      %v5364 = vadd.f32 %v4359, %v5196
      %v5365 = vadd.f32 %v4360, %v5198
      %v5366 = vadd.f32 %v4361, %v5334
      %v5367 = vadd.f32 %v4362, %v5200
      %v5368 = vadd.f32 %v4363, %v5202
      %v5369 = vadd.f32 %v4364, %v5337
      %v5370 = vadd.f32 %v4365, %v5206
      %v5371 = vadd.f32 %v4366, %v5208
      %v5372 = vadd.f32 %v4367, %v5342
      %v5373 = vadd.f32 %v4368, %v5210
      %v5374 = vadd.f32 %v4369, %v5212
      %v5375 = vadd.f32 %v4370, %v5345
      %v5376 = vadd.f32 %v4371, %v5216
      %v5377 = vadd.f32 %v4372, %v5218
      %v5378 = vadd.f32 %v4373, %v5350
      %v5379 = vadd.f32 %v4374, %v5220
      %v5380 = vadd.f32 %v4375, %v5222
      %v5381 = vadd.f32 %v4376, %v5353
      %v5382 = vadd.f32 %v4377, %v5226
      %v5383 = vadd.f32 %v4378, %v5228
      %v5384 = vadd.f32 %v4379, %v5358
      %v5385 = vadd.f32 %v4380, %v5230
      %v5386 = vadd.f32 %v4381, %v5232
      %v5387 = vadd.f32 %v4382, %v5361
      %v5389 = vshrl.u32 %v3147, 16
      %v5391 = vrot.slane %v5389, 4
      %v5392 = vshll.u32 %v3147, 16
      %v5394 = vrot.slane %v5392, 5
      %v5395 = vor.u32 %v5391, %v5394
      %v5396 = vrot.slane %v5395, 4
      %v5398 = vshll.u32 %v3149, 16
      %v5400 = vrot.slane %v5398, 5
      %v5401 = vsel %vm3153, %v5396, %v5400
      %v5403 = vshrl.u32 %v3148, 16
      %v5405 = vrot.slane %v5403, 4
      %v5406 = vshll.u32 %v3148, 16
      %v5408 = vrot.slane %v5406, 5
      %v5409 = vor.u32 %v5405, %v5408
      %v5410 = vrot.slane %v5409, 4
      %v5412 = vshll.u32 %v3150, 16
      %v5414 = vrot.slane %v5412, 5
      %v5415 = vsel %vm3153, %v5410, %v5414
      %s5416 = scalar_lea.vmem %s1, 5376
      %v5417 = vld [vmem:[%s5416] sm:$0xff]
      %v5418 = vld [vmem:[%s5416 + $0x8] sm:$0xf]
      %v5419 = vld [vmem:[%s5416 + $0xc] sm:$0xff]
      %v5420 = vld [vmem:[%s5416 + $0x14] sm:$0xf]
      %v5421 = vld [vmem:[%s5416 + $0x18] sm:$0xff]
      %v5422 = vld [vmem:[%s5416 + $0x20] sm:$0xf]
      %v5423 = vld [vmem:[%s5416 + $0x24] sm:$0xff]
      %v5424 = vld [vmem:[%s5416 + $0x2c] sm:$0xf]
      %v5425 = vld [vmem:[%s5416 + $0x30] sm:$0xff]
      %v5426 = vld [vmem:[%s5416 + $0x38] sm:$0xf]
      %v5427 = vld [vmem:[%s5416 + $0x3c] sm:$0xff]
      %v5428 = vld [vmem:[%s5416 + $0x44] sm:$0xf]
      %v5429 = vld [vmem:[%s5416 + $0x48] sm:$0xff]
      %v5430 = vld [vmem:[%s5416 + $0x50] sm:$0xf]
      %v5431 = vld [vmem:[%s5416 + $0x54] sm:$0xff]
      %v5432 = vld [vmem:[%s5416 + $0x5c] sm:$0xf]
      %v5433 = vld [vmem:[%s5416 + $0x60] sm:$0xff]
      %v5434 = vld [vmem:[%s5416 + $0x68] sm:$0xf]
      %v5435 = vld [vmem:[%s5416 + $0x6c] sm:$0xff]
      %v5436 = vld [vmem:[%s5416 + $0x74] sm:$0xf]
      %v5437 = vld [vmem:[%s5416 + $0x78] sm:$0xff]
      %v5438 = vld [vmem:[%s5416 + $0x80] sm:$0xf]
      %v5439 = vld [vmem:[%s5416 + $0x84] sm:$0xff]
      %v5440 = vld [vmem:[%s5416 + $0x8c] sm:$0xf]
      %v5441 = vld [vmem:[%s5416 + $0x90] sm:$0xff]
      %v5442 = vld [vmem:[%s5416 + $0x98] sm:$0xf]
      %v5443 = vld [vmem:[%s5416 + $0x9c] sm:$0xff]
      %v5444 = vld [vmem:[%s5416 + $0xa4] sm:$0xf]
      %v5445 = vld [vmem:[%s5416 + $0xa8] sm:$0xff]
      %v5446 = vld [vmem:[%s5416 + $0xb0] sm:$0xf]
      %v5447 = vld [vmem:[%s5416 + $0xb4] sm:$0xff]
      %v5448 = vld [vmem:[%s5416 + $0xbc] sm:$0xf]
      %v5449 = vld [vmem:[%s5416 + $0xc0] sm:$0xff]
      %v5450 = vld [vmem:[%s5416 + $0xc8] sm:$0xf]
      %v5451 = vld [vmem:[%s5416 + $0xcc] sm:$0xff]
      %v5452 = vld [vmem:[%s5416 + $0xd4] sm:$0xf]
      %v5453 = vld [vmem:[%s5416 + $0xd8] sm:$0xff]
      %v5454 = vld [vmem:[%s5416 + $0xe0] sm:$0xf]
      %v5455 = vld [vmem:[%s5416 + $0xe4] sm:$0xff]
      %v5456 = vld [vmem:[%s5416 + $0xec] sm:$0xf]
      %v5457 = vld [vmem:[%s5416 + $0xf0] sm:$0xff]
      %v5458 = vld [vmem:[%s5416 + $0xf8] sm:$0xf]
      %v5459 = vld [vmem:[%s5416 + $0xfc] sm:$0xff]
      %v5460 = vld [vmem:[%s5416 + $0x104] sm:$0xf]
      %v5461 = vld [vmem:[%s5416 + $0x108] sm:$0xff]
      %v5462 = vld [vmem:[%s5416 + $0x110] sm:$0xf]
      %v5463 = vld [vmem:[%s5416 + $0x114] sm:$0xff]
      %v5464 = vld [vmem:[%s5416 + $0x11c] sm:$0xf]
      %v5465 = vld [vmem:[%s5416 + $0x120] sm:$0xff]
      %v5466 = vld [vmem:[%s5416 + $0x128] sm:$0xf]
      %v5467 = vld [vmem:[%s5416 + $0x12c] sm:$0xff]
      %v5468 = vld [vmem:[%s5416 + $0x134] sm:$0xf]
      %v5469 = vld [vmem:[%s5416 + $0x138] sm:$0xff]
      %v5470 = vld [vmem:[%s5416 + $0x140] sm:$0xf]
      %v5471 = vld [vmem:[%s5416 + $0x144] sm:$0xff]
      %v5472 = vld [vmem:[%s5416 + $0x14c] sm:$0xf]
      %v5473 = vld [vmem:[%s5416 + $0x150] sm:$0xff]
      %v5474 = vld [vmem:[%s5416 + $0x158] sm:$0xf]
      %v5475 = vld [vmem:[%s5416 + $0x15c] sm:$0xff]
      %v5476 = vld [vmem:[%s5416 + $0x164] sm:$0xf]
      %v5477 = vld [vmem:[%s5416 + $0x168] sm:$0xff]
      %v5478 = vld [vmem:[%s5416 + $0x170] sm:$0xf]
      %v5479 = vld [vmem:[%s5416 + $0x174] sm:$0xff]
      %v5480 = vld [vmem:[%s5416 + $0x17c] sm:$0xf]
      %v5481 = vld [vmem:[%s5416 + $0x180] sm:$0xff]
      %v5482 = vld [vmem:[%s5416 + $0x188] sm:$0xf]
      %v5483 = vld [vmem:[%s5416 + $0x18c] sm:$0xff]
      %v5484 = vld [vmem:[%s5416 + $0x194] sm:$0xf]
      %v5485 = vld [vmem:[%s5416 + $0x198] sm:$0xff]
      %v5486 = vld [vmem:[%s5416 + $0x1a0] sm:$0xf]
      %v5487 = vld [vmem:[%s5416 + $0x1a4] sm:$0xff]
      %v5488 = vld [vmem:[%s5416 + $0x1ac] sm:$0xf]
      %v5489 = vld [vmem:[%s5416 + $0x1b0] sm:$0xff]
      %v5490 = vld [vmem:[%s5416 + $0x1b8] sm:$0xf]
      %v5491 = vld [vmem:[%s5416 + $0x1bc] sm:$0xff]
      %v5492 = vld [vmem:[%s5416 + $0x1c4] sm:$0xf]
      %v5493 = vld [vmem:[%s5416 + $0x1c8] sm:$0xff]
      %v5494 = vld [vmem:[%s5416 + $0x1d0] sm:$0xf]
      %v5495 = vld [vmem:[%s5416 + $0x1d4] sm:$0xff]
      %v5496 = vld [vmem:[%s5416 + $0x1dc] sm:$0xf]
      %v5497 = vld [vmem:[%s5416 + $0x1e0] sm:$0xff]
      %v5498 = vld [vmem:[%s5416 + $0x1e8] sm:$0xf]
      %v5499 = vld [vmem:[%s5416 + $0x1ec] sm:$0xff]
      %v5500 = vld [vmem:[%s5416 + $0x1f4] sm:$0xf]
      %v5501 = vld [vmem:[%s5416 + $0x1f8] sm:$0xff]
      %v5502 = vld [vmem:[%s5416 + $0x200] sm:$0xf]
      %v5503 = vld [vmem:[%s5416 + $0x204] sm:$0xff]
      %v5504 = vld [vmem:[%s5416 + $0x20c] sm:$0xf]
      %v5505 = vld [vmem:[%s5416 + $0x210] sm:$0xff]
      %v5506 = vld [vmem:[%s5416 + $0x218] sm:$0xf]
      %v5507 = vld [vmem:[%s5416 + $0x21c] sm:$0xff]
      %v5508 = vld [vmem:[%s5416 + $0x224] sm:$0xf]
      %v5509 = vld [vmem:[%s5416 + $0x228] sm:$0xff]
      %v5510 = vld [vmem:[%s5416 + $0x230] sm:$0xf]
      %v5511 = vld [vmem:[%s5416 + $0x234] sm:$0xff]
      %v5512 = vld [vmem:[%s5416 + $0x23c] sm:$0xf]
      %v5513 = vld [vmem:[%s5416 + $0x240] sm:$0xff]
      %v5514 = vld [vmem:[%s5416 + $0x248] sm:$0xf]
      %v5515 = vld [vmem:[%s5416 + $0x24c] sm:$0xff]
      %v5516 = vld [vmem:[%s5416 + $0x254] sm:$0xf]
      %v5517 = vld [vmem:[%s5416 + $0x258] sm:$0xff]
      %v5518 = vld [vmem:[%s5416 + $0x260] sm:$0xf]
      %v5519 = vld [vmem:[%s5416 + $0x264] sm:$0xff]
      %v5520 = vld [vmem:[%s5416 + $0x26c] sm:$0xf]
      %v5521 = vld [vmem:[%s5416 + $0x270] sm:$0xff]
      %v5522 = vld [vmem:[%s5416 + $0x278] sm:$0xf]
      %v5523 = vld [vmem:[%s5416 + $0x27c] sm:$0xff]
      %v5524 = vld [vmem:[%s5416 + $0x284] sm:$0xf]
      %v5525 = vld [vmem:[%s5416 + $0x288] sm:$0xff]
      %v5526 = vld [vmem:[%s5416 + $0x290] sm:$0xf]
      %v5527 = vld [vmem:[%s5416 + $0x294] sm:$0xff]
      %v5528 = vld [vmem:[%s5416 + $0x29c] sm:$0xf]
      %v5529 = vld [vmem:[%s5416 + $0x2a0] sm:$0xff]
      %v5530 = vld [vmem:[%s5416 + $0x2a8] sm:$0xf]
      %v5531 = vld [vmem:[%s5416 + $0x2ac] sm:$0xff]
      %v5532 = vld [vmem:[%s5416 + $0x2b4] sm:$0xf]
      %v5533 = vld [vmem:[%s5416 + $0x2b8] sm:$0xff]
      %v5534 = vld [vmem:[%s5416 + $0x2c0] sm:$0xf]
      %v5535 = vld [vmem:[%s5416 + $0x2c4] sm:$0xff]
      %v5536 = vld [vmem:[%s5416 + $0x2cc] sm:$0xf]
      %v5537 = vld [vmem:[%s5416 + $0x2d0] sm:$0xff]
      %v5538 = vld [vmem:[%s5416 + $0x2d8] sm:$0xf]
      %v5539 = vld [vmem:[%s5416 + $0x2dc] sm:$0xff]
      %v5540 = vld [vmem:[%s5416 + $0x2e4] sm:$0xf]
      %v5541 = vld [vmem:[%s5416 + $0x2e8] sm:$0xff]
      %v5542 = vld [vmem:[%s5416 + $0x2f0] sm:$0xf]
      %v5543 = vld [vmem:[%s5416 + $0x2f4] sm:$0xff]
      %v5544 = vld [vmem:[%s5416 + $0x2fc] sm:$0xf]
      %v5545 = vunpack.c.l.b16 %v5401
      %v5546 = vunpack.c.h.b16 %v5401
      %v5547 = vunpack.c.l.b16 %v5415
      %v5548 = vunpack.c.h.b16 %v5415
      %v5549 = vpack.c.b16 %v5545, %v4540
      %v5550 = vpack.c.b16 %v5546, %v4541
      %v5551 = vpack.c.b16 %v5547, %v4542
      %v5552 = vpack.c.b16 %v5548, %v4543
      %v5685 = vunpack.c.l.b16 %v5417
      %v5686 = vunpack.c.h.b16 %v5417
      %v5687 = vunpack.c.l.b16 %v5418
      %v5688 = vunpack.c.l.b16 %v5419
      %v5689 = vunpack.c.h.b16 %v5419
      %v5690 = vunpack.c.l.b16 %v5420
      %v5691 = vunpack.c.l.b16 %v5421
      %v5692 = vunpack.c.h.b16 %v5421
      %v5693 = vunpack.c.l.b16 %v5422
      %v5694 = vunpack.c.l.b16 %v5423
      %v5695 = vunpack.c.h.b16 %v5423
      %v5696 = vunpack.c.l.b16 %v5424
      %v5697 = vunpack.c.l.b16 %v5425
      %v5698 = vunpack.c.h.b16 %v5425
      %v5699 = vunpack.c.l.b16 %v5426
      %v5700 = vunpack.c.l.b16 %v5427
      %v5701 = vunpack.c.h.b16 %v5427
      %v5702 = vunpack.c.l.b16 %v5428
      %v5703 = vunpack.c.l.b16 %v5429
      %v5704 = vunpack.c.h.b16 %v5429
      %v5705 = vunpack.c.l.b16 %v5430
      %v5706 = vunpack.c.l.b16 %v5431
      %v5707 = vunpack.c.h.b16 %v5431
      %v5708 = vunpack.c.l.b16 %v5432
      %v5709 = vunpack.c.l.b16 %v5433
      %v5710 = vunpack.c.h.b16 %v5433
      %v5711 = vunpack.c.l.b16 %v5434
      %v5712 = vunpack.c.l.b16 %v5435
      %v5713 = vunpack.c.h.b16 %v5435
      %v5714 = vunpack.c.l.b16 %v5436
      %v5715 = vunpack.c.l.b16 %v5437
      %v5716 = vunpack.c.h.b16 %v5437
      %v5717 = vunpack.c.l.b16 %v5438
      %v5718 = vunpack.c.l.b16 %v5439
      %v5719 = vunpack.c.h.b16 %v5439
      %v5720 = vunpack.c.l.b16 %v5440
      %v5721 = vunpack.c.l.b16 %v5441
      %v5722 = vunpack.c.h.b16 %v5441
      %v5723 = vunpack.c.l.b16 %v5442
      %v5724 = vunpack.c.l.b16 %v5443
      %v5725 = vunpack.c.h.b16 %v5443
      %v5726 = vunpack.c.l.b16 %v5444
      %v5727 = vunpack.c.l.b16 %v5445
      %v5728 = vunpack.c.h.b16 %v5445
      %v5729 = vunpack.c.l.b16 %v5446
      %v5730 = vunpack.c.l.b16 %v5447
      %v5731 = vunpack.c.h.b16 %v5447
      %v5732 = vunpack.c.l.b16 %v5448
      %v5733 = vunpack.c.l.b16 %v5449
      %v5734 = vunpack.c.h.b16 %v5449
      %v5735 = vunpack.c.l.b16 %v5450
      %v5736 = vunpack.c.l.b16 %v5451
      %v5737 = vunpack.c.h.b16 %v5451
      %v5738 = vunpack.c.l.b16 %v5452
      %v5739 = vunpack.c.l.b16 %v5453
      %v5740 = vunpack.c.h.b16 %v5453
      %v5741 = vunpack.c.l.b16 %v5454
      %v5742 = vunpack.c.l.b16 %v5455
      %v5743 = vunpack.c.h.b16 %v5455
      %v5744 = vunpack.c.l.b16 %v5456
      %v5745 = vunpack.c.l.b16 %v5457
      %v5746 = vunpack.c.h.b16 %v5457
      %v5747 = vunpack.c.l.b16 %v5458
      %v5748 = vunpack.c.l.b16 %v5459
      %v5749 = vunpack.c.h.b16 %v5459
      %v5750 = vunpack.c.l.b16 %v5460
      %v5751 = vunpack.c.l.b16 %v5461
      %v5752 = vunpack.c.h.b16 %v5461
      %v5753 = vunpack.c.l.b16 %v5462
      %v5754 = vunpack.c.l.b16 %v5463
      %v5755 = vunpack.c.h.b16 %v5463
      %v5756 = vunpack.c.l.b16 %v5464
      %v5757 = vunpack.c.l.b16 %v5465
      %v5758 = vunpack.c.h.b16 %v5465
      %v5759 = vunpack.c.l.b16 %v5466
      %v5760 = vunpack.c.l.b16 %v5467
      %v5761 = vunpack.c.h.b16 %v5467
      %v5762 = vunpack.c.l.b16 %v5468
      %v5763 = vunpack.c.l.b16 %v5469
      %v5764 = vunpack.c.h.b16 %v5469
      %v5765 = vunpack.c.l.b16 %v5470
      %v5766 = vunpack.c.l.b16 %v5471
      %v5767 = vunpack.c.h.b16 %v5471
      %v5768 = vunpack.c.l.b16 %v5472
      %v5769 = vunpack.c.l.b16 %v5473
      %v5770 = vunpack.c.h.b16 %v5473
      %v5771 = vunpack.c.l.b16 %v5474
      %v5772 = vunpack.c.l.b16 %v5475
      %v5773 = vunpack.c.h.b16 %v5475
      %v5774 = vunpack.c.l.b16 %v5476
      %v5775 = vunpack.c.l.b16 %v5477
      %v5776 = vunpack.c.h.b16 %v5477
      %v5777 = vunpack.c.l.b16 %v5478
      %v5778 = vunpack.c.l.b16 %v5479
      %v5779 = vunpack.c.h.b16 %v5479
      %v5780 = vunpack.c.l.b16 %v5480
      %v5781 = vunpack.c.l.b16 %v5481
      %v5782 = vunpack.c.h.b16 %v5481
      %v5783 = vunpack.c.l.b16 %v5482
      %v5784 = vunpack.c.l.b16 %v5483
      %v5785 = vunpack.c.h.b16 %v5483
      %v5786 = vunpack.c.l.b16 %v5484
      %v5787 = vunpack.c.l.b16 %v5485
      %v5788 = vunpack.c.h.b16 %v5485
      %v5789 = vunpack.c.l.b16 %v5486
      %v5790 = vunpack.c.l.b16 %v5487
      %v5791 = vunpack.c.h.b16 %v5487
      %v5792 = vunpack.c.l.b16 %v5488
      %v5793 = vunpack.c.l.b16 %v5489
      %v5794 = vunpack.c.h.b16 %v5489
      %v5795 = vunpack.c.l.b16 %v5490
      %v5796 = vunpack.c.l.b16 %v5491
      %v5797 = vunpack.c.h.b16 %v5491
      %v5798 = vunpack.c.l.b16 %v5492
      %v5799 = vunpack.c.l.b16 %v5493
      %v5800 = vunpack.c.h.b16 %v5493
      %v5801 = vunpack.c.l.b16 %v5494
      %v5802 = vunpack.c.l.b16 %v5495
      %v5803 = vunpack.c.h.b16 %v5495
      %v5804 = vunpack.c.l.b16 %v5496
      %v5805 = vunpack.c.l.b16 %v5497
      %v5806 = vunpack.c.h.b16 %v5497
      %v5807 = vunpack.c.l.b16 %v5498
      %v5808 = vunpack.c.l.b16 %v5499
      %v5809 = vunpack.c.h.b16 %v5499
      %v5810 = vunpack.c.l.b16 %v5500
      %v5811 = vunpack.c.l.b16 %v5501
      %v5812 = vunpack.c.h.b16 %v5501
      %v5813 = vunpack.c.l.b16 %v5502
      %v5814 = vunpack.c.l.b16 %v5503
      %v5815 = vunpack.c.h.b16 %v5503
      %v5816 = vunpack.c.l.b16 %v5504
      %v5817 = vunpack.c.l.b16 %v5505
      %v5818 = vunpack.c.h.b16 %v5505
      %v5819 = vunpack.c.l.b16 %v5506
      %v5820 = vunpack.c.l.b16 %v5507
      %v5821 = vunpack.c.h.b16 %v5507
      %v5822 = vunpack.c.l.b16 %v5508
      %v5823 = vunpack.c.l.b16 %v5509
      %v5824 = vunpack.c.h.b16 %v5509
      %v5825 = vunpack.c.l.b16 %v5510
      %v5826 = vunpack.c.l.b16 %v5511
      %v5827 = vunpack.c.h.b16 %v5511
      %v5828 = vunpack.c.l.b16 %v5512
      %v5829 = vunpack.c.l.b16 %v5513
      %v5830 = vunpack.c.h.b16 %v5513
      %v5831 = vunpack.c.l.b16 %v5514
      %v5832 = vunpack.c.l.b16 %v5515
      %v5833 = vunpack.c.h.b16 %v5515
      %v5834 = vunpack.c.l.b16 %v5516
      %v5835 = vunpack.c.l.b16 %v5517
      %v5836 = vunpack.c.h.b16 %v5517
      %v5837 = vunpack.c.l.b16 %v5518
      %v5838 = vunpack.c.l.b16 %v5519
      %v5839 = vunpack.c.h.b16 %v5519
      %v5840 = vunpack.c.l.b16 %v5520
      %v5841 = vunpack.c.l.b16 %v5521
      %v5842 = vunpack.c.h.b16 %v5521
      %v5843 = vunpack.c.l.b16 %v5522
      %v5844 = vunpack.c.l.b16 %v5523
      %v5845 = vunpack.c.h.b16 %v5523
      %v5846 = vunpack.c.l.b16 %v5524
      %v5847 = vunpack.c.l.b16 %v5525
      %v5848 = vunpack.c.h.b16 %v5525
      %v5849 = vunpack.c.l.b16 %v5526
      %v5850 = vunpack.c.l.b16 %v5527
      %v5851 = vunpack.c.h.b16 %v5527
      %v5852 = vunpack.c.l.b16 %v5528
      %v5853 = vunpack.c.l.b16 %v5529
      %v5854 = vunpack.c.h.b16 %v5529
      %v5855 = vunpack.c.l.b16 %v5530
      %v5856 = vunpack.c.l.b16 %v5531
      %v5857 = vunpack.c.h.b16 %v5531
      %v5858 = vunpack.c.l.b16 %v5532
      %v5859 = vunpack.c.l.b16 %v5533
      %v5860 = vunpack.c.h.b16 %v5533
      %v5861 = vunpack.c.l.b16 %v5534
      %v5862 = vunpack.c.l.b16 %v5535
      %v5863 = vunpack.c.h.b16 %v5535
      %v5864 = vunpack.c.l.b16 %v5536
      %v5865 = vunpack.c.l.b16 %v5537
      %v5866 = vunpack.c.h.b16 %v5537
      %v5867 = vunpack.c.l.b16 %v5538
      %v5868 = vunpack.c.l.b16 %v5539
      %v5869 = vunpack.c.h.b16 %v5539
      %v5870 = vunpack.c.l.b16 %v5540
      %v5871 = vunpack.c.l.b16 %v5541
      %v5872 = vunpack.c.h.b16 %v5541
      %v5873 = vunpack.c.l.b16 %v5542
      %v5874 = vunpack.c.l.b16 %v5543
      %v5875 = vunpack.c.h.b16 %v5543
      %v5876 = vunpack.c.l.b16 %v5544
      %v5877 = vpack.c.b16 %v5688, %v5685
      %v5878 = vpack.c.b16 %v5689, %v5686
      %v5879 = vpack.c.b16 %v5690, %v5687
      %v5880 = vpack.c.b16 %v5694, %v5691
      %v5881 = vpack.c.b16 %v5695, %v5692
      %v5882 = vpack.c.b16 %v5696, %v5693
      %v5883 = vpack.c.b16 %v5700, %v5697
      %v5884 = vpack.c.b16 %v5701, %v5698
      %v5885 = vpack.c.b16 %v5702, %v5699
      %v5886 = vpack.c.b16 %v5706, %v5703
      %v5887 = vpack.c.b16 %v5707, %v5704
      %v5888 = vpack.c.b16 %v5708, %v5705
      %v5889 = vpack.c.b16 %v5712, %v5709
      %v5890 = vpack.c.b16 %v5713, %v5710
      %v5891 = vpack.c.b16 %v5714, %v5711
      %v5892 = vpack.c.b16 %v5718, %v5715
      %v5893 = vpack.c.b16 %v5719, %v5716
      %v5894 = vpack.c.b16 %v5720, %v5717
      %v5895 = vpack.c.b16 %v5724, %v5721
      %v5896 = vpack.c.b16 %v5725, %v5722
      %v5897 = vpack.c.b16 %v5726, %v5723
      %v5898 = vpack.c.b16 %v5730, %v5727
      %v5899 = vpack.c.b16 %v5731, %v5728
      %v5900 = vpack.c.b16 %v5732, %v5729
      %v5901 = vpack.c.b16 %v5736, %v5733
      %v5902 = vpack.c.b16 %v5737, %v5734
      %v5903 = vpack.c.b16 %v5738, %v5735
      %v5904 = vpack.c.b16 %v5742, %v5739
      %v5905 = vpack.c.b16 %v5743, %v5740
      %v5906 = vpack.c.b16 %v5744, %v5741
      %v5907 = vpack.c.b16 %v5748, %v5745
      %v5908 = vpack.c.b16 %v5749, %v5746
      %v5909 = vpack.c.b16 %v5750, %v5747
      %v5910 = vpack.c.b16 %v5754, %v5751
      %v5911 = vpack.c.b16 %v5755, %v5752
      %v5912 = vpack.c.b16 %v5756, %v5753
      %v5913 = vpack.c.b16 %v5760, %v5757
      %v5914 = vpack.c.b16 %v5761, %v5758
      %v5915 = vpack.c.b16 %v5762, %v5759
      %v5916 = vpack.c.b16 %v5766, %v5763
      %v5917 = vpack.c.b16 %v5767, %v5764
      %v5918 = vpack.c.b16 %v5768, %v5765
      %v5919 = vpack.c.b16 %v5772, %v5769
      %v5920 = vpack.c.b16 %v5773, %v5770
      %v5921 = vpack.c.b16 %v5774, %v5771
      %v5922 = vpack.c.b16 %v5778, %v5775
      %v5923 = vpack.c.b16 %v5779, %v5776
      %v5924 = vpack.c.b16 %v5780, %v5777
      %v5925 = vpack.c.b16 %v5784, %v5781
      %v5926 = vpack.c.b16 %v5785, %v5782
      %v5927 = vpack.c.b16 %v5786, %v5783
      %v5928 = vpack.c.b16 %v5790, %v5787
      %v5929 = vpack.c.b16 %v5791, %v5788
      %v5930 = vpack.c.b16 %v5792, %v5789
      %v5931 = vpack.c.b16 %v5796, %v5793
      %v5932 = vpack.c.b16 %v5797, %v5794
      %v5933 = vpack.c.b16 %v5798, %v5795
      %v5934 = vpack.c.b16 %v5802, %v5799
      %v5935 = vpack.c.b16 %v5803, %v5800
      %v5936 = vpack.c.b16 %v5804, %v5801
      %v5937 = vpack.c.b16 %v5808, %v5805
      %v5938 = vpack.c.b16 %v5809, %v5806
      %v5939 = vpack.c.b16 %v5810, %v5807
      %v5940 = vpack.c.b16 %v5814, %v5811
      %v5941 = vpack.c.b16 %v5815, %v5812
      %v5942 = vpack.c.b16 %v5816, %v5813
      %v5943 = vpack.c.b16 %v5820, %v5817
      %v5944 = vpack.c.b16 %v5821, %v5818
      %v5945 = vpack.c.b16 %v5822, %v5819
      %v5946 = vpack.c.b16 %v5826, %v5823
      %v5947 = vpack.c.b16 %v5827, %v5824
      %v5948 = vpack.c.b16 %v5828, %v5825
      %v5949 = vpack.c.b16 %v5832, %v5829
      %v5950 = vpack.c.b16 %v5833, %v5830
      %v5951 = vpack.c.b16 %v5834, %v5831
      %v5952 = vpack.c.b16 %v5838, %v5835
      %v5953 = vpack.c.b16 %v5839, %v5836
      %v5954 = vpack.c.b16 %v5840, %v5837
      %v5955 = vpack.c.b16 %v5844, %v5841
      %v5956 = vpack.c.b16 %v5845, %v5842
      %v5957 = vpack.c.b16 %v5846, %v5843
      %v5958 = vpack.c.b16 %v5850, %v5847
      %v5959 = vpack.c.b16 %v5851, %v5848
      %v5960 = vpack.c.b16 %v5852, %v5849
      %v5961 = vpack.c.b16 %v5856, %v5853
      %v5962 = vpack.c.b16 %v5857, %v5854
      %v5963 = vpack.c.b16 %v5858, %v5855
      %v5964 = vpack.c.b16 %v5862, %v5859
      %v5965 = vpack.c.b16 %v5863, %v5860
      %v5966 = vpack.c.b16 %v5864, %v5861
      %v5967 = vpack.c.b16 %v5868, %v5865
      %v5968 = vpack.c.b16 %v5869, %v5866
      %v5969 = vpack.c.b16 %v5870, %v5867
      %v5970 = vpack.c.b16 %v5874, %v5871
      %v5971 = vpack.c.b16 %v5875, %v5872
      %v5972 = vpack.c.b16 %v5876, %v5873
      %6069 = vmatprep.subr.bf16.mxu0 %v5899
      %6070 = vmatpush1.bf16.msra.mxu0 %v5898
      %6071 = vmatprep.subr.bf16.mxu0 %v5896
      %6072 = vmatpush1.bf16.msra.mxu0 %v5895
      %6073 = vmatprep.subr.bf16.mxu0 %v5893
      %6074 = vmatpush1.bf16.msra.mxu0 %v5892
      %6075 = vmatprep.subr.bf16.mxu0 %v5890
      %6076 = vmatpush1.bf16.msra.mxu0 %v5889
      %6077 = vmatprep.subr.bf16.mxu0 %v5887
      %6078 = vmatpush1.bf16.msra.mxu0 %v5886
      %6079 = vmatprep.subr.bf16.mxu0 %v5884
      %6080 = vmatpush1.bf16.msra.mxu0 %v5883
      %6081 = vmatprep.subr.bf16.mxu0 %v5881
      %6082 = vmatpush1.bf16.msra.mxu0 %v5880
      %6083 = vmatprep.subr.bf16.mxu0 %v5878
      %6084 = vmatpush1.bf16.msra.mxu0 %v5877
      %6085 = vmatprep.subr.bf16.mxu0 %v5923
      %6086 = vmatpush2.bf16.msra.mxu0 %v5922
      %6087 = vmatprep.subr.bf16.mxu0 %v5920
      %6088 = vmatpush2.bf16.msra.mxu0 %v5919
      %6089 = vmatprep.subr.bf16.mxu0 %v5917
      %6090 = vmatpush2.bf16.msra.mxu0 %v5916
      %6091 = vmatprep.subr.bf16.mxu0 %v5914
      %6092 = vmatpush2.bf16.msra.mxu0 %v5913
      %6093 = vmatprep.subr.bf16.mxu0 %v5911
      %6094 = vmatpush2.bf16.msra.mxu0 %v5910
      %6095 = vmatprep.subr.bf16.mxu0 %v5908
      %6096 = vmatpush2.bf16.msra.mxu0 %v5907
      %6097 = vmatprep.subr.bf16.mxu0 %v5905
      %6098 = vmatpush2.bf16.msra.mxu0 %v5904
      %6099 = vmatprep.subr.bf16.mxu0 %v5902
      %6100 = vmatpush2.bf16.msra.mxu0 %v5901
      %6101 = vmatprep.mubr.bf16.mxu0 %v3544
      %6102 = vmatmul.mubr.bf16.gmra.mxu0 %v3543
      %v6103 = vpop.f32.mrf.mxu0
      %v6104 = vadd.f32 0.0, %v6103
      %v6105 = vpop.f32.mrf.mxu0
      %v6106 = vadd.f32 0.0, %v6105
      %v6107 = vpop.f32.mrf.mxu0
      %v6108 = vadd.f32 0.0, %v6107
      %v6109 = vpop.f32.mrf.mxu0
      %v6110 = vadd.f32 0.0, %v6109
      %6111 = vmatprep.mubr.bf16.mxu0 %v3548
      %6112 = vmatmul.mubr.bf16.gmra.mxu0 %v3547
      %v6113 = vpop.f32.mrf.mxu0
      %v6114 = vadd.f32 0.0, %v6113
      %v6115 = vpop.f32.mrf.mxu0
      %v6116 = vadd.f32 0.0, %v6115
      %v6117 = vpop.f32.mrf.mxu0
      %v6118 = vadd.f32 0.0, %v6117
      %v6119 = vpop.f32.mrf.mxu0
      %v6120 = vadd.f32 0.0, %v6119
      %6121 = vmatprep.mubr.bf16.mxu0 %v3552
      %6122 = vmatmul.mubr.bf16.gmra.mxu0 %v3551
      %v6123 = vpop.f32.mrf.mxu0
      %v6124 = vadd.f32 0.0, %v6123
      %v6125 = vpop.f32.mrf.mxu0
      %v6126 = vadd.f32 0.0, %v6125
      %v6127 = vpop.f32.mrf.mxu0
      %v6128 = vadd.f32 0.0, %v6127
      %v6129 = vpop.f32.mrf.mxu0
      %v6130 = vadd.f32 0.0, %v6129
      %6131 = vmatprep.mubr.bf16.mxu0 %v5550
      %6132 = vmatmul.mubr.bf16.gmra.mxu0 %v5549
      %v6133 = vpop.f32.mrf.mxu0
      %v6134 = vadd.f32 0.0, %v6133
      %v6135 = vpop.f32.mrf.mxu0
      %v6136 = vadd.f32 0.0, %v6135
      %v6137 = vpop.f32.mrf.mxu0
      %v6138 = vadd.f32 0.0, %v6137
      %v6139 = vpop.f32.mrf.mxu0
      %v6140 = vadd.f32 0.0, %v6139
      %6141 = vdwg.mxu0
      %6142 = vmatprep.subr.bf16.mxu0 %v5947
      %6143 = vmatpush1.bf16.msra.mxu0 %v5946
      %6144 = vmatprep.subr.bf16.mxu0 %v5944
      %6145 = vmatpush1.bf16.msra.mxu0 %v5943
      %6146 = vmatprep.subr.bf16.mxu0 %v5941
      %6147 = vmatpush1.bf16.msra.mxu0 %v5940
      %6148 = vmatprep.subr.bf16.mxu0 %v5938
      %6149 = vmatpush1.bf16.msra.mxu0 %v5937
      %6150 = vmatprep.subr.bf16.mxu0 %v5935
      %6151 = vmatpush1.bf16.msra.mxu0 %v5934
      %6152 = vmatprep.subr.bf16.mxu0 %v5932
      %6153 = vmatpush1.bf16.msra.mxu0 %v5931
      %6154 = vmatprep.subr.bf16.mxu0 %v5929
      %6155 = vmatpush1.bf16.msra.mxu0 %v5928
      %6156 = vmatprep.subr.bf16.mxu0 %v5926
      %6157 = vmatpush1.bf16.msra.mxu0 %v5925
      %6158 = vmatprep.subr.bf16.mxu0 %v5971
      %6159 = vmatpush2.bf16.msra.mxu0 %v5970
      %6160 = vmatprep.subr.bf16.mxu0 %v5968
      %6161 = vmatpush2.bf16.msra.mxu0 %v5967
      %6162 = vmatprep.subr.bf16.mxu0 %v5965
      %6163 = vmatpush2.bf16.msra.mxu0 %v5964
      %6164 = vmatprep.subr.bf16.mxu0 %v5962
      %6165 = vmatpush2.bf16.msra.mxu0 %v5961
      %6166 = vmatprep.subr.bf16.mxu0 %v5959
      %6167 = vmatpush2.bf16.msra.mxu0 %v5958
      %6168 = vmatprep.subr.bf16.mxu0 %v5956
      %6169 = vmatpush2.bf16.msra.mxu0 %v5955
      %6170 = vmatprep.subr.bf16.mxu0 %v5953
      %6171 = vmatpush2.bf16.msra.mxu0 %v5952
      %6172 = vmatprep.subr.bf16.mxu0 %v5950
      %6173 = vmatpush2.bf16.msra.mxu0 %v5949
      %6174 = vmatprep.mubr.bf16.mxu0 %v3546
      %6175 = vmatmul.mubr.bf16.gmra.mxu0 %v3545
      %v6176 = vpop.f32.mrf.mxu0
      %v6177 = vadd.f32 %v6104, %v6176
      %v6178 = vpop.f32.mrf.mxu0
      %v6179 = vadd.f32 %v6106, %v6178
      %v6180 = vpop.f32.mrf.mxu0
      %v6181 = vadd.f32 %v6108, %v6180
      %v6182 = vpop.f32.mrf.mxu0
      %v6183 = vadd.f32 %v6110, %v6182
      %6184 = vmatprep.mubr.bf16.mxu0 %v3550
      %6185 = vmatmul.mubr.bf16.gmra.mxu0 %v3549
      %v6186 = vpop.f32.mrf.mxu0
      %v6187 = vadd.f32 %v6114, %v6186
      %v6188 = vpop.f32.mrf.mxu0
      %v6189 = vadd.f32 %v6116, %v6188
      %v6190 = vpop.f32.mrf.mxu0
      %v6191 = vadd.f32 %v6118, %v6190
      %v6192 = vpop.f32.mrf.mxu0
      %v6193 = vadd.f32 %v6120, %v6192
      %6194 = vmatprep.mubr.bf16.mxu0 %v3554
      %6195 = vmatmul.mubr.bf16.gmra.mxu0 %v3553
      %v6196 = vpop.f32.mrf.mxu0
      %v6197 = vadd.f32 %v6124, %v6196
      %v6198 = vpop.f32.mrf.mxu0
      %v6199 = vadd.f32 %v6126, %v6198
      %v6200 = vpop.f32.mrf.mxu0
      %v6201 = vadd.f32 %v6128, %v6200
      %v6202 = vpop.f32.mrf.mxu0
      %v6203 = vadd.f32 %v6130, %v6202
      %6204 = vmatprep.mubr.bf16.mxu0 %v5552
      %6205 = vmatmul.mubr.bf16.gmra.mxu0 %v5551
      %v6206 = vpop.f32.mrf.mxu0
      %v6207 = vadd.f32 %v6134, %v6206
      %v6208 = vpop.f32.mrf.mxu0
      %v6209 = vadd.f32 %v6136, %v6208
      %v6210 = vpop.f32.mrf.mxu0
      %v6211 = vadd.f32 %v6138, %v6210
      %v6212 = vpop.f32.mrf.mxu0
      %v6213 = vadd.f32 %v6140, %v6212
      %6214 = vdwg.mxu0
      %6215 = vmatprep.subr.bf16.mxu0 0
      %6216 = vmatpush1.bf16.msra.mxu0 %v5900
      %6217 = vmatprep.subr.bf16.mxu0 0
      %6218 = vmatpush1.bf16.msra.mxu0 %v5897
      %6219 = vmatprep.subr.bf16.mxu0 0
      %6220 = vmatpush1.bf16.msra.mxu0 %v5894
      %6221 = vmatprep.subr.bf16.mxu0 0
      %6222 = vmatpush1.bf16.msra.mxu0 %v5891
      %6223 = vmatprep.subr.bf16.mxu0 0
      %6224 = vmatpush1.bf16.msra.mxu0 %v5888
      %6225 = vmatprep.subr.bf16.mxu0 0
      %6226 = vmatpush1.bf16.msra.mxu0 %v5885
      %6227 = vmatprep.subr.bf16.mxu0 0
      %6228 = vmatpush1.bf16.msra.mxu0 %v5882
      %6229 = vmatprep.subr.bf16.mxu0 0
      %6230 = vmatpush1.bf16.msra.mxu0 %v5879
      %6231 = vmatprep.subr.bf16.mxu0 0
      %6232 = vmatpush2.bf16.msra.mxu0 %v5924
      %6233 = vmatprep.subr.bf16.mxu0 0
      %6234 = vmatpush2.bf16.msra.mxu0 %v5921
      %6235 = vmatprep.subr.bf16.mxu0 0
      %6236 = vmatpush2.bf16.msra.mxu0 %v5918
      %6237 = vmatprep.subr.bf16.mxu0 0
      %6238 = vmatpush2.bf16.msra.mxu0 %v5915
      %6239 = vmatprep.subr.bf16.mxu0 0
      %6240 = vmatpush2.bf16.msra.mxu0 %v5912
      %6241 = vmatprep.subr.bf16.mxu0 0
      %6242 = vmatpush2.bf16.msra.mxu0 %v5909
      %6243 = vmatprep.subr.bf16.mxu0 0
      %6244 = vmatpush2.bf16.msra.mxu0 %v5906
      %6245 = vmatprep.subr.bf16.mxu0 0
      %6246 = vmatpush2.bf16.msra.mxu0 %v5903
      %6247 = vmatprep.mubr.bf16.mxu0 %v3544
      %6248 = vmatmul.mubr.bf16.gmra.mxu0 %v3543
      %v6249 = vpop.f32.mrf.mxu0
      %v6250 = vadd.f32 0.0, %v6249
      %v6251 = vpop.f32.mrf.mxu0
      %v6252 = vpop.f32.mrf.mxu0
      %v6253 = vadd.f32 0.0, %v6252
      %v6254 = vpop.f32.mrf.mxu0
      %6255 = vmatprep.mubr.bf16.mxu0 %v3548
      %6256 = vmatmul.mubr.bf16.gmra.mxu0 %v3547
      %v6257 = vpop.f32.mrf.mxu0
      %v6258 = vadd.f32 0.0, %v6257
      %v6259 = vpop.f32.mrf.mxu0
      %v6260 = vpop.f32.mrf.mxu0
      %v6261 = vadd.f32 0.0, %v6260
      %v6262 = vpop.f32.mrf.mxu0
      %6263 = vmatprep.mubr.bf16.mxu0 %v3552
      %6264 = vmatmul.mubr.bf16.gmra.mxu0 %v3551
      %v6265 = vpop.f32.mrf.mxu0
      %v6266 = vadd.f32 0.0, %v6265
      %v6267 = vpop.f32.mrf.mxu0
      %v6268 = vpop.f32.mrf.mxu0
      %v6269 = vadd.f32 0.0, %v6268
      %v6270 = vpop.f32.mrf.mxu0
      %6271 = vmatprep.mubr.bf16.mxu0 %v5550
      %6272 = vmatmul.mubr.bf16.gmra.mxu0 %v5549
      %v6273 = vpop.f32.mrf.mxu0
      %v6274 = vadd.f32 0.0, %v6273
      %v6275 = vpop.f32.mrf.mxu0
      %v6276 = vpop.f32.mrf.mxu0
      %v6277 = vadd.f32 0.0, %v6276
      %v6278 = vpop.f32.mrf.mxu0
      %6279 = vdwg.mxu0
      %6280 = vmatprep.subr.bf16.mxu0 0
      %6281 = vmatpush1.bf16.msra.mxu0 %v5948
      %6282 = vmatprep.subr.bf16.mxu0 0
      %6283 = vmatpush1.bf16.msra.mxu0 %v5945
      %6284 = vmatprep.subr.bf16.mxu0 0
      %6285 = vmatpush1.bf16.msra.mxu0 %v5942
      %6286 = vmatprep.subr.bf16.mxu0 0
      %6287 = vmatpush1.bf16.msra.mxu0 %v5939
      %6288 = vmatprep.subr.bf16.mxu0 0
      %6289 = vmatpush1.bf16.msra.mxu0 %v5936
      %6290 = vmatprep.subr.bf16.mxu0 0
      %6291 = vmatpush1.bf16.msra.mxu0 %v5933
      %6292 = vmatprep.subr.bf16.mxu0 0
      %6293 = vmatpush1.bf16.msra.mxu0 %v5930
      %6294 = vmatprep.subr.bf16.mxu0 0
      %6295 = vmatpush1.bf16.msra.mxu0 %v5927
      %6296 = vmatprep.subr.bf16.mxu0 0
      %6297 = vmatpush2.bf16.msra.mxu0 %v5972
      %6298 = vmatprep.subr.bf16.mxu0 0
      %6299 = vmatpush2.bf16.msra.mxu0 %v5969
      %6300 = vmatprep.subr.bf16.mxu0 0
      %6301 = vmatpush2.bf16.msra.mxu0 %v5966
      %6302 = vmatprep.subr.bf16.mxu0 0
      %6303 = vmatpush2.bf16.msra.mxu0 %v5963
      %6304 = vmatprep.subr.bf16.mxu0 0
      %6305 = vmatpush2.bf16.msra.mxu0 %v5960
      %6306 = vmatprep.subr.bf16.mxu0 0
      %6307 = vmatpush2.bf16.msra.mxu0 %v5957
      %6308 = vmatprep.subr.bf16.mxu0 0
      %6309 = vmatpush2.bf16.msra.mxu0 %v5954
      %6310 = vmatprep.subr.bf16.mxu0 0
      %6311 = vmatpush2.bf16.msra.mxu0 %v5951
      %6312 = vmatprep.mubr.bf16.mxu0 %v3546
      %6313 = vmatmul.mubr.bf16.gmra.mxu0 %v3545
      %v6314 = vpop.f32.mrf.mxu0
      %v6315 = vadd.f32 %v6250, %v6314
      %v6316 = vpop.f32.mrf.mxu0
      %v6317 = vpop.f32.mrf.mxu0
      %v6318 = vadd.f32 %v6253, %v6317
      %v6319 = vpop.f32.mrf.mxu0
      %6320 = vmatprep.mubr.bf16.mxu0 %v3550
      %6321 = vmatmul.mubr.bf16.gmra.mxu0 %v3549
      %v6322 = vpop.f32.mrf.mxu0
      %v6323 = vadd.f32 %v6258, %v6322
      %v6324 = vpop.f32.mrf.mxu0
      %v6325 = vpop.f32.mrf.mxu0
      %v6326 = vadd.f32 %v6261, %v6325
      %v6327 = vpop.f32.mrf.mxu0
      %6328 = vmatprep.mubr.bf16.mxu0 %v3554
      %6329 = vmatmul.mubr.bf16.gmra.mxu0 %v3553
      %v6330 = vpop.f32.mrf.mxu0
      %v6331 = vadd.f32 %v6266, %v6330
      %v6332 = vpop.f32.mrf.mxu0
      %v6333 = vpop.f32.mrf.mxu0
      %v6334 = vadd.f32 %v6269, %v6333
      %v6335 = vpop.f32.mrf.mxu0
      %6336 = vmatprep.mubr.bf16.mxu0 %v5552
      %6337 = vmatmul.mubr.bf16.gmra.mxu0 %v5551
      %v6338 = vpop.f32.mrf.mxu0
      %v6339 = vadd.f32 %v6274, %v6338
      %v6340 = vpop.f32.mrf.mxu0
      %v6341 = vpop.f32.mrf.mxu0
      %v6342 = vadd.f32 %v6277, %v6341
      %v6343 = vpop.f32.mrf.mxu0
      %6344 = vdwg.mxu0
      %v6345 = vadd.f32 %v5364, %v6177
      %v6346 = vadd.f32 %v5365, %v6179
      %v6347 = vadd.f32 %v5366, %v6315
      %v6348 = vadd.f32 %v5367, %v6181
      %v6349 = vadd.f32 %v5368, %v6183
      %v6350 = vadd.f32 %v5369, %v6318
      %v6351 = vadd.f32 %v5370, %v6187
      %v6352 = vadd.f32 %v5371, %v6189
      %v6353 = vadd.f32 %v5372, %v6323
      %v6354 = vadd.f32 %v5373, %v6191
      %v6355 = vadd.f32 %v5374, %v6193
      %v6356 = vadd.f32 %v5375, %v6326
      %v6357 = vadd.f32 %v5376, %v6197
      %v6358 = vadd.f32 %v5377, %v6199
      %v6359 = vadd.f32 %v5378, %v6331
      %v6360 = vadd.f32 %v5379, %v6201
      %v6361 = vadd.f32 %v5380, %v6203
      %v6362 = vadd.f32 %v5381, %v6334
      %v6363 = vadd.f32 %v5382, %v6207
      %v6364 = vadd.f32 %v5383, %v6209
      %v6365 = vadd.f32 %v5384, %v6339
      %v6366 = vadd.f32 %v5385, %v6211
      %v6367 = vadd.f32 %v5386, %v6213
      %v6368 = vadd.f32 %v5387, %v6342
      %v6369 = vld [vmem:[%s173] sm:$0xee]
      %v6370 = vld [vmem:[%s173 + $0x8] sm:$0xee]
      %v6371 = vld [vmem:[%s173 + $0x20] sm:$0xee]
      %v6372 = vld [vmem:[%s173 + $0x28] sm:$0xee]
      %v6373 = vld [vmem:[%s173 + $0x40] sm:$0xee]
      %v6374 = vld [vmem:[%s173 + $0x48] sm:$0xee]
      %v6375 = vld [vmem:[%s173 + $0x60] sm:$0xee]
      %v6376 = vld [vmem:[%s173 + $0x68] sm:$0xee]
      %v6377 = vld [vmem:[%s173 + $0x80] sm:$0xee]
      %v6378 = vld [vmem:[%s173 + $0x88] sm:$0xee]
      %v6379 = vld [vmem:[%s173 + $0xa0] sm:$0xee]
      %v6380 = vld [vmem:[%s173 + $0xa8] sm:$0xee]
      %v6381 = vld [vmem:[%s173 + $0xc0] sm:$0xee]
      %v6382 = vld [vmem:[%s173 + $0xc8] sm:$0xee]
      %v6383 = vld [vmem:[%s173 + $0xe0] sm:$0xee]
      %v6384 = vld [vmem:[%s173 + $0xe8] sm:$0xee]
      %v6385 = vld [vmem:[%s173 + $0x100] sm:$0xee]
      %v6386 = vld [vmem:[%s173 + $0x108] sm:$0xee]
      %v6387 = vld [vmem:[%s173 + $0x120] sm:$0xee]
      %v6388 = vld [vmem:[%s173 + $0x128] sm:$0xee]
      %vm6421 = vcmask 1042432
      %vm6422 = vcmask 1046532
      %vm6423 = vmor %vm6421, %vm6422
      %v6424 = vrot.slane %v6369, 5
      %v6425 = vrot.slane %v6424, 4
      %v6426 = vrot.slane %v3113, 5
      %v6427 = vsel %vm6423, %v6425, %v6426
      %v6428 = vrot.slane %v6370, 5
      %v6429 = vrot.slane %v6428, 4
      %v6430 = vrot.slane %v3114, 5
      %v6431 = vsel %vm6423, %v6429, %v6430
      %v6432 = vrot.slane %v6371, 5
      %v6433 = vrot.slane %v6432, 4
      %v6434 = vrot.slane %v3117, 5
      %v6435 = vsel %vm6423, %v6433, %v6434
      %v6436 = vrot.slane %v6372, 5
      %v6437 = vrot.slane %v6436, 4
      %v6438 = vrot.slane %v3118, 5
      %v6439 = vsel %vm6423, %v6437, %v6438
      %v6440 = vrot.slane %v6373, 5
      %v6441 = vrot.slane %v6440, 4
      %v6442 = vrot.slane %v3121, 5
      %v6443 = vsel %vm6423, %v6441, %v6442
      %v6444 = vrot.slane %v6374, 5
      %v6445 = vrot.slane %v6444, 4
      %v6446 = vrot.slane %v3122, 5
      %v6447 = vsel %vm6423, %v6445, %v6446
      %v6448 = vrot.slane %v6375, 5
      %v6449 = vrot.slane %v6448, 4
      %v6450 = vrot.slane %v3125, 5
      %v6451 = vsel %vm6423, %v6449, %v6450
      %v6452 = vrot.slane %v6376, 5
      %v6453 = vrot.slane %v6452, 4
      %v6454 = vrot.slane %v3126, 5
      %v6455 = vsel %vm6423, %v6453, %v6454
      %v6456 = vrot.slane %v6377, 5
      %v6457 = vrot.slane %v6456, 4
      %v6458 = vrot.slane %v3129, 5
      %v6459 = vsel %vm6423, %v6457, %v6458
      %v6460 = vrot.slane %v6378, 5
      %v6461 = vrot.slane %v6460, 4
      %v6462 = vrot.slane %v3130, 5
      %v6463 = vsel %vm6423, %v6461, %v6462
      %v6464 = vrot.slane %v6379, 5
      %v6465 = vrot.slane %v6464, 4
      %v6466 = vrot.slane %v3133, 5
      %v6467 = vsel %vm6423, %v6465, %v6466
      %v6468 = vrot.slane %v6380, 5
      %v6469 = vrot.slane %v6468, 4
      %v6470 = vrot.slane %v3134, 5
      %v6471 = vsel %vm6423, %v6469, %v6470
      %v6472 = vrot.slane %v6381, 5
      %v6473 = vrot.slane %v6472, 4
      %v6474 = vrot.slane %v3137, 5
      %v6475 = vsel %vm6423, %v6473, %v6474
      %v6476 = vrot.slane %v6382, 5
      %v6477 = vrot.slane %v6476, 4
      %v6478 = vrot.slane %v3138, 5
      %v6479 = vsel %vm6423, %v6477, %v6478
      %v6480 = vrot.slane %v6383, 5
      %v6481 = vrot.slane %v6480, 4
      %v6482 = vrot.slane %v3141, 5
      %v6483 = vsel %vm6423, %v6481, %v6482
      %v6484 = vrot.slane %v6384, 5
      %v6485 = vrot.slane %v6484, 4
      %v6486 = vrot.slane %v3142, 5
      %v6487 = vsel %vm6423, %v6485, %v6486
      %s6488 = scalar_lea.vmem %s1, 1536
      %v6489 = vld [vmem:[%s6488] sm:$0xff]
      %v6490 = vld [vmem:[%s6488 + $0x8] sm:$0xf]
      %v6491 = vld [vmem:[%s6488 + $0xc] sm:$0xff]
      %v6492 = vld [vmem:[%s6488 + $0x14] sm:$0xf]
      %v6493 = vld [vmem:[%s6488 + $0x18] sm:$0xff]
      %v6494 = vld [vmem:[%s6488 + $0x20] sm:$0xf]
      %v6495 = vld [vmem:[%s6488 + $0x24] sm:$0xff]
      %v6496 = vld [vmem:[%s6488 + $0x2c] sm:$0xf]
      %v6497 = vld [vmem:[%s6488 + $0x30] sm:$0xff]
      %v6498 = vld [vmem:[%s6488 + $0x38] sm:$0xf]
      %v6499 = vld [vmem:[%s6488 + $0x3c] sm:$0xff]
      %v6500 = vld [vmem:[%s6488 + $0x44] sm:$0xf]
      %v6501 = vld [vmem:[%s6488 + $0x48] sm:$0xff]
      %v6502 = vld [vmem:[%s6488 + $0x50] sm:$0xf]
      %v6503 = vld [vmem:[%s6488 + $0x54] sm:$0xff]
      %v6504 = vld [vmem:[%s6488 + $0x5c] sm:$0xf]
      %v6505 = vld [vmem:[%s6488 + $0x60] sm:$0xff]
      %v6506 = vld [vmem:[%s6488 + $0x68] sm:$0xf]
      %v6507 = vld [vmem:[%s6488 + $0x6c] sm:$0xff]
      %v6508 = vld [vmem:[%s6488 + $0x74] sm:$0xf]
      %v6509 = vld [vmem:[%s6488 + $0x78] sm:$0xff]
      %v6510 = vld [vmem:[%s6488 + $0x80] sm:$0xf]
      %v6511 = vld [vmem:[%s6488 + $0x84] sm:$0xff]
      %v6512 = vld [vmem:[%s6488 + $0x8c] sm:$0xf]
      %v6513 = vld [vmem:[%s6488 + $0x90] sm:$0xff]
      %v6514 = vld [vmem:[%s6488 + $0x98] sm:$0xf]
      %v6515 = vld [vmem:[%s6488 + $0x9c] sm:$0xff]
      %v6516 = vld [vmem:[%s6488 + $0xa4] sm:$0xf]
      %v6517 = vld [vmem:[%s6488 + $0xa8] sm:$0xff]
      %v6518 = vld [vmem:[%s6488 + $0xb0] sm:$0xf]
      %v6519 = vld [vmem:[%s6488 + $0xb4] sm:$0xff]
      %v6520 = vld [vmem:[%s6488 + $0xbc] sm:$0xf]
      %v6521 = vld [vmem:[%s6488 + $0xc0] sm:$0xff]
      %v6522 = vld [vmem:[%s6488 + $0xc8] sm:$0xf]
      %v6523 = vld [vmem:[%s6488 + $0xcc] sm:$0xff]
      %v6524 = vld [vmem:[%s6488 + $0xd4] sm:$0xf]
      %v6525 = vld [vmem:[%s6488 + $0xd8] sm:$0xff]
      %v6526 = vld [vmem:[%s6488 + $0xe0] sm:$0xf]
      %v6527 = vld [vmem:[%s6488 + $0xe4] sm:$0xff]
      %v6528 = vld [vmem:[%s6488 + $0xec] sm:$0xf]
      %v6529 = vld [vmem:[%s6488 + $0xf0] sm:$0xff]
      %v6530 = vld [vmem:[%s6488 + $0xf8] sm:$0xf]
      %v6531 = vld [vmem:[%s6488 + $0xfc] sm:$0xff]
      %v6532 = vld [vmem:[%s6488 + $0x104] sm:$0xf]
      %v6533 = vld [vmem:[%s6488 + $0x108] sm:$0xff]
      %v6534 = vld [vmem:[%s6488 + $0x110] sm:$0xf]
      %v6535 = vld [vmem:[%s6488 + $0x114] sm:$0xff]
      %v6536 = vld [vmem:[%s6488 + $0x11c] sm:$0xf]
      %v6537 = vld [vmem:[%s6488 + $0x120] sm:$0xff]
      %v6538 = vld [vmem:[%s6488 + $0x128] sm:$0xf]
      %v6539 = vld [vmem:[%s6488 + $0x12c] sm:$0xff]
      %v6540 = vld [vmem:[%s6488 + $0x134] sm:$0xf]
      %v6541 = vld [vmem:[%s6488 + $0x138] sm:$0xff]
      %v6542 = vld [vmem:[%s6488 + $0x140] sm:$0xf]
      %v6543 = vld [vmem:[%s6488 + $0x144] sm:$0xff]
      %v6544 = vld [vmem:[%s6488 + $0x14c] sm:$0xf]
      %v6545 = vld [vmem:[%s6488 + $0x150] sm:$0xff]
      %v6546 = vld [vmem:[%s6488 + $0x158] sm:$0xf]
      %v6547 = vld [vmem:[%s6488 + $0x15c] sm:$0xff]
      %v6548 = vld [vmem:[%s6488 + $0x164] sm:$0xf]
      %v6549 = vld [vmem:[%s6488 + $0x168] sm:$0xff]
      %v6550 = vld [vmem:[%s6488 + $0x170] sm:$0xf]
      %v6551 = vld [vmem:[%s6488 + $0x174] sm:$0xff]
      %v6552 = vld [vmem:[%s6488 + $0x17c] sm:$0xf]
      %v6553 = vld [vmem:[%s6488 + $0x180] sm:$0xff]
      %v6554 = vld [vmem:[%s6488 + $0x188] sm:$0xf]
      %v6555 = vld [vmem:[%s6488 + $0x18c] sm:$0xff]
      %v6556 = vld [vmem:[%s6488 + $0x194] sm:$0xf]
      %v6557 = vld [vmem:[%s6488 + $0x198] sm:$0xff]
      %v6558 = vld [vmem:[%s6488 + $0x1a0] sm:$0xf]
      %v6559 = vld [vmem:[%s6488 + $0x1a4] sm:$0xff]
      %v6560 = vld [vmem:[%s6488 + $0x1ac] sm:$0xf]
      %v6561 = vld [vmem:[%s6488 + $0x1b0] sm:$0xff]
      %v6562 = vld [vmem:[%s6488 + $0x1b8] sm:$0xf]
      %v6563 = vld [vmem:[%s6488 + $0x1bc] sm:$0xff]
      %v6564 = vld [vmem:[%s6488 + $0x1c4] sm:$0xf]
      %v6565 = vld [vmem:[%s6488 + $0x1c8] sm:$0xff]
      %v6566 = vld [vmem:[%s6488 + $0x1d0] sm:$0xf]
      %v6567 = vld [vmem:[%s6488 + $0x1d4] sm:$0xff]
      %v6568 = vld [vmem:[%s6488 + $0x1dc] sm:$0xf]
      %v6569 = vld [vmem:[%s6488 + $0x1e0] sm:$0xff]
      %v6570 = vld [vmem:[%s6488 + $0x1e8] sm:$0xf]
      %v6571 = vld [vmem:[%s6488 + $0x1ec] sm:$0xff]
      %v6572 = vld [vmem:[%s6488 + $0x1f4] sm:$0xf]
      %v6573 = vld [vmem:[%s6488 + $0x1f8] sm:$0xff]
      %v6574 = vld [vmem:[%s6488 + $0x200] sm:$0xf]
      %v6575 = vld [vmem:[%s6488 + $0x204] sm:$0xff]
      %v6576 = vld [vmem:[%s6488 + $0x20c] sm:$0xf]
      %v6577 = vld [vmem:[%s6488 + $0x210] sm:$0xff]
      %v6578 = vld [vmem:[%s6488 + $0x218] sm:$0xf]
      %v6579 = vld [vmem:[%s6488 + $0x21c] sm:$0xff]
      %v6580 = vld [vmem:[%s6488 + $0x224] sm:$0xf]
      %v6581 = vld [vmem:[%s6488 + $0x228] sm:$0xff]
      %v6582 = vld [vmem:[%s6488 + $0x230] sm:$0xf]
      %v6583 = vld [vmem:[%s6488 + $0x234] sm:$0xff]
      %v6584 = vld [vmem:[%s6488 + $0x23c] sm:$0xf]
      %v6585 = vld [vmem:[%s6488 + $0x240] sm:$0xff]
      %v6586 = vld [vmem:[%s6488 + $0x248] sm:$0xf]
      %v6587 = vld [vmem:[%s6488 + $0x24c] sm:$0xff]
      %v6588 = vld [vmem:[%s6488 + $0x254] sm:$0xf]
      %v6589 = vld [vmem:[%s6488 + $0x258] sm:$0xff]
      %v6590 = vld [vmem:[%s6488 + $0x260] sm:$0xf]
      %v6591 = vld [vmem:[%s6488 + $0x264] sm:$0xff]
      %v6592 = vld [vmem:[%s6488 + $0x26c] sm:$0xf]
      %v6593 = vld [vmem:[%s6488 + $0x270] sm:$0xff]
      %v6594 = vld [vmem:[%s6488 + $0x278] sm:$0xf]
      %v6595 = vld [vmem:[%s6488 + $0x27c] sm:$0xff]
      %v6596 = vld [vmem:[%s6488 + $0x284] sm:$0xf]
      %v6597 = vld [vmem:[%s6488 + $0x288] sm:$0xff]
      %v6598 = vld [vmem:[%s6488 + $0x290] sm:$0xf]
      %v6599 = vld [vmem:[%s6488 + $0x294] sm:$0xff]
      %v6600 = vld [vmem:[%s6488 + $0x29c] sm:$0xf]
      %v6601 = vld [vmem:[%s6488 + $0x2a0] sm:$0xff]
      %v6602 = vld [vmem:[%s6488 + $0x2a8] sm:$0xf]
      %v6603 = vld [vmem:[%s6488 + $0x2ac] sm:$0xff]
      %v6604 = vld [vmem:[%s6488 + $0x2b4] sm:$0xf]
      %v6605 = vld [vmem:[%s6488 + $0x2b8] sm:$0xff]
      %v6606 = vld [vmem:[%s6488 + $0x2c0] sm:$0xf]
      %v6607 = vld [vmem:[%s6488 + $0x2c4] sm:$0xff]
      %v6608 = vld [vmem:[%s6488 + $0x2cc] sm:$0xf]
      %v6609 = vld [vmem:[%s6488 + $0x2d0] sm:$0xff]
      %v6610 = vld [vmem:[%s6488 + $0x2d8] sm:$0xf]
      %v6611 = vld [vmem:[%s6488 + $0x2dc] sm:$0xff]
      %v6612 = vld [vmem:[%s6488 + $0x2e4] sm:$0xf]
      %v6613 = vld [vmem:[%s6488 + $0x2e8] sm:$0xff]
      %v6614 = vld [vmem:[%s6488 + $0x2f0] sm:$0xf]
      %v6615 = vld [vmem:[%s6488 + $0x2f4] sm:$0xff]
      %v6616 = vld [vmem:[%s6488 + $0x2fc] sm:$0xf]
      %v6617 = vunpack.c.l.b16 %v6427
      %v6618 = vunpack.c.h.b16 %v6427
      %v6619 = vunpack.c.l.b16 %v6431
      %v6620 = vunpack.c.h.b16 %v6431
      %v6621 = vunpack.c.l.b16 %v6435
      %v6622 = vunpack.c.h.b16 %v6435
      %v6623 = vunpack.c.l.b16 %v6439
      %v6624 = vunpack.c.h.b16 %v6439
      %v6625 = vunpack.c.l.b16 %v6443
      %v6626 = vunpack.c.h.b16 %v6443
      %v6627 = vunpack.c.l.b16 %v6447
      %v6628 = vunpack.c.h.b16 %v6447
      %v6629 = vunpack.c.l.b16 %v6451
      %v6630 = vunpack.c.h.b16 %v6451
      %v6631 = vunpack.c.l.b16 %v6455
      %v6632 = vunpack.c.h.b16 %v6455
      %v6633 = vunpack.c.l.b16 %v6459
      %v6634 = vunpack.c.h.b16 %v6459
      %v6635 = vunpack.c.l.b16 %v6463
      %v6636 = vunpack.c.h.b16 %v6463
      %v6637 = vunpack.c.l.b16 %v6467
      %v6638 = vunpack.c.h.b16 %v6467
      %v6639 = vunpack.c.l.b16 %v6471
      %v6640 = vunpack.c.h.b16 %v6471
      %v6641 = vunpack.c.l.b16 %v6475
      %v6642 = vunpack.c.h.b16 %v6475
      %v6643 = vunpack.c.l.b16 %v6479
      %v6644 = vunpack.c.h.b16 %v6479
      %v6645 = vunpack.c.l.b16 %v6483
      %v6646 = vunpack.c.h.b16 %v6483
      %v6647 = vunpack.c.l.b16 %v6487
      %v6648 = vunpack.c.h.b16 %v6487
      %v6649 = vpack.c.b16 %v6621, %v6617
      %v6650 = vpack.c.b16 %v6622, %v6618
      %v6651 = vpack.c.b16 %v6623, %v6619
      %v6652 = vpack.c.b16 %v6624, %v6620
      %v6653 = vpack.c.b16 %v6629, %v6625
      %v6654 = vpack.c.b16 %v6630, %v6626
      %v6655 = vpack.c.b16 %v6631, %v6627
      %v6656 = vpack.c.b16 %v6632, %v6628
      %v6657 = vpack.c.b16 %v6637, %v6633
      %v6658 = vpack.c.b16 %v6638, %v6634
      %v6659 = vpack.c.b16 %v6639, %v6635
      %v6660 = vpack.c.b16 %v6640, %v6636
      %v6661 = vpack.c.b16 %v6645, %v6641
      %v6662 = vpack.c.b16 %v6646, %v6642
      %v6663 = vpack.c.b16 %v6647, %v6643
      %v6664 = vpack.c.b16 %v6648, %v6644
      %v6809 = vunpack.c.l.b16 %v6489
      %v6810 = vunpack.c.h.b16 %v6489
      %v6811 = vunpack.c.l.b16 %v6490
      %v6812 = vunpack.c.l.b16 %v6491
      %v6813 = vunpack.c.h.b16 %v6491
      %v6814 = vunpack.c.l.b16 %v6492
      %v6815 = vunpack.c.l.b16 %v6493
      %v6816 = vunpack.c.h.b16 %v6493
      %v6817 = vunpack.c.l.b16 %v6494
      %v6818 = vunpack.c.l.b16 %v6495
      %v6819 = vunpack.c.h.b16 %v6495
      %v6820 = vunpack.c.l.b16 %v6496
      %v6821 = vunpack.c.l.b16 %v6497
      %v6822 = vunpack.c.h.b16 %v6497
      %v6823 = vunpack.c.l.b16 %v6498
      %v6824 = vunpack.c.l.b16 %v6499
      %v6825 = vunpack.c.h.b16 %v6499
      %v6826 = vunpack.c.l.b16 %v6500
      %v6827 = vunpack.c.l.b16 %v6501
      %v6828 = vunpack.c.h.b16 %v6501
      %v6829 = vunpack.c.l.b16 %v6502
      %v6830 = vunpack.c.l.b16 %v6503
      %v6831 = vunpack.c.h.b16 %v6503
      %v6832 = vunpack.c.l.b16 %v6504
      %v6833 = vunpack.c.l.b16 %v6505
      %v6834 = vunpack.c.h.b16 %v6505
      %v6835 = vunpack.c.l.b16 %v6506
      %v6836 = vunpack.c.l.b16 %v6507
      %v6837 = vunpack.c.h.b16 %v6507
      %v6838 = vunpack.c.l.b16 %v6508
      %v6839 = vunpack.c.l.b16 %v6509
      %v6840 = vunpack.c.h.b16 %v6509
      %v6841 = vunpack.c.l.b16 %v6510
      %v6842 = vunpack.c.l.b16 %v6511
      %v6843 = vunpack.c.h.b16 %v6511
      %v6844 = vunpack.c.l.b16 %v6512
      %v6845 = vunpack.c.l.b16 %v6513
      %v6846 = vunpack.c.h.b16 %v6513
      %v6847 = vunpack.c.l.b16 %v6514
      %v6848 = vunpack.c.l.b16 %v6515
      %v6849 = vunpack.c.h.b16 %v6515
      %v6850 = vunpack.c.l.b16 %v6516
      %v6851 = vunpack.c.l.b16 %v6517
      %v6852 = vunpack.c.h.b16 %v6517
      %v6853 = vunpack.c.l.b16 %v6518
      %v6854 = vunpack.c.l.b16 %v6519
      %v6855 = vunpack.c.h.b16 %v6519
      %v6856 = vunpack.c.l.b16 %v6520
      %v6857 = vunpack.c.l.b16 %v6521
      %v6858 = vunpack.c.h.b16 %v6521
      %v6859 = vunpack.c.l.b16 %v6522
      %v6860 = vunpack.c.l.b16 %v6523
      %v6861 = vunpack.c.h.b16 %v6523
      %v6862 = vunpack.c.l.b16 %v6524
      %v6863 = vunpack.c.l.b16 %v6525
      %v6864 = vunpack.c.h.b16 %v6525
      %v6865 = vunpack.c.l.b16 %v6526
      %v6866 = vunpack.c.l.b16 %v6527
      %v6867 = vunpack.c.h.b16 %v6527
      %v6868 = vunpack.c.l.b16 %v6528
      %v6869 = vunpack.c.l.b16 %v6529
      %v6870 = vunpack.c.h.b16 %v6529
      %v6871 = vunpack.c.l.b16 %v6530
      %v6872 = vunpack.c.l.b16 %v6531
      %v6873 = vunpack.c.h.b16 %v6531
      %v6874 = vunpack.c.l.b16 %v6532
      %v6875 = vunpack.c.l.b16 %v6533
      %v6876 = vunpack.c.h.b16 %v6533
      %v6877 = vunpack.c.l.b16 %v6534
      %v6878 = vunpack.c.l.b16 %v6535
      %v6879 = vunpack.c.h.b16 %v6535
      %v6880 = vunpack.c.l.b16 %v6536
      %v6881 = vunpack.c.l.b16 %v6537
      %v6882 = vunpack.c.h.b16 %v6537
      %v6883 = vunpack.c.l.b16 %v6538
      %v6884 = vunpack.c.l.b16 %v6539
      %v6885 = vunpack.c.h.b16 %v6539
      %v6886 = vunpack.c.l.b16 %v6540
      %v6887 = vunpack.c.l.b16 %v6541
      %v6888 = vunpack.c.h.b16 %v6541
      %v6889 = vunpack.c.l.b16 %v6542
      %v6890 = vunpack.c.l.b16 %v6543
      %v6891 = vunpack.c.h.b16 %v6543
      %v6892 = vunpack.c.l.b16 %v6544
      %v6893 = vunpack.c.l.b16 %v6545
      %v6894 = vunpack.c.h.b16 %v6545
      %v6895 = vunpack.c.l.b16 %v6546
      %v6896 = vunpack.c.l.b16 %v6547
      %v6897 = vunpack.c.h.b16 %v6547
      %v6898 = vunpack.c.l.b16 %v6548
      %v6899 = vunpack.c.l.b16 %v6549
      %v6900 = vunpack.c.h.b16 %v6549
      %v6901 = vunpack.c.l.b16 %v6550
      %v6902 = vunpack.c.l.b16 %v6551
      %v6903 = vunpack.c.h.b16 %v6551
      %v6904 = vunpack.c.l.b16 %v6552
      %v6905 = vunpack.c.l.b16 %v6553
      %v6906 = vunpack.c.h.b16 %v6553
      %v6907 = vunpack.c.l.b16 %v6554
      %v6908 = vunpack.c.l.b16 %v6555
      %v6909 = vunpack.c.h.b16 %v6555
      %v6910 = vunpack.c.l.b16 %v6556
      %v6911 = vunpack.c.l.b16 %v6557
      %v6912 = vunpack.c.h.b16 %v6557
      %v6913 = vunpack.c.l.b16 %v6558
      %v6914 = vunpack.c.l.b16 %v6559
      %v6915 = vunpack.c.h.b16 %v6559
      %v6916 = vunpack.c.l.b16 %v6560
      %v6917 = vunpack.c.l.b16 %v6561
      %v6918 = vunpack.c.h.b16 %v6561
      %v6919 = vunpack.c.l.b16 %v6562
      %v6920 = vunpack.c.l.b16 %v6563
      %v6921 = vunpack.c.h.b16 %v6563
      %v6922 = vunpack.c.l.b16 %v6564
      %v6923 = vunpack.c.l.b16 %v6565
      %v6924 = vunpack.c.h.b16 %v6565
      %v6925 = vunpack.c.l.b16 %v6566
      %v6926 = vunpack.c.l.b16 %v6567
      %v6927 = vunpack.c.h.b16 %v6567
      %v6928 = vunpack.c.l.b16 %v6568
      %v6929 = vunpack.c.l.b16 %v6569
      %v6930 = vunpack.c.h.b16 %v6569
      %v6931 = vunpack.c.l.b16 %v6570
      %v6932 = vunpack.c.l.b16 %v6571
      %v6933 = vunpack.c.h.b16 %v6571
      %v6934 = vunpack.c.l.b16 %v6572
      %v6935 = vunpack.c.l.b16 %v6573
      %v6936 = vunpack.c.h.b16 %v6573
      %v6937 = vunpack.c.l.b16 %v6574
      %v6938 = vunpack.c.l.b16 %v6575
      %v6939 = vunpack.c.h.b16 %v6575
      %v6940 = vunpack.c.l.b16 %v6576
      %v6941 = vunpack.c.l.b16 %v6577
      %v6942 = vunpack.c.h.b16 %v6577
      %v6943 = vunpack.c.l.b16 %v6578
      %v6944 = vunpack.c.l.b16 %v6579
      %v6945 = vunpack.c.h.b16 %v6579
      %v6946 = vunpack.c.l.b16 %v6580
      %v6947 = vunpack.c.l.b16 %v6581
      %v6948 = vunpack.c.h.b16 %v6581
      %v6949 = vunpack.c.l.b16 %v6582
      %v6950 = vunpack.c.l.b16 %v6583
      %v6951 = vunpack.c.h.b16 %v6583
      %v6952 = vunpack.c.l.b16 %v6584
      %v6953 = vunpack.c.l.b16 %v6585
      %v6954 = vunpack.c.h.b16 %v6585
      %v6955 = vunpack.c.l.b16 %v6586
      %v6956 = vunpack.c.l.b16 %v6587
      %v6957 = vunpack.c.h.b16 %v6587
      %v6958 = vunpack.c.l.b16 %v6588
      %v6959 = vunpack.c.l.b16 %v6589
      %v6960 = vunpack.c.h.b16 %v6589
      %v6961 = vunpack.c.l.b16 %v6590
      %v6962 = vunpack.c.l.b16 %v6591
      %v6963 = vunpack.c.h.b16 %v6591
      %v6964 = vunpack.c.l.b16 %v6592
      %v6965 = vunpack.c.l.b16 %v6593
      %v6966 = vunpack.c.h.b16 %v6593
      %v6967 = vunpack.c.l.b16 %v6594
      %v6968 = vunpack.c.l.b16 %v6595
      %v6969 = vunpack.c.h.b16 %v6595
      %v6970 = vunpack.c.l.b16 %v6596
      %v6971 = vunpack.c.l.b16 %v6597
      %v6972 = vunpack.c.h.b16 %v6597
      %v6973 = vunpack.c.l.b16 %v6598
      %v6974 = vunpack.c.l.b16 %v6599
      %v6975 = vunpack.c.h.b16 %v6599
      %v6976 = vunpack.c.l.b16 %v6600
      %v6977 = vunpack.c.l.b16 %v6601
      %v6978 = vunpack.c.h.b16 %v6601
      %v6979 = vunpack.c.l.b16 %v6602
      %v6980 = vunpack.c.l.b16 %v6603
      %v6981 = vunpack.c.h.b16 %v6603
      %v6982 = vunpack.c.l.b16 %v6604
      %v6983 = vunpack.c.l.b16 %v6605
      %v6984 = vunpack.c.h.b16 %v6605
      %v6985 = vunpack.c.l.b16 %v6606
      %v6986 = vunpack.c.l.b16 %v6607
      %v6987 = vunpack.c.h.b16 %v6607
      %v6988 = vunpack.c.l.b16 %v6608
      %v6989 = vunpack.c.l.b16 %v6609
      %v6990 = vunpack.c.h.b16 %v6609
      %v6991 = vunpack.c.l.b16 %v6610
      %v6992 = vunpack.c.l.b16 %v6611
      %v6993 = vunpack.c.h.b16 %v6611
      %v6994 = vunpack.c.l.b16 %v6612
      %v6995 = vunpack.c.l.b16 %v6613
      %v6996 = vunpack.c.h.b16 %v6613
      %v6997 = vunpack.c.l.b16 %v6614
      %v6998 = vunpack.c.l.b16 %v6615
      %v6999 = vunpack.c.h.b16 %v6615
      %v7000 = vunpack.c.l.b16 %v6616
      %v7001 = vpack.c.b16 %v6812, %v6809
      %v7002 = vpack.c.b16 %v6813, %v6810
      %v7003 = vpack.c.b16 %v6814, %v6811
      %v7004 = vpack.c.b16 %v6818, %v6815
      %v7005 = vpack.c.b16 %v6819, %v6816
      %v7006 = vpack.c.b16 %v6820, %v6817
      %v7007 = vpack.c.b16 %v6824, %v6821
      %v7008 = vpack.c.b16 %v6825, %v6822
      %v7009 = vpack.c.b16 %v6826, %v6823
      %v7010 = vpack.c.b16 %v6830, %v6827
      %v7011 = vpack.c.b16 %v6831, %v6828
      %v7012 = vpack.c.b16 %v6832, %v6829
      %v7013 = vpack.c.b16 %v6836, %v6833
      %v7014 = vpack.c.b16 %v6837, %v6834
      %v7015 = vpack.c.b16 %v6838, %v6835
      %v7016 = vpack.c.b16 %v6842, %v6839
      %v7017 = vpack.c.b16 %v6843, %v6840
      %v7018 = vpack.c.b16 %v6844, %v6841
      %v7019 = vpack.c.b16 %v6848, %v6845
      %v7020 = vpack.c.b16 %v6849, %v6846
      %v7021 = vpack.c.b16 %v6850, %v6847
      %v7022 = vpack.c.b16 %v6854, %v6851
      %v7023 = vpack.c.b16 %v6855, %v6852
      %v7024 = vpack.c.b16 %v6856, %v6853
      %v7025 = vpack.c.b16 %v6860, %v6857
      %v7026 = vpack.c.b16 %v6861, %v6858
      %v7027 = vpack.c.b16 %v6862, %v6859
      %v7028 = vpack.c.b16 %v6866, %v6863
      %v7029 = vpack.c.b16 %v6867, %v6864
      %v7030 = vpack.c.b16 %v6868, %v6865
      %v7031 = vpack.c.b16 %v6872, %v6869
      %v7032 = vpack.c.b16 %v6873, %v6870
      %v7033 = vpack.c.b16 %v6874, %v6871
      %v7034 = vpack.c.b16 %v6878, %v6875
      %v7035 = vpack.c.b16 %v6879, %v6876
      %v7036 = vpack.c.b16 %v6880, %v6877
      %v7037 = vpack.c.b16 %v6884, %v6881
      %v7038 = vpack.c.b16 %v6885, %v6882
      %v7039 = vpack.c.b16 %v6886, %v6883
      %v7040 = vpack.c.b16 %v6890, %v6887
      %v7041 = vpack.c.b16 %v6891, %v6888
      %v7042 = vpack.c.b16 %v6892, %v6889
      %v7043 = vpack.c.b16 %v6896, %v6893
      %v7044 = vpack.c.b16 %v6897, %v6894
      %v7045 = vpack.c.b16 %v6898, %v6895
      %v7046 = vpack.c.b16 %v6902, %v6899
      %v7047 = vpack.c.b16 %v6903, %v6900
      %v7048 = vpack.c.b16 %v6904, %v6901
      %v7049 = vpack.c.b16 %v6908, %v6905
      %v7050 = vpack.c.b16 %v6909, %v6906
      %v7051 = vpack.c.b16 %v6910, %v6907
      %v7052 = vpack.c.b16 %v6914, %v6911
      %v7053 = vpack.c.b16 %v6915, %v6912
      %v7054 = vpack.c.b16 %v6916, %v6913
      %v7055 = vpack.c.b16 %v6920, %v6917
      %v7056 = vpack.c.b16 %v6921, %v6918
      %v7057 = vpack.c.b16 %v6922, %v6919
      %v7058 = vpack.c.b16 %v6926, %v6923
      %v7059 = vpack.c.b16 %v6927, %v6924
      %v7060 = vpack.c.b16 %v6928, %v6925
      %v7061 = vpack.c.b16 %v6932, %v6929
      %v7062 = vpack.c.b16 %v6933, %v6930
      %v7063 = vpack.c.b16 %v6934, %v6931
      %v7064 = vpack.c.b16 %v6938, %v6935
      %v7065 = vpack.c.b16 %v6939, %v6936
      %v7066 = vpack.c.b16 %v6940, %v6937
      %v7067 = vpack.c.b16 %v6944, %v6941
      %v7068 = vpack.c.b16 %v6945, %v6942
      %v7069 = vpack.c.b16 %v6946, %v6943
      %v7070 = vpack.c.b16 %v6950, %v6947
      %v7071 = vpack.c.b16 %v6951, %v6948
      %v7072 = vpack.c.b16 %v6952, %v6949
      %v7073 = vpack.c.b16 %v6956, %v6953
      %v7074 = vpack.c.b16 %v6957, %v6954
      %v7075 = vpack.c.b16 %v6958, %v6955
      %v7076 = vpack.c.b16 %v6962, %v6959
      %v7077 = vpack.c.b16 %v6963, %v6960
      %v7078 = vpack.c.b16 %v6964, %v6961
      %v7079 = vpack.c.b16 %v6968, %v6965
      %v7080 = vpack.c.b16 %v6969, %v6966
      %v7081 = vpack.c.b16 %v6970, %v6967
      %v7082 = vpack.c.b16 %v6974, %v6971
      %v7083 = vpack.c.b16 %v6975, %v6972
      %v7084 = vpack.c.b16 %v6976, %v6973
      %v7085 = vpack.c.b16 %v6980, %v6977
      %v7086 = vpack.c.b16 %v6981, %v6978
      %v7087 = vpack.c.b16 %v6982, %v6979
      %v7088 = vpack.c.b16 %v6986, %v6983
      %v7089 = vpack.c.b16 %v6987, %v6984
      %v7090 = vpack.c.b16 %v6988, %v6985
      %v7091 = vpack.c.b16 %v6992, %v6989
      %v7092 = vpack.c.b16 %v6993, %v6990
      %v7093 = vpack.c.b16 %v6994, %v6991
      %v7094 = vpack.c.b16 %v6998, %v6995
      %v7095 = vpack.c.b16 %v6999, %v6996
      %v7096 = vpack.c.b16 %v7000, %v6997
      %7193 = vmatprep.subr.bf16.mxu0 %v7023
      %7194 = vmatpush1.bf16.msra.mxu0 %v7022
      %7195 = vmatprep.subr.bf16.mxu0 %v7020
      %7196 = vmatpush1.bf16.msra.mxu0 %v7019
      %7197 = vmatprep.subr.bf16.mxu0 %v7017
      %7198 = vmatpush1.bf16.msra.mxu0 %v7016
      %7199 = vmatprep.subr.bf16.mxu0 %v7014
      %7200 = vmatpush1.bf16.msra.mxu0 %v7013
      %7201 = vmatprep.subr.bf16.mxu0 %v7011
      %7202 = vmatpush1.bf16.msra.mxu0 %v7010
      %7203 = vmatprep.subr.bf16.mxu0 %v7008
      %7204 = vmatpush1.bf16.msra.mxu0 %v7007
      %7205 = vmatprep.subr.bf16.mxu0 %v7005
      %7206 = vmatpush1.bf16.msra.mxu0 %v7004
      %7207 = vmatprep.subr.bf16.mxu0 %v7002
      %7208 = vmatpush1.bf16.msra.mxu0 %v7001
      %7209 = vmatprep.subr.bf16.mxu0 %v7047
      %7210 = vmatpush2.bf16.msra.mxu0 %v7046
      %7211 = vmatprep.subr.bf16.mxu0 %v7044
      %7212 = vmatpush2.bf16.msra.mxu0 %v7043
      %7213 = vmatprep.subr.bf16.mxu0 %v7041
      %7214 = vmatpush2.bf16.msra.mxu0 %v7040
      %7215 = vmatprep.subr.bf16.mxu0 %v7038
      %7216 = vmatpush2.bf16.msra.mxu0 %v7037
      %7217 = vmatprep.subr.bf16.mxu0 %v7035
      %7218 = vmatpush2.bf16.msra.mxu0 %v7034
      %7219 = vmatprep.subr.bf16.mxu0 %v7032
      %7220 = vmatpush2.bf16.msra.mxu0 %v7031
      %7221 = vmatprep.subr.bf16.mxu0 %v7029
      %7222 = vmatpush2.bf16.msra.mxu0 %v7028
      %7223 = vmatprep.subr.bf16.mxu0 %v7026
      %7224 = vmatpush2.bf16.msra.mxu0 %v7025
      %7225 = vmatprep.mubr.bf16.mxu0 %v6650
      %7226 = vmatmul.mubr.bf16.gmra.mxu0 %v6649
      %v7227 = vpop.f32.mrf.mxu0
      %v7228 = vadd.f32 0.0, %v7227
      %v7229 = vpop.f32.mrf.mxu0
      %v7230 = vadd.f32 0.0, %v7229
      %v7231 = vpop.f32.mrf.mxu0
      %v7232 = vadd.f32 0.0, %v7231
      %v7233 = vpop.f32.mrf.mxu0
      %v7234 = vadd.f32 0.0, %v7233
      %7235 = vmatprep.mubr.bf16.mxu0 %v6654
      %7236 = vmatmul.mubr.bf16.gmra.mxu0 %v6653
      %v7237 = vpop.f32.mrf.mxu0
      %v7238 = vadd.f32 0.0, %v7237
      %v7239 = vpop.f32.mrf.mxu0
      %v7240 = vadd.f32 0.0, %v7239
      %v7241 = vpop.f32.mrf.mxu0
      %v7242 = vadd.f32 0.0, %v7241
      %v7243 = vpop.f32.mrf.mxu0
      %v7244 = vadd.f32 0.0, %v7243
      %7245 = vmatprep.mubr.bf16.mxu0 %v6658
      %7246 = vmatmul.mubr.bf16.gmra.mxu0 %v6657
      %v7247 = vpop.f32.mrf.mxu0
      %v7248 = vadd.f32 0.0, %v7247
      %v7249 = vpop.f32.mrf.mxu0
      %v7250 = vadd.f32 0.0, %v7249
      %v7251 = vpop.f32.mrf.mxu0
      %v7252 = vadd.f32 0.0, %v7251
      %v7253 = vpop.f32.mrf.mxu0
      %v7254 = vadd.f32 0.0, %v7253
      %7255 = vmatprep.mubr.bf16.mxu0 %v6662
      %7256 = vmatmul.mubr.bf16.gmra.mxu0 %v6661
      %v7257 = vpop.f32.mrf.mxu0
      %v7258 = vadd.f32 0.0, %v7257
      %v7259 = vpop.f32.mrf.mxu0
      %v7260 = vadd.f32 0.0, %v7259
      %v7261 = vpop.f32.mrf.mxu0
      %v7262 = vadd.f32 0.0, %v7261
      %v7263 = vpop.f32.mrf.mxu0
      %v7264 = vadd.f32 0.0, %v7263
      %7265 = vdwg.mxu0
      %7266 = vmatprep.subr.bf16.mxu0 %v7071
      %7267 = vmatpush1.bf16.msra.mxu0 %v7070
      %7268 = vmatprep.subr.bf16.mxu0 %v7068
      %7269 = vmatpush1.bf16.msra.mxu0 %v7067
      %7270 = vmatprep.subr.bf16.mxu0 %v7065
      %7271 = vmatpush1.bf16.msra.mxu0 %v7064
      %7272 = vmatprep.subr.bf16.mxu0 %v7062
      %7273 = vmatpush1.bf16.msra.mxu0 %v7061
      %7274 = vmatprep.subr.bf16.mxu0 %v7059
      %7275 = vmatpush1.bf16.msra.mxu0 %v7058
      %7276 = vmatprep.subr.bf16.mxu0 %v7056
      %7277 = vmatpush1.bf16.msra.mxu0 %v7055
      %7278 = vmatprep.subr.bf16.mxu0 %v7053
      %7279 = vmatpush1.bf16.msra.mxu0 %v7052
      %7280 = vmatprep.subr.bf16.mxu0 %v7050
      %7281 = vmatpush1.bf16.msra.mxu0 %v7049
      %7282 = vmatprep.subr.bf16.mxu0 %v7095
      %7283 = vmatpush2.bf16.msra.mxu0 %v7094
      %7284 = vmatprep.subr.bf16.mxu0 %v7092
      %7285 = vmatpush2.bf16.msra.mxu0 %v7091
      %7286 = vmatprep.subr.bf16.mxu0 %v7089
      %7287 = vmatpush2.bf16.msra.mxu0 %v7088
      %7288 = vmatprep.subr.bf16.mxu0 %v7086
      %7289 = vmatpush2.bf16.msra.mxu0 %v7085
      %7290 = vmatprep.subr.bf16.mxu0 %v7083
      %7291 = vmatpush2.bf16.msra.mxu0 %v7082
      %7292 = vmatprep.subr.bf16.mxu0 %v7080
      %7293 = vmatpush2.bf16.msra.mxu0 %v7079
      %7294 = vmatprep.subr.bf16.mxu0 %v7077
      %7295 = vmatpush2.bf16.msra.mxu0 %v7076
      %7296 = vmatprep.subr.bf16.mxu0 %v7074
      %7297 = vmatpush2.bf16.msra.mxu0 %v7073
      %7298 = vmatprep.mubr.bf16.mxu0 %v6652
      %7299 = vmatmul.mubr.bf16.gmra.mxu0 %v6651
      %v7300 = vpop.f32.mrf.mxu0
      %v7301 = vadd.f32 %v7228, %v7300
      %v7302 = vpop.f32.mrf.mxu0
      %v7303 = vadd.f32 %v7230, %v7302
      %v7304 = vpop.f32.mrf.mxu0
      %v7305 = vadd.f32 %v7232, %v7304
      %v7306 = vpop.f32.mrf.mxu0
      %v7307 = vadd.f32 %v7234, %v7306
      %7308 = vmatprep.mubr.bf16.mxu0 %v6656
      %7309 = vmatmul.mubr.bf16.gmra.mxu0 %v6655
      %v7310 = vpop.f32.mrf.mxu0
      %v7311 = vadd.f32 %v7238, %v7310
      %v7312 = vpop.f32.mrf.mxu0
      %v7313 = vadd.f32 %v7240, %v7312
      %v7314 = vpop.f32.mrf.mxu0
      %v7315 = vadd.f32 %v7242, %v7314
      %v7316 = vpop.f32.mrf.mxu0
      %v7317 = vadd.f32 %v7244, %v7316
      %7318 = vmatprep.mubr.bf16.mxu0 %v6660
      %7319 = vmatmul.mubr.bf16.gmra.mxu0 %v6659
      %v7320 = vpop.f32.mrf.mxu0
      %v7321 = vadd.f32 %v7248, %v7320
      %v7322 = vpop.f32.mrf.mxu0
      %v7323 = vadd.f32 %v7250, %v7322
      %v7324 = vpop.f32.mrf.mxu0
      %v7325 = vadd.f32 %v7252, %v7324
      %v7326 = vpop.f32.mrf.mxu0
      %v7327 = vadd.f32 %v7254, %v7326
      %7328 = vmatprep.mubr.bf16.mxu0 %v6664
      %7329 = vmatmul.mubr.bf16.gmra.mxu0 %v6663
      %v7330 = vpop.f32.mrf.mxu0
      %v7331 = vadd.f32 %v7258, %v7330
      %v7332 = vpop.f32.mrf.mxu0
      %v7333 = vadd.f32 %v7260, %v7332
      %v7334 = vpop.f32.mrf.mxu0
      %v7335 = vadd.f32 %v7262, %v7334
      %v7336 = vpop.f32.mrf.mxu0
      %v7337 = vadd.f32 %v7264, %v7336
      %7338 = vdwg.mxu0
      %7339 = vmatprep.subr.bf16.mxu0 0
      %7340 = vmatpush1.bf16.msra.mxu0 %v7024
      %7341 = vmatprep.subr.bf16.mxu0 0
      %7342 = vmatpush1.bf16.msra.mxu0 %v7021
      %7343 = vmatprep.subr.bf16.mxu0 0
      %7344 = vmatpush1.bf16.msra.mxu0 %v7018
      %7345 = vmatprep.subr.bf16.mxu0 0
      %7346 = vmatpush1.bf16.msra.mxu0 %v7015
      %7347 = vmatprep.subr.bf16.mxu0 0
      %7348 = vmatpush1.bf16.msra.mxu0 %v7012
      %7349 = vmatprep.subr.bf16.mxu0 0
      %7350 = vmatpush1.bf16.msra.mxu0 %v7009
      %7351 = vmatprep.subr.bf16.mxu0 0
      %7352 = vmatpush1.bf16.msra.mxu0 %v7006
      %7353 = vmatprep.subr.bf16.mxu0 0
      %7354 = vmatpush1.bf16.msra.mxu0 %v7003
      %7355 = vmatprep.subr.bf16.mxu0 0
      %7356 = vmatpush2.bf16.msra.mxu0 %v7048
      %7357 = vmatprep.subr.bf16.mxu0 0
      %7358 = vmatpush2.bf16.msra.mxu0 %v7045
      %7359 = vmatprep.subr.bf16.mxu0 0
      %7360 = vmatpush2.bf16.msra.mxu0 %v7042
      %7361 = vmatprep.subr.bf16.mxu0 0
      %7362 = vmatpush2.bf16.msra.mxu0 %v7039
      %7363 = vmatprep.subr.bf16.mxu0 0
      %7364 = vmatpush2.bf16.msra.mxu0 %v7036
      %7365 = vmatprep.subr.bf16.mxu0 0
      %7366 = vmatpush2.bf16.msra.mxu0 %v7033
      %7367 = vmatprep.subr.bf16.mxu0 0
      %7368 = vmatpush2.bf16.msra.mxu0 %v7030
      %7369 = vmatprep.subr.bf16.mxu0 0
      %7370 = vmatpush2.bf16.msra.mxu0 %v7027
      %7371 = vmatprep.mubr.bf16.mxu0 %v6650
      %7372 = vmatmul.mubr.bf16.gmra.mxu0 %v6649
      %v7373 = vpop.f32.mrf.mxu0
      %v7374 = vadd.f32 0.0, %v7373
      %v7375 = vpop.f32.mrf.mxu0
      %v7376 = vpop.f32.mrf.mxu0
      %v7377 = vadd.f32 0.0, %v7376
      %v7378 = vpop.f32.mrf.mxu0
      %7379 = vmatprep.mubr.bf16.mxu0 %v6654
      %7380 = vmatmul.mubr.bf16.gmra.mxu0 %v6653
      %v7381 = vpop.f32.mrf.mxu0
      %v7382 = vadd.f32 0.0, %v7381
      %v7383 = vpop.f32.mrf.mxu0
      %v7384 = vpop.f32.mrf.mxu0
      %v7385 = vadd.f32 0.0, %v7384
      %v7386 = vpop.f32.mrf.mxu0
      %7387 = vmatprep.mubr.bf16.mxu0 %v6658
      %7388 = vmatmul.mubr.bf16.gmra.mxu0 %v6657
      %v7389 = vpop.f32.mrf.mxu0
      %v7390 = vadd.f32 0.0, %v7389
      %v7391 = vpop.f32.mrf.mxu0
      %v7392 = vpop.f32.mrf.mxu0
      %v7393 = vadd.f32 0.0, %v7392
      %v7394 = vpop.f32.mrf.mxu0
      %7395 = vmatprep.mubr.bf16.mxu0 %v6662
      %7396 = vmatmul.mubr.bf16.gmra.mxu0 %v6661
      %v7397 = vpop.f32.mrf.mxu0
      %v7398 = vadd.f32 0.0, %v7397
      %v7399 = vpop.f32.mrf.mxu0
      %v7400 = vpop.f32.mrf.mxu0
      %v7401 = vadd.f32 0.0, %v7400
      %v7402 = vpop.f32.mrf.mxu0
      %7403 = vdwg.mxu0
      %7404 = vmatprep.subr.bf16.mxu0 0
      %7405 = vmatpush1.bf16.msra.mxu0 %v7072
      %7406 = vmatprep.subr.bf16.mxu0 0
      %7407 = vmatpush1.bf16.msra.mxu0 %v7069
      %7408 = vmatprep.subr.bf16.mxu0 0
      %7409 = vmatpush1.bf16.msra.mxu0 %v7066
      %7410 = vmatprep.subr.bf16.mxu0 0
      %7411 = vmatpush1.bf16.msra.mxu0 %v7063
      %7412 = vmatprep.subr.bf16.mxu0 0
      %7413 = vmatpush1.bf16.msra.mxu0 %v7060
      %7414 = vmatprep.subr.bf16.mxu0 0
      %7415 = vmatpush1.bf16.msra.mxu0 %v7057
      %7416 = vmatprep.subr.bf16.mxu0 0
      %7417 = vmatpush1.bf16.msra.mxu0 %v7054
      %7418 = vmatprep.subr.bf16.mxu0 0
      %7419 = vmatpush1.bf16.msra.mxu0 %v7051
      %7420 = vmatprep.subr.bf16.mxu0 0
      %7421 = vmatpush2.bf16.msra.mxu0 %v7096
      %7422 = vmatprep.subr.bf16.mxu0 0
      %7423 = vmatpush2.bf16.msra.mxu0 %v7093
      %7424 = vmatprep.subr.bf16.mxu0 0
      %7425 = vmatpush2.bf16.msra.mxu0 %v7090
      %7426 = vmatprep.subr.bf16.mxu0 0
      %7427 = vmatpush2.bf16.msra.mxu0 %v7087
      %7428 = vmatprep.subr.bf16.mxu0 0
      %7429 = vmatpush2.bf16.msra.mxu0 %v7084
      %7430 = vmatprep.subr.bf16.mxu0 0
      %7431 = vmatpush2.bf16.msra.mxu0 %v7081
      %7432 = vmatprep.subr.bf16.mxu0 0
      %7433 = vmatpush2.bf16.msra.mxu0 %v7078
      %7434 = vmatprep.subr.bf16.mxu0 0
      %7435 = vmatpush2.bf16.msra.mxu0 %v7075
      %7436 = vmatprep.mubr.bf16.mxu0 %v6652
      %7437 = vmatmul.mubr.bf16.gmra.mxu0 %v6651
      %v7438 = vpop.f32.mrf.mxu0
      %v7439 = vadd.f32 %v7374, %v7438
      %v7440 = vpop.f32.mrf.mxu0
      %v7441 = vpop.f32.mrf.mxu0
      %v7442 = vadd.f32 %v7377, %v7441
      %v7443 = vpop.f32.mrf.mxu0
      %7444 = vmatprep.mubr.bf16.mxu0 %v6656
      %7445 = vmatmul.mubr.bf16.gmra.mxu0 %v6655
      %v7446 = vpop.f32.mrf.mxu0
      %v7447 = vadd.f32 %v7382, %v7446
      %v7448 = vpop.f32.mrf.mxu0
      %v7449 = vpop.f32.mrf.mxu0
      %v7450 = vadd.f32 %v7385, %v7449
      %v7451 = vpop.f32.mrf.mxu0
      %7452 = vmatprep.mubr.bf16.mxu0 %v6660
      %7453 = vmatmul.mubr.bf16.gmra.mxu0 %v6659
      %v7454 = vpop.f32.mrf.mxu0
      %v7455 = vadd.f32 %v7390, %v7454
      %v7456 = vpop.f32.mrf.mxu0
      %v7457 = vpop.f32.mrf.mxu0
      %v7458 = vadd.f32 %v7393, %v7457
      %v7459 = vpop.f32.mrf.mxu0
      %7460 = vmatprep.mubr.bf16.mxu0 %v6664
      %7461 = vmatmul.mubr.bf16.gmra.mxu0 %v6663
      %v7462 = vpop.f32.mrf.mxu0
      %v7463 = vadd.f32 %v7398, %v7462
      %v7464 = vpop.f32.mrf.mxu0
      %v7465 = vpop.f32.mrf.mxu0
      %v7466 = vadd.f32 %v7401, %v7465
      %v7467 = vpop.f32.mrf.mxu0
      %7468 = vdwg.mxu0
      %v7469 = vadd.f32 %v6345, %v7301
      %v7470 = vadd.f32 %v6346, %v7303
      %v7471 = vadd.f32 %v6347, %v7439
      %v7472 = vadd.f32 %v6348, %v7305
      %v7473 = vadd.f32 %v6349, %v7307
      %v7474 = vadd.f32 %v6350, %v7442
      %v7475 = vadd.f32 %v6351, %v7311
      %v7476 = vadd.f32 %v6352, %v7313
      %v7477 = vadd.f32 %v6353, %v7447
      %v7478 = vadd.f32 %v6354, %v7315
      %v7479 = vadd.f32 %v6355, %v7317
      %v7480 = vadd.f32 %v6356, %v7450
      %v7481 = vadd.f32 %v6357, %v7321
      %v7482 = vadd.f32 %v6358, %v7323
      %v7483 = vadd.f32 %v6359, %v7455
      %v7484 = vadd.f32 %v6360, %v7325
      %v7485 = vadd.f32 %v6361, %v7327
      %v7486 = vadd.f32 %v6362, %v7458
      %v7487 = vadd.f32 %v6363, %v7331
      %v7488 = vadd.f32 %v6364, %v7333
      %v7489 = vadd.f32 %v6365, %v7463
      %v7490 = vadd.f32 %v6366, %v7335
      %v7491 = vadd.f32 %v6367, %v7337
      %v7492 = vadd.f32 %v6368, %v7466
      %v7497 = vrot.slane %v6385, 5
      %v7498 = vrot.slane %v7497, 4
      %v7499 = vrot.slane %v3145, 5
      %v7500 = vsel %vm6423, %v7498, %v7499
      %v7501 = vrot.slane %v6386, 5
      %v7502 = vrot.slane %v7501, 4
      %v7503 = vrot.slane %v3146, 5
      %v7504 = vsel %vm6423, %v7502, %v7503
      %s7505 = scalar_lea.vmem %s1, 3840
      %v7506 = vld [vmem:[%s7505] sm:$0xff]
      %v7507 = vld [vmem:[%s7505 + $0x8] sm:$0xf]
      %v7508 = vld [vmem:[%s7505 + $0xc] sm:$0xff]
      %v7509 = vld [vmem:[%s7505 + $0x14] sm:$0xf]
      %v7510 = vld [vmem:[%s7505 + $0x18] sm:$0xff]
      %v7511 = vld [vmem:[%s7505 + $0x20] sm:$0xf]
      %v7512 = vld [vmem:[%s7505 + $0x24] sm:$0xff]
      %v7513 = vld [vmem:[%s7505 + $0x2c] sm:$0xf]
      %v7514 = vld [vmem:[%s7505 + $0x30] sm:$0xff]
      %v7515 = vld [vmem:[%s7505 + $0x38] sm:$0xf]
      %v7516 = vld [vmem:[%s7505 + $0x3c] sm:$0xff]
      %v7517 = vld [vmem:[%s7505 + $0x44] sm:$0xf]
      %v7518 = vld [vmem:[%s7505 + $0x48] sm:$0xff]
      %v7519 = vld [vmem:[%s7505 + $0x50] sm:$0xf]
      %v7520 = vld [vmem:[%s7505 + $0x54] sm:$0xff]
      %v7521 = vld [vmem:[%s7505 + $0x5c] sm:$0xf]
      %v7522 = vld [vmem:[%s7505 + $0x60] sm:$0xff]
      %v7523 = vld [vmem:[%s7505 + $0x68] sm:$0xf]
      %v7524 = vld [vmem:[%s7505 + $0x6c] sm:$0xff]
      %v7525 = vld [vmem:[%s7505 + $0x74] sm:$0xf]
      %v7526 = vld [vmem:[%s7505 + $0x78] sm:$0xff]
      %v7527 = vld [vmem:[%s7505 + $0x80] sm:$0xf]
      %v7528 = vld [vmem:[%s7505 + $0x84] sm:$0xff]
      %v7529 = vld [vmem:[%s7505 + $0x8c] sm:$0xf]
      %v7530 = vld [vmem:[%s7505 + $0x90] sm:$0xff]
      %v7531 = vld [vmem:[%s7505 + $0x98] sm:$0xf]
      %v7532 = vld [vmem:[%s7505 + $0x9c] sm:$0xff]
      %v7533 = vld [vmem:[%s7505 + $0xa4] sm:$0xf]
      %v7534 = vld [vmem:[%s7505 + $0xa8] sm:$0xff]
      %v7535 = vld [vmem:[%s7505 + $0xb0] sm:$0xf]
      %v7536 = vld [vmem:[%s7505 + $0xb4] sm:$0xff]
      %v7537 = vld [vmem:[%s7505 + $0xbc] sm:$0xf]
      %v7538 = vld [vmem:[%s7505 + $0xc0] sm:$0xff]
      %v7539 = vld [vmem:[%s7505 + $0xc8] sm:$0xf]
      %v7540 = vld [vmem:[%s7505 + $0xcc] sm:$0xff]
      %v7541 = vld [vmem:[%s7505 + $0xd4] sm:$0xf]
      %v7542 = vld [vmem:[%s7505 + $0xd8] sm:$0xff]
      %v7543 = vld [vmem:[%s7505 + $0xe0] sm:$0xf]
      %v7544 = vld [vmem:[%s7505 + $0xe4] sm:$0xff]
      %v7545 = vld [vmem:[%s7505 + $0xec] sm:$0xf]
      %v7546 = vld [vmem:[%s7505 + $0xf0] sm:$0xff]
      %v7547 = vld [vmem:[%s7505 + $0xf8] sm:$0xf]
      %v7548 = vld [vmem:[%s7505 + $0xfc] sm:$0xff]
      %v7549 = vld [vmem:[%s7505 + $0x104] sm:$0xf]
      %v7550 = vld [vmem:[%s7505 + $0x108] sm:$0xff]
      %v7551 = vld [vmem:[%s7505 + $0x110] sm:$0xf]
      %v7552 = vld [vmem:[%s7505 + $0x114] sm:$0xff]
      %v7553 = vld [vmem:[%s7505 + $0x11c] sm:$0xf]
      %v7554 = vld [vmem:[%s7505 + $0x120] sm:$0xff]
      %v7555 = vld [vmem:[%s7505 + $0x128] sm:$0xf]
      %v7556 = vld [vmem:[%s7505 + $0x12c] sm:$0xff]
      %v7557 = vld [vmem:[%s7505 + $0x134] sm:$0xf]
      %v7558 = vld [vmem:[%s7505 + $0x138] sm:$0xff]
      %v7559 = vld [vmem:[%s7505 + $0x140] sm:$0xf]
      %v7560 = vld [vmem:[%s7505 + $0x144] sm:$0xff]
      %v7561 = vld [vmem:[%s7505 + $0x14c] sm:$0xf]
      %v7562 = vld [vmem:[%s7505 + $0x150] sm:$0xff]
      %v7563 = vld [vmem:[%s7505 + $0x158] sm:$0xf]
      %v7564 = vld [vmem:[%s7505 + $0x15c] sm:$0xff]
      %v7565 = vld [vmem:[%s7505 + $0x164] sm:$0xf]
      %v7566 = vld [vmem:[%s7505 + $0x168] sm:$0xff]
      %v7567 = vld [vmem:[%s7505 + $0x170] sm:$0xf]
      %v7568 = vld [vmem:[%s7505 + $0x174] sm:$0xff]
      %v7569 = vld [vmem:[%s7505 + $0x17c] sm:$0xf]
      %v7570 = vld [vmem:[%s7505 + $0x180] sm:$0xff]
      %v7571 = vld [vmem:[%s7505 + $0x188] sm:$0xf]
      %v7572 = vld [vmem:[%s7505 + $0x18c] sm:$0xff]
      %v7573 = vld [vmem:[%s7505 + $0x194] sm:$0xf]
      %v7574 = vld [vmem:[%s7505 + $0x198] sm:$0xff]
      %v7575 = vld [vmem:[%s7505 + $0x1a0] sm:$0xf]
      %v7576 = vld [vmem:[%s7505 + $0x1a4] sm:$0xff]
      %v7577 = vld [vmem:[%s7505 + $0x1ac] sm:$0xf]
      %v7578 = vld [vmem:[%s7505 + $0x1b0] sm:$0xff]
      %v7579 = vld [vmem:[%s7505 + $0x1b8] sm:$0xf]
      %v7580 = vld [vmem:[%s7505 + $0x1bc] sm:$0xff]
      %v7581 = vld [vmem:[%s7505 + $0x1c4] sm:$0xf]
      %v7582 = vld [vmem:[%s7505 + $0x1c8] sm:$0xff]
      %v7583 = vld [vmem:[%s7505 + $0x1d0] sm:$0xf]
      %v7584 = vld [vmem:[%s7505 + $0x1d4] sm:$0xff]
      %v7585 = vld [vmem:[%s7505 + $0x1dc] sm:$0xf]
      %v7586 = vld [vmem:[%s7505 + $0x1e0] sm:$0xff]
      %v7587 = vld [vmem:[%s7505 + $0x1e8] sm:$0xf]
      %v7588 = vld [vmem:[%s7505 + $0x1ec] sm:$0xff]
      %v7589 = vld [vmem:[%s7505 + $0x1f4] sm:$0xf]
      %v7590 = vld [vmem:[%s7505 + $0x1f8] sm:$0xff]
      %v7591 = vld [vmem:[%s7505 + $0x200] sm:$0xf]
      %v7592 = vld [vmem:[%s7505 + $0x204] sm:$0xff]
      %v7593 = vld [vmem:[%s7505 + $0x20c] sm:$0xf]
      %v7594 = vld [vmem:[%s7505 + $0x210] sm:$0xff]
      %v7595 = vld [vmem:[%s7505 + $0x218] sm:$0xf]
      %v7596 = vld [vmem:[%s7505 + $0x21c] sm:$0xff]
      %v7597 = vld [vmem:[%s7505 + $0x224] sm:$0xf]
      %v7598 = vld [vmem:[%s7505 + $0x228] sm:$0xff]
      %v7599 = vld [vmem:[%s7505 + $0x230] sm:$0xf]
      %v7600 = vld [vmem:[%s7505 + $0x234] sm:$0xff]
      %v7601 = vld [vmem:[%s7505 + $0x23c] sm:$0xf]
      %v7602 = vld [vmem:[%s7505 + $0x240] sm:$0xff]
      %v7603 = vld [vmem:[%s7505 + $0x248] sm:$0xf]
      %v7604 = vld [vmem:[%s7505 + $0x24c] sm:$0xff]
      %v7605 = vld [vmem:[%s7505 + $0x254] sm:$0xf]
      %v7606 = vld [vmem:[%s7505 + $0x258] sm:$0xff]
      %v7607 = vld [vmem:[%s7505 + $0x260] sm:$0xf]
      %v7608 = vld [vmem:[%s7505 + $0x264] sm:$0xff]
      %v7609 = vld [vmem:[%s7505 + $0x26c] sm:$0xf]
      %v7610 = vld [vmem:[%s7505 + $0x270] sm:$0xff]
      %v7611 = vld [vmem:[%s7505 + $0x278] sm:$0xf]
      %v7612 = vld [vmem:[%s7505 + $0x27c] sm:$0xff]
      %v7613 = vld [vmem:[%s7505 + $0x284] sm:$0xf]
      %v7614 = vld [vmem:[%s7505 + $0x288] sm:$0xff]
      %v7615 = vld [vmem:[%s7505 + $0x290] sm:$0xf]
      %v7616 = vld [vmem:[%s7505 + $0x294] sm:$0xff]
      %v7617 = vld [vmem:[%s7505 + $0x29c] sm:$0xf]
      %v7618 = vld [vmem:[%s7505 + $0x2a0] sm:$0xff]
      %v7619 = vld [vmem:[%s7505 + $0x2a8] sm:$0xf]
      %v7620 = vld [vmem:[%s7505 + $0x2ac] sm:$0xff]
      %v7621 = vld [vmem:[%s7505 + $0x2b4] sm:$0xf]
      %v7622 = vld [vmem:[%s7505 + $0x2b8] sm:$0xff]
      %v7623 = vld [vmem:[%s7505 + $0x2c0] sm:$0xf]
      %v7624 = vld [vmem:[%s7505 + $0x2c4] sm:$0xff]
      %v7625 = vld [vmem:[%s7505 + $0x2cc] sm:$0xf]
      %v7626 = vld [vmem:[%s7505 + $0x2d0] sm:$0xff]
      %v7627 = vld [vmem:[%s7505 + $0x2d8] sm:$0xf]
      %v7628 = vld [vmem:[%s7505 + $0x2dc] sm:$0xff]
      %v7629 = vld [vmem:[%s7505 + $0x2e4] sm:$0xf]
      %v7630 = vld [vmem:[%s7505 + $0x2e8] sm:$0xff]
      %v7631 = vld [vmem:[%s7505 + $0x2f0] sm:$0xf]
      %v7632 = vld [vmem:[%s7505 + $0x2f4] sm:$0xff]
      %v7633 = vld [vmem:[%s7505 + $0x2fc] sm:$0xf]
      %v7634 = vunpack.c.l.b16 %v7500
      %v7635 = vunpack.c.h.b16 %v7500
      %v7636 = vunpack.c.l.b16 %v7504
      %v7637 = vunpack.c.h.b16 %v7504
      %v7638 = vpack.c.b16 %v6625, %v6621
      %v7639 = vpack.c.b16 %v6626, %v6622
      %v7640 = vpack.c.b16 %v6627, %v6623
      %v7641 = vpack.c.b16 %v6628, %v6624
      %v7642 = vpack.c.b16 %v6633, %v6629
      %v7643 = vpack.c.b16 %v6634, %v6630
      %v7644 = vpack.c.b16 %v6635, %v6631
      %v7645 = vpack.c.b16 %v6636, %v6632
      %v7646 = vpack.c.b16 %v6641, %v6637
      %v7647 = vpack.c.b16 %v6642, %v6638
      %v7648 = vpack.c.b16 %v6643, %v6639
      %v7649 = vpack.c.b16 %v6644, %v6640
      %v7650 = vpack.c.b16 %v7634, %v6645
      %v7651 = vpack.c.b16 %v7635, %v6646
      %v7652 = vpack.c.b16 %v7636, %v6647
      %v7653 = vpack.c.b16 %v7637, %v6648
      %v7798 = vunpack.c.l.b16 %v7506
      %v7799 = vunpack.c.h.b16 %v7506
      %v7800 = vunpack.c.l.b16 %v7507
      %v7801 = vunpack.c.l.b16 %v7508
      %v7802 = vunpack.c.h.b16 %v7508
      %v7803 = vunpack.c.l.b16 %v7509
      %v7804 = vunpack.c.l.b16 %v7510
      %v7805 = vunpack.c.h.b16 %v7510
      %v7806 = vunpack.c.l.b16 %v7511
      %v7807 = vunpack.c.l.b16 %v7512
      %v7808 = vunpack.c.h.b16 %v7512
      %v7809 = vunpack.c.l.b16 %v7513
      %v7810 = vunpack.c.l.b16 %v7514
      %v7811 = vunpack.c.h.b16 %v7514
      %v7812 = vunpack.c.l.b16 %v7515
      %v7813 = vunpack.c.l.b16 %v7516
      %v7814 = vunpack.c.h.b16 %v7516
      %v7815 = vunpack.c.l.b16 %v7517
      %v7816 = vunpack.c.l.b16 %v7518
      %v7817 = vunpack.c.h.b16 %v7518
      %v7818 = vunpack.c.l.b16 %v7519
      %v7819 = vunpack.c.l.b16 %v7520
      %v7820 = vunpack.c.h.b16 %v7520
      %v7821 = vunpack.c.l.b16 %v7521
      %v7822 = vunpack.c.l.b16 %v7522
      %v7823 = vunpack.c.h.b16 %v7522
      %v7824 = vunpack.c.l.b16 %v7523
      %v7825 = vunpack.c.l.b16 %v7524
      %v7826 = vunpack.c.h.b16 %v7524
      %v7827 = vunpack.c.l.b16 %v7525
      %v7828 = vunpack.c.l.b16 %v7526
      %v7829 = vunpack.c.h.b16 %v7526
      %v7830 = vunpack.c.l.b16 %v7527
      %v7831 = vunpack.c.l.b16 %v7528
      %v7832 = vunpack.c.h.b16 %v7528
      %v7833 = vunpack.c.l.b16 %v7529
      %v7834 = vunpack.c.l.b16 %v7530
      %v7835 = vunpack.c.h.b16 %v7530
      %v7836 = vunpack.c.l.b16 %v7531
      %v7837 = vunpack.c.l.b16 %v7532
      %v7838 = vunpack.c.h.b16 %v7532
      %v7839 = vunpack.c.l.b16 %v7533
      %v7840 = vunpack.c.l.b16 %v7534
      %v7841 = vunpack.c.h.b16 %v7534
      %v7842 = vunpack.c.l.b16 %v7535
      %v7843 = vunpack.c.l.b16 %v7536
      %v7844 = vunpack.c.h.b16 %v7536
      %v7845 = vunpack.c.l.b16 %v7537
      %v7846 = vunpack.c.l.b16 %v7538
      %v7847 = vunpack.c.h.b16 %v7538
      %v7848 = vunpack.c.l.b16 %v7539
      %v7849 = vunpack.c.l.b16 %v7540
      %v7850 = vunpack.c.h.b16 %v7540
      %v7851 = vunpack.c.l.b16 %v7541
      %v7852 = vunpack.c.l.b16 %v7542
      %v7853 = vunpack.c.h.b16 %v7542
      %v7854 = vunpack.c.l.b16 %v7543
      %v7855 = vunpack.c.l.b16 %v7544
      %v7856 = vunpack.c.h.b16 %v7544
      %v7857 = vunpack.c.l.b16 %v7545
      %v7858 = vunpack.c.l.b16 %v7546
      %v7859 = vunpack.c.h.b16 %v7546
      %v7860 = vunpack.c.l.b16 %v7547
      %v7861 = vunpack.c.l.b16 %v7548
      %v7862 = vunpack.c.h.b16 %v7548
      %v7863 = vunpack.c.l.b16 %v7549
      %v7864 = vunpack.c.l.b16 %v7550
      %v7865 = vunpack.c.h.b16 %v7550
      %v7866 = vunpack.c.l.b16 %v7551
      %v7867 = vunpack.c.l.b16 %v7552
      %v7868 = vunpack.c.h.b16 %v7552
      %v7869 = vunpack.c.l.b16 %v7553
      %v7870 = vunpack.c.l.b16 %v7554
      %v7871 = vunpack.c.h.b16 %v7554
      %v7872 = vunpack.c.l.b16 %v7555
      %v7873 = vunpack.c.l.b16 %v7556
      %v7874 = vunpack.c.h.b16 %v7556
      %v7875 = vunpack.c.l.b16 %v7557
      %v7876 = vunpack.c.l.b16 %v7558
      %v7877 = vunpack.c.h.b16 %v7558
      %v7878 = vunpack.c.l.b16 %v7559
      %v7879 = vunpack.c.l.b16 %v7560
      %v7880 = vunpack.c.h.b16 %v7560
      %v7881 = vunpack.c.l.b16 %v7561
      %v7882 = vunpack.c.l.b16 %v7562
      %v7883 = vunpack.c.h.b16 %v7562
      %v7884 = vunpack.c.l.b16 %v7563
      %v7885 = vunpack.c.l.b16 %v7564
      %v7886 = vunpack.c.h.b16 %v7564
      %v7887 = vunpack.c.l.b16 %v7565
      %v7888 = vunpack.c.l.b16 %v7566
      %v7889 = vunpack.c.h.b16 %v7566
      %v7890 = vunpack.c.l.b16 %v7567
      %v7891 = vunpack.c.l.b16 %v7568
      %v7892 = vunpack.c.h.b16 %v7568
      %v7893 = vunpack.c.l.b16 %v7569
      %v7894 = vunpack.c.l.b16 %v7570
      %v7895 = vunpack.c.h.b16 %v7570
      %v7896 = vunpack.c.l.b16 %v7571
      %v7897 = vunpack.c.l.b16 %v7572
      %v7898 = vunpack.c.h.b16 %v7572
      %v7899 = vunpack.c.l.b16 %v7573
      %v7900 = vunpack.c.l.b16 %v7574
      %v7901 = vunpack.c.h.b16 %v7574
      %v7902 = vunpack.c.l.b16 %v7575
      %v7903 = vunpack.c.l.b16 %v7576
      %v7904 = vunpack.c.h.b16 %v7576
      %v7905 = vunpack.c.l.b16 %v7577
      %v7906 = vunpack.c.l.b16 %v7578
      %v7907 = vunpack.c.h.b16 %v7578
      %v7908 = vunpack.c.l.b16 %v7579
      %v7909 = vunpack.c.l.b16 %v7580
      %v7910 = vunpack.c.h.b16 %v7580
      %v7911 = vunpack.c.l.b16 %v7581
      %v7912 = vunpack.c.l.b16 %v7582
      %v7913 = vunpack.c.h.b16 %v7582
      %v7914 = vunpack.c.l.b16 %v7583
      %v7915 = vunpack.c.l.b16 %v7584
      %v7916 = vunpack.c.h.b16 %v7584
      %v7917 = vunpack.c.l.b16 %v7585
      %v7918 = vunpack.c.l.b16 %v7586
      %v7919 = vunpack.c.h.b16 %v7586
      %v7920 = vunpack.c.l.b16 %v7587
      %v7921 = vunpack.c.l.b16 %v7588
      %v7922 = vunpack.c.h.b16 %v7588
      %v7923 = vunpack.c.l.b16 %v7589
      %v7924 = vunpack.c.l.b16 %v7590
      %v7925 = vunpack.c.h.b16 %v7590
      %v7926 = vunpack.c.l.b16 %v7591
      %v7927 = vunpack.c.l.b16 %v7592
      %v7928 = vunpack.c.h.b16 %v7592
      %v7929 = vunpack.c.l.b16 %v7593
      %v7930 = vunpack.c.l.b16 %v7594
      %v7931 = vunpack.c.h.b16 %v7594
      %v7932 = vunpack.c.l.b16 %v7595
      %v7933 = vunpack.c.l.b16 %v7596
      %v7934 = vunpack.c.h.b16 %v7596
      %v7935 = vunpack.c.l.b16 %v7597
      %v7936 = vunpack.c.l.b16 %v7598
      %v7937 = vunpack.c.h.b16 %v7598
      %v7938 = vunpack.c.l.b16 %v7599
      %v7939 = vunpack.c.l.b16 %v7600
      %v7940 = vunpack.c.h.b16 %v7600
      %v7941 = vunpack.c.l.b16 %v7601
      %v7942 = vunpack.c.l.b16 %v7602
      %v7943 = vunpack.c.h.b16 %v7602
      %v7944 = vunpack.c.l.b16 %v7603
      %v7945 = vunpack.c.l.b16 %v7604
      %v7946 = vunpack.c.h.b16 %v7604
      %v7947 = vunpack.c.l.b16 %v7605
      %v7948 = vunpack.c.l.b16 %v7606
      %v7949 = vunpack.c.h.b16 %v7606
      %v7950 = vunpack.c.l.b16 %v7607
      %v7951 = vunpack.c.l.b16 %v7608
      %v7952 = vunpack.c.h.b16 %v7608
      %v7953 = vunpack.c.l.b16 %v7609
      %v7954 = vunpack.c.l.b16 %v7610
      %v7955 = vunpack.c.h.b16 %v7610
      %v7956 = vunpack.c.l.b16 %v7611
      %v7957 = vunpack.c.l.b16 %v7612
      %v7958 = vunpack.c.h.b16 %v7612
      %v7959 = vunpack.c.l.b16 %v7613
      %v7960 = vunpack.c.l.b16 %v7614
      %v7961 = vunpack.c.h.b16 %v7614
      %v7962 = vunpack.c.l.b16 %v7615
      %v7963 = vunpack.c.l.b16 %v7616
      %v7964 = vunpack.c.h.b16 %v7616
      %v7965 = vunpack.c.l.b16 %v7617
      %v7966 = vunpack.c.l.b16 %v7618
      %v7967 = vunpack.c.h.b16 %v7618
      %v7968 = vunpack.c.l.b16 %v7619
      %v7969 = vunpack.c.l.b16 %v7620
      %v7970 = vunpack.c.h.b16 %v7620
      %v7971 = vunpack.c.l.b16 %v7621
      %v7972 = vunpack.c.l.b16 %v7622
      %v7973 = vunpack.c.h.b16 %v7622
      %v7974 = vunpack.c.l.b16 %v7623
      %v7975 = vunpack.c.l.b16 %v7624
      %v7976 = vunpack.c.h.b16 %v7624
      %v7977 = vunpack.c.l.b16 %v7625
      %v7978 = vunpack.c.l.b16 %v7626
      %v7979 = vunpack.c.h.b16 %v7626
      %v7980 = vunpack.c.l.b16 %v7627
      %v7981 = vunpack.c.l.b16 %v7628
      %v7982 = vunpack.c.h.b16 %v7628
      %v7983 = vunpack.c.l.b16 %v7629
      %v7984 = vunpack.c.l.b16 %v7630
      %v7985 = vunpack.c.h.b16 %v7630
      %v7986 = vunpack.c.l.b16 %v7631
      %v7987 = vunpack.c.l.b16 %v7632
      %v7988 = vunpack.c.h.b16 %v7632
      %v7989 = vunpack.c.l.b16 %v7633
      %v7990 = vpack.c.b16 %v7801, %v7798
      %v7991 = vpack.c.b16 %v7802, %v7799
      %v7992 = vpack.c.b16 %v7803, %v7800
      %v7993 = vpack.c.b16 %v7807, %v7804
      %v7994 = vpack.c.b16 %v7808, %v7805
      %v7995 = vpack.c.b16 %v7809, %v7806
      %v7996 = vpack.c.b16 %v7813, %v7810
      %v7997 = vpack.c.b16 %v7814, %v7811
      %v7998 = vpack.c.b16 %v7815, %v7812
      %v7999 = vpack.c.b16 %v7819, %v7816
      %v8000 = vpack.c.b16 %v7820, %v7817
      %v8001 = vpack.c.b16 %v7821, %v7818
      %v8002 = vpack.c.b16 %v7825, %v7822
      %v8003 = vpack.c.b16 %v7826, %v7823
      %v8004 = vpack.c.b16 %v7827, %v7824
      %v8005 = vpack.c.b16 %v7831, %v7828
      %v8006 = vpack.c.b16 %v7832, %v7829
      %v8007 = vpack.c.b16 %v7833, %v7830
      %v8008 = vpack.c.b16 %v7837, %v7834
      %v8009 = vpack.c.b16 %v7838, %v7835
      %v8010 = vpack.c.b16 %v7839, %v7836
      %v8011 = vpack.c.b16 %v7843, %v7840
      %v8012 = vpack.c.b16 %v7844, %v7841
      %v8013 = vpack.c.b16 %v7845, %v7842
      %v8014 = vpack.c.b16 %v7849, %v7846
      %v8015 = vpack.c.b16 %v7850, %v7847
      %v8016 = vpack.c.b16 %v7851, %v7848
      %v8017 = vpack.c.b16 %v7855, %v7852
      %v8018 = vpack.c.b16 %v7856, %v7853
      %v8019 = vpack.c.b16 %v7857, %v7854
      %v8020 = vpack.c.b16 %v7861, %v7858
      %v8021 = vpack.c.b16 %v7862, %v7859
      %v8022 = vpack.c.b16 %v7863, %v7860
      %v8023 = vpack.c.b16 %v7867, %v7864
      %v8024 = vpack.c.b16 %v7868, %v7865
      %v8025 = vpack.c.b16 %v7869, %v7866
      %v8026 = vpack.c.b16 %v7873, %v7870
      %v8027 = vpack.c.b16 %v7874, %v7871
      %v8028 = vpack.c.b16 %v7875, %v7872
      %v8029 = vpack.c.b16 %v7879, %v7876
      %v8030 = vpack.c.b16 %v7880, %v7877
      %v8031 = vpack.c.b16 %v7881, %v7878
      %v8032 = vpack.c.b16 %v7885, %v7882
      %v8033 = vpack.c.b16 %v7886, %v7883
      %v8034 = vpack.c.b16 %v7887, %v7884
      %v8035 = vpack.c.b16 %v7891, %v7888
      %v8036 = vpack.c.b16 %v7892, %v7889
      %v8037 = vpack.c.b16 %v7893, %v7890
      %v8038 = vpack.c.b16 %v7897, %v7894
      %v8039 = vpack.c.b16 %v7898, %v7895
      %v8040 = vpack.c.b16 %v7899, %v7896
      %v8041 = vpack.c.b16 %v7903, %v7900
      %v8042 = vpack.c.b16 %v7904, %v7901
      %v8043 = vpack.c.b16 %v7905, %v7902
      %v8044 = vpack.c.b16 %v7909, %v7906
      %v8045 = vpack.c.b16 %v7910, %v7907
      %v8046 = vpack.c.b16 %v7911, %v7908
      %v8047 = vpack.c.b16 %v7915, %v7912
      %v8048 = vpack.c.b16 %v7916, %v7913
      %v8049 = vpack.c.b16 %v7917, %v7914
      %v8050 = vpack.c.b16 %v7921, %v7918
      %v8051 = vpack.c.b16 %v7922, %v7919
      %v8052 = vpack.c.b16 %v7923, %v7920
      %v8053 = vpack.c.b16 %v7927, %v7924
      %v8054 = vpack.c.b16 %v7928, %v7925
      %v8055 = vpack.c.b16 %v7929, %v7926
      %v8056 = vpack.c.b16 %v7933, %v7930
      %v8057 = vpack.c.b16 %v7934, %v7931
      %v8058 = vpack.c.b16 %v7935, %v7932
      %v8059 = vpack.c.b16 %v7939, %v7936
      %v8060 = vpack.c.b16 %v7940, %v7937
      %v8061 = vpack.c.b16 %v7941, %v7938
      %v8062 = vpack.c.b16 %v7945, %v7942
      %v8063 = vpack.c.b16 %v7946, %v7943
      %v8064 = vpack.c.b16 %v7947, %v7944
      %v8065 = vpack.c.b16 %v7951, %v7948
      %v8066 = vpack.c.b16 %v7952, %v7949
      %v8067 = vpack.c.b16 %v7953, %v7950
      %v8068 = vpack.c.b16 %v7957, %v7954
      %v8069 = vpack.c.b16 %v7958, %v7955
      %v8070 = vpack.c.b16 %v7959, %v7956
      %v8071 = vpack.c.b16 %v7963, %v7960
      %v8072 = vpack.c.b16 %v7964, %v7961
      %v8073 = vpack.c.b16 %v7965, %v7962
      %v8074 = vpack.c.b16 %v7969, %v7966
      %v8075 = vpack.c.b16 %v7970, %v7967
      %v8076 = vpack.c.b16 %v7971, %v7968
      %v8077 = vpack.c.b16 %v7975, %v7972
      %v8078 = vpack.c.b16 %v7976, %v7973
      %v8079 = vpack.c.b16 %v7977, %v7974
      %v8080 = vpack.c.b16 %v7981, %v7978
      %v8081 = vpack.c.b16 %v7982, %v7979
      %v8082 = vpack.c.b16 %v7983, %v7980
      %v8083 = vpack.c.b16 %v7987, %v7984
      %v8084 = vpack.c.b16 %v7988, %v7985
      %v8085 = vpack.c.b16 %v7989, %v7986
      %8182 = vmatprep.subr.bf16.mxu0 %v8012
      %8183 = vmatpush1.bf16.msra.mxu0 %v8011
      %8184 = vmatprep.subr.bf16.mxu0 %v8009
      %8185 = vmatpush1.bf16.msra.mxu0 %v8008
      %8186 = vmatprep.subr.bf16.mxu0 %v8006
      %8187 = vmatpush1.bf16.msra.mxu0 %v8005
      %8188 = vmatprep.subr.bf16.mxu0 %v8003
      %8189 = vmatpush1.bf16.msra.mxu0 %v8002
      %8190 = vmatprep.subr.bf16.mxu0 %v8000
      %8191 = vmatpush1.bf16.msra.mxu0 %v7999
      %8192 = vmatprep.subr.bf16.mxu0 %v7997
      %8193 = vmatpush1.bf16.msra.mxu0 %v7996
      %8194 = vmatprep.subr.bf16.mxu0 %v7994
      %8195 = vmatpush1.bf16.msra.mxu0 %v7993
      %8196 = vmatprep.subr.bf16.mxu0 %v7991
      %8197 = vmatpush1.bf16.msra.mxu0 %v7990
      %8198 = vmatprep.subr.bf16.mxu0 %v8036
      %8199 = vmatpush2.bf16.msra.mxu0 %v8035
      %8200 = vmatprep.subr.bf16.mxu0 %v8033
      %8201 = vmatpush2.bf16.msra.mxu0 %v8032
      %8202 = vmatprep.subr.bf16.mxu0 %v8030
      %8203 = vmatpush2.bf16.msra.mxu0 %v8029
      %8204 = vmatprep.subr.bf16.mxu0 %v8027
      %8205 = vmatpush2.bf16.msra.mxu0 %v8026
      %8206 = vmatprep.subr.bf16.mxu0 %v8024
      %8207 = vmatpush2.bf16.msra.mxu0 %v8023
      %8208 = vmatprep.subr.bf16.mxu0 %v8021
      %8209 = vmatpush2.bf16.msra.mxu0 %v8020
      %8210 = vmatprep.subr.bf16.mxu0 %v8018
      %8211 = vmatpush2.bf16.msra.mxu0 %v8017
      %8212 = vmatprep.subr.bf16.mxu0 %v8015
      %8213 = vmatpush2.bf16.msra.mxu0 %v8014
      %8214 = vmatprep.mubr.bf16.mxu0 %v7639
      %8215 = vmatmul.mubr.bf16.gmra.mxu0 %v7638
      %v8216 = vpop.f32.mrf.mxu0
      %v8217 = vadd.f32 0.0, %v8216
      %v8218 = vpop.f32.mrf.mxu0
      %v8219 = vadd.f32 0.0, %v8218
      %v8220 = vpop.f32.mrf.mxu0
      %v8221 = vadd.f32 0.0, %v8220
      %v8222 = vpop.f32.mrf.mxu0
      %v8223 = vadd.f32 0.0, %v8222
      %8224 = vmatprep.mubr.bf16.mxu0 %v7643
      %8225 = vmatmul.mubr.bf16.gmra.mxu0 %v7642
      %v8226 = vpop.f32.mrf.mxu0
      %v8227 = vadd.f32 0.0, %v8226
      %v8228 = vpop.f32.mrf.mxu0
      %v8229 = vadd.f32 0.0, %v8228
      %v8230 = vpop.f32.mrf.mxu0
      %v8231 = vadd.f32 0.0, %v8230
      %v8232 = vpop.f32.mrf.mxu0
      %v8233 = vadd.f32 0.0, %v8232
      %8234 = vmatprep.mubr.bf16.mxu0 %v7647
      %8235 = vmatmul.mubr.bf16.gmra.mxu0 %v7646
      %v8236 = vpop.f32.mrf.mxu0
      %v8237 = vadd.f32 0.0, %v8236
      %v8238 = vpop.f32.mrf.mxu0
      %v8239 = vadd.f32 0.0, %v8238
      %v8240 = vpop.f32.mrf.mxu0
      %v8241 = vadd.f32 0.0, %v8240
      %v8242 = vpop.f32.mrf.mxu0
      %v8243 = vadd.f32 0.0, %v8242
      %8244 = vmatprep.mubr.bf16.mxu0 %v7651
      %8245 = vmatmul.mubr.bf16.gmra.mxu0 %v7650
      %v8246 = vpop.f32.mrf.mxu0
      %v8247 = vadd.f32 0.0, %v8246
      %v8248 = vpop.f32.mrf.mxu0
      %v8249 = vadd.f32 0.0, %v8248
      %v8250 = vpop.f32.mrf.mxu0
      %v8251 = vadd.f32 0.0, %v8250
      %v8252 = vpop.f32.mrf.mxu0
      %v8253 = vadd.f32 0.0, %v8252
      %8254 = vdwg.mxu0
      %8255 = vmatprep.subr.bf16.mxu0 %v8060
      %8256 = vmatpush1.bf16.msra.mxu0 %v8059
      %8257 = vmatprep.subr.bf16.mxu0 %v8057
      %8258 = vmatpush1.bf16.msra.mxu0 %v8056
      %8259 = vmatprep.subr.bf16.mxu0 %v8054
      %8260 = vmatpush1.bf16.msra.mxu0 %v8053
      %8261 = vmatprep.subr.bf16.mxu0 %v8051
      %8262 = vmatpush1.bf16.msra.mxu0 %v8050
      %8263 = vmatprep.subr.bf16.mxu0 %v8048
      %8264 = vmatpush1.bf16.msra.mxu0 %v8047
      %8265 = vmatprep.subr.bf16.mxu0 %v8045
      %8266 = vmatpush1.bf16.msra.mxu0 %v8044
      %8267 = vmatprep.subr.bf16.mxu0 %v8042
      %8268 = vmatpush1.bf16.msra.mxu0 %v8041
      %8269 = vmatprep.subr.bf16.mxu0 %v8039
      %8270 = vmatpush1.bf16.msra.mxu0 %v8038
      %8271 = vmatprep.subr.bf16.mxu0 %v8084
      %8272 = vmatpush2.bf16.msra.mxu0 %v8083
      %8273 = vmatprep.subr.bf16.mxu0 %v8081
      %8274 = vmatpush2.bf16.msra.mxu0 %v8080
      %8275 = vmatprep.subr.bf16.mxu0 %v8078
      %8276 = vmatpush2.bf16.msra.mxu0 %v8077
      %8277 = vmatprep.subr.bf16.mxu0 %v8075
      %8278 = vmatpush2.bf16.msra.mxu0 %v8074
      %8279 = vmatprep.subr.bf16.mxu0 %v8072
      %8280 = vmatpush2.bf16.msra.mxu0 %v8071
      %8281 = vmatprep.subr.bf16.mxu0 %v8069
      %8282 = vmatpush2.bf16.msra.mxu0 %v8068
      %8283 = vmatprep.subr.bf16.mxu0 %v8066
      %8284 = vmatpush2.bf16.msra.mxu0 %v8065
      %8285 = vmatprep.subr.bf16.mxu0 %v8063
      %8286 = vmatpush2.bf16.msra.mxu0 %v8062
      %8287 = vmatprep.mubr.bf16.mxu0 %v7641
      %8288 = vmatmul.mubr.bf16.gmra.mxu0 %v7640
      %v8289 = vpop.f32.mrf.mxu0
      %v8290 = vadd.f32 %v8217, %v8289
      %v8291 = vpop.f32.mrf.mxu0
      %v8292 = vadd.f32 %v8219, %v8291
      %v8293 = vpop.f32.mrf.mxu0
      %v8294 = vadd.f32 %v8221, %v8293
      %v8295 = vpop.f32.mrf.mxu0
      %v8296 = vadd.f32 %v8223, %v8295
      %8297 = vmatprep.mubr.bf16.mxu0 %v7645
      %8298 = vmatmul.mubr.bf16.gmra.mxu0 %v7644
      %v8299 = vpop.f32.mrf.mxu0
      %v8300 = vadd.f32 %v8227, %v8299
      %v8301 = vpop.f32.mrf.mxu0
      %v8302 = vadd.f32 %v8229, %v8301
      %v8303 = vpop.f32.mrf.mxu0
      %v8304 = vadd.f32 %v8231, %v8303
      %v8305 = vpop.f32.mrf.mxu0
      %v8306 = vadd.f32 %v8233, %v8305
      %8307 = vmatprep.mubr.bf16.mxu0 %v7649
      %8308 = vmatmul.mubr.bf16.gmra.mxu0 %v7648
      %v8309 = vpop.f32.mrf.mxu0
      %v8310 = vadd.f32 %v8237, %v8309
      %v8311 = vpop.f32.mrf.mxu0
      %v8312 = vadd.f32 %v8239, %v8311
      %v8313 = vpop.f32.mrf.mxu0
      %v8314 = vadd.f32 %v8241, %v8313
      %v8315 = vpop.f32.mrf.mxu0
      %v8316 = vadd.f32 %v8243, %v8315
      %8317 = vmatprep.mubr.bf16.mxu0 %v7653
      %8318 = vmatmul.mubr.bf16.gmra.mxu0 %v7652
      %v8319 = vpop.f32.mrf.mxu0
      %v8320 = vadd.f32 %v8247, %v8319
      %v8321 = vpop.f32.mrf.mxu0
      %v8322 = vadd.f32 %v8249, %v8321
      %v8323 = vpop.f32.mrf.mxu0
      %v8324 = vadd.f32 %v8251, %v8323
      %v8325 = vpop.f32.mrf.mxu0
      %v8326 = vadd.f32 %v8253, %v8325
      %8327 = vdwg.mxu0
      %8328 = vmatprep.subr.bf16.mxu0 0
      %8329 = vmatpush1.bf16.msra.mxu0 %v8013
      %8330 = vmatprep.subr.bf16.mxu0 0
      %8331 = vmatpush1.bf16.msra.mxu0 %v8010
      %8332 = vmatprep.subr.bf16.mxu0 0
      %8333 = vmatpush1.bf16.msra.mxu0 %v8007
      %8334 = vmatprep.subr.bf16.mxu0 0
      %8335 = vmatpush1.bf16.msra.mxu0 %v8004
      %8336 = vmatprep.subr.bf16.mxu0 0
      %8337 = vmatpush1.bf16.msra.mxu0 %v8001
      %8338 = vmatprep.subr.bf16.mxu0 0
      %8339 = vmatpush1.bf16.msra.mxu0 %v7998
      %8340 = vmatprep.subr.bf16.mxu0 0
      %8341 = vmatpush1.bf16.msra.mxu0 %v7995
      %8342 = vmatprep.subr.bf16.mxu0 0
      %8343 = vmatpush1.bf16.msra.mxu0 %v7992
      %8344 = vmatprep.subr.bf16.mxu0 0
      %8345 = vmatpush2.bf16.msra.mxu0 %v8037
      %8346 = vmatprep.subr.bf16.mxu0 0
      %8347 = vmatpush2.bf16.msra.mxu0 %v8034
      %8348 = vmatprep.subr.bf16.mxu0 0
      %8349 = vmatpush2.bf16.msra.mxu0 %v8031
      %8350 = vmatprep.subr.bf16.mxu0 0
      %8351 = vmatpush2.bf16.msra.mxu0 %v8028
      %8352 = vmatprep.subr.bf16.mxu0 0
      %8353 = vmatpush2.bf16.msra.mxu0 %v8025
      %8354 = vmatprep.subr.bf16.mxu0 0
      %8355 = vmatpush2.bf16.msra.mxu0 %v8022
      %8356 = vmatprep.subr.bf16.mxu0 0
      %8357 = vmatpush2.bf16.msra.mxu0 %v8019
      %8358 = vmatprep.subr.bf16.mxu0 0
      %8359 = vmatpush2.bf16.msra.mxu0 %v8016
      %8360 = vmatprep.mubr.bf16.mxu0 %v7639
      %8361 = vmatmul.mubr.bf16.gmra.mxu0 %v7638
      %v8362 = vpop.f32.mrf.mxu0
      %v8363 = vadd.f32 0.0, %v8362
      %v8364 = vpop.f32.mrf.mxu0
      %v8365 = vpop.f32.mrf.mxu0
      %v8366 = vadd.f32 0.0, %v8365
      %v8367 = vpop.f32.mrf.mxu0
      %8368 = vmatprep.mubr.bf16.mxu0 %v7643
      %8369 = vmatmul.mubr.bf16.gmra.mxu0 %v7642
      %v8370 = vpop.f32.mrf.mxu0
      %v8371 = vadd.f32 0.0, %v8370
      %v8372 = vpop.f32.mrf.mxu0
      %v8373 = vpop.f32.mrf.mxu0
      %v8374 = vadd.f32 0.0, %v8373
      %v8375 = vpop.f32.mrf.mxu0
      %8376 = vmatprep.mubr.bf16.mxu0 %v7647
      %8377 = vmatmul.mubr.bf16.gmra.mxu0 %v7646
      %v8378 = vpop.f32.mrf.mxu0
      %v8379 = vadd.f32 0.0, %v8378
      %v8380 = vpop.f32.mrf.mxu0
      %v8381 = vpop.f32.mrf.mxu0
      %v8382 = vadd.f32 0.0, %v8381
      %v8383 = vpop.f32.mrf.mxu0
      %8384 = vmatprep.mubr.bf16.mxu0 %v7651
      %8385 = vmatmul.mubr.bf16.gmra.mxu0 %v7650
      %v8386 = vpop.f32.mrf.mxu0
      %v8387 = vadd.f32 0.0, %v8386
      %v8388 = vpop.f32.mrf.mxu0
      %v8389 = vpop.f32.mrf.mxu0
      %v8390 = vadd.f32 0.0, %v8389
      %v8391 = vpop.f32.mrf.mxu0
      %8392 = vdwg.mxu0
      %8393 = vmatprep.subr.bf16.mxu0 0
      %8394 = vmatpush1.bf16.msra.mxu0 %v8061
      %8395 = vmatprep.subr.bf16.mxu0 0
      %8396 = vmatpush1.bf16.msra.mxu0 %v8058
      %8397 = vmatprep.subr.bf16.mxu0 0
      %8398 = vmatpush1.bf16.msra.mxu0 %v8055
      %8399 = vmatprep.subr.bf16.mxu0 0
      %8400 = vmatpush1.bf16.msra.mxu0 %v8052
      %8401 = vmatprep.subr.bf16.mxu0 0
      %8402 = vmatpush1.bf16.msra.mxu0 %v8049
      %8403 = vmatprep.subr.bf16.mxu0 0
      %8404 = vmatpush1.bf16.msra.mxu0 %v8046
      %8405 = vmatprep.subr.bf16.mxu0 0
      %8406 = vmatpush1.bf16.msra.mxu0 %v8043
      %8407 = vmatprep.subr.bf16.mxu0 0
      %8408 = vmatpush1.bf16.msra.mxu0 %v8040
      %8409 = vmatprep.subr.bf16.mxu0 0
      %8410 = vmatpush2.bf16.msra.mxu0 %v8085
      %8411 = vmatprep.subr.bf16.mxu0 0
      %8412 = vmatpush2.bf16.msra.mxu0 %v8082
      %8413 = vmatprep.subr.bf16.mxu0 0
      %8414 = vmatpush2.bf16.msra.mxu0 %v8079
      %8415 = vmatprep.subr.bf16.mxu0 0
      %8416 = vmatpush2.bf16.msra.mxu0 %v8076
      %8417 = vmatprep.subr.bf16.mxu0 0
      %8418 = vmatpush2.bf16.msra.mxu0 %v8073
      %8419 = vmatprep.subr.bf16.mxu0 0
      %8420 = vmatpush2.bf16.msra.mxu0 %v8070
      %8421 = vmatprep.subr.bf16.mxu0 0
      %8422 = vmatpush2.bf16.msra.mxu0 %v8067
      %8423 = vmatprep.subr.bf16.mxu0 0
      %8424 = vmatpush2.bf16.msra.mxu0 %v8064
      %8425 = vmatprep.mubr.bf16.mxu0 %v7641
      %8426 = vmatmul.mubr.bf16.gmra.mxu0 %v7640
      %v8427 = vpop.f32.mrf.mxu0
      %v8428 = vadd.f32 %v8363, %v8427
      %v8429 = vpop.f32.mrf.mxu0
      %v8430 = vpop.f32.mrf.mxu0
      %v8431 = vadd.f32 %v8366, %v8430
      %v8432 = vpop.f32.mrf.mxu0
      %8433 = vmatprep.mubr.bf16.mxu0 %v7645
      %8434 = vmatmul.mubr.bf16.gmra.mxu0 %v7644
      %v8435 = vpop.f32.mrf.mxu0
      %v8436 = vadd.f32 %v8371, %v8435
      %v8437 = vpop.f32.mrf.mxu0
      %v8438 = vpop.f32.mrf.mxu0
      %v8439 = vadd.f32 %v8374, %v8438
      %v8440 = vpop.f32.mrf.mxu0
      %8441 = vmatprep.mubr.bf16.mxu0 %v7649
      %8442 = vmatmul.mubr.bf16.gmra.mxu0 %v7648
      %v8443 = vpop.f32.mrf.mxu0
      %v8444 = vadd.f32 %v8379, %v8443
      %v8445 = vpop.f32.mrf.mxu0
      %v8446 = vpop.f32.mrf.mxu0
      %v8447 = vadd.f32 %v8382, %v8446
      %v8448 = vpop.f32.mrf.mxu0
      %8449 = vmatprep.mubr.bf16.mxu0 %v7653
      %8450 = vmatmul.mubr.bf16.gmra.mxu0 %v7652
      %v8451 = vpop.f32.mrf.mxu0
      %v8452 = vadd.f32 %v8387, %v8451
      %v8453 = vpop.f32.mrf.mxu0
      %v8454 = vpop.f32.mrf.mxu0
      %v8455 = vadd.f32 %v8390, %v8454
      %v8456 = vpop.f32.mrf.mxu0
      %8457 = vdwg.mxu0
      %v8458 = vadd.f32 %v7469, %v8290
      %v8459 = vadd.f32 %v7470, %v8292
      %v8460 = vadd.f32 %v7471, %v8428
      %v8461 = vadd.f32 %v7472, %v8294
      %v8462 = vadd.f32 %v7473, %v8296
      %v8463 = vadd.f32 %v7474, %v8431
      %v8464 = vadd.f32 %v7475, %v8300
      %v8465 = vadd.f32 %v7476, %v8302
      %v8466 = vadd.f32 %v7477, %v8436
      %v8467 = vadd.f32 %v7478, %v8304
      %v8468 = vadd.f32 %v7479, %v8306
      %v8469 = vadd.f32 %v7480, %v8439
      %v8470 = vadd.f32 %v7481, %v8310
      %v8471 = vadd.f32 %v7482, %v8312
      %v8472 = vadd.f32 %v7483, %v8444
      %v8473 = vadd.f32 %v7484, %v8314
      %v8474 = vadd.f32 %v7485, %v8316
      %v8475 = vadd.f32 %v7486, %v8447
      %v8476 = vadd.f32 %v7487, %v8320
      %v8477 = vadd.f32 %v7488, %v8322
      %v8478 = vadd.f32 %v7489, %v8452
      %v8479 = vadd.f32 %v7490, %v8324
      %v8480 = vadd.f32 %v7491, %v8326
      %v8481 = vadd.f32 %v7492, %v8455
      %v8486 = vrot.slane %v6387, 5
      %v8487 = vrot.slane %v8486, 4
      %v8488 = vrot.slane %v3149, 5
      %v8489 = vsel %vm6423, %v8487, %v8488
      %v8490 = vrot.slane %v6388, 5
      %v8491 = vrot.slane %v8490, 4
      %v8492 = vrot.slane %v3150, 5
      %v8493 = vsel %vm6423, %v8491, %v8492
      %s8494 = scalar_lea.vmem %s1, 6144
      %v8495 = vld [vmem:[%s8494] sm:$0xff]
      %v8496 = vld [vmem:[%s8494 + $0x8] sm:$0xf]
      %v8497 = vld [vmem:[%s8494 + $0xc] sm:$0xff]
      %v8498 = vld [vmem:[%s8494 + $0x14] sm:$0xf]
      %v8499 = vld [vmem:[%s8494 + $0x18] sm:$0xff]
      %v8500 = vld [vmem:[%s8494 + $0x20] sm:$0xf]
      %v8501 = vld [vmem:[%s8494 + $0x24] sm:$0xff]
      %v8502 = vld [vmem:[%s8494 + $0x2c] sm:$0xf]
      %v8503 = vld [vmem:[%s8494 + $0x30] sm:$0xff]
      %v8504 = vld [vmem:[%s8494 + $0x38] sm:$0xf]
      %v8505 = vld [vmem:[%s8494 + $0x3c] sm:$0xff]
      %v8506 = vld [vmem:[%s8494 + $0x44] sm:$0xf]
      %v8507 = vld [vmem:[%s8494 + $0x48] sm:$0xff]
      %v8508 = vld [vmem:[%s8494 + $0x50] sm:$0xf]
      %v8509 = vld [vmem:[%s8494 + $0x54] sm:$0xff]
      %v8510 = vld [vmem:[%s8494 + $0x5c] sm:$0xf]
      %v8511 = vld [vmem:[%s8494 + $0x60] sm:$0xff]
      %v8512 = vld [vmem:[%s8494 + $0x68] sm:$0xf]
      %v8513 = vld [vmem:[%s8494 + $0x6c] sm:$0xff]
      %v8514 = vld [vmem:[%s8494 + $0x74] sm:$0xf]
      %v8515 = vld [vmem:[%s8494 + $0x78] sm:$0xff]
      %v8516 = vld [vmem:[%s8494 + $0x80] sm:$0xf]
      %v8517 = vld [vmem:[%s8494 + $0x84] sm:$0xff]
      %v8518 = vld [vmem:[%s8494 + $0x8c] sm:$0xf]
      %v8519 = vld [vmem:[%s8494 + $0x90] sm:$0xff]
      %v8520 = vld [vmem:[%s8494 + $0x98] sm:$0xf]
      %v8521 = vld [vmem:[%s8494 + $0x9c] sm:$0xff]
      %v8522 = vld [vmem:[%s8494 + $0xa4] sm:$0xf]
      %v8523 = vld [vmem:[%s8494 + $0xa8] sm:$0xff]
      %v8524 = vld [vmem:[%s8494 + $0xb0] sm:$0xf]
      %v8525 = vld [vmem:[%s8494 + $0xb4] sm:$0xff]
      %v8526 = vld [vmem:[%s8494 + $0xbc] sm:$0xf]
      %v8527 = vld [vmem:[%s8494 + $0xc0] sm:$0xff]
      %v8528 = vld [vmem:[%s8494 + $0xc8] sm:$0xf]
      %v8529 = vld [vmem:[%s8494 + $0xcc] sm:$0xff]
      %v8530 = vld [vmem:[%s8494 + $0xd4] sm:$0xf]
      %v8531 = vld [vmem:[%s8494 + $0xd8] sm:$0xff]
      %v8532 = vld [vmem:[%s8494 + $0xe0] sm:$0xf]
      %v8533 = vld [vmem:[%s8494 + $0xe4] sm:$0xff]
      %v8534 = vld [vmem:[%s8494 + $0xec] sm:$0xf]
      %v8535 = vld [vmem:[%s8494 + $0xf0] sm:$0xff]
      %v8536 = vld [vmem:[%s8494 + $0xf8] sm:$0xf]
      %v8537 = vld [vmem:[%s8494 + $0xfc] sm:$0xff]
      %v8538 = vld [vmem:[%s8494 + $0x104] sm:$0xf]
      %v8539 = vld [vmem:[%s8494 + $0x108] sm:$0xff]
      %v8540 = vld [vmem:[%s8494 + $0x110] sm:$0xf]
      %v8541 = vld [vmem:[%s8494 + $0x114] sm:$0xff]
      %v8542 = vld [vmem:[%s8494 + $0x11c] sm:$0xf]
      %v8543 = vld [vmem:[%s8494 + $0x120] sm:$0xff]
      %v8544 = vld [vmem:[%s8494 + $0x128] sm:$0xf]
      %v8545 = vld [vmem:[%s8494 + $0x12c] sm:$0xff]
      %v8546 = vld [vmem:[%s8494 + $0x134] sm:$0xf]
      %v8547 = vld [vmem:[%s8494 + $0x138] sm:$0xff]
      %v8548 = vld [vmem:[%s8494 + $0x140] sm:$0xf]
      %v8549 = vld [vmem:[%s8494 + $0x144] sm:$0xff]
      %v8550 = vld [vmem:[%s8494 + $0x14c] sm:$0xf]
      %v8551 = vld [vmem:[%s8494 + $0x150] sm:$0xff]
      %v8552 = vld [vmem:[%s8494 + $0x158] sm:$0xf]
      %v8553 = vld [vmem:[%s8494 + $0x15c] sm:$0xff]
      %v8554 = vld [vmem:[%s8494 + $0x164] sm:$0xf]
      %v8555 = vld [vmem:[%s8494 + $0x168] sm:$0xff]
      %v8556 = vld [vmem:[%s8494 + $0x170] sm:$0xf]
      %v8557 = vld [vmem:[%s8494 + $0x174] sm:$0xff]
      %v8558 = vld [vmem:[%s8494 + $0x17c] sm:$0xf]
      %v8559 = vld [vmem:[%s8494 + $0x180] sm:$0xff]
      %v8560 = vld [vmem:[%s8494 + $0x188] sm:$0xf]
      %v8561 = vld [vmem:[%s8494 + $0x18c] sm:$0xff]
      %v8562 = vld [vmem:[%s8494 + $0x194] sm:$0xf]
      %v8563 = vld [vmem:[%s8494 + $0x198] sm:$0xff]
      %v8564 = vld [vmem:[%s8494 + $0x1a0] sm:$0xf]
      %v8565 = vld [vmem:[%s8494 + $0x1a4] sm:$0xff]
      %v8566 = vld [vmem:[%s8494 + $0x1ac] sm:$0xf]
      %v8567 = vld [vmem:[%s8494 + $0x1b0] sm:$0xff]
      %v8568 = vld [vmem:[%s8494 + $0x1b8] sm:$0xf]
      %v8569 = vld [vmem:[%s8494 + $0x1bc] sm:$0xff]
      %v8570 = vld [vmem:[%s8494 + $0x1c4] sm:$0xf]
      %v8571 = vld [vmem:[%s8494 + $0x1c8] sm:$0xff]
      %v8572 = vld [vmem:[%s8494 + $0x1d0] sm:$0xf]
      %v8573 = vld [vmem:[%s8494 + $0x1d4] sm:$0xff]
      %v8574 = vld [vmem:[%s8494 + $0x1dc] sm:$0xf]
      %v8575 = vld [vmem:[%s8494 + $0x1e0] sm:$0xff]
      %v8576 = vld [vmem:[%s8494 + $0x1e8] sm:$0xf]
      %v8577 = vld [vmem:[%s8494 + $0x1ec] sm:$0xff]
      %v8578 = vld [vmem:[%s8494 + $0x1f4] sm:$0xf]
      %v8579 = vld [vmem:[%s8494 + $0x1f8] sm:$0xff]
      %v8580 = vld [vmem:[%s8494 + $0x200] sm:$0xf]
      %v8581 = vld [vmem:[%s8494 + $0x204] sm:$0xff]
      %v8582 = vld [vmem:[%s8494 + $0x20c] sm:$0xf]
      %v8583 = vld [vmem:[%s8494 + $0x210] sm:$0xff]
      %v8584 = vld [vmem:[%s8494 + $0x218] sm:$0xf]
      %v8585 = vld [vmem:[%s8494 + $0x21c] sm:$0xff]
      %v8586 = vld [vmem:[%s8494 + $0x224] sm:$0xf]
      %v8587 = vld [vmem:[%s8494 + $0x228] sm:$0xff]
      %v8588 = vld [vmem:[%s8494 + $0x230] sm:$0xf]
      %v8589 = vld [vmem:[%s8494 + $0x234] sm:$0xff]
      %v8590 = vld [vmem:[%s8494 + $0x23c] sm:$0xf]
      %v8591 = vld [vmem:[%s8494 + $0x240] sm:$0xff]
      %v8592 = vld [vmem:[%s8494 + $0x248] sm:$0xf]
      %v8593 = vld [vmem:[%s8494 + $0x24c] sm:$0xff]
      %v8594 = vld [vmem:[%s8494 + $0x254] sm:$0xf]
      %v8595 = vld [vmem:[%s8494 + $0x258] sm:$0xff]
      %v8596 = vld [vmem:[%s8494 + $0x260] sm:$0xf]
      %v8597 = vld [vmem:[%s8494 + $0x264] sm:$0xff]
      %v8598 = vld [vmem:[%s8494 + $0x26c] sm:$0xf]
      %v8599 = vld [vmem:[%s8494 + $0x270] sm:$0xff]
      %v8600 = vld [vmem:[%s8494 + $0x278] sm:$0xf]
      %v8601 = vld [vmem:[%s8494 + $0x27c] sm:$0xff]
      %v8602 = vld [vmem:[%s8494 + $0x284] sm:$0xf]
      %v8603 = vld [vmem:[%s8494 + $0x288] sm:$0xff]
      %v8604 = vld [vmem:[%s8494 + $0x290] sm:$0xf]
      %v8605 = vld [vmem:[%s8494 + $0x294] sm:$0xff]
      %v8606 = vld [vmem:[%s8494 + $0x29c] sm:$0xf]
      %v8607 = vld [vmem:[%s8494 + $0x2a0] sm:$0xff]
      %v8608 = vld [vmem:[%s8494 + $0x2a8] sm:$0xf]
      %v8609 = vld [vmem:[%s8494 + $0x2ac] sm:$0xff]
      %v8610 = vld [vmem:[%s8494 + $0x2b4] sm:$0xf]
      %v8611 = vld [vmem:[%s8494 + $0x2b8] sm:$0xff]
      %v8612 = vld [vmem:[%s8494 + $0x2c0] sm:$0xf]
      %v8613 = vld [vmem:[%s8494 + $0x2c4] sm:$0xff]
      %v8614 = vld [vmem:[%s8494 + $0x2cc] sm:$0xf]
      %v8615 = vld [vmem:[%s8494 + $0x2d0] sm:$0xff]
      %v8616 = vld [vmem:[%s8494 + $0x2d8] sm:$0xf]
      %v8617 = vld [vmem:[%s8494 + $0x2dc] sm:$0xff]
      %v8618 = vld [vmem:[%s8494 + $0x2e4] sm:$0xf]
      %v8619 = vld [vmem:[%s8494 + $0x2e8] sm:$0xff]
      %v8620 = vld [vmem:[%s8494 + $0x2f0] sm:$0xf]
      %v8621 = vld [vmem:[%s8494 + $0x2f4] sm:$0xff]
      %v8622 = vld [vmem:[%s8494 + $0x2fc] sm:$0xf]
      %v8623 = vunpack.c.l.b16 %v8489
      %v8624 = vunpack.c.h.b16 %v8489
      %v8625 = vunpack.c.l.b16 %v8493
      %v8626 = vunpack.c.h.b16 %v8493
      %v8627 = vpack.c.b16 %v8623, %v7634
      %v8628 = vpack.c.b16 %v8624, %v7635
      %v8629 = vpack.c.b16 %v8625, %v7636
      %v8630 = vpack.c.b16 %v8626, %v7637
      %v8763 = vunpack.c.l.b16 %v8495
      %v8764 = vunpack.c.h.b16 %v8495
      %v8765 = vunpack.c.l.b16 %v8496
      %v8766 = vunpack.c.l.b16 %v8497
      %v8767 = vunpack.c.h.b16 %v8497
      %v8768 = vunpack.c.l.b16 %v8498
      %v8769 = vunpack.c.l.b16 %v8499
      %v8770 = vunpack.c.h.b16 %v8499
      %v8771 = vunpack.c.l.b16 %v8500
      %v8772 = vunpack.c.l.b16 %v8501
      %v8773 = vunpack.c.h.b16 %v8501
      %v8774 = vunpack.c.l.b16 %v8502
      %v8775 = vunpack.c.l.b16 %v8503
      %v8776 = vunpack.c.h.b16 %v8503
      %v8777 = vunpack.c.l.b16 %v8504
      %v8778 = vunpack.c.l.b16 %v8505
      %v8779 = vunpack.c.h.b16 %v8505
      %v8780 = vunpack.c.l.b16 %v8506
      %v8781 = vunpack.c.l.b16 %v8507
      %v8782 = vunpack.c.h.b16 %v8507
      %v8783 = vunpack.c.l.b16 %v8508
      %v8784 = vunpack.c.l.b16 %v8509
      %v8785 = vunpack.c.h.b16 %v8509
      %v8786 = vunpack.c.l.b16 %v8510
      %v8787 = vunpack.c.l.b16 %v8511
      %v8788 = vunpack.c.h.b16 %v8511
      %v8789 = vunpack.c.l.b16 %v8512
      %v8790 = vunpack.c.l.b16 %v8513
      %v8791 = vunpack.c.h.b16 %v8513
      %v8792 = vunpack.c.l.b16 %v8514
      %v8793 = vunpack.c.l.b16 %v8515
      %v8794 = vunpack.c.h.b16 %v8515
      %v8795 = vunpack.c.l.b16 %v8516
      %v8796 = vunpack.c.l.b16 %v8517
      %v8797 = vunpack.c.h.b16 %v8517
      %v8798 = vunpack.c.l.b16 %v8518
      %v8799 = vunpack.c.l.b16 %v8519
      %v8800 = vunpack.c.h.b16 %v8519
      %v8801 = vunpack.c.l.b16 %v8520
      %v8802 = vunpack.c.l.b16 %v8521
      %v8803 = vunpack.c.h.b16 %v8521
      %v8804 = vunpack.c.l.b16 %v8522
      %v8805 = vunpack.c.l.b16 %v8523
      %v8806 = vunpack.c.h.b16 %v8523
      %v8807 = vunpack.c.l.b16 %v8524
      %v8808 = vunpack.c.l.b16 %v8525
      %v8809 = vunpack.c.h.b16 %v8525
      %v8810 = vunpack.c.l.b16 %v8526
      %v8811 = vunpack.c.l.b16 %v8527
      %v8812 = vunpack.c.h.b16 %v8527
      %v8813 = vunpack.c.l.b16 %v8528
      %v8814 = vunpack.c.l.b16 %v8529
      %v8815 = vunpack.c.h.b16 %v8529
      %v8816 = vunpack.c.l.b16 %v8530
      %v8817 = vunpack.c.l.b16 %v8531
      %v8818 = vunpack.c.h.b16 %v8531
      %v8819 = vunpack.c.l.b16 %v8532
      %v8820 = vunpack.c.l.b16 %v8533
      %v8821 = vunpack.c.h.b16 %v8533
      %v8822 = vunpack.c.l.b16 %v8534
      %v8823 = vunpack.c.l.b16 %v8535
      %v8824 = vunpack.c.h.b16 %v8535
      %v8825 = vunpack.c.l.b16 %v8536
      %v8826 = vunpack.c.l.b16 %v8537
      %v8827 = vunpack.c.h.b16 %v8537
      %v8828 = vunpack.c.l.b16 %v8538
      %v8829 = vunpack.c.l.b16 %v8539
      %v8830 = vunpack.c.h.b16 %v8539
      %v8831 = vunpack.c.l.b16 %v8540
      %v8832 = vunpack.c.l.b16 %v8541
      %v8833 = vunpack.c.h.b16 %v8541
      %v8834 = vunpack.c.l.b16 %v8542
      %v8835 = vunpack.c.l.b16 %v8543
      %v8836 = vunpack.c.h.b16 %v8543
      %v8837 = vunpack.c.l.b16 %v8544
      %v8838 = vunpack.c.l.b16 %v8545
      %v8839 = vunpack.c.h.b16 %v8545
      %v8840 = vunpack.c.l.b16 %v8546
      %v8841 = vunpack.c.l.b16 %v8547
      %v8842 = vunpack.c.h.b16 %v8547
      %v8843 = vunpack.c.l.b16 %v8548
      %v8844 = vunpack.c.l.b16 %v8549
      %v8845 = vunpack.c.h.b16 %v8549
      %v8846 = vunpack.c.l.b16 %v8550
      %v8847 = vunpack.c.l.b16 %v8551
      %v8848 = vunpack.c.h.b16 %v8551
      %v8849 = vunpack.c.l.b16 %v8552
      %v8850 = vunpack.c.l.b16 %v8553
      %v8851 = vunpack.c.h.b16 %v8553
      %v8852 = vunpack.c.l.b16 %v8554
      %v8853 = vunpack.c.l.b16 %v8555
      %v8854 = vunpack.c.h.b16 %v8555
      %v8855 = vunpack.c.l.b16 %v8556
      %v8856 = vunpack.c.l.b16 %v8557
      %v8857 = vunpack.c.h.b16 %v8557
      %v8858 = vunpack.c.l.b16 %v8558
      %v8859 = vunpack.c.l.b16 %v8559
      %v8860 = vunpack.c.h.b16 %v8559
      %v8861 = vunpack.c.l.b16 %v8560
      %v8862 = vunpack.c.l.b16 %v8561
      %v8863 = vunpack.c.h.b16 %v8561
      %v8864 = vunpack.c.l.b16 %v8562
      %v8865 = vunpack.c.l.b16 %v8563
      %v8866 = vunpack.c.h.b16 %v8563
      %v8867 = vunpack.c.l.b16 %v8564
      %v8868 = vunpack.c.l.b16 %v8565
      %v8869 = vunpack.c.h.b16 %v8565
      %v8870 = vunpack.c.l.b16 %v8566
      %v8871 = vunpack.c.l.b16 %v8567
      %v8872 = vunpack.c.h.b16 %v8567
      %v8873 = vunpack.c.l.b16 %v8568
      %v8874 = vunpack.c.l.b16 %v8569
      %v8875 = vunpack.c.h.b16 %v8569
      %v8876 = vunpack.c.l.b16 %v8570
      %v8877 = vunpack.c.l.b16 %v8571
      %v8878 = vunpack.c.h.b16 %v8571
      %v8879 = vunpack.c.l.b16 %v8572
      %v8880 = vunpack.c.l.b16 %v8573
      %v8881 = vunpack.c.h.b16 %v8573
      %v8882 = vunpack.c.l.b16 %v8574
      %v8883 = vunpack.c.l.b16 %v8575
      %v8884 = vunpack.c.h.b16 %v8575
      %v8885 = vunpack.c.l.b16 %v8576
      %v8886 = vunpack.c.l.b16 %v8577
      %v8887 = vunpack.c.h.b16 %v8577
      %v8888 = vunpack.c.l.b16 %v8578
      %v8889 = vunpack.c.l.b16 %v8579
      %v8890 = vunpack.c.h.b16 %v8579
      %v8891 = vunpack.c.l.b16 %v8580
      %v8892 = vunpack.c.l.b16 %v8581
      %v8893 = vunpack.c.h.b16 %v8581
      %v8894 = vunpack.c.l.b16 %v8582
      %v8895 = vunpack.c.l.b16 %v8583
      %v8896 = vunpack.c.h.b16 %v8583
      %v8897 = vunpack.c.l.b16 %v8584
      %v8898 = vunpack.c.l.b16 %v8585
      %v8899 = vunpack.c.h.b16 %v8585
      %v8900 = vunpack.c.l.b16 %v8586
      %v8901 = vunpack.c.l.b16 %v8587
      %v8902 = vunpack.c.h.b16 %v8587
      %v8903 = vunpack.c.l.b16 %v8588
      %v8904 = vunpack.c.l.b16 %v8589
      %v8905 = vunpack.c.h.b16 %v8589
      %v8906 = vunpack.c.l.b16 %v8590
      %v8907 = vunpack.c.l.b16 %v8591
      %v8908 = vunpack.c.h.b16 %v8591
      %v8909 = vunpack.c.l.b16 %v8592
      %v8910 = vunpack.c.l.b16 %v8593
      %v8911 = vunpack.c.h.b16 %v8593
      %v8912 = vunpack.c.l.b16 %v8594
      %v8913 = vunpack.c.l.b16 %v8595
      %v8914 = vunpack.c.h.b16 %v8595
      %v8915 = vunpack.c.l.b16 %v8596
      %v8916 = vunpack.c.l.b16 %v8597
      %v8917 = vunpack.c.h.b16 %v8597
      %v8918 = vunpack.c.l.b16 %v8598
      %v8919 = vunpack.c.l.b16 %v8599
      %v8920 = vunpack.c.h.b16 %v8599
      %v8921 = vunpack.c.l.b16 %v8600
      %v8922 = vunpack.c.l.b16 %v8601
      %v8923 = vunpack.c.h.b16 %v8601
      %v8924 = vunpack.c.l.b16 %v8602
      %v8925 = vunpack.c.l.b16 %v8603
      %v8926 = vunpack.c.h.b16 %v8603
      %v8927 = vunpack.c.l.b16 %v8604
      %v8928 = vunpack.c.l.b16 %v8605
      %v8929 = vunpack.c.h.b16 %v8605
      %v8930 = vunpack.c.l.b16 %v8606
      %v8931 = vunpack.c.l.b16 %v8607
      %v8932 = vunpack.c.h.b16 %v8607
      %v8933 = vunpack.c.l.b16 %v8608
      %v8934 = vunpack.c.l.b16 %v8609
      %v8935 = vunpack.c.h.b16 %v8609
      %v8936 = vunpack.c.l.b16 %v8610
      %v8937 = vunpack.c.l.b16 %v8611
      %v8938 = vunpack.c.h.b16 %v8611
      %v8939 = vunpack.c.l.b16 %v8612
      %v8940 = vunpack.c.l.b16 %v8613
      %v8941 = vunpack.c.h.b16 %v8613
      %v8942 = vunpack.c.l.b16 %v8614
      %v8943 = vunpack.c.l.b16 %v8615
      %v8944 = vunpack.c.h.b16 %v8615
      %v8945 = vunpack.c.l.b16 %v8616
      %v8946 = vunpack.c.l.b16 %v8617
      %v8947 = vunpack.c.h.b16 %v8617
      %v8948 = vunpack.c.l.b16 %v8618
      %v8949 = vunpack.c.l.b16 %v8619
      %v8950 = vunpack.c.h.b16 %v8619
      %v8951 = vunpack.c.l.b16 %v8620
      %v8952 = vunpack.c.l.b16 %v8621
      %v8953 = vunpack.c.h.b16 %v8621
      %v8954 = vunpack.c.l.b16 %v8622
      %v8955 = vpack.c.b16 %v8766, %v8763
      %v8956 = vpack.c.b16 %v8767, %v8764
      %v8957 = vpack.c.b16 %v8768, %v8765
      %v8958 = vpack.c.b16 %v8772, %v8769
      %v8959 = vpack.c.b16 %v8773, %v8770
      %v8960 = vpack.c.b16 %v8774, %v8771
      %v8961 = vpack.c.b16 %v8778, %v8775
      %v8962 = vpack.c.b16 %v8779, %v8776
      %v8963 = vpack.c.b16 %v8780, %v8777
      %v8964 = vpack.c.b16 %v8784, %v8781
      %v8965 = vpack.c.b16 %v8785, %v8782
      %v8966 = vpack.c.b16 %v8786, %v8783
      %v8967 = vpack.c.b16 %v8790, %v8787
      %v8968 = vpack.c.b16 %v8791, %v8788
      %v8969 = vpack.c.b16 %v8792, %v8789
      %v8970 = vpack.c.b16 %v8796, %v8793
      %v8971 = vpack.c.b16 %v8797, %v8794
      %v8972 = vpack.c.b16 %v8798, %v8795
      %v8973 = vpack.c.b16 %v8802, %v8799
      %v8974 = vpack.c.b16 %v8803, %v8800
      %v8975 = vpack.c.b16 %v8804, %v8801
      %v8976 = vpack.c.b16 %v8808, %v8805
      %v8977 = vpack.c.b16 %v8809, %v8806
      %v8978 = vpack.c.b16 %v8810, %v8807
      %v8979 = vpack.c.b16 %v8814, %v8811
      %v8980 = vpack.c.b16 %v8815, %v8812
      %v8981 = vpack.c.b16 %v8816, %v8813
      %v8982 = vpack.c.b16 %v8820, %v8817
      %v8983 = vpack.c.b16 %v8821, %v8818
      %v8984 = vpack.c.b16 %v8822, %v8819
      %v8985 = vpack.c.b16 %v8826, %v8823
      %v8986 = vpack.c.b16 %v8827, %v8824
      %v8987 = vpack.c.b16 %v8828, %v8825
      %v8988 = vpack.c.b16 %v8832, %v8829
      %v8989 = vpack.c.b16 %v8833, %v8830
      %v8990 = vpack.c.b16 %v8834, %v8831
      %v8991 = vpack.c.b16 %v8838, %v8835
      %v8992 = vpack.c.b16 %v8839, %v8836
      %v8993 = vpack.c.b16 %v8840, %v8837
      %v8994 = vpack.c.b16 %v8844, %v8841
      %v8995 = vpack.c.b16 %v8845, %v8842
      %v8996 = vpack.c.b16 %v8846, %v8843
      %v8997 = vpack.c.b16 %v8850, %v8847
      %v8998 = vpack.c.b16 %v8851, %v8848
      %v8999 = vpack.c.b16 %v8852, %v8849
      %v9000 = vpack.c.b16 %v8856, %v8853
      %v9001 = vpack.c.b16 %v8857, %v8854
      %v9002 = vpack.c.b16 %v8858, %v8855
      %v9003 = vpack.c.b16 %v8862, %v8859
      %v9004 = vpack.c.b16 %v8863, %v8860
      %v9005 = vpack.c.b16 %v8864, %v8861
      %v9006 = vpack.c.b16 %v8868, %v8865
      %v9007 = vpack.c.b16 %v8869, %v8866
      %v9008 = vpack.c.b16 %v8870, %v8867
      %v9009 = vpack.c.b16 %v8874, %v8871
      %v9010 = vpack.c.b16 %v8875, %v8872
      %v9011 = vpack.c.b16 %v8876, %v8873
      %v9012 = vpack.c.b16 %v8880, %v8877
      %v9013 = vpack.c.b16 %v8881, %v8878
      %v9014 = vpack.c.b16 %v8882, %v8879
      %v9015 = vpack.c.b16 %v8886, %v8883
      %v9016 = vpack.c.b16 %v8887, %v8884
      %v9017 = vpack.c.b16 %v8888, %v8885
      %v9018 = vpack.c.b16 %v8892, %v8889
      %v9019 = vpack.c.b16 %v8893, %v8890
      %v9020 = vpack.c.b16 %v8894, %v8891
      %v9021 = vpack.c.b16 %v8898, %v8895
      %v9022 = vpack.c.b16 %v8899, %v8896
      %v9023 = vpack.c.b16 %v8900, %v8897
      %v9024 = vpack.c.b16 %v8904, %v8901
      %v9025 = vpack.c.b16 %v8905, %v8902
      %v9026 = vpack.c.b16 %v8906, %v8903
      %v9027 = vpack.c.b16 %v8910, %v8907
      %v9028 = vpack.c.b16 %v8911, %v8908
      %v9029 = vpack.c.b16 %v8912, %v8909
      %v9030 = vpack.c.b16 %v8916, %v8913
      %v9031 = vpack.c.b16 %v8917, %v8914
      %v9032 = vpack.c.b16 %v8918, %v8915
      %v9033 = vpack.c.b16 %v8922, %v8919
      %v9034 = vpack.c.b16 %v8923, %v8920
      %v9035 = vpack.c.b16 %v8924, %v8921
      %v9036 = vpack.c.b16 %v8928, %v8925
      %v9037 = vpack.c.b16 %v8929, %v8926
      %v9038 = vpack.c.b16 %v8930, %v8927
      %v9039 = vpack.c.b16 %v8934, %v8931
      %v9040 = vpack.c.b16 %v8935, %v8932
      %v9041 = vpack.c.b16 %v8936, %v8933
      %v9042 = vpack.c.b16 %v8940, %v8937
      %v9043 = vpack.c.b16 %v8941, %v8938
      %v9044 = vpack.c.b16 %v8942, %v8939
      %v9045 = vpack.c.b16 %v8946, %v8943
      %v9046 = vpack.c.b16 %v8947, %v8944
      %v9047 = vpack.c.b16 %v8948, %v8945
      %v9048 = vpack.c.b16 %v8952, %v8949
      %v9049 = vpack.c.b16 %v8953, %v8950
      %v9050 = vpack.c.b16 %v8954, %v8951
      %9147 = vmatprep.subr.bf16.mxu0 %v8977
      %9148 = vmatpush1.bf16.msra.mxu0 %v8976
      %9149 = vmatprep.subr.bf16.mxu0 %v8974
      %9150 = vmatpush1.bf16.msra.mxu0 %v8973
      %9151 = vmatprep.subr.bf16.mxu0 %v8971
      %9152 = vmatpush1.bf16.msra.mxu0 %v8970
      %9153 = vmatprep.subr.bf16.mxu0 %v8968
      %9154 = vmatpush1.bf16.msra.mxu0 %v8967
      %9155 = vmatprep.subr.bf16.mxu0 %v8965
      %9156 = vmatpush1.bf16.msra.mxu0 %v8964
      %9157 = vmatprep.subr.bf16.mxu0 %v8962
      %9158 = vmatpush1.bf16.msra.mxu0 %v8961
      %9159 = vmatprep.subr.bf16.mxu0 %v8959
      %9160 = vmatpush1.bf16.msra.mxu0 %v8958
      %9161 = vmatprep.subr.bf16.mxu0 %v8956
      %9162 = vmatpush1.bf16.msra.mxu0 %v8955
      %9163 = vmatprep.subr.bf16.mxu0 %v9001
      %9164 = vmatpush2.bf16.msra.mxu0 %v9000
      %9165 = vmatprep.subr.bf16.mxu0 %v8998
      %9166 = vmatpush2.bf16.msra.mxu0 %v8997
      %9167 = vmatprep.subr.bf16.mxu0 %v8995
      %9168 = vmatpush2.bf16.msra.mxu0 %v8994
      %9169 = vmatprep.subr.bf16.mxu0 %v8992
      %9170 = vmatpush2.bf16.msra.mxu0 %v8991
      %9171 = vmatprep.subr.bf16.mxu0 %v8989
      %9172 = vmatpush2.bf16.msra.mxu0 %v8988
      %9173 = vmatprep.subr.bf16.mxu0 %v8986
      %9174 = vmatpush2.bf16.msra.mxu0 %v8985
      %9175 = vmatprep.subr.bf16.mxu0 %v8983
      %9176 = vmatpush2.bf16.msra.mxu0 %v8982
      %9177 = vmatprep.subr.bf16.mxu0 %v8980
      %9178 = vmatpush2.bf16.msra.mxu0 %v8979
      %9179 = vmatprep.mubr.bf16.mxu0 %v6654
      %9180 = vmatmul.mubr.bf16.gmra.mxu0 %v6653
      %v9181 = vpop.f32.mrf.mxu0
      %v9182 = vadd.f32 0.0, %v9181
      %v9183 = vpop.f32.mrf.mxu0
      %v9184 = vadd.f32 0.0, %v9183
      %v9185 = vpop.f32.mrf.mxu0
      %v9186 = vadd.f32 0.0, %v9185
      %v9187 = vpop.f32.mrf.mxu0
      %v9188 = vadd.f32 0.0, %v9187
      %9189 = vmatprep.mubr.bf16.mxu0 %v6658
      %9190 = vmatmul.mubr.bf16.gmra.mxu0 %v6657
      %v9191 = vpop.f32.mrf.mxu0
      %v9192 = vadd.f32 0.0, %v9191
      %v9193 = vpop.f32.mrf.mxu0
      %v9194 = vadd.f32 0.0, %v9193
      %v9195 = vpop.f32.mrf.mxu0
      %v9196 = vadd.f32 0.0, %v9195
      %v9197 = vpop.f32.mrf.mxu0
      %v9198 = vadd.f32 0.0, %v9197
      %9199 = vmatprep.mubr.bf16.mxu0 %v6662
      %9200 = vmatmul.mubr.bf16.gmra.mxu0 %v6661
      %v9201 = vpop.f32.mrf.mxu0
      %v9202 = vadd.f32 0.0, %v9201
      %v9203 = vpop.f32.mrf.mxu0
      %v9204 = vadd.f32 0.0, %v9203
      %v9205 = vpop.f32.mrf.mxu0
      %v9206 = vadd.f32 0.0, %v9205
      %v9207 = vpop.f32.mrf.mxu0
      %v9208 = vadd.f32 0.0, %v9207
      %9209 = vmatprep.mubr.bf16.mxu0 %v8628
      %9210 = vmatmul.mubr.bf16.gmra.mxu0 %v8627
      %v9211 = vpop.f32.mrf.mxu0
      %v9212 = vadd.f32 0.0, %v9211
      %v9213 = vpop.f32.mrf.mxu0
      %v9214 = vadd.f32 0.0, %v9213
      %v9215 = vpop.f32.mrf.mxu0
      %v9216 = vadd.f32 0.0, %v9215
      %v9217 = vpop.f32.mrf.mxu0
      %v9218 = vadd.f32 0.0, %v9217
      %9219 = vdwg.mxu0
      %9220 = vmatprep.subr.bf16.mxu0 %v9025
      %9221 = vmatpush1.bf16.msra.mxu0 %v9024
      %9222 = vmatprep.subr.bf16.mxu0 %v9022
      %9223 = vmatpush1.bf16.msra.mxu0 %v9021
      %9224 = vmatprep.subr.bf16.mxu0 %v9019
      %9225 = vmatpush1.bf16.msra.mxu0 %v9018
      %9226 = vmatprep.subr.bf16.mxu0 %v9016
      %9227 = vmatpush1.bf16.msra.mxu0 %v9015
      %9228 = vmatprep.subr.bf16.mxu0 %v9013
      %9229 = vmatpush1.bf16.msra.mxu0 %v9012
      %9230 = vmatprep.subr.bf16.mxu0 %v9010
      %9231 = vmatpush1.bf16.msra.mxu0 %v9009
      %9232 = vmatprep.subr.bf16.mxu0 %v9007
      %9233 = vmatpush1.bf16.msra.mxu0 %v9006
      %9234 = vmatprep.subr.bf16.mxu0 %v9004
      %9235 = vmatpush1.bf16.msra.mxu0 %v9003
      %9236 = vmatprep.subr.bf16.mxu0 %v9049
      %9237 = vmatpush2.bf16.msra.mxu0 %v9048
      %9238 = vmatprep.subr.bf16.mxu0 %v9046
      %9239 = vmatpush2.bf16.msra.mxu0 %v9045
      %9240 = vmatprep.subr.bf16.mxu0 %v9043
      %9241 = vmatpush2.bf16.msra.mxu0 %v9042
      %9242 = vmatprep.subr.bf16.mxu0 %v9040
      %9243 = vmatpush2.bf16.msra.mxu0 %v9039
      %9244 = vmatprep.subr.bf16.mxu0 %v9037
      %9245 = vmatpush2.bf16.msra.mxu0 %v9036
      %9246 = vmatprep.subr.bf16.mxu0 %v9034
      %9247 = vmatpush2.bf16.msra.mxu0 %v9033
      %9248 = vmatprep.subr.bf16.mxu0 %v9031
      %9249 = vmatpush2.bf16.msra.mxu0 %v9030
      %9250 = vmatprep.subr.bf16.mxu0 %v9028
      %9251 = vmatpush2.bf16.msra.mxu0 %v9027
      %9252 = vmatprep.mubr.bf16.mxu0 %v6656
      %9253 = vmatmul.mubr.bf16.gmra.mxu0 %v6655
      %v9254 = vpop.f32.mrf.mxu0
      %v9255 = vadd.f32 %v9182, %v9254
      %v9256 = vpop.f32.mrf.mxu0
      %v9257 = vadd.f32 %v9184, %v9256
      %v9258 = vpop.f32.mrf.mxu0
      %v9259 = vadd.f32 %v9186, %v9258
      %v9260 = vpop.f32.mrf.mxu0
      %v9261 = vadd.f32 %v9188, %v9260
      %9262 = vmatprep.mubr.bf16.mxu0 %v6660
      %9263 = vmatmul.mubr.bf16.gmra.mxu0 %v6659
      %v9264 = vpop.f32.mrf.mxu0
      %v9265 = vadd.f32 %v9192, %v9264
      %v9266 = vpop.f32.mrf.mxu0
      %v9267 = vadd.f32 %v9194, %v9266
      %v9268 = vpop.f32.mrf.mxu0
      %v9269 = vadd.f32 %v9196, %v9268
      %v9270 = vpop.f32.mrf.mxu0
      %v9271 = vadd.f32 %v9198, %v9270
      %9272 = vmatprep.mubr.bf16.mxu0 %v6664
      %9273 = vmatmul.mubr.bf16.gmra.mxu0 %v6663
      %v9274 = vpop.f32.mrf.mxu0
      %v9275 = vadd.f32 %v9202, %v9274
      %v9276 = vpop.f32.mrf.mxu0
      %v9277 = vadd.f32 %v9204, %v9276
      %v9278 = vpop.f32.mrf.mxu0
      %v9279 = vadd.f32 %v9206, %v9278
      %v9280 = vpop.f32.mrf.mxu0
      %v9281 = vadd.f32 %v9208, %v9280
      %9282 = vmatprep.mubr.bf16.mxu0 %v8630
      %9283 = vmatmul.mubr.bf16.gmra.mxu0 %v8629
      %v9284 = vpop.f32.mrf.mxu0
      %v9285 = vadd.f32 %v9212, %v9284
      %v9286 = vpop.f32.mrf.mxu0
      %v9287 = vadd.f32 %v9214, %v9286
      %v9288 = vpop.f32.mrf.mxu0
      %v9289 = vadd.f32 %v9216, %v9288
      %v9290 = vpop.f32.mrf.mxu0
      %v9291 = vadd.f32 %v9218, %v9290
      %9292 = vdwg.mxu0
      %9293 = vmatprep.subr.bf16.mxu0 0
      %9294 = vmatpush1.bf16.msra.mxu0 %v8978
      %9295 = vmatprep.subr.bf16.mxu0 0
      %9296 = vmatpush1.bf16.msra.mxu0 %v8975
      %9297 = vmatprep.subr.bf16.mxu0 0
      %9298 = vmatpush1.bf16.msra.mxu0 %v8972
      %9299 = vmatprep.subr.bf16.mxu0 0
      %9300 = vmatpush1.bf16.msra.mxu0 %v8969
      %9301 = vmatprep.subr.bf16.mxu0 0
      %9302 = vmatpush1.bf16.msra.mxu0 %v8966
      %9303 = vmatprep.subr.bf16.mxu0 0
      %9304 = vmatpush1.bf16.msra.mxu0 %v8963
      %9305 = vmatprep.subr.bf16.mxu0 0
      %9306 = vmatpush1.bf16.msra.mxu0 %v8960
      %9307 = vmatprep.subr.bf16.mxu0 0
      %9308 = vmatpush1.bf16.msra.mxu0 %v8957
      %9309 = vmatprep.subr.bf16.mxu0 0
      %9310 = vmatpush2.bf16.msra.mxu0 %v9002
      %9311 = vmatprep.subr.bf16.mxu0 0
      %9312 = vmatpush2.bf16.msra.mxu0 %v8999
      %9313 = vmatprep.subr.bf16.mxu0 0
      %9314 = vmatpush2.bf16.msra.mxu0 %v8996
      %9315 = vmatprep.subr.bf16.mxu0 0
      %9316 = vmatpush2.bf16.msra.mxu0 %v8993
      %9317 = vmatprep.subr.bf16.mxu0 0
      %9318 = vmatpush2.bf16.msra.mxu0 %v8990
      %9319 = vmatprep.subr.bf16.mxu0 0
      %9320 = vmatpush2.bf16.msra.mxu0 %v8987
      %9321 = vmatprep.subr.bf16.mxu0 0
      %9322 = vmatpush2.bf16.msra.mxu0 %v8984
      %9323 = vmatprep.subr.bf16.mxu0 0
      %9324 = vmatpush2.bf16.msra.mxu0 %v8981
      %9325 = vmatprep.mubr.bf16.mxu0 %v6654
      %9326 = vmatmul.mubr.bf16.gmra.mxu0 %v6653
      %v9327 = vpop.f32.mrf.mxu0
      %v9328 = vadd.f32 0.0, %v9327
      %v9329 = vpop.f32.mrf.mxu0
      %v9330 = vpop.f32.mrf.mxu0
      %v9331 = vadd.f32 0.0, %v9330
      %v9332 = vpop.f32.mrf.mxu0
      %9333 = vmatprep.mubr.bf16.mxu0 %v6658
      %9334 = vmatmul.mubr.bf16.gmra.mxu0 %v6657
      %v9335 = vpop.f32.mrf.mxu0
      %v9336 = vadd.f32 0.0, %v9335
      %v9337 = vpop.f32.mrf.mxu0
      %v9338 = vpop.f32.mrf.mxu0
      %v9339 = vadd.f32 0.0, %v9338
      %v9340 = vpop.f32.mrf.mxu0
      %9341 = vmatprep.mubr.bf16.mxu0 %v6662
      %9342 = vmatmul.mubr.bf16.gmra.mxu0 %v6661
      %v9343 = vpop.f32.mrf.mxu0
      %v9344 = vadd.f32 0.0, %v9343
      %v9345 = vpop.f32.mrf.mxu0
      %v9346 = vpop.f32.mrf.mxu0
      %v9347 = vadd.f32 0.0, %v9346
      %v9348 = vpop.f32.mrf.mxu0
      %9349 = vmatprep.mubr.bf16.mxu0 %v8628
      %9350 = vmatmul.mubr.bf16.gmra.mxu0 %v8627
      %v9351 = vpop.f32.mrf.mxu0
      %v9352 = vadd.f32 0.0, %v9351
      %v9353 = vpop.f32.mrf.mxu0
      %v9354 = vpop.f32.mrf.mxu0
      %v9355 = vadd.f32 0.0, %v9354
      %v9356 = vpop.f32.mrf.mxu0
      %9357 = vdwg.mxu0
      %9358 = vmatprep.subr.bf16.mxu0 0
      %9359 = vmatpush1.bf16.msra.mxu0 %v9026
      %9360 = vmatprep.subr.bf16.mxu0 0
      %9361 = vmatpush1.bf16.msra.mxu0 %v9023
      %9362 = vmatprep.subr.bf16.mxu0 0
      %9363 = vmatpush1.bf16.msra.mxu0 %v9020
      %9364 = vmatprep.subr.bf16.mxu0 0
      %9365 = vmatpush1.bf16.msra.mxu0 %v9017
      %9366 = vmatprep.subr.bf16.mxu0 0
      %9367 = vmatpush1.bf16.msra.mxu0 %v9014
      %9368 = vmatprep.subr.bf16.mxu0 0
      %9369 = vmatpush1.bf16.msra.mxu0 %v9011
      %9370 = vmatprep.subr.bf16.mxu0 0
      %9371 = vmatpush1.bf16.msra.mxu0 %v9008
      %9372 = vmatprep.subr.bf16.mxu0 0
      %9373 = vmatpush1.bf16.msra.mxu0 %v9005
      %9374 = vmatprep.subr.bf16.mxu0 0
      %9375 = vmatpush2.bf16.msra.mxu0 %v9050
      %9376 = vmatprep.subr.bf16.mxu0 0
      %9377 = vmatpush2.bf16.msra.mxu0 %v9047
      %9378 = vmatprep.subr.bf16.mxu0 0
      %9379 = vmatpush2.bf16.msra.mxu0 %v9044
      %9380 = vmatprep.subr.bf16.mxu0 0
      %9381 = vmatpush2.bf16.msra.mxu0 %v9041
      %9382 = vmatprep.subr.bf16.mxu0 0
      %9383 = vmatpush2.bf16.msra.mxu0 %v9038
      %9384 = vmatprep.subr.bf16.mxu0 0
      %9385 = vmatpush2.bf16.msra.mxu0 %v9035
      %9386 = vmatprep.subr.bf16.mxu0 0
      %9387 = vmatpush2.bf16.msra.mxu0 %v9032
      %9388 = vmatprep.subr.bf16.mxu0 0
      %9389 = vmatpush2.bf16.msra.mxu0 %v9029
      %9390 = vmatprep.mubr.bf16.mxu0 %v6656
      %9391 = vmatmul.mubr.bf16.gmra.mxu0 %v6655
      %v9392 = vpop.f32.mrf.mxu0
      %v9393 = vadd.f32 %v9328, %v9392
      %v9394 = vpop.f32.mrf.mxu0
      %v9395 = vpop.f32.mrf.mxu0
      %v9396 = vadd.f32 %v9331, %v9395
      %v9397 = vpop.f32.mrf.mxu0
      %9398 = vmatprep.mubr.bf16.mxu0 %v6660
      %9399 = vmatmul.mubr.bf16.gmra.mxu0 %v6659
      %v9400 = vpop.f32.mrf.mxu0
      %v9401 = vadd.f32 %v9336, %v9400
      %v9402 = vpop.f32.mrf.mxu0
      %v9403 = vpop.f32.mrf.mxu0
      %v9404 = vadd.f32 %v9339, %v9403
      %v9405 = vpop.f32.mrf.mxu0
      %9406 = vmatprep.mubr.bf16.mxu0 %v6664
      %9407 = vmatmul.mubr.bf16.gmra.mxu0 %v6663
      %v9408 = vpop.f32.mrf.mxu0
      %v9409 = vadd.f32 %v9344, %v9408
      %v9410 = vpop.f32.mrf.mxu0
      %v9411 = vpop.f32.mrf.mxu0
      %v9412 = vadd.f32 %v9347, %v9411
      %v9413 = vpop.f32.mrf.mxu0
      %9414 = vmatprep.mubr.bf16.mxu0 %v8630
      %9415 = vmatmul.mubr.bf16.gmra.mxu0 %v8629
      %v9416 = vpop.f32.mrf.mxu0
      %v9417 = vadd.f32 %v9352, %v9416
      %v9418 = vpop.f32.mrf.mxu0
      %v9419 = vpop.f32.mrf.mxu0
      %v9420 = vadd.f32 %v9355, %v9419
      %v9421 = vpop.f32.mrf.mxu0
      %9422 = vdwg.mxu0
      %v9423 = vadd.f32 %v8458, %v9255
      %v9424 = vadd.f32 %v8459, %v9257
      %v9425 = vadd.f32 %v8460, %v9393
      %v9426 = vadd.f32 %v8461, %v9259
      %v9427 = vadd.f32 %v8462, %v9261
      %v9428 = vadd.f32 %v8463, %v9396
      %v9429 = vadd.f32 %v8464, %v9265
      %v9430 = vadd.f32 %v8465, %v9267
      %v9431 = vadd.f32 %v8466, %v9401
      %v9432 = vadd.f32 %v8467, %v9269
      %v9433 = vadd.f32 %v8468, %v9271
      %v9434 = vadd.f32 %v8469, %v9404
      %v9435 = vadd.f32 %v8470, %v9275
      %v9436 = vadd.f32 %v8471, %v9277
      %v9437 = vadd.f32 %v8472, %v9409
      %v9438 = vadd.f32 %v8473, %v9279
      %v9439 = vadd.f32 %v8474, %v9281
      %v9440 = vadd.f32 %v8475, %v9412
      %v9441 = vadd.f32 %v8476, %v9285
      %v9442 = vadd.f32 %v8477, %v9287
      %v9443 = vadd.f32 %v8478, %v9417
      %v9444 = vadd.f32 %v8479, %v9289
      %v9445 = vadd.f32 %v8480, %v9291
      %v9446 = vadd.f32 %v8481, %v9420
      %9447 = vst [vmem:[%s178] sm:$0xff] %v9423
      %9448 = vst [vmem:[%s178 + $0x8] sm:$0xff] %v9424
      %9449 = vst [vmem:[%s178 + $0x10] sm:$0xff] %v9425
      %9450 = vst [vmem:[%s178 + $0x18] sm:$0xff] %v9426
      %9451 = vst [vmem:[%s178 + $0x20] sm:$0xff] %v9427
      %9452 = vst [vmem:[%s178 + $0x28] sm:$0xff] %v9428
      %9453 = vst [vmem:[%s178 + $0x30] sm:$0xff] %v9429
      %9454 = vst [vmem:[%s178 + $0x38] sm:$0xff] %v9430
      %9455 = vst [vmem:[%s178 + $0x40] sm:$0xff] %v9431
      %9456 = vst [vmem:[%s178 + $0x48] sm:$0xff] %v9432
      %9457 = vst [vmem:[%s178 + $0x50] sm:$0xff] %v9433
      %9458 = vst [vmem:[%s178 + $0x58] sm:$0xff] %v9434
      %9459 = vst [vmem:[%s178 + $0x60] sm:$0xff] %v9435
      %9460 = vst [vmem:[%s178 + $0x68] sm:$0xff] %v9436
      %9461 = vst [vmem:[%s178 + $0x70] sm:$0xff] %v9437
      %9462 = vst [vmem:[%s178 + $0x78] sm:$0xff] %v9438
      %9463 = vst [vmem:[%s178 + $0x80] sm:$0xff] %v9439
      %9464 = vst [vmem:[%s178 + $0x88] sm:$0xff] %v9440
      %9465 = vst [vmem:[%s178 + $0x90] sm:$0xff] %v9441
      %9466 = vst [vmem:[%s178 + $0x98] sm:$0xff] %v9442
      %9467 = vst [vmem:[%s178 + $0xa0] sm:$0xff] %v9443
      %9468 = vst [vmem:[%s178 + $0xa8] sm:$0xff] %v9444
      %9469 = vst [vmem:[%s178 + $0xb0] sm:$0xff] %v9445
      %9470 = vst [vmem:[%s178 + $0xb8] sm:$0xff] %v9446
      %v9471 = vadd.f32 %v9423, %v9426
      %v9472 = vadd.f32 %v9471, %v9429
      %v9473 = vadd.f32 %v9472, %v9432
      %v9474 = vadd.f32 %v9473, %v9435
      %v9475 = vadd.f32 %v9474, %v9438
      %v9476 = vadd.f32 %v9475, %v9441
      %v9477 = vadd.f32 %v9476, %v9444
      %v9478 = vrot.slane %v9477, 4
      %v9479 = vadd.f32 %v9477, %v9478
      %v9480 = vrot.slane %v9479, 2
      %v9481 = vadd.f32 %v9479, %v9480
      %v9482 = vrot.slane %v9481, 1
      %v9483 = vadd.f32 %v9481, %v9482
      %v9484 = vadd.f32 %v9424, %v9427
      %v9485 = vadd.f32 %v9484, %v9430
      %v9486 = vadd.f32 %v9485, %v9433
      %v9487 = vadd.f32 %v9486, %v9436
      %v9488 = vadd.f32 %v9487, %v9439
      %v9489 = vadd.f32 %v9488, %v9442
      %v9490 = vadd.f32 %v9489, %v9445
      %v9491 = vrot.slane %v9490, 4
      %v9492 = vadd.f32 %v9490, %v9491
      %v9493 = vrot.slane %v9492, 2
      %v9494 = vadd.f32 %v9492, %v9493
      %v9495 = vrot.slane %v9494, 1
      %v9496 = vadd.f32 %v9494, %v9495
      %v9497 = vadd.f32 %v9425, %v9428
      %v9498 = vadd.f32 %v9497, %v9431
      %v9499 = vadd.f32 %v9498, %v9434
      %v9500 = vadd.f32 %v9499, %v9437
      %v9501 = vadd.f32 %v9500, %v9440
      %v9502 = vadd.f32 %v9501, %v9443
      %v9503 = vadd.f32 %v9502, %v9446
      %v9504 = vrot.slane %v9503, 4
      %v9505 = vadd.f32 %v9503, %v9504
      %v9506 = vrot.slane %v9505, 2
      %v9507 = vadd.f32 %v9505, %v9506
      %v9508 = vrot.slane %v9507, 1
      %v9509 = vadd.f32 %v9507, %v9508
      %v9510 = vmul.f32 %v9423, %v9423
      %v9511 = vmul.f32 %v9424, %v9424
      %v9512 = vmul.f32 %v9425, %v9425
      %v9513 = vmul.f32 %v9426, %v9426
      %v9514 = vmul.f32 %v9427, %v9427
      %v9515 = vmul.f32 %v9428, %v9428
      %v9516 = vmul.f32 %v9429, %v9429
      %v9517 = vmul.f32 %v9430, %v9430
      %v9518 = vmul.f32 %v9431, %v9431
      %v9519 = vmul.f32 %v9432, %v9432
      %v9520 = vmul.f32 %v9433, %v9433
      %v9521 = vmul.f32 %v9434, %v9434
      %v9522 = vmul.f32 %v9435, %v9435
      %v9523 = vmul.f32 %v9436, %v9436
      %v9524 = vmul.f32 %v9437, %v9437
      %v9525 = vmul.f32 %v9438, %v9438
      %v9526 = vmul.f32 %v9439, %v9439
      %v9527 = vmul.f32 %v9440, %v9440
      %v9528 = vmul.f32 %v9441, %v9441
      %v9529 = vmul.f32 %v9442, %v9442
      %v9530 = vmul.f32 %v9443, %v9443
      %v9531 = vmul.f32 %v9444, %v9444
      %v9532 = vmul.f32 %v9445, %v9445
      %v9533 = vmul.f32 %v9446, %v9446
      %v9534 = vadd.f32 %v9510, %v9513
      %v9535 = vadd.f32 %v9534, %v9516
      %v9536 = vadd.f32 %v9535, %v9519
      %v9537 = vadd.f32 %v9536, %v9522
      %v9538 = vadd.f32 %v9537, %v9525
      %v9539 = vadd.f32 %v9538, %v9528
      %v9540 = vadd.f32 %v9539, %v9531
      %v9541 = vrot.slane %v9540, 4
      %v9542 = vadd.f32 %v9540, %v9541
      %v9543 = vrot.slane %v9542, 2
      %v9544 = vadd.f32 %v9542, %v9543
      %v9545 = vrot.slane %v9544, 1
      %v9546 = vadd.f32 %v9544, %v9545
      %v9547 = vadd.f32 %v9511, %v9514
      %v9548 = vadd.f32 %v9547, %v9517
      %v9549 = vadd.f32 %v9548, %v9520
      %v9550 = vadd.f32 %v9549, %v9523
      %v9551 = vadd.f32 %v9550, %v9526
      %v9552 = vadd.f32 %v9551, %v9529
      %v9553 = vadd.f32 %v9552, %v9532
      %v9554 = vrot.slane %v9553, 4
      %v9555 = vadd.f32 %v9553, %v9554
      %v9556 = vrot.slane %v9555, 2
      %v9557 = vadd.f32 %v9555, %v9556
      %v9558 = vrot.slane %v9557, 1
      %v9559 = vadd.f32 %v9557, %v9558
      %v9560 = vadd.f32 %v9512, %v9515
      %v9561 = vadd.f32 %v9560, %v9518
      %v9562 = vadd.f32 %v9561, %v9521
      %v9563 = vadd.f32 %v9562, %v9524
      %v9564 = vadd.f32 %v9563, %v9527
      %v9565 = vadd.f32 %v9564, %v9530
      %v9566 = vadd.f32 %v9565, %v9533
      %v9567 = vrot.slane %v9566, 4
      %v9568 = vadd.f32 %v9566, %v9567
      %v9569 = vrot.slane %v9568, 2
      %v9570 = vadd.f32 %v9568, %v9569
      %v9571 = vrot.slane %v9570, 1
      %v9572 = vadd.f32 %v9570, %v9571
      %vm9573 = vcmask 1040384
      %v9574 = vsel %vm9573, %v9483, %v9546
      %v9575 = vsel %vm9573, %v9496, %v9559
      %v9576 = vsel %vm9573, %v9509, %v9572
      %v9580 = vcombine.low %v9574, %v9575
      %v9582 = vunpack.c.l.s4 1983009808
      %v9583 = vunpack.c.0.s8 %v9582
      %v9584 = vlaneseq
      %v9585 = vshrl.u32 %v9584, 7
      %v9586 = vsub.s32 %v9583, %v9585
      %v9587 = vrot.slane %v9580, %v9586
      %v9589 = vunpack.c.l.s4 1983009808
      %v9590 = vunpack.c.0.s8 %v9589
      %v9591 = vlaneseq
      %v9592 = vshrl.u32 %v9591, 7
      %v9593 = vsub.s32 %v9590, %v9592
      %v9594 = vrot.slane %v9576, %v9593
      %v9595 = vcombine.low %v9587, %v9594
      %9597 = vst [vmem:[%s183] sm:$0x3f] %v9595
      %p9598 = scmp.lt.s32.totalorder %s15, 1
      %s9599 = scalar_select %p9598, %s15, 1
      %s9600 = smul.addr %s9599, 24
      %s9601 = smul.addr %s9600, 8
      %s9602 = scalar_lea.vmem %s2, %s9601
      %p9603 = scmp.lt.s32.totalorder %s15, 1
      %s9604 = scalar_select %p9603, %s15, 1
      %s9605 = smul.addr %s9604, 3
      %s9606 = smul.addr %s9605, 2
      %s9607 = scalar_lea.vmem %s3, %s9606
      // Predicated region
      $region29: #{dimension_adapter.2} parent=27 // pred_check
        %p9608 = pneg %p80
      $region30: #{dimension_adapter.2} parent=27 // pred_check_branch
        %9610 = sbr.rel (%p9608) target = $region32
      $region31: #{dimension_adapter.2} parent=27 // pred_region
        _
      $region32: #{dimension_adapter.2} parent=27 // pred_fallthru
        _
      // Predicated region
      $region33: #{dimension_adapter.2} parent=27 // pred_check
        %p9611 = pneg %p106
      $region34: #{dimension_adapter.2} parent=27 // pred_check_branch
        %9613 = sbr.rel (%p9611) target = $region36
      $region35: #{dimension_adapter.2} parent=27 // pred_region
        _
      $region36: #{dimension_adapter.2} parent=27 // pred_fallthru
        _
    $region28: #{dimension_adapter.2} parent=5 // pred_fallthru
      _
    %p9614 = scmp.le.s32.totalorder 2, %s10
    // Predicated region
    $region37: #{dimension_adapter.2} parent=5 // pred_check
      %p9615 = pneg %p9614
    $region38: #{dimension_adapter.2} parent=5 // pred_check_branch
      %9617 = sbr.rel (%p9615) target = $region40
    $region39: #{dimension_adapter.2} parent=5 // pred_region
      %s9618 = ssub.s32 %s10, 2
      // Predicated region
      $region41: #{dimension_adapter.2} parent=39 // pred_check
        %p9619 = pneg %p86
      $region42: #{dimension_adapter.2} parent=39 // pred_check_branch
        %9621 = sbr.rel (%p9619) target = $region44
      $region43: #{dimension_adapter.2} parent=39 // pred_region
        %p9622 = scmp.lt.s32.totalorder %s16, 1
        %s9623 = scalar_select %p9622, %s16, 1
        %s9624 = smul.addr %s9623, 24
        %s9625 = smul.addr %s9624, 8
        %s9626 = scalar_lea.vmem %s2, %s9625
      $region44: #{dimension_adapter.2} parent=39 // pred_fallthru
        _
      // Predicated region
      $region45: #{dimension_adapter.2} parent=39 // pred_check
        %p9627 = pneg %p112
      $region46: #{dimension_adapter.2} parent=39 // pred_check_branch
        %9629 = sbr.rel (%p9627) target = $region48
      $region47: #{dimension_adapter.2} parent=39 // pred_region
        %p9630 = scmp.lt.s32.totalorder %s16, 1
        %s9631 = scalar_select %p9630, %s16, 1
        %s9632 = smul.addr %s9631, 3
        %s9633 = smul.addr %s9632, 2
        %s9634 = scalar_lea.vmem %s3, %s9633
      $region48: #{dimension_adapter.2} parent=39 // pred_fallthru
        _
    $region40: #{dimension_adapter.2} parent=5 // pred_fallthru
      _
  $region6: #{dimension_adapter.2} parent=0 // loop_footer
    %s14 = sadd.s32 1, %s10
  $region7: #{dimension_adapter.2} parent=0 // loop_footer_branch
    %9 = sbr.rel target = $region3
  $region8: #{dimension_adapter.2} parent=0 // loop_exit
    _

</llo_original>
